<compile_context>
chip_gen: v5e
topology: v5e:2x2
jax: 0.10.0
libtpu: 0.0.40
codegen_flags: <defaults>
</compile_context>

<pallas_src>
import math
import functools

import jax
import jax.numpy as jnp
from jax.experimental import pallas as pl
from jax.experimental.pallas import tpu as pltpu


TARGET_ROWS = 4096      # anchor rows per grid step; worst-case per-step VMEM ~< 10 MiB
                        # (fits the default scoped VMEM on v5e/v6e/v7x)


def _round_up(x, m):
    return (x + m - 1) // m * m


def _cin_pad(cin):
    # pad input channels to a packed-sublane-friendly multiple (16 covers bf16 packing)
    return _round_up(max(cin, 16), 16)


def _pick_tn(n, ranc, target_rows=TARGET_ROWS):
    """Images per grid step: ~target_rows anchor rows, grid length >= 2, divides n."""
    tn = max(1, min(n, target_rows // max(ranc, 1)))
    if n >= 2:
        tn = min(tn, n // 2)
    tn = max(tn, 1)
    while n % tn:
        tn -= 1
    return tn


# ----------------------------- Pallas kernels ------------------------------


def _conv3x3_kernel(*refs, taps, ranc, cin, relu, has_res):
    """Direct 3x3 conv: 9 shifted-row-window matmuls + folded-BN bias [+ residual] + ReLU.

    x_ref: (tn, Rtot, cin)  bf16  spatially pre-padded, row-flattened activation
    w_ref: (9*cin, cout)    bf16  BN-folded weights, tap-major rows
    b_ref: (1, cout)        f32   BN-folded bias
    r_ref: (tn*ranc, cout)  bf16  optional residual in anchor-row layout
    o_ref: (tn*ranc, cout)  bf16  conv output in anchor-row layout
    """
    if has_res:
        x_ref, w_ref, b_ref, r_ref, o_ref = refs
    else:
        x_ref, w_ref, b_ref, o_ref = refs
        r_ref = None
    tn = x_ref.shape[0]
    cout = o_ref.shape[-1]
    m = tn * ranc

    acc = jnp.zeros((m, cout), jnp.float32)
    for t, d in enumerate(taps):                       # unrolled, 9 taps
        xs = x_ref[:, d:d + ranc, :]                   # (tn, ranc, cin) shifted slab
        xs = xs.reshape(m, cin)
        wt = w_ref[t * cin:(t + 1) * cin, :]           # (cin, cout)
        acc = acc + jnp.dot(xs, wt, preferred_element_type=jnp.float32)

    acc = acc + b_ref[...]
    if has_res:
        acc = acc + r_ref[...].astype(jnp.float32)
    if relu:
        acc = jnp.maximum(acc, 0.0)
    o_ref[...] = acc.astype(o_ref.dtype)


def _pool_fc_kernel(x_ref, w_ref, b_ref, o_ref, *, inv_hw):
    # Fused AdaptiveAvgPool2d((1,1)) + Linear: x (tb, HW, C) bf16, w (C, Ncp) bf16.
    feats = jnp.sum(x_ref[...].astype(jnp.float32), axis=1) * inv_hw   # (tb, C) f32
    acc = jnp.dot(feats.astype(jnp.bfloat16), w_ref[...],
                  preferred_element_type=jnp.float32)
    o_ref[...] = acc + b_ref[...]


# ------------------------------- conv wrapper -------------------------------


def conv3x3_bn(x, wmat, bias, stride, cout, relu=True, residual=None):
    """3x3 conv (pad=1, no conv bias) + folded BN + optional residual + ReLU.

    x:        (N, H, W, Cin) bf16 activation
    wmat:     (9*cin_pad, cout) bf16 (BN folded, tap-major)
    bias:     (1, cout) f32
    residual: (N, Ho, Wo, cout) bf16 or None
    returns:  (N, Ho, Wo, cout) bf16
    """
    N, H, W, cin = x.shape
    cin_p = _cin_pad(cin)
    assert wmat.shape == (9 * cin_p, cout) and bias.shape == (1, cout)

    # Channel pad + spatial zero pad: top/left/right 1, bottom 3 (the extra bottom rows
    # keep the reads issued by trailing "garbage" anchor rows inside the block).
    xp = jnp.pad(x, ((0, 0), (1, 3), (1, 1), (0, cin_p - cin)))
    Hp, Wp = H + 4, W + 2

    if stride == 1:
        Ho, Wo, Wanc = H, W, Wp
        ranc = _round_up(Ho * Wanc, 8)                 # anchor rows per image
        taps = tuple(i * Wp + j for i in range(3) for j in range(3))
        xflat = xp.reshape(N, Hp * Wp, cin_p)
        need = ranc + max(taps)
        if need > xflat.shape[1]:
            xflat = jnp.pad(xflat, ((0, 0), (0, need - xflat.shape[1]), (0, 0)))
    else:
        assert stride == 2 and H % 2 == 0 and W % 2 == 0
        Ho, Wo = H // 2, W // 2
        Hh, Wq = Hp // 2, Wp // 2
        Wanc = Wq
        ranc = _round_up(Ho * Wanc, 8)
        rph = max(Hh * Wq, ranc + Wq + 1)              # rows per even/odd phase segment
        segs = []
        for p in range(2):
            for q in range(2):
                ph = xp[:, p::2, q::2, :].reshape(N, Hh * Wq, cin_p)
                if rph > Hh * Wq:
                    ph = jnp.pad(ph, ((0, 0), (0, rph - Hh * Wq), (0, 0)))
                segs.append(ph)
        xflat = jnp.concatenate(segs, axis=1)          # (N, 4*rph, cin_p)
        taps = tuple(((i % 2) * 2 + (j % 2)) * rph + (i // 2) * Wq + (j // 2)
                     for i in range(3) for j in range(3))

    Rtot = xflat.shape[1]
    tn = _pick_tn(N, ranc)
    grid = (N // tn,)

    in_specs = [
        pl.BlockSpec((tn, Rtot, cin_p), lambda i: (i, 0, 0)),
        pl.BlockSpec((9 * cin_p, cout), lambda i: (0, 0)),
        pl.BlockSpec((1, cout), lambda i: (0, 0)),
    ]
    args = [xflat, wmat, bias]

    has_res = residual is not None
    if has_res:
        r = jnp.pad(residual.astype(jnp.bfloat16),
                    ((0, 0), (0, 0), (0, Wanc - Wo), (0, 0)))
        r = r.reshape(N, Ho * Wanc, cout)
        if ranc > Ho * Wanc:
            r = jnp.pad(r, ((0, 0), (0, ranc - Ho * Wanc), (0, 0)))
        args.append(r.reshape(N * ranc, cout))
        in_specs.append(pl.BlockSpec((tn * ranc, cout), lambda i: (i, 0)))

    out2d = pl.pallas_call(
        functools.partial(_conv3x3_kernel, taps=taps, ranc=ranc, cin=cin_p,
                          relu=relu, has_res=has_res),
        grid=grid,
        in_specs=in_specs,
        out_specs=pl.BlockSpec((tn * ranc, cout), lambda i: (i, 0)),
        out_shape=jax.ShapeDtypeStruct((N * ranc, cout), jnp.bfloat16),
        compiler_params=pltpu.CompilerParams(dimension_semantics=("parallel",)),
    )(*args)

    # strip garbage anchors (rows beyond Ho*Wanc, columns beyond Wo)
    out = out2d.reshape(N, ranc, cout)[:, :Ho * Wanc, :]
    return out.reshape(N, Ho, Wanc, cout)[:, :, :Wo, :]


def avgpool_fc(x_nhwc, fc_w, fc_b, num_classes):
    """Fused AdaptiveAvgPool2d((1,1)) + Linear head (batch-tiled)."""
    N, H, W, C = x_nhwc.shape
    hw = H * W
    ncp = fc_w.shape[1]
    x3 = x_nhwc.reshape(N, hw, C)
    if N > 8 and N % 8 == 0:
        tb = 8
        while tb * 2 <= min(N, 256) and N % (tb * 2) == 0:
            tb *= 2
    else:
        tb = N
    out = pl.pallas_call(
        functools.partial(_pool_fc_kernel, inv_hw=1.0 / hw),
        grid=(N // tb,),
        in_specs=[pl.BlockSpec((tb, hw, C), lambda i: (i, 0, 0)),
                  pl.BlockSpec((C, ncp), lambda i: (0, 0)),
                  pl.BlockSpec((1, ncp), lambda i: (0, 0))],
        out_specs=pl.BlockSpec((tb, ncp), lambda i: (i, 0)),
        out_shape=jax.ShapeDtypeStruct((N, ncp), jnp.float32),
        compiler_params=pltpu.CompilerParams(dimension_semantics=("parallel",)),
    )(x3, fc_w, fc_b)
    return out[:, :num_classes]


# ---------------------------- parameter init -------------------------------


def kaiming_conv(key, cin, cout, kh=3, kw=3):
    fan_in = cin * kh * kw
    std = math.sqrt(2.0 / fan_in)
    return std * jax.random.normal(key, (kh, kw, cin, cout), jnp.float32)


def fold_bn(w, gamma, beta, mean, var, eps=1e-5):
    """Fold eval-mode BN into the conv weight; pad Cin to a sublane multiple."""
    kh, kw, cin, cout = w.shape
    scale = gamma / jnp.sqrt(var + eps)
    bias = beta - mean * scale
    w = w * scale[None, None, None, :]
    cin_p = _cin_pad(cin)
    if cin_p != cin:
        w = jnp.pad(w, ((0, 0), (0, 0), (0, cin_p - cin), (0, 0)))
    wmat = w.reshape(kh * kw * cin_p, cout).astype(jnp.bfloat16)
    bvec = bias.astype(jnp.float32).reshape(1, cout)
    return wmat, bvec


def bn_identity(c):
    # PyTorch BatchNorm2d defaults (eval mode): gamma=1, beta=0, mean=0, var=1
    return (jnp.ones((c,), jnp.float32), jnp.zeros((c,), jnp.float32),
            jnp.zeros((c,), jnp.float32), jnp.ones((c,), jnp.float32))


def init_resnet_s(key, num_blocks=(1, 1, 1), num_classes=10):
    keys = iter(jax.random.split(key, 64))
    nk = lambda: next(keys)

    params = {}
    params["w1"], params["b1"] = fold_bn(kaiming_conv(nk(), 3, 16), *bn_identity(16))

    in_planes = 16
    layers = []
    for planes, nb, stride0 in zip((16, 32, 64), num_blocks, (1, 2, 2)):
        strides = [stride0] + [1] * (nb - 1)
        layer = []
        for s in strides:
            wa, ba = fold_bn(kaiming_conv(nk(), in_planes, planes), *bn_identity(planes))
            wb, bb = fold_bn(kaiming_conv(nk(), planes, planes), *bn_identity(planes))
            layer.append({"w1": wa, "b1": ba, "w2": wb, "b2": bb,
                          "stride": s, "in_planes": in_planes, "planes": planes})
            in_planes = planes
        layers.append(layer)
    params["layers"] = layers

    # Linear(64, num_classes): kaiming_normal_ weight (via _weights_init), default bias.
    fan_in = 64
    fc_w = math.sqrt(2.0 / fan_in) * jax.random.normal(nk(), (64, num_classes), jnp.float32)
    bound = 1.0 / math.sqrt(fan_in)
    fc_b = jax.random.uniform(nk(), (num_classes,), jnp.float32, -bound, bound)
    ncp = _round_up(num_classes, 128)
    params["fc_w"] = jnp.pad(fc_w, ((0, 0), (0, ncp - num_classes))).astype(jnp.bfloat16)
    params["fc_b"] = jnp.pad(fc_b, (0, ncp - num_classes)).astype(jnp.float32).reshape(1, ncp)
    return params


# ------------------------------ forward pass --------------------------------


def basic_block_forward(x, blk):
    stride, planes, in_planes = blk["stride"], blk["planes"], blk["in_planes"]
    out = conv3x3_bn(x, blk["w1"], blk["b1"], stride, planes, relu=True)
    if stride != 1 or in_planes != planes:
        # option-'A' shortcut: ::2 spatial subsample + planes//4 zero-pad each side (bf16)
        pad = planes // 4
        sc = x[:, ::2, ::2, :]
        sc = jnp.pad(sc, ((0, 0), (0, 0), (0, 0), (pad, planes - in_planes - pad)))
    else:
        sc = x
    # second conv + BN + residual add + final ReLU fused in one Pallas kernel
    return conv3x3_bn(out, blk["w2"], blk["b2"], 1, planes, relu=True, residual=sc)


def resnet_s_forward(params, x_nchw, num_classes=10):
    # NCHW (PyTorch) -> NHWC bf16 (kernel layout)
    x = jnp.transpose(x_nchw, (0, 2, 3, 1)).astype(jnp.bfloat16)
    out = conv3x3_bn(x, params["w1"], params["b1"], 1, 16, relu=True)
    for layer in params["layers"]:
        for blk in layer:
            out = basic_block_forward(out, blk)
    return avgpool_fc(out, params["fc_w"], params["fc_b"], num_classes)


if __name__ == "__main__":
    key = jax.random.PRNGKey(0)
    pkey, xkey = jax.random.split(key)
    params = init_resnet_s(pkey, num_blocks=(1, 1, 1), num_classes=10)
    x = jax.random.normal(xkey, (2, 3, 16, 16), jnp.float32)   # NCHW input

    # params captured by closure -> block structure (ints) stays static under jit.
    fwd = jax.jit(lambda inp: resnet_s_forward(params, inp, num_classes=10))
    out = fwd(x)
    jax.block_until_ready(out)
    assert out.shape == (2, 10) and out.dtype == jnp.float32
    print("KERNEL_OK")
</pallas_src>

<mosaic_0001>
module attributes {stable_mosaic.version = 11 : i64} {
  func.func @_conv3x3_kernel(%arg0: i32, %arg1: memref<1x360x16xbf16, #tpu.memory_space<vmem>>, %arg2: memref<144x16xbf16, #tpu.memory_space<vmem>>, %arg3: memref<1x16xf32, #tpu.memory_space<vmem>>, %arg4: memref<288x16xbf16, #tpu.memory_space<vmem>>) attributes {dimension_semantics = [#tpu.dimension_semantics<parallel>], iteration_bounds = array<i64: 2>, scalar_prefetch = 0 : i64, scratch_operands = 0 : i64, tpu.core_type = #tpu.core_type<tc>, window_params = [{transform_indices = @transform_0, window_bounds = array<i64: 1, 360, 16>}, {pipeline_mode = #tpu.pipeline_mode<synchronous>, transform_indices = @transform_1, window_bounds = array<i64: 144, 16>}, {pipeline_mode = #tpu.pipeline_mode<synchronous>, transform_indices = @transform_2, window_bounds = array<i64: 1, 16>}, {transform_indices = @transform_3, window_bounds = array<i64: 288, 16>}]} {
    %cst = arith.constant 0.000000e+00 : f32
    %0 = vector.broadcast %cst : f32 to vector<288x16xf32>
    %c0 = arith.constant 0 : index
    %c0_0 = arith.constant 0 : index
    %c0_1 = arith.constant 0 : index
    %1 = vector.load %arg1[%c0, %c0_0, %c0_1] : memref<1x360x16xbf16, #tpu.memory_space<vmem>>, vector<1x288x16xbf16>
    %2 = vector.shape_cast %1 : vector<1x288x16xbf16> to vector<288x16xbf16>
    %c0_2 = arith.constant 0 : index
    %c0_3 = arith.constant 0 : index
    %3 = vector.load %arg2[%c0_2, %c0_3] : memref<144x16xbf16, #tpu.memory_space<vmem>>, vector<16x16xbf16>
    %cst_4 = arith.constant dense<0.000000e+00> : vector<288x16xf32>
    %4 = tpu.matmul %2, %3, %cst_4 {dimension_numbers = #tpu.dot_dimension_numbers<[1], [0], [0], [1], [0, 0, 1, 1], [], []>} : vector<288x16xbf16>, vector<16x16xbf16>, vector<288x16xf32> -> vector<288x16xf32>
    %5 = arith.addf %0, %4 : vector<288x16xf32>
    %c0_5 = arith.constant 0 : index
    %c1 = arith.constant 1 : index
    %c0_6 = arith.constant 0 : index
    %6 = vector.load %arg1[%c0_5, %c1, %c0_6] : memref<1x360x16xbf16, #tpu.memory_space<vmem>>, vector<1x288x16xbf16>
    %7 = vector.shape_cast %6 : vector<1x288x16xbf16> to vector<288x16xbf16>
    %c16 = arith.constant 16 : index
    %c0_7 = arith.constant 0 : index
    %8 = vector.load %arg2[%c16, %c0_7] : memref<144x16xbf16, #tpu.memory_space<vmem>>, vector<16x16xbf16>
    %cst_8 = arith.constant dense<0.000000e+00> : vector<288x16xf32>
    %9 = tpu.matmul %7, %8, %cst_8 {dimension_numbers = #tpu.dot_dimension_numbers<[1], [0], [0], [1], [0, 0, 1, 1], [], []>} : vector<288x16xbf16>, vector<16x16xbf16>, vector<288x16xf32> -> vector<288x16xf32>
    %10 = arith.addf %5, %9 : vector<288x16xf32>
    %c0_9 = arith.constant 0 : index
    %c2 = arith.constant 2 : index
    %c0_10 = arith.constant 0 : index
    %11 = vector.load %arg1[%c0_9, %c2, %c0_10] : memref<1x360x16xbf16, #tpu.memory_space<vmem>>, vector<1x288x16xbf16>
    %12 = vector.shape_cast %11 : vector<1x288x16xbf16> to vector<288x16xbf16>
    %c32 = arith.constant 32 : index
    %c0_11 = arith.constant 0 : index
    %13 = vector.load %arg2[%c32, %c0_11] : memref<144x16xbf16, #tpu.memory_space<vmem>>, vector<16x16xbf16>
    %cst_12 = arith.constant dense<0.000000e+00> : vector<288x16xf32>
    %14 = tpu.matmul %12, %13, %cst_12 {dimension_numbers = #tpu.dot_dimension_numbers<[1], [0], [0], [1], [0, 0, 1, 1], [], []>} : vector<288x16xbf16>, vector<16x16xbf16>, vector<288x16xf32> -> vector<288x16xf32>
    %15 = arith.addf %10, %14 : vector<288x16xf32>
    %c0_13 = arith.constant 0 : index
    %c18 = arith.constant 18 : index
    %c0_14 = arith.constant 0 : index
    %16 = vector.load %arg1[%c0_13, %c18, %c0_14] : memref<1x360x16xbf16, #tpu.memory_space<vmem>>, vector<1x288x16xbf16>
    %17 = vector.shape_cast %16 : vector<1x288x16xbf16> to vector<288x16xbf16>
    %c48 = arith.constant 48 : index
    %c0_15 = arith.constant 0 : index
    %18 = vector.load %arg2[%c48, %c0_15] : memref<144x16xbf16, #tpu.memory_space<vmem>>, vector<16x16xbf16>
    %cst_16 = arith.constant dense<0.000000e+00> : vector<288x16xf32>
    %19 = tpu.matmul %17, %18, %cst_16 {dimension_numbers = #tpu.dot_dimension_numbers<[1], [0], [0], [1], [0, 0, 1, 1], [], []>} : vector<288x16xbf16>, vector<16x16xbf16>, vector<288x16xf32> -> vector<288x16xf32>
    %20 = arith.addf %15, %19 : vector<288x16xf32>
    %c0_17 = arith.constant 0 : index
    %c19 = arith.constant 19 : index
    %c0_18 = arith.constant 0 : index
    %21 = vector.load %arg1[%c0_17, %c19, %c0_18] : memref<1x360x16xbf16, #tpu.memory_space<vmem>>, vector<1x288x16xbf16>
    %22 = vector.shape_cast %21 : vector<1x288x16xbf16> to vector<288x16xbf16>
    %c64 = arith.constant 64 : index
    %c0_19 = arith.constant 0 : index
    %23 = vector.load %arg2[%c64, %c0_19] : memref<144x16xbf16, #tpu.memory_space<vmem>>, vector<16x16xbf16>
    %cst_20 = arith.constant dense<0.000000e+00> : vector<288x16xf32>
    %24 = tpu.matmul %22, %23, %cst_20 {dimension_numbers = #tpu.dot_dimension_numbers<[1], [0], [0], [1], [0, 0, 1, 1], [], []>} : vector<288x16xbf16>, vector<16x16xbf16>, vector<288x16xf32> -> vector<288x16xf32>
    %25 = arith.addf %20, %24 : vector<288x16xf32>
    %c0_21 = arith.constant 0 : index
    %c20 = arith.constant 20 : index
    %c0_22 = arith.constant 0 : index
    %26 = vector.load %arg1[%c0_21, %c20, %c0_22] : memref<1x360x16xbf16, #tpu.memory_space<vmem>>, vector<1x288x16xbf16>
    %27 = vector.shape_cast %26 : vector<1x288x16xbf16> to vector<288x16xbf16>
    %c80 = arith.constant 80 : index
    %c0_23 = arith.constant 0 : index
    %28 = vector.load %arg2[%c80, %c0_23] : memref<144x16xbf16, #tpu.memory_space<vmem>>, vector<16x16xbf16>
    %cst_24 = arith.constant dense<0.000000e+00> : vector<288x16xf32>
    %29 = tpu.matmul %27, %28, %cst_24 {dimension_numbers = #tpu.dot_dimension_numbers<[1], [0], [0], [1], [0, 0, 1, 1], [], []>} : vector<288x16xbf16>, vector<16x16xbf16>, vector<288x16xf32> -> vector<288x16xf32>
    %30 = arith.addf %25, %29 : vector<288x16xf32>
    %c0_25 = arith.constant 0 : index
    %c36 = arith.constant 36 : index
    %c0_26 = arith.constant 0 : index
    %31 = vector.load %arg1[%c0_25, %c36, %c0_26] : memref<1x360x16xbf16, #tpu.memory_space<vmem>>, vector<1x288x16xbf16>
    %32 = vector.shape_cast %31 : vector<1x288x16xbf16> to vector<288x16xbf16>
    %c96 = arith.constant 96 : index
    %c0_27 = arith.constant 0 : index
    %33 = vector.load %arg2[%c96, %c0_27] : memref<144x16xbf16, #tpu.memory_space<vmem>>, vector<16x16xbf16>
    %cst_28 = arith.constant dense<0.000000e+00> : vector<288x16xf32>
    %34 = tpu.matmul %32, %33, %cst_28 {dimension_numbers = #tpu.dot_dimension_numbers<[1], [0], [0], [1], [0, 0, 1, 1], [], []>} : vector<288x16xbf16>, vector<16x16xbf16>, vector<288x16xf32> -> vector<288x16xf32>
    %35 = arith.addf %30, %34 : vector<288x16xf32>
    %c0_29 = arith.constant 0 : index
    %c37 = arith.constant 37 : index
    %c0_30 = arith.constant 0 : index
    %36 = vector.load %arg1[%c0_29, %c37, %c0_30] : memref<1x360x16xbf16, #tpu.memory_space<vmem>>, vector<1x288x16xbf16>
    %37 = vector.shape_cast %36 : vector<1x288x16xbf16> to vector<288x16xbf16>
    %c112 = arith.constant 112 : index
    %c0_31 = arith.constant 0 : index
    %38 = vector.load %arg2[%c112, %c0_31] : memref<144x16xbf16, #tpu.memory_space<vmem>>, vector<16x16xbf16>
    %cst_32 = arith.constant dense<0.000000e+00> : vector<288x16xf32>
    %39 = tpu.matmul %37, %38, %cst_32 {dimension_numbers = #tpu.dot_dimension_numbers<[1], [0], [0], [1], [0, 0, 1, 1], [], []>} : vector<288x16xbf16>, vector<16x16xbf16>, vector<288x16xf32> -> vector<288x16xf32>
    %40 = arith.addf %35, %39 : vector<288x16xf32>
    %c0_33 = arith.constant 0 : index
    %c38 = arith.constant 38 : index
    %c0_34 = arith.constant 0 : index
    %41 = vector.load %arg1[%c0_33, %c38, %c0_34] : memref<1x360x16xbf16, #tpu.memory_space<vmem>>, vector<1x288x16xbf16>
    %42 = vector.shape_cast %41 : vector<1x288x16xbf16> to vector<288x16xbf16>
    %c128 = arith.constant 128 : index
    %c0_35 = arith.constant 0 : index
    %43 = vector.load %arg2[%c128, %c0_35] : memref<144x16xbf16, #tpu.memory_space<vmem>>, vector<16x16xbf16>
    %cst_36 = arith.constant dense<0.000000e+00> : vector<288x16xf32>
    %44 = tpu.matmul %42, %43, %cst_36 {dimension_numbers = #tpu.dot_dimension_numbers<[1], [0], [0], [1], [0, 0, 1, 1], [], []>} : vector<288x16xbf16>, vector<16x16xbf16>, vector<288x16xf32> -> vector<288x16xf32>
    %45 = arith.addf %40, %44 : vector<288x16xf32>
    %c0_37 = arith.constant 0 : index
    %c0_38 = arith.constant 0 : index
    %46 = vector.load %arg3[%c0_37, %c0_38] : memref<1x16xf32, #tpu.memory_space<vmem>>, vector<1x16xf32>
    %47 = vector.broadcast %46 : vector<1x16xf32> to vector<288x16xf32>
    %48 = arith.addf %45, %47 : vector<288x16xf32>
    %cst_39 = arith.constant 0.000000e+00 : f32
    %49 = vector.broadcast %cst_39 : f32 to vector<288x16xf32>
    %50 = arith.maximumf %48, %49 : vector<288x16xf32>
    %51 = arith.truncf %50 : vector<288x16xf32> to vector<288x16xbf16>
    %c0_40 = arith.constant 0 : index
    %c0_41 = arith.constant 0 : index
    %52 = vector.load %arg4[%c0_40, %c0_41] : memref<288x16xbf16, #tpu.memory_space<vmem>>, vector<288x16xbf16>
    tpu.vector_store %arg4[%c0_40, %c0_41], %51 {strides = array<i32>} : memref<288x16xbf16, #tpu.memory_space<vmem>>, vector<288x16xbf16>,
    return
  }
  func.func @transform_0(%arg0: i32) -> (i32, i32, i32) {
    %c0_i32 = arith.constant 0 : i32
    %c0_i32_0 = arith.constant 0 : i32
    %c0_i32_1 = arith.constant 0 : i32
    return %arg0, %c0_i32, %c0_i32_0 : i32, i32, i32
  }
  func.func @transform_1(%arg0: i32) -> (i32, i32) {
    %c0_i32 = arith.constant 0 : i32
    %c0_i32_0 = arith.constant 0 : i32
    %c0_i32_1 = arith.constant 0 : i32
    return %c0_i32, %c0_i32_0 : i32, i32
  }
  func.func @transform_2(%arg0: i32) -> (i32, i32) {
    %c0_i32 = arith.constant 0 : i32
    %c0_i32_0 = arith.constant 0 : i32
    %c0_i32_1 = arith.constant 0 : i32
    return %c0_i32, %c0_i32_0 : i32, i32
  }
  func.func @transform_3(%arg0: i32) -> (i32, i32) {
    %c0_i32 = arith.constant 0 : i32
    %c0_i32_0 = arith.constant 0 : i32
    return %arg0, %c0_i32 : i32, i32
  }
}

module attributes {stable_mosaic.version = 11 : i64} {
  func.func @_conv3x3_kernel(%arg0: i32, %arg1: memref<1x360x16xbf16, #tpu.memory_space<vmem>>, %arg2: memref<144x16xbf16, #tpu.memory_space<vmem>>, %arg3: memref<1x16xf32, #tpu.memory_space<vmem>>, %arg4: memref<288x16xbf16, #tpu.memory_space<vmem>>, %arg5: memref<288x16xbf16, #tpu.memory_space<vmem>>) attributes {dimension_semantics = [#tpu.dimension_semantics<parallel>], iteration_bounds = array<i64: 2>, scalar_prefetch = 0 : i64, scratch_operands = 0 : i64, tpu.core_type = #tpu.core_type<tc>, window_params = [{transform_indices = @transform_0, window_bounds = array<i64: 1, 360, 16>}, {pipeline_mode = #tpu.pipeline_mode<synchronous>, transform_indices = @transform_1, window_bounds = array<i64: 144, 16>}, {pipeline_mode = #tpu.pipeline_mode<synchronous>, transform_indices = @transform_2, window_bounds = array<i64: 1, 16>}, {transform_indices = @transform_3, window_bounds = array<i64: 288, 16>}, {transform_indices = @transform_4, window_bounds = array<i64: 288, 16>}]} {
    %cst = arith.constant 0.000000e+00 : f32
    %0 = vector.broadcast %cst : f32 to vector<288x16xf32>
    %c0 = arith.constant 0 : index
    %c0_0 = arith.constant 0 : index
    %c0_1 = arith.constant 0 : index
    %1 = vector.load %arg1[%c0, %c0_0, %c0_1] : memref<1x360x16xbf16, #tpu.memory_space<vmem>>, vector<1x288x16xbf16>
    %2 = vector.shape_cast %1 : vector<1x288x16xbf16> to vector<288x16xbf16>
    %c0_2 = arith.constant 0 : index
    %c0_3 = arith.constant 0 : index
    %3 = vector.load %arg2[%c0_2, %c0_3] : memref<144x16xbf16, #tpu.memory_space<vmem>>, vector<16x16xbf16>
    %cst_4 = arith.constant dense<0.000000e+00> : vector<288x16xf32>
    %4 = tpu.matmul %2, %3, %cst_4 {dimension_numbers = #tpu.dot_dimension_numbers<[1], [0], [0], [1], [0, 0, 1, 1], [], []>} : vector<288x16xbf16>, vector<16x16xbf16>, vector<288x16xf32> -> vector<288x16xf32>
    %5 = arith.addf %0, %4 : vector<288x16xf32>
    %c0_5 = arith.constant 0 : index
    %c1 = arith.constant 1 : index
    %c0_6 = arith.constant 0 : index
    %6 = vector.load %arg1[%c0_5, %c1, %c0_6] : memref<1x360x16xbf16, #tpu.memory_space<vmem>>, vector<1x288x16xbf16>
    %7 = vector.shape_cast %6 : vector<1x288x16xbf16> to vector<288x16xbf16>
    %c16 = arith.constant 16 : index
    %c0_7 = arith.constant 0 : index
    %8 = vector.load %arg2[%c16, %c0_7] : memref<144x16xbf16, #tpu.memory_space<vmem>>, vector<16x16xbf16>
    %cst_8 = arith.constant dense<0.000000e+00> : vector<288x16xf32>
    %9 = tpu.matmul %7, %8, %cst_8 {dimension_numbers = #tpu.dot_dimension_numbers<[1], [0], [0], [1], [0, 0, 1, 1], [], []>} : vector<288x16xbf16>, vector<16x16xbf16>, vector<288x16xf32> -> vector<288x16xf32>
    %10 = arith.addf %5, %9 : vector<288x16xf32>
    %c0_9 = arith.constant 0 : index
    %c2 = arith.constant 2 : index
    %c0_10 = arith.constant 0 : index
    %11 = vector.load %arg1[%c0_9, %c2, %c0_10] : memref<1x360x16xbf16, #tpu.memory_space<vmem>>, vector<1x288x16xbf16>
    %12 = vector.shape_cast %11 : vector<1x288x16xbf16> to vector<288x16xbf16>
    %c32 = arith.constant 32 : index
    %c0_11 = arith.constant 0 : index
    %13 = vector.load %arg2[%c32, %c0_11] : memref<144x16xbf16, #tpu.memory_space<vmem>>, vector<16x16xbf16>
    %cst_12 = arith.constant dense<0.000000e+00> : vector<288x16xf32>
    %14 = tpu.matmul %12, %13, %cst_12 {dimension_numbers = #tpu.dot_dimension_numbers<[1], [0], [0], [1], [0, 0, 1, 1], [], []>} : vector<288x16xbf16>, vector<16x16xbf16>, vector<288x16xf32> -> vector<288x16xf32>
    %15 = arith.addf %10, %14 : vector<288x16xf32>
    %c0_13 = arith.constant 0 : index
    %c18 = arith.constant 18 : index
    %c0_14 = arith.constant 0 : index
    %16 = vector.load %arg1[%c0_13, %c18, %c0_14] : memref<1x360x16xbf16, #tpu.memory_space<vmem>>, vector<1x288x16xbf16>
    %17 = vector.shape_cast %16 : vector<1x288x16xbf16> to vector<288x16xbf16>
    %c48 = arith.constant 48 : index
    %c0_15 = arith.constant 0 : index
    %18 = vector.load %arg2[%c48, %c0_15] : memref<144x16xbf16, #tpu.memory_space<vmem>>, vector<16x16xbf16>
    %cst_16 = arith.constant dense<0.000000e+00> : vector<288x16xf32>
    %19 = tpu.matmul %17, %18, %cst_16 {dimension_numbers = #tpu.dot_dimension_numbers<[1], [0], [0], [1], [0, 0, 1, 1], [], []>} : vector<288x16xbf16>, vector<16x16xbf16>, vector<288x16xf32> -> vector<288x16xf32>
    %20 = arith.addf %15, %19 : vector<288x16xf32>
    %c0_17 = arith.constant 0 : index
    %c19 = arith.constant 19 : index
    %c0_18 = arith.constant 0 : index
    %21 = vector.load %arg1[%c0_17, %c19, %c0_18] : memref<1x360x16xbf16, #tpu.memory_space<vmem>>, vector<1x288x16xbf16>
    %22 = vector.shape_cast %21 : vector<1x288x16xbf16> to vector<288x16xbf16>
    %c64 = arith.constant 64 : index
    %c0_19 = arith.constant 0 : index
    %23 = vector.load %arg2[%c64, %c0_19] : memref<144x16xbf16, #tpu.memory_space<vmem>>, vector<16x16xbf16>
    %cst_20 = arith.constant dense<0.000000e+00> : vector<288x16xf32>
    %24 = tpu.matmul %22, %23, %cst_20 {dimension_numbers = #tpu.dot_dimension_numbers<[1], [0], [0], [1], [0, 0, 1, 1], [], []>} : vector<288x16xbf16>, vector<16x16xbf16>, vector<288x16xf32> -> vector<288x16xf32>
    %25 = arith.addf %20, %24 : vector<288x16xf32>
    %c0_21 = arith.constant 0 : index
    %c20 = arith.constant 20 : index
    %c0_22 = arith.constant 0 : index
    %26 = vector.load %arg1[%c0_21, %c20, %c0_22] : memref<1x360x16xbf16, #tpu.memory_space<vmem>>, vector<1x288x16xbf16>
    %27 = vector.shape_cast %26 : vector<1x288x16xbf16> to vector<288x16xbf16>
    %c80 = arith.constant 80 : index
    %c0_23 = arith.constant 0 : index
    %28 = vector.load %arg2[%c80, %c0_23] : memref<144x16xbf16, #tpu.memory_space<vmem>>, vector<16x16xbf16>
    %cst_24 = arith.constant dense<0.000000e+00> : vector<288x16xf32>
    %29 = tpu.matmul %27, %28, %cst_24 {dimension_numbers = #tpu.dot_dimension_numbers<[1], [0], [0], [1], [0, 0, 1, 1], [], []>} : vector<288x16xbf16>, vector<16x16xbf16>, vector<288x16xf32> -> vector<288x16xf32>
    %30 = arith.addf %25, %29 : vector<288x16xf32>
    %c0_25 = arith.constant 0 : index
    %c36 = arith.constant 36 : index
    %c0_26 = arith.constant 0 : index
    %31 = vector.load %arg1[%c0_25, %c36, %c0_26] : memref<1x360x16xbf16, #tpu.memory_space<vmem>>, vector<1x288x16xbf16>
    %32 = vector.shape_cast %31 : vector<1x288x16xbf16> to vector<288x16xbf16>
    %c96 = arith.constant 96 : index
    %c0_27 = arith.constant 0 : index
    %33 = vector.load %arg2[%c96, %c0_27] : memref<144x16xbf16, #tpu.memory_space<vmem>>, vector<16x16xbf16>
    %cst_28 = arith.constant dense<0.000000e+00> : vector<288x16xf32>
    %34 = tpu.matmul %32, %33, %cst_28 {dimension_numbers = #tpu.dot_dimension_numbers<[1], [0], [0], [1], [0, 0, 1, 1], [], []>} : vector<288x16xbf16>, vector<16x16xbf16>, vector<288x16xf32> -> vector<288x16xf32>
    %35 = arith.addf %30, %34 : vector<288x16xf32>
    %c0_29 = arith.constant 0 : index
    %c37 = arith.constant 37 : index
    %c0_30 = arith.constant 0 : index
    %36 = vector.load %arg1[%c0_29, %c37, %c0_30] : memref<1x360x16xbf16, #tpu.memory_space<vmem>>, vector<1x288x16xbf16>
    %37 = vector.shape_cast %36 : vector<1x288x16xbf16> to vector<288x16xbf16>
    %c112 = arith.constant 112 : index
    %c0_31 = arith.constant 0 : index
    %38 = vector.load %arg2[%c112, %c0_31] : memref<144x16xbf16, #tpu.memory_space<vmem>>, vector<16x16xbf16>
    %cst_32 = arith.constant dense<0.000000e+00> : vector<288x16xf32>
    %39 = tpu.matmul %37, %38, %cst_32 {dimension_numbers = #tpu.dot_dimension_numbers<[1], [0], [0], [1], [0, 0, 1, 1], [], []>} : vector<288x16xbf16>, vector<16x16xbf16>, vector<288x16xf32> -> vector<288x16xf32>
    %40 = arith.addf %35, %39 : vector<288x16xf32>
    %c0_33 = arith.constant 0 : index
    %c38 = arith.constant 38 : index
    %c0_34 = arith.constant 0 : index
    %41 = vector.load %arg1[%c0_33, %c38, %c0_34] : memref<1x360x16xbf16, #tpu.memory_space<vmem>>, vector<1x288x16xbf16>
    %42 = vector.shape_cast %41 : vector<1x288x16xbf16> to vector<288x16xbf16>
    %c128 = arith.constant 128 : index
    %c0_35 = arith.constant 0 : index
    %43 = vector.load %arg2[%c128, %c0_35] : memref<144x16xbf16, #tpu.memory_space<vmem>>, vector<16x16xbf16>
    %cst_36 = arith.constant dense<0.000000e+00> : vector<288x16xf32>
    %44 = tpu.matmul %42, %43, %cst_36 {dimension_numbers = #tpu.dot_dimension_numbers<[1], [0], [0], [1], [0, 0, 1, 1], [], []>} : vector<288x16xbf16>, vector<16x16xbf16>, vector<288x16xf32> -> vector<288x16xf32>
    %45 = arith.addf %40, %44 : vector<288x16xf32>
    %c0_37 = arith.constant 0 : index
    %c0_38 = arith.constant 0 : index
    %46 = vector.load %arg3[%c0_37, %c0_38] : memref<1x16xf32, #tpu.memory_space<vmem>>, vector<1x16xf32>
    %47 = vector.broadcast %46 : vector<1x16xf32> to vector<288x16xf32>
    %48 = arith.addf %45, %47 : vector<288x16xf32>
    %c0_39 = arith.constant 0 : index
    %c0_40 = arith.constant 0 : index
    %49 = vector.load %arg4[%c0_39, %c0_40] : memref<288x16xbf16, #tpu.memory_space<vmem>>, vector<288x16xbf16>
    %50 = arith.extf %49 : vector<288x16xbf16> to vector<288x16xf32>
    %51 = arith.addf %48, %50 : vector<288x16xf32>
    %cst_41 = arith.constant 0.000000e+00 : f32
    %52 = vector.broadcast %cst_41 : f32 to vector<288x16xf32>
    %53 = arith.maximumf %51, %52 : vector<288x16xf32>
    %54 = arith.truncf %53 : vector<288x16xf32> to vector<288x16xbf16>
    %c0_42 = arith.constant 0 : index
    %c0_43 = arith.constant 0 : index
    %55 = vector.load %arg5[%c0_42, %c0_43] : memref<288x16xbf16, #tpu.memory_space<vmem>>, vector<288x16xbf16>
    tpu.vector_store %arg5[%c0_42, %c0_43], %54 {strides = array<i32>} : memref<288x16xbf16, #tpu.memory_space<vmem>>, vector<288x16xbf16>,
    return
  }
  func.func @transform_0(%arg0: i32) -> (i32, i32, i32) {
    %c0_i32 = arith.constant 0 : i32
    %c0_i32_0 = arith.constant 0 : i32
    %c0_i32_1 = arith.constant 0 : i32
    return %arg0, %c0_i32, %c0_i32_0 : i32, i32, i32
  }
  func.func @transform_1(%arg0: i32) -> (i32, i32) {
    %c0_i32 = arith.constant 0 : i32
    %c0_i32_0 = arith.constant 0 : i32
    %c0_i32_1 = arith.constant 0 : i32
    return %c0_i32, %c0_i32_0 : i32, i32
  }
  func.func @transform_2(%arg0: i32) -> (i32, i32) {
    %c0_i32 = arith.constant 0 : i32
    %c0_i32_0 = arith.constant 0 : i32
    %c0_i32_1 = arith.constant 0 : i32
    return %c0_i32, %c0_i32_0 : i32, i32
  }
  func.func @transform_3(%arg0: i32) -> (i32, i32) {
    %c0_i32 = arith.constant 0 : i32
    %c0_i32_0 = arith.constant 0 : i32
    return %arg0, %c0_i32 : i32, i32
  }
  func.func @transform_4(%arg0: i32) -> (i32, i32) {
    %c0_i32 = arith.constant 0 : i32
    %c0_i32_0 = arith.constant 0 : i32
    return %arg0, %c0_i32 : i32, i32
  }
}

module attributes {stable_mosaic.version = 11 : i64} {
  func.func @_conv3x3_kernel(%arg0: i32, %arg1: memref<1x360x16xbf16, #tpu.memory_space<vmem>>, %arg2: memref<144x32xbf16, #tpu.memory_space<vmem>>, %arg3: memref<1x32xf32, #tpu.memory_space<vmem>>, %arg4: memref<72x32xbf16, #tpu.memory_space<vmem>>) attributes {dimension_semantics = [#tpu.dimension_semantics<parallel>], iteration_bounds = array<i64: 2>, scalar_prefetch = 0 : i64, scratch_operands = 0 : i64, tpu.core_type = #tpu.core_type<tc>, window_params = [{transform_indices = @transform_0, window_bounds = array<i64: 1, 360, 16>}, {pipeline_mode = #tpu.pipeline_mode<synchronous>, transform_indices = @transform_1, window_bounds = array<i64: 144, 32>}, {pipeline_mode = #tpu.pipeline_mode<synchronous>, transform_indices = @transform_2, window_bounds = array<i64: 1, 32>}, {transform_indices = @transform_3, window_bounds = array<i64: 72, 32>}]} {
    %cst = arith.constant 0.000000e+00 : f32
    %0 = vector.broadcast %cst : f32 to vector<72x32xf32>
    %c0 = arith.constant 0 : index
    %c0_0 = arith.constant 0 : index
    %c0_1 = arith.constant 0 : index
    %1 = vector.load %arg1[%c0, %c0_0, %c0_1] : memref<1x360x16xbf16, #tpu.memory_space<vmem>>, vector<1x72x16xbf16>
    %2 = vector.shape_cast %1 : vector<1x72x16xbf16> to vector<72x16xbf16>
    %c0_2 = arith.constant 0 : index
    %c0_3 = arith.constant 0 : index
    %3 = vector.load %arg2[%c0_2, %c0_3] : memref<144x32xbf16, #tpu.memory_space<vmem>>, vector<16x32xbf16>
    %cst_4 = arith.constant dense<0.000000e+00> : vector<72x32xf32>
    %4 = tpu.matmul %2, %3, %cst_4 {dimension_numbers = #tpu.dot_dimension_numbers<[1], [0], [0], [1], [0, 0, 1, 1], [], []>} : vector<72x16xbf16>, vector<16x32xbf16>, vector<72x32xf32> -> vector<72x32xf32>
    %5 = arith.addf %0, %4 : vector<72x32xf32>
    %c0_5 = arith.constant 0 : index
    %c90 = arith.constant 90 : index
    %c0_6 = arith.constant 0 : index
    %6 = vector.load %arg1[%c0_5, %c90, %c0_6] : memref<1x360x16xbf16, #tpu.memory_space<vmem>>, vector<1x72x16xbf16>
    %7 = vector.shape_cast %6 : vector<1x72x16xbf16> to vector<72x16xbf16>
    %c16 = arith.constant 16 : index
    %c0_7 = arith.constant 0 : index
    %8 = vector.load %arg2[%c16, %c0_7] : memref<144x32xbf16, #tpu.memory_space<vmem>>, vector<16x32xbf16>
    %cst_8 = arith.constant dense<0.000000e+00> : vector<72x32xf32>
    %9 = tpu.matmul %7, %8, %cst_8 {dimension_numbers = #tpu.dot_dimension_numbers<[1], [0], [0], [1], [0, 0, 1, 1], [], []>} : vector<72x16xbf16>, vector<16x32xbf16>, vector<72x32xf32> -> vector<72x32xf32>
    %10 = arith.addf %5, %9 : vector<72x32xf32>
    %c0_9 = arith.constant 0 : index
    %c1 = arith.constant 1 : index
    %c0_10 = arith.constant 0 : index
    %11 = vector.load %arg1[%c0_9, %c1, %c0_10] : memref<1x360x16xbf16, #tpu.memory_space<vmem>>, vector<1x72x16xbf16>
    %12 = vector.shape_cast %11 : vector<1x72x16xbf16> to vector<72x16xbf16>
    %c32 = arith.constant 32 : index
    %c0_11 = arith.constant 0 : index
    %13 = vector.load %arg2[%c32, %c0_11] : memref<144x32xbf16, #tpu.memory_space<vmem>>, vector<16x32xbf16>
    %cst_12 = arith.constant dense<0.000000e+00> : vector<72x32xf32>
    %14 = tpu.matmul %12, %13, %cst_12 {dimension_numbers = #tpu.dot_dimension_numbers<[1], [0], [0], [1], [0, 0, 1, 1], [], []>} : vector<72x16xbf16>, vector<16x32xbf16>, vector<72x32xf32> -> vector<72x32xf32>
    %15 = arith.addf %10, %14 : vector<72x32xf32>
    %c0_13 = arith.constant 0 : index
    %c180 = arith.constant 180 : index
    %c0_14 = arith.constant 0 : index
    %16 = vector.load %arg1[%c0_13, %c180, %c0_14] : memref<1x360x16xbf16, #tpu.memory_space<vmem>>, vector<1x72x16xbf16>
    %17 = vector.shape_cast %16 : vector<1x72x16xbf16> to vector<72x16xbf16>
    %c48 = arith.constant 48 : index
    %c0_15 = arith.constant 0 : index
    %18 = vector.load %arg2[%c48, %c0_15] : memref<144x32xbf16, #tpu.memory_space<vmem>>, vector<16x32xbf16>
    %cst_16 = arith.constant dense<0.000000e+00> : vector<72x32xf32>
    %19 = tpu.matmul %17, %18, %cst_16 {dimension_numbers = #tpu.dot_dimension_numbers<[1], [0], [0], [1], [0, 0, 1, 1], [], []>} : vector<72x16xbf16>, vector<16x32xbf16>, vector<72x32xf32> -> vector<72x32xf32>
    %20 = arith.addf %15, %19 : vector<72x32xf32>
    %c0_17 = arith.constant 0 : index
    %c270 = arith.constant 270 : index
    %c0_18 = arith.constant 0 : index
    %21 = vector.load %arg1[%c0_17, %c270, %c0_18] : memref<1x360x16xbf16, #tpu.memory_space<vmem>>, vector<1x72x16xbf16>
    %22 = vector.shape_cast %21 : vector<1x72x16xbf16> to vector<72x16xbf16>
    %c64 = arith.constant 64 : index
    %c0_19 = arith.constant 0 : index
    %23 = vector.load %arg2[%c64, %c0_19] : memref<144x32xbf16, #tpu.memory_space<vmem>>, vector<16x32xbf16>
    %cst_20 = arith.constant dense<0.000000e+00> : vector<72x32xf32>
    %24 = tpu.matmul %22, %23, %cst_20 {dimension_numbers = #tpu.dot_dimension_numbers<[1], [0], [0], [1], [0, 0, 1, 1], [], []>} : vector<72x16xbf16>, vector<16x32xbf16>, vector<72x32xf32> -> vector<72x32xf32>
    %25 = arith.addf %20, %24 : vector<72x32xf32>
    %c0_21 = arith.constant 0 : index
    %c181 = arith.constant 181 : index
    %c0_22 = arith.constant 0 : index
    %26 = vector.load %arg1[%c0_21, %c181, %c0_22] : memref<1x360x16xbf16, #tpu.memory_space<vmem>>, vector<1x72x16xbf16>
    %27 = vector.shape_cast %26 : vector<1x72x16xbf16> to vector<72x16xbf16>
    %c80 = arith.constant 80 : index
    %c0_23 = arith.constant 0 : index
    %28 = vector.load %arg2[%c80, %c0_23] : memref<144x32xbf16, #tpu.memory_space<vmem>>, vector<16x32xbf16>
    %cst_24 = arith.constant dense<0.000000e+00> : vector<72x32xf32>
    %29 = tpu.matmul %27, %28, %cst_24 {dimension_numbers = #tpu.dot_dimension_numbers<[1], [0], [0], [1], [0, 0, 1, 1], [], []>} : vector<72x16xbf16>, vector<16x32xbf16>, vector<72x32xf32> -> vector<72x32xf32>
    %30 = arith.addf %25, %29 : vector<72x32xf32>
    %c0_25 = arith.constant 0 : index
    %c9 = arith.constant 9 : index
    %c0_26 = arith.constant 0 : index
    %31 = vector.load %arg1[%c0_25, %c9, %c0_26] : memref<1x360x16xbf16, #tpu.memory_space<vmem>>, vector<1x72x16xbf16>
    %32 = vector.shape_cast %31 : vector<1x72x16xbf16> to vector<72x16xbf16>
    %c96 = arith.constant 96 : index
    %c0_27 = arith.constant 0 : index
    %33 = vector.load %arg2[%c96, %c0_27] : memref<144x32xbf16, #tpu.memory_space<vmem>>, vector<16x32xbf16>
    %cst_28 = arith.constant dense<0.000000e+00> : vector<72x32xf32>
    %34 = tpu.matmul %32, %33, %cst_28 {dimension_numbers = #tpu.dot_dimension_numbers<[1], [0], [0], [1], [0, 0, 1, 1], [], []>} : vector<72x16xbf16>, vector<16x32xbf16>, vector<72x32xf32> -> vector<72x32xf32>
    %35 = arith.addf %30, %34 : vector<72x32xf32>
    %c0_29 = arith.constant 0 : index
    %c99 = arith.constant 99 : index
    %c0_30 = arith.constant 0 : index
    %36 = vector.load %arg1[%c0_29, %c99, %c0_30] : memref<1x360x16xbf16, #tpu.memory_space<vmem>>, vector<1x72x16xbf16>
    %37 = vector.shape_cast %36 : vector<1x72x16xbf16> to vector<72x16xbf16>
    %c112 = arith.constant 112 : index
    %c0_31 = arith.constant 0 : index
    %38 = vector.load %arg2[%c112, %c0_31] : memref<144x32xbf16, #tpu.memory_space<vmem>>, vector<16x32xbf16>
    %cst_32 = arith.constant dense<0.000000e+00> : vector<72x32xf32>
    %39 = tpu.matmul %37, %38, %cst_32 {dimension_numbers = #tpu.dot_dimension_numbers<[1], [0], [0], [1], [0, 0, 1, 1], [], []>} : vector<72x16xbf16>, vector<16x32xbf16>, vector<72x32xf32> -> vector<72x32xf32>
    %40 = arith.addf %35, %39 : vector<72x32xf32>
    %c0_33 = arith.constant 0 : index
    %c10 = arith.constant 10 : index
    %c0_34 = arith.constant 0 : index
    %41 = vector.load %arg1[%c0_33, %c10, %c0_34] : memref<1x360x16xbf16, #tpu.memory_space<vmem>>, vector<1x72x16xbf16>
    %42 = vector.shape_cast %41 : vector<1x72x16xbf16> to vector<72x16xbf16>
    %c128 = arith.constant 128 : index
    %c0_35 = arith.constant 0 : index
    %43 = vector.load %arg2[%c128, %c0_35] : memref<144x32xbf16, #tpu.memory_space<vmem>>, vector<16x32xbf16>
    %cst_36 = arith.constant dense<0.000000e+00> : vector<72x32xf32>
    %44 = tpu.matmul %42, %43, %cst_36 {dimension_numbers = #tpu.dot_dimension_numbers<[1], [0], [0], [1], [0, 0, 1, 1], [], []>} : vector<72x16xbf16>, vector<16x32xbf16>, vector<72x32xf32> -> vector<72x32xf32>
    %45 = arith.addf %40, %44 : vector<72x32xf32>
    %c0_37 = arith.constant 0 : index
    %c0_38 = arith.constant 0 : index
    %46 = vector.load %arg3[%c0_37, %c0_38] : memref<1x32xf32, #tpu.memory_space<vmem>>, vector<1x32xf32>
    %47 = vector.broadcast %46 : vector<1x32xf32> to vector<72x32xf32>
    %48 = arith.addf %45, %47 : vector<72x32xf32>
    %cst_39 = arith.constant 0.000000e+00 : f32
    %49 = vector.broadcast %cst_39 : f32 to vector<72x32xf32>
    %50 = arith.maximumf %48, %49 : vector<72x32xf32>
    %51 = arith.truncf %50 : vector<72x32xf32> to vector<72x32xbf16>
    %c0_40 = arith.constant 0 : index
    %c0_41 = arith.constant 0 : index
    %52 = vector.load %arg4[%c0_40, %c0_41] : memref<72x32xbf16, #tpu.memory_space<vmem>>, vector<72x32xbf16>
    tpu.vector_store %arg4[%c0_40, %c0_41], %51 {strides = array<i32>} : memref<72x32xbf16, #tpu.memory_space<vmem>>, vector<72x32xbf16>,
    return
  }
  func.func @transform_0(%arg0: i32) -> (i32, i32, i32) {
    %c0_i32 = arith.constant 0 : i32
    %c0_i32_0 = arith.constant 0 : i32
    %c0_i32_1 = arith.constant 0 : i32
    return %arg0, %c0_i32, %c0_i32_0 : i32, i32, i32
  }
  func.func @transform_1(%arg0: i32) -> (i32, i32) {
    %c0_i32 = arith.constant 0 : i32
    %c0_i32_0 = arith.constant 0 : i32
    %c0_i32_1 = arith.constant 0 : i32
    return %c0_i32, %c0_i32_0 : i32, i32
  }
  func.func @transform_2(%arg0: i32) -> (i32, i32) {
    %c0_i32 = arith.constant 0 : i32
    %c0_i32_0 = arith.constant 0 : i32
    %c0_i32_1 = arith.constant 0 : i32
    return %c0_i32, %c0_i32_0 : i32, i32
  }
  func.func @transform_3(%arg0: i32) -> (i32, i32) {
    %c0_i32 = arith.constant 0 : i32
    %c0_i32_0 = arith.constant 0 : i32
    return %arg0, %c0_i32 : i32, i32
  }
}

module attributes {stable_mosaic.version = 11 : i64} {
  func.func @_conv3x3_kernel(%arg0: i32, %arg1: memref<1x120x32xbf16, #tpu.memory_space<vmem>>, %arg2: memref<288x32xbf16, #tpu.memory_space<vmem>>, %arg3: memref<1x32xf32, #tpu.memory_space<vmem>>, %arg4: memref<80x32xbf16, #tpu.memory_space<vmem>>, %arg5: memref<80x32xbf16, #tpu.memory_space<vmem>>) attributes {dimension_semantics = [#tpu.dimension_semantics<parallel>], iteration_bounds = array<i64: 2>, scalar_prefetch = 0 : i64, scratch_operands = 0 : i64, tpu.core_type = #tpu.core_type<tc>, window_params = [{transform_indices = @transform_0, window_bounds = array<i64: 1, 120, 32>}, {pipeline_mode = #tpu.pipeline_mode<synchronous>, transform_indices = @transform_1, window_bounds = array<i64: 288, 32>}, {pipeline_mode = #tpu.pipeline_mode<synchronous>, transform_indices = @transform_2, window_bounds = array<i64: 1, 32>}, {transform_indices = @transform_3, window_bounds = array<i64: 80, 32>}, {transform_indices = @transform_4, window_bounds = array<i64: 80, 32>}]} {
    %cst = arith.constant 0.000000e+00 : f32
    %0 = vector.broadcast %cst : f32 to vector<80x32xf32>
    %c0 = arith.constant 0 : index
    %c0_0 = arith.constant 0 : index
    %c0_1 = arith.constant 0 : index
    %1 = vector.load %arg1[%c0, %c0_0, %c0_1] : memref<1x120x32xbf16, #tpu.memory_space<vmem>>, vector<1x80x32xbf16>
    %2 = vector.shape_cast %1 : vector<1x80x32xbf16> to vector<80x32xbf16>
    %c0_2 = arith.constant 0 : index
    %c0_3 = arith.constant 0 : index
    %3 = vector.load %arg2[%c0_2, %c0_3] : memref<288x32xbf16, #tpu.memory_space<vmem>>, vector<32x32xbf16>
    %cst_4 = arith.constant dense<0.000000e+00> : vector<80x32xf32>
    %4 = tpu.matmul %2, %3, %cst_4 {dimension_numbers = #tpu.dot_dimension_numbers<[1], [0], [0], [1], [0, 0, 1, 1], [], []>} : vector<80x32xbf16>, vector<32x32xbf16>, vector<80x32xf32> -> vector<80x32xf32>
    %5 = arith.addf %0, %4 : vector<80x32xf32>
    %c0_5 = arith.constant 0 : index
    %c1 = arith.constant 1 : index
    %c0_6 = arith.constant 0 : index
    %6 = vector.load %arg1[%c0_5, %c1, %c0_6] : memref<1x120x32xbf16, #tpu.memory_space<vmem>>, vector<1x80x32xbf16>
    %7 = vector.shape_cast %6 : vector<1x80x32xbf16> to vector<80x32xbf16>
    %c32 = arith.constant 32 : index
    %c0_7 = arith.constant 0 : index
    %8 = vector.load %arg2[%c32, %c0_7] : memref<288x32xbf16, #tpu.memory_space<vmem>>, vector<32x32xbf16>
    %cst_8 = arith.constant dense<0.000000e+00> : vector<80x32xf32>
    %9 = tpu.matmul %7, %8, %cst_8 {dimension_numbers = #tpu.dot_dimension_numbers<[1], [0], [0], [1], [0, 0, 1, 1], [], []>} : vector<80x32xbf16>, vector<32x32xbf16>, vector<80x32xf32> -> vector<80x32xf32>
    %10 = arith.addf %5, %9 : vector<80x32xf32>
    %c0_9 = arith.constant 0 : index
    %c2 = arith.constant 2 : index
    %c0_10 = arith.constant 0 : index
    %11 = vector.load %arg1[%c0_9, %c2, %c0_10] : memref<1x120x32xbf16, #tpu.memory_space<vmem>>, vector<1x80x32xbf16>
    %12 = vector.shape_cast %11 : vector<1x80x32xbf16> to vector<80x32xbf16>
    %c64 = arith.constant 64 : index
    %c0_11 = arith.constant 0 : index
    %13 = vector.load %arg2[%c64, %c0_11] : memref<288x32xbf16, #tpu.memory_space<vmem>>, vector<32x32xbf16>
    %cst_12 = arith.constant dense<0.000000e+00> : vector<80x32xf32>
    %14 = tpu.matmul %12, %13, %cst_12 {dimension_numbers = #tpu.dot_dimension_numbers<[1], [0], [0], [1], [0, 0, 1, 1], [], []>} : vector<80x32xbf16>, vector<32x32xbf16>, vector<80x32xf32> -> vector<80x32xf32>
    %15 = arith.addf %10, %14 : vector<80x32xf32>
    %c0_13 = arith.constant 0 : index
    %c10 = arith.constant 10 : index
    %c0_14 = arith.constant 0 : index
    %16 = vector.load %arg1[%c0_13, %c10, %c0_14] : memref<1x120x32xbf16, #tpu.memory_space<vmem>>, vector<1x80x32xbf16>
    %17 = vector.shape_cast %16 : vector<1x80x32xbf16> to vector<80x32xbf16>
    %c96 = arith.constant 96 : index
    %c0_15 = arith.constant 0 : index
    %18 = vector.load %arg2[%c96, %c0_15] : memref<288x32xbf16, #tpu.memory_space<vmem>>, vector<32x32xbf16>
    %cst_16 = arith.constant dense<0.000000e+00> : vector<80x32xf32>
    %19 = tpu.matmul %17, %18, %cst_16 {dimension_numbers = #tpu.dot_dimension_numbers<[1], [0], [0], [1], [0, 0, 1, 1], [], []>} : vector<80x32xbf16>, vector<32x32xbf16>, vector<80x32xf32> -> vector<80x32xf32>
    %20 = arith.addf %15, %19 : vector<80x32xf32>
    %c0_17 = arith.constant 0 : index
    %c11 = arith.constant 11 : index
    %c0_18 = arith.constant 0 : index
    %21 = vector.load %arg1[%c0_17, %c11, %c0_18] : memref<1x120x32xbf16, #tpu.memory_space<vmem>>, vector<1x80x32xbf16>
    %22 = vector.shape_cast %21 : vector<1x80x32xbf16> to vector<80x32xbf16>
    %c128 = arith.constant 128 : index
    %c0_19 = arith.constant 0 : index
    %23 = vector.load %arg2[%c128, %c0_19] : memref<288x32xbf16, #tpu.memory_space<vmem>>, vector<32x32xbf16>
    %cst_20 = arith.constant dense<0.000000e+00> : vector<80x32xf32>
    %24 = tpu.matmul %22, %23, %cst_20 {dimension_numbers = #tpu.dot_dimension_numbers<[1], [0], [0], [1], [0, 0, 1, 1], [], []>} : vector<80x32xbf16>, vector<32x32xbf16>, vector<80x32xf32> -> vector<80x32xf32>
    %25 = arith.addf %20, %24 : vector<80x32xf32>
    %c0_21 = arith.constant 0 : index
    %c12 = arith.constant 12 : index
    %c0_22 = arith.constant 0 : index
    %26 = vector.load %arg1[%c0_21, %c12, %c0_22] : memref<1x120x32xbf16, #tpu.memory_space<vmem>>, vector<1x80x32xbf16>
    %27 = vector.shape_cast %26 : vector<1x80x32xbf16> to vector<80x32xbf16>
    %c160 = arith.constant 160 : index
    %c0_23 = arith.constant 0 : index
    %28 = vector.load %arg2[%c160, %c0_23] : memref<288x32xbf16, #tpu.memory_space<vmem>>, vector<32x32xbf16>
    %cst_24 = arith.constant dense<0.000000e+00> : vector<80x32xf32>
    %29 = tpu.matmul %27, %28, %cst_24 {dimension_numbers = #tpu.dot_dimension_numbers<[1], [0], [0], [1], [0, 0, 1, 1], [], []>} : vector<80x32xbf16>, vector<32x32xbf16>, vector<80x32xf32> -> vector<80x32xf32>
    %30 = arith.addf %25, %29 : vector<80x32xf32>
    %c0_25 = arith.constant 0 : index
    %c20 = arith.constant 20 : index
    %c0_26 = arith.constant 0 : index
    %31 = vector.load %arg1[%c0_25, %c20, %c0_26] : memref<1x120x32xbf16, #tpu.memory_space<vmem>>, vector<1x80x32xbf16>
    %32 = vector.shape_cast %31 : vector<1x80x32xbf16> to vector<80x32xbf16>
    %c192 = arith.constant 192 : index
    %c0_27 = arith.constant 0 : index
    %33 = vector.load %arg2[%c192, %c0_27] : memref<288x32xbf16, #tpu.memory_space<vmem>>, vector<32x32xbf16>
    %cst_28 = arith.constant dense<0.000000e+00> : vector<80x32xf32>
    %34 = tpu.matmul %32, %33, %cst_28 {dimension_numbers = #tpu.dot_dimension_numbers<[1], [0], [0], [1], [0, 0, 1, 1], [], []>} : vector<80x32xbf16>, vector<32x32xbf16>, vector<80x32xf32> -> vector<80x32xf32>
    %35 = arith.addf %30, %34 : vector<80x32xf32>
    %c0_29 = arith.constant 0 : index
    %c21 = arith.constant 21 : index
    %c0_30 = arith.constant 0 : index
    %36 = vector.load %arg1[%c0_29, %c21, %c0_30] : memref<1x120x32xbf16, #tpu.memory_space<vmem>>, vector<1x80x32xbf16>
    %37 = vector.shape_cast %36 : vector<1x80x32xbf16> to vector<80x32xbf16>
    %c224 = arith.constant 224 : index
    %c0_31 = arith.constant 0 : index
    %38 = vector.load %arg2[%c224, %c0_31] : memref<288x32xbf16, #tpu.memory_space<vmem>>, vector<32x32xbf16>
    %cst_32 = arith.constant dense<0.000000e+00> : vector<80x32xf32>
    %39 = tpu.matmul %37, %38, %cst_32 {dimension_numbers = #tpu.dot_dimension_numbers<[1], [0], [0], [1], [0, 0, 1, 1], [], []>} : vector<80x32xbf16>, vector<32x32xbf16>, vector<80x32xf32> -> vector<80x32xf32>
    %40 = arith.addf %35, %39 : vector<80x32xf32>
    %c0_33 = arith.constant 0 : index
    %c22 = arith.constant 22 : index
    %c0_34 = arith.constant 0 : index
    %41 = vector.load %arg1[%c0_33, %c22, %c0_34] : memref<1x120x32xbf16, #tpu.memory_space<vmem>>, vector<1x80x32xbf16>
    %42 = vector.shape_cast %41 : vector<1x80x32xbf16> to vector<80x32xbf16>
    %c256 = arith.constant 256 : index
    %c0_35 = arith.constant 0 : index
    %43 = vector.load %arg2[%c256, %c0_35] : memref<288x32xbf16, #tpu.memory_space<vmem>>, vector<32x32xbf16>
    %cst_36 = arith.constant dense<0.000000e+00> : vector<80x32xf32>
    %44 = tpu.matmul %42, %43, %cst_36 {dimension_numbers = #tpu.dot_dimension_numbers<[1], [0], [0], [1], [0, 0, 1, 1], [], []>} : vector<80x32xbf16>, vector<32x32xbf16>, vector<80x32xf32> -> vector<80x32xf32>
    %45 = arith.addf %40, %44 : vector<80x32xf32>
    %c0_37 = arith.constant 0 : index
    %c0_38 = arith.constant 0 : index
    %46 = vector.load %arg3[%c0_37, %c0_38] : memref<1x32xf32, #tpu.memory_space<vmem>>, vector<1x32xf32>
    %47 = vector.broadcast %46 : vector<1x32xf32> to vector<80x32xf32>
    %48 = arith.addf %45, %47 : vector<80x32xf32>
    %c0_39 = arith.constant 0 : index
    %c0_40 = arith.constant 0 : index
    %49 = vector.load %arg4[%c0_39, %c0_40] : memref<80x32xbf16, #tpu.memory_space<vmem>>, vector<80x32xbf16>
    %50 = arith.extf %49 : vector<80x32xbf16> to vector<80x32xf32>
    %51 = arith.addf %48, %50 : vector<80x32xf32>
    %cst_41 = arith.constant 0.000000e+00 : f32
    %52 = vector.broadcast %cst_41 : f32 to vector<80x32xf32>
    %53 = arith.maximumf %51, %52 : vector<80x32xf32>
    %54 = arith.truncf %53 : vector<80x32xf32> to vector<80x32xbf16>
    %c0_42 = arith.constant 0 : index
    %c0_43 = arith.constant 0 : index
    %55 = vector.load %arg5[%c0_42, %c0_43] : memref<80x32xbf16, #tpu.memory_space<vmem>>, vector<80x32xbf16>
    tpu.vector_store %arg5[%c0_42, %c0_43], %54 {strides = array<i32>} : memref<80x32xbf16, #tpu.memory_space<vmem>>, vector<80x32xbf16>,
    return
  }
  func.func @transform_0(%arg0: i32) -> (i32, i32, i32) {
    %c0_i32 = arith.constant 0 : i32
    %c0_i32_0 = arith.constant 0 : i32
    %c0_i32_1 = arith.constant 0 : i32
    return %arg0, %c0_i32, %c0_i32_0 : i32, i32, i32
  }
  func.func @transform_1(%arg0: i32) -> (i32, i32) {
    %c0_i32 = arith.constant 0 : i32
    %c0_i32_0 = arith.constant 0 : i32
    %c0_i32_1 = arith.constant 0 : i32
    return %c0_i32, %c0_i32_0 : i32, i32
  }
  func.func @transform_2(%arg0: i32) -> (i32, i32) {
    %c0_i32 = arith.constant 0 : i32
    %c0_i32_0 = arith.constant 0 : i32
    %c0_i32_1 = arith.constant 0 : i32
    return %c0_i32, %c0_i32_0 : i32, i32
  }
  func.func @transform_3(%arg0: i32) -> (i32, i32) {
    %c0_i32 = arith.constant 0 : i32
    %c0_i32_0 = arith.constant 0 : i32
    return %arg0, %c0_i32 : i32, i32
  }
  func.func @transform_4(%arg0: i32) -> (i32, i32) {
    %c0_i32 = arith.constant 0 : i32
    %c0_i32_0 = arith.constant 0 : i32
    return %arg0, %c0_i32 : i32, i32
  }
}

module attributes {stable_mosaic.version = 11 : i64} {
  func.func @_conv3x3_kernel(%arg0: i32, %arg1: memref<1x48x64xbf16, #tpu.memory_space<vmem>>, %arg2: memref<576x64xbf16, #tpu.memory_space<vmem>>, %arg3: memref<1x64xf32, #tpu.memory_space<vmem>>, %arg4: memref<24x64xbf16, #tpu.memory_space<vmem>>, %arg5: memref<24x64xbf16, #tpu.memory_space<vmem>>) attributes {dimension_semantics = [#tpu.dimension_semantics<parallel>], iteration_bounds = array<i64: 2>, scalar_prefetch = 0 : i64, scratch_operands = 0 : i64, tpu.core_type = #tpu.core_type<tc>, window_params = [{transform_indices = @transform_0, window_bounds = array<i64: 1, 48, 64>}, {pipeline_mode = #tpu.pipeline_mode<synchronous>, transform_indices = @transform_1, window_bounds = array<i64: 576, 64>}, {pipeline_mode = #tpu.pipeline_mode<synchronous>, transform_indices = @transform_2, window_bounds = array<i64: 1, 64>}, {transform_indices = @transform_3, window_bounds = array<i64: 24, 64>}, {transform_indices = @transform_4, window_bounds = array<i64: 24, 64>}]} {
    %cst = arith.constant 0.000000e+00 : f32
    %0 = vector.broadcast %cst : f32 to vector<24x64xf32>
    %c0 = arith.constant 0 : index
    %c0_0 = arith.constant 0 : index
    %c0_1 = arith.constant 0 : index
    %1 = vector.load %arg1[%c0, %c0_0, %c0_1] : memref<1x48x64xbf16, #tpu.memory_space<vmem>>, vector<1x24x64xbf16>
    %2 = vector.shape_cast %1 : vector<1x24x64xbf16> to vector<24x64xbf16>
    %c0_2 = arith.constant 0 : index
    %c0_3 = arith.constant 0 : index
    %3 = vector.load %arg2[%c0_2, %c0_3] : memref<576x64xbf16, #tpu.memory_space<vmem>>, vector<64x64xbf16>
    %cst_4 = arith.constant dense<0.000000e+00> : vector<24x64xf32>
    %4 = tpu.matmul %2, %3, %cst_4 {dimension_numbers = #tpu.dot_dimension_numbers<[1], [0], [0], [1], [0, 0, 1, 1], [], []>} : vector<24x64xbf16>, vector<64x64xbf16>, vector<24x64xf32> -> vector<24x64xf32>
    %5 = arith.addf %0, %4 : vector<24x64xf32>
    %c0_5 = arith.constant 0 : index
    %c1 = arith.constant 1 : index
    %c0_6 = arith.constant 0 : index
    %6 = vector.load %arg1[%c0_5, %c1, %c0_6] : memref<1x48x64xbf16, #tpu.memory_space<vmem>>, vector<1x24x64xbf16>
    %7 = vector.shape_cast %6 : vector<1x24x64xbf16> to vector<24x64xbf16>
    %c64 = arith.constant 64 : index
    %c0_7 = arith.constant 0 : index
    %8 = vector.load %arg2[%c64, %c0_7] : memref<576x64xbf16, #tpu.memory_space<vmem>>, vector<64x64xbf16>
    %cst_8 = arith.constant dense<0.000000e+00> : vector<24x64xf32>
    %9 = tpu.matmul %7, %8, %cst_8 {dimension_numbers = #tpu.dot_dimension_numbers<[1], [0], [0], [1], [0, 0, 1, 1], [], []>} : vector<24x64xbf16>, vector<64x64xbf16>, vector<24x64xf32> -> vector<24x64xf32>
    %10 = arith.addf %5, %9 : vector<24x64xf32>
    %c0_9 = arith.constant 0 : index
    %c2 = arith.constant 2 : index
    %c0_10 = arith.constant 0 : index
    %11 = vector.load %arg1[%c0_9, %c2, %c0_10] : memref<1x48x64xbf16, #tpu.memory_space<vmem>>, vector<1x24x64xbf16>
    %12 = vector.shape_cast %11 : vector<1x24x64xbf16> to vector<24x64xbf16>
    %c128 = arith.constant 128 : index
    %c0_11 = arith.constant 0 : index
    %13 = vector.load %arg2[%c128, %c0_11] : memref<576x64xbf16, #tpu.memory_space<vmem>>, vector<64x64xbf16>
    %cst_12 = arith.constant dense<0.000000e+00> : vector<24x64xf32>
    %14 = tpu.matmul %12, %13, %cst_12 {dimension_numbers = #tpu.dot_dimension_numbers<[1], [0], [0], [1], [0, 0, 1, 1], [], []>} : vector<24x64xbf16>, vector<64x64xbf16>, vector<24x64xf32> -> vector<24x64xf32>
    %15 = arith.addf %10, %14 : vector<24x64xf32>
    %c0_13 = arith.constant 0 : index
    %c6 = arith.constant 6 : index
    %c0_14 = arith.constant 0 : index
    %16 = vector.load %arg1[%c0_13, %c6, %c0_14] : memref<1x48x64xbf16, #tpu.memory_space<vmem>>, vector<1x24x64xbf16>
    %17 = vector.shape_cast %16 : vector<1x24x64xbf16> to vector<24x64xbf16>
    %c192 = arith.constant 192 : index
    %c0_15 = arith.constant 0 : index
    %18 = vector.load %arg2[%c192, %c0_15] : memref<576x64xbf16, #tpu.memory_space<vmem>>, vector<64x64xbf16>
    %cst_16 = arith.constant dense<0.000000e+00> : vector<24x64xf32>
    %19 = tpu.matmul %17, %18, %cst_16 {dimension_numbers = #tpu.dot_dimension_numbers<[1], [0], [0], [1], [0, 0, 1, 1], [], []>} : vector<24x64xbf16>, vector<64x64xbf16>, vector<24x64xf32> -> vector<24x64xf32>
    %20 = arith.addf %15, %19 : vector<24x64xf32>
    %c0_17 = arith.constant 0 : index
    %c7 = arith.constant 7 : index
    %c0_18 = arith.constant 0 : index
    %21 = vector.load %arg1[%c0_17, %c7, %c0_18] : memref<1x48x64xbf16, #tpu.memory_space<vmem>>, vector<1x24x64xbf16>
    %22 = vector.shape_cast %21 : vector<1x24x64xbf16> to vector<24x64xbf16>
    %c256 = arith.constant 256 : index
    %c0_19 = arith.constant 0 : index
    %23 = vector.load %arg2[%c256, %c0_19] : memref<576x64xbf16, #tpu.memory_space<vmem>>, vector<64x64xbf16>
    %cst_20 = arith.constant dense<0.000000e+00> : vector<24x64xf32>
    %24 = tpu.matmul %22, %23, %cst_20 {dimension_numbers = #tpu.dot_dimension_numbers<[1], [0], [0], [1], [0, 0, 1, 1], [], []>} : vector<24x64xbf16>, vector<64x64xbf16>, vector<24x64xf32> -> vector<24x64xf32>
    %25 = arith.addf %20, %24 : vector<24x64xf32>
    %c0_21 = arith.constant 0 : index
    %c8 = arith.constant 8 : index
    %c0_22 = arith.constant 0 : index
    %26 = vector.load %arg1[%c0_21, %c8, %c0_22] : memref<1x48x64xbf16, #tpu.memory_space<vmem>>, vector<1x24x64xbf16>
    %27 = vector.shape_cast %26 : vector<1x24x64xbf16> to vector<24x64xbf16>
    %c320 = arith.constant 320 : index
    %c0_23 = arith.constant 0 : index
    %28 = vector.load %arg2[%c320, %c0_23] : memref<576x64xbf16, #tpu.memory_space<vmem>>, vector<64x64xbf16>
    %cst_24 = arith.constant dense<0.000000e+00> : vector<24x64xf32>
    %29 = tpu.matmul %27, %28, %cst_24 {dimension_numbers = #tpu.dot_dimension_numbers<[1], [0], [0], [1], [0, 0, 1, 1], [], []>} : vector<24x64xbf16>, vector<64x64xbf16>, vector<24x64xf32> -> vector<24x64xf32>
    %30 = arith.addf %25, %29 : vector<24x64xf32>
    %c0_25 = arith.constant 0 : index
    %c12 = arith.constant 12 : index
    %c0_26 = arith.constant 0 : index
    %31 = vector.load %arg1[%c0_25, %c12, %c0_26] : memref<1x48x64xbf16, #tpu.memory_space<vmem>>, vector<1x24x64xbf16>
    %32 = vector.shape_cast %31 : vector<1x24x64xbf16> to vector<24x64xbf16>
    %c384 = arith.constant 384 : index
    %c0_27 = arith.constant 0 : index
    %33 = vector.load %arg2[%c384, %c0_27] : memref<576x64xbf16, #tpu.memory_space<vmem>>, vector<64x64xbf16>
    %cst_28 = arith.constant dense<0.000000e+00> : vector<24x64xf32>
    %34 = tpu.matmul %32, %33, %cst_28 {dimension_numbers = #tpu.dot_dimension_numbers<[1], [0], [0], [1], [0, 0, 1, 1], [], []>} : vector<24x64xbf16>, vector<64x64xbf16>, vector<24x64xf32> -> vector<24x64xf32>
    %35 = arith.addf %30, %34 : vector<24x64xf32>
    %c0_29 = arith.constant 0 : index
    %c13 = arith.constant 13 : index
    %c0_30 = arith.constant 0 : index
    %36 = vector.load %arg1[%c0_29, %c13, %c0_30] : memref<1x48x64xbf16, #tpu.memory_space<vmem>>, vector<1x24x64xbf16>
    %37 = vector.shape_cast %36 : vector<1x24x64xbf16> to vector<24x64xbf16>
    %c448 = arith.constant 448 : index
    %c0_31 = arith.constant 0 : index
    %38 = vector.load %arg2[%c448, %c0_31] : memref<576x64xbf16, #tpu.memory_space<vmem>>, vector<64x64xbf16>
    %cst_32 = arith.constant dense<0.000000e+00> : vector<24x64xf32>
    %39 = tpu.matmul %37, %38, %cst_32 {dimension_numbers = #tpu.dot_dimension_numbers<[1], [0], [0], [1], [0, 0, 1, 1], [], []>} : vector<24x64xbf16>, vector<64x64xbf16>, vector<24x64xf32> -> vector<24x64xf32>
    %40 = arith.addf %35, %39 : vector<24x64xf32>
    %c0_33 = arith.constant 0 : index
    %c14 = arith.constant 14 : index
    %c0_34 = arith.constant 0 : index
    %41 = vector.load %arg1[%c0_33, %c14, %c0_34] : memref<1x48x64xbf16, #tpu.memory_space<vmem>>, vector<1x24x64xbf16>
    %42 = vector.shape_cast %41 : vector<1x24x64xbf16> to vector<24x64xbf16>
    %c512 = arith.constant 512 : index
    %c0_35 = arith.constant 0 : index
    %43 = vector.load %arg2[%c512, %c0_35] : memref<576x64xbf16, #tpu.memory_space<vmem>>, vector<64x64xbf16>
    %cst_36 = arith.constant dense<0.000000e+00> : vector<24x64xf32>
    %44 = tpu.matmul %42, %43, %cst_36 {dimension_numbers = #tpu.dot_dimension_numbers<[1], [0], [0], [1], [0, 0, 1, 1], [], []>} : vector<24x64xbf16>, vector<64x64xbf16>, vector<24x64xf32> -> vector<24x64xf32>
    %45 = arith.addf %40, %44 : vector<24x64xf32>
    %c0_37 = arith.constant 0 : index
    %c0_38 = arith.constant 0 : index
    %46 = vector.load %arg3[%c0_37, %c0_38] : memref<1x64xf32, #tpu.memory_space<vmem>>, vector<1x64xf32>
    %47 = vector.broadcast %46 : vector<1x64xf32> to vector<24x64xf32>
    %48 = arith.addf %45, %47 : vector<24x64xf32>
    %c0_39 = arith.constant 0 : index
    %c0_40 = arith.constant 0 : index
    %49 = vector.load %arg4[%c0_39, %c0_40] : memref<24x64xbf16, #tpu.memory_space<vmem>>, vector<24x64xbf16>
    %50 = arith.extf %49 : vector<24x64xbf16> to vector<24x64xf32>
    %51 = arith.addf %48, %50 : vector<24x64xf32>
    %cst_41 = arith.constant 0.000000e+00 : f32
    %52 = vector.broadcast %cst_41 : f32 to vector<24x64xf32>
    %53 = arith.maximumf %51, %52 : vector<24x64xf32>
    %54 = arith.truncf %53 : vector<24x64xf32> to vector<24x64xbf16>
    %c0_42 = arith.constant 0 : index
    %c0_43 = arith.constant 0 : index
    %55 = vector.load %arg5[%c0_42, %c0_43] : memref<24x64xbf16, #tpu.memory_space<vmem>>, vector<24x64xbf16>
    tpu.vector_store %arg5[%c0_42, %c0_43], %54 {strides = array<i32>} : memref<24x64xbf16, #tpu.memory_space<vmem>>, vector<24x64xbf16>,
    return
  }
  func.func @transform_0(%arg0: i32) -> (i32, i32, i32) {
    %c0_i32 = arith.constant 0 : i32
    %c0_i32_0 = arith.constant 0 : i32
    %c0_i32_1 = arith.constant 0 : i32
    return %arg0, %c0_i32, %c0_i32_0 : i32, i32, i32
  }
  func.func @transform_1(%arg0: i32) -> (i32, i32) {
    %c0_i32 = arith.constant 0 : i32
    %c0_i32_0 = arith.constant 0 : i32
    %c0_i32_1 = arith.constant 0 : i32
    return %c0_i32, %c0_i32_0 : i32, i32
  }
  func.func @transform_2(%arg0: i32) -> (i32, i32) {
    %c0_i32 = arith.constant 0 : i32
    %c0_i32_0 = arith.constant 0 : i32
    %c0_i32_1 = arith.constant 0 : i32
    return %c0_i32, %c0_i32_0 : i32, i32
  }
  func.func @transform_3(%arg0: i32) -> (i32, i32) {
    %c0_i32 = arith.constant 0 : i32
    %c0_i32_0 = arith.constant 0 : i32
    return %arg0, %c0_i32 : i32, i32
  }
  func.func @transform_4(%arg0: i32) -> (i32, i32) {
    %c0_i32 = arith.constant 0 : i32
    %c0_i32_0 = arith.constant 0 : i32
    return %arg0, %c0_i32 : i32, i32
  }
}

module attributes {stable_mosaic.version = 11 : i64} {
  func.func @_conv3x3_kernel(%arg0: i32, %arg1: memref<1x120x32xbf16, #tpu.memory_space<vmem>>, %arg2: memref<288x64xbf16, #tpu.memory_space<vmem>>, %arg3: memref<1x64xf32, #tpu.memory_space<vmem>>, %arg4: memref<24x64xbf16, #tpu.memory_space<vmem>>) attributes {dimension_semantics = [#tpu.dimension_semantics<parallel>], iteration_bounds = array<i64: 2>, scalar_prefetch = 0 : i64, scratch_operands = 0 : i64, tpu.core_type = #tpu.core_type<tc>, window_params = [{transform_indices = @transform_0, window_bounds = array<i64: 1, 120, 32>}, {pipeline_mode = #tpu.pipeline_mode<synchronous>, transform_indices = @transform_1, window_bounds = array<i64: 288, 64>}, {pipeline_mode = #tpu.pipeline_mode<synchronous>, transform_indices = @transform_2, window_bounds = array<i64: 1, 64>}, {transform_indices = @transform_3, window_bounds = array<i64: 24, 64>}]} {
    %cst = arith.constant 0.000000e+00 : f32
    %0 = vector.broadcast %cst : f32 to vector<24x64xf32>
    %c0 = arith.constant 0 : index
    %c0_0 = arith.constant 0 : index
    %c0_1 = arith.constant 0 : index
    %1 = vector.load %arg1[%c0, %c0_0, %c0_1] : memref<1x120x32xbf16, #tpu.memory_space<vmem>>, vector<1x24x32xbf16>
    %2 = vector.shape_cast %1 : vector<1x24x32xbf16> to vector<24x32xbf16>
    %c0_2 = arith.constant 0 : index
    %c0_3 = arith.constant 0 : index
    %3 = vector.load %arg2[%c0_2, %c0_3] : memref<288x64xbf16, #tpu.memory_space<vmem>>, vector<32x64xbf16>
    %cst_4 = arith.constant dense<0.000000e+00> : vector<24x64xf32>
    %4 = tpu.matmul %2, %3, %cst_4 {dimension_numbers = #tpu.dot_dimension_numbers<[1], [0], [0], [1], [0, 0, 1, 1], [], []>} : vector<24x32xbf16>, vector<32x64xbf16>, vector<24x64xf32> -> vector<24x64xf32>
    %5 = arith.addf %0, %4 : vector<24x64xf32>
    %c0_5 = arith.constant 0 : index
    %c30 = arith.constant 30 : index
    %c0_6 = arith.constant 0 : index
    %6 = vector.load %arg1[%c0_5, %c30, %c0_6] : memref<1x120x32xbf16, #tpu.memory_space<vmem>>, vector<1x24x32xbf16>
    %7 = vector.shape_cast %6 : vector<1x24x32xbf16> to vector<24x32xbf16>
    %c32 = arith.constant 32 : index
    %c0_7 = arith.constant 0 : index
    %8 = vector.load %arg2[%c32, %c0_7] : memref<288x64xbf16, #tpu.memory_space<vmem>>, vector<32x64xbf16>
    %cst_8 = arith.constant dense<0.000000e+00> : vector<24x64xf32>
    %9 = tpu.matmul %7, %8, %cst_8 {dimension_numbers = #tpu.dot_dimension_numbers<[1], [0], [0], [1], [0, 0, 1, 1], [], []>} : vector<24x32xbf16>, vector<32x64xbf16>, vector<24x64xf32> -> vector<24x64xf32>
    %10 = arith.addf %5, %9 : vector<24x64xf32>
    %c0_9 = arith.constant 0 : index
    %c1 = arith.constant 1 : index
    %c0_10 = arith.constant 0 : index
    %11 = vector.load %arg1[%c0_9, %c1, %c0_10] : memref<1x120x32xbf16, #tpu.memory_space<vmem>>, vector<1x24x32xbf16>
    %12 = vector.shape_cast %11 : vector<1x24x32xbf16> to vector<24x32xbf16>
    %c64 = arith.constant 64 : index
    %c0_11 = arith.constant 0 : index
    %13 = vector.load %arg2[%c64, %c0_11] : memref<288x64xbf16, #tpu.memory_space<vmem>>, vector<32x64xbf16>
    %cst_12 = arith.constant dense<0.000000e+00> : vector<24x64xf32>
    %14 = tpu.matmul %12, %13, %cst_12 {dimension_numbers = #tpu.dot_dimension_numbers<[1], [0], [0], [1], [0, 0, 1, 1], [], []>} : vector<24x32xbf16>, vector<32x64xbf16>, vector<24x64xf32> -> vector<24x64xf32>
    %15 = arith.addf %10, %14 : vector<24x64xf32>
    %c0_13 = arith.constant 0 : index
    %c60 = arith.constant 60 : index
    %c0_14 = arith.constant 0 : index
    %16 = vector.load %arg1[%c0_13, %c60, %c0_14] : memref<1x120x32xbf16, #tpu.memory_space<vmem>>, vector<1x24x32xbf16>
    %17 = vector.shape_cast %16 : vector<1x24x32xbf16> to vector<24x32xbf16>
    %c96 = arith.constant 96 : index
    %c0_15 = arith.constant 0 : index
    %18 = vector.load %arg2[%c96, %c0_15] : memref<288x64xbf16, #tpu.memory_space<vmem>>, vector<32x64xbf16>
    %cst_16 = arith.constant dense<0.000000e+00> : vector<24x64xf32>
    %19 = tpu.matmul %17, %18, %cst_16 {dimension_numbers = #tpu.dot_dimension_numbers<[1], [0], [0], [1], [0, 0, 1, 1], [], []>} : vector<24x32xbf16>, vector<32x64xbf16>, vector<24x64xf32> -> vector<24x64xf32>
    %20 = arith.addf %15, %19 : vector<24x64xf32>
    %c0_17 = arith.constant 0 : index
    %c90 = arith.constant 90 : index
    %c0_18 = arith.constant 0 : index
    %21 = vector.load %arg1[%c0_17, %c90, %c0_18] : memref<1x120x32xbf16, #tpu.memory_space<vmem>>, vector<1x24x32xbf16>
    %22 = vector.shape_cast %21 : vector<1x24x32xbf16> to vector<24x32xbf16>
    %c128 = arith.constant 128 : index
    %c0_19 = arith.constant 0 : index
    %23 = vector.load %arg2[%c128, %c0_19] : memref<288x64xbf16, #tpu.memory_space<vmem>>, vector<32x64xbf16>
    %cst_20 = arith.constant dense<0.000000e+00> : vector<24x64xf32>
    %24 = tpu.matmul %22, %23, %cst_20 {dimension_numbers = #tpu.dot_dimension_numbers<[1], [0], [0], [1], [0, 0, 1, 1], [], []>} : vector<24x32xbf16>, vector<32x64xbf16>, vector<24x64xf32> -> vector<24x64xf32>
    %25 = arith.addf %20, %24 : vector<24x64xf32>
    %c0_21 = arith.constant 0 : index
    %c61 = arith.constant 61 : index
    %c0_22 = arith.constant 0 : index
    %26 = vector.load %arg1[%c0_21, %c61, %c0_22] : memref<1x120x32xbf16, #tpu.memory_space<vmem>>, vector<1x24x32xbf16>
    %27 = vector.shape_cast %26 : vector<1x24x32xbf16> to vector<24x32xbf16>
    %c160 = arith.constant 160 : index
    %c0_23 = arith.constant 0 : index
    %28 = vector.load %arg2[%c160, %c0_23] : memref<288x64xbf16, #tpu.memory_space<vmem>>, vector<32x64xbf16>
    %cst_24 = arith.constant dense<0.000000e+00> : vector<24x64xf32>
    %29 = tpu.matmul %27, %28, %cst_24 {dimension_numbers = #tpu.dot_dimension_numbers<[1], [0], [0], [1], [0, 0, 1, 1], [], []>} : vector<24x32xbf16>, vector<32x64xbf16>, vector<24x64xf32> -> vector<24x64xf32>
    %30 = arith.addf %25, %29 : vector<24x64xf32>
    %c0_25 = arith.constant 0 : index
    %c5 = arith.constant 5 : index
    %c0_26 = arith.constant 0 : index
    %31 = vector.load %arg1[%c0_25, %c5, %c0_26] : memref<1x120x32xbf16, #tpu.memory_space<vmem>>, vector<1x24x32xbf16>
    %32 = vector.shape_cast %31 : vector<1x24x32xbf16> to vector<24x32xbf16>
    %c192 = arith.constant 192 : index
    %c0_27 = arith.constant 0 : index
    %33 = vector.load %arg2[%c192, %c0_27] : memref<288x64xbf16, #tpu.memory_space<vmem>>, vector<32x64xbf16>
    %cst_28 = arith.constant dense<0.000000e+00> : vector<24x64xf32>
    %34 = tpu.matmul %32, %33, %cst_28 {dimension_numbers = #tpu.dot_dimension_numbers<[1], [0], [0], [1], [0, 0, 1, 1], [], []>} : vector<24x32xbf16>, vector<32x64xbf16>, vector<24x64xf32> -> vector<24x64xf32>
    %35 = arith.addf %30, %34 : vector<24x64xf32>
    %c0_29 = arith.constant 0 : index
    %c35 = arith.constant 35 : index
    %c0_30 = arith.constant 0 : index
    %36 = vector.load %arg1[%c0_29, %c35, %c0_30] : memref<1x120x32xbf16, #tpu.memory_space<vmem>>, vector<1x24x32xbf16>
    %37 = vector.shape_cast %36 : vector<1x24x32xbf16> to vector<24x32xbf16>
    %c224 = arith.constant 224 : index
    %c0_31 = arith.constant 0 : index
    %38 = vector.load %arg2[%c224, %c0_31] : memref<288x64xbf16, #tpu.memory_space<vmem>>, vector<32x64xbf16>
    %cst_32 = arith.constant dense<0.000000e+00> : vector<24x64xf32>
    %39 = tpu.matmul %37, %38, %cst_32 {dimension_numbers = #tpu.dot_dimension_numbers<[1], [0], [0], [1], [0, 0, 1, 1], [], []>} : vector<24x32xbf16>, vector<32x64xbf16>, vector<24x64xf32> -> vector<24x64xf32>
    %40 = arith.addf %35, %39 : vector<24x64xf32>
    %c0_33 = arith.constant 0 : index
    %c6 = arith.constant 6 : index
    %c0_34 = arith.constant 0 : index
    %41 = vector.load %arg1[%c0_33, %c6, %c0_34] : memref<1x120x32xbf16, #tpu.memory_space<vmem>>, vector<1x24x32xbf16>
    %42 = vector.shape_cast %41 : vector<1x24x32xbf16> to vector<24x32xbf16>
    %c256 = arith.constant 256 : index
    %c0_35 = arith.constant 0 : index
    %43 = vector.load %arg2[%c256, %c0_35] : memref<288x64xbf16, #tpu.memory_space<vmem>>, vector<32x64xbf16>
    %cst_36 = arith.constant dense<0.000000e+00> : vector<24x64xf32>
    %44 = tpu.matmul %42, %43, %cst_36 {dimension_numbers = #tpu.dot_dimension_numbers<[1], [0], [0], [1], [0, 0, 1, 1], [], []>} : vector<24x32xbf16>, vector<32x64xbf16>, vector<24x64xf32> -> vector<24x64xf32>
    %45 = arith.addf %40, %44 : vector<24x64xf32>
    %c0_37 = arith.constant 0 : index
    %c0_38 = arith.constant 0 : index
    %46 = vector.load %arg3[%c0_37, %c0_38] : memref<1x64xf32, #tpu.memory_space<vmem>>, vector<1x64xf32>
    %47 = vector.broadcast %46 : vector<1x64xf32> to vector<24x64xf32>
    %48 = arith.addf %45, %47 : vector<24x64xf32>
    %cst_39 = arith.constant 0.000000e+00 : f32
    %49 = vector.broadcast %cst_39 : f32 to vector<24x64xf32>
    %50 = arith.maximumf %48, %49 : vector<24x64xf32>
    %51 = arith.truncf %50 : vector<24x64xf32> to vector<24x64xbf16>
    %c0_40 = arith.constant 0 : index
    %c0_41 = arith.constant 0 : index
    %52 = vector.load %arg4[%c0_40, %c0_41] : memref<24x64xbf16, #tpu.memory_space<vmem>>, vector<24x64xbf16>
    tpu.vector_store %arg4[%c0_40, %c0_41], %51 {strides = array<i32>} : memref<24x64xbf16, #tpu.memory_space<vmem>>, vector<24x64xbf16>,
    return
  }
  func.func @transform_0(%arg0: i32) -> (i32, i32, i32) {
    %c0_i32 = arith.constant 0 : i32
    %c0_i32_0 = arith.constant 0 : i32
    %c0_i32_1 = arith.constant 0 : i32
    return %arg0, %c0_i32, %c0_i32_0 : i32, i32, i32
  }
  func.func @transform_1(%arg0: i32) -> (i32, i32) {
    %c0_i32 = arith.constant 0 : i32
    %c0_i32_0 = arith.constant 0 : i32
    %c0_i32_1 = arith.constant 0 : i32
    return %c0_i32, %c0_i32_0 : i32, i32
  }
  func.func @transform_2(%arg0: i32) -> (i32, i32) {
    %c0_i32 = arith.constant 0 : i32
    %c0_i32_0 = arith.constant 0 : i32
    %c0_i32_1 = arith.constant 0 : i32
    return %c0_i32, %c0_i32_0 : i32, i32
  }
  func.func @transform_3(%arg0: i32) -> (i32, i32) {
    %c0_i32 = arith.constant 0 : i32
    %c0_i32_0 = arith.constant 0 : i32
    return %arg0, %c0_i32 : i32, i32
  }
}

module attributes {stable_mosaic.version = 11 : i64} {
  func.func @_pool_fc_kernel(%arg0: i32, %arg1: memref<2x16x64xbf16, #tpu.memory_space<vmem>>, %arg2: memref<64x128xbf16, #tpu.memory_space<vmem>>, %arg3: memref<1x128xf32, #tpu.memory_space<vmem>>, %arg4: memref<2x128xf32, #tpu.memory_space<vmem>>) attributes {dimension_semantics = [#tpu.dimension_semantics<parallel>], iteration_bounds = array<i64: 1>, scalar_prefetch = 0 : i64, scratch_operands = 0 : i64, tpu.core_type = #tpu.core_type<tc>, window_params = [{transform_indices = @transform_0, window_bounds = array<i64: 2, 16, 64>}, {pipeline_mode = #tpu.pipeline_mode<synchronous>, transform_indices = @transform_1, window_bounds = array<i64: 64, 128>}, {pipeline_mode = #tpu.pipeline_mode<synchronous>, transform_indices = @transform_2, window_bounds = array<i64: 1, 128>}, {transform_indices = @transform_3, window_bounds = array<i64: 2, 128>}]} {
    %c0 = arith.constant 0 : index
    %c0_0 = arith.constant 0 : index
    %c0_1 = arith.constant 0 : index
    %0 = vector.load %arg1[%c0, %c0_0, %c0_1] : memref<2x16x64xbf16, #tpu.memory_space<vmem>>, vector<2x16x64xbf16>
    %1 = arith.extf %0 : vector<2x16x64xbf16> to vector<2x16x64xf32>
    %cst = arith.constant dense<0.000000e+00> : vector<2x64xf32>
    %2 = vector.multi_reduction <add>, %1, %cst [1] : vector<2x16x64xf32> to vector<2x64xf32>
    %cst_2 = arith.constant 6.250000e-02 : f32
    %3 = vector.broadcast %cst_2 : f32 to vector<2x64xf32>
    %4 = arith.mulf %2, %3 : vector<2x64xf32>
    %5 = arith.truncf %4 : vector<2x64xf32> to vector<2x64xbf16>
    %c0_3 = arith.constant 0 : index
    %c0_4 = arith.constant 0 : index
    %6 = vector.load %arg2[%c0_3, %c0_4] : memref<64x128xbf16, #tpu.memory_space<vmem>>, vector<64x128xbf16>
    %cst_5 = arith.constant dense<0.000000e+00> : vector<2x128xf32>
    %7 = tpu.matmul %5, %6, %cst_5 {dimension_numbers = #tpu.dot_dimension_numbers<[1], [0], [0], [1], [0, 0, 1, 1], [], []>} : vector<2x64xbf16>, vector<64x128xbf16>, vector<2x128xf32> -> vector<2x128xf32>
    %c0_6 = arith.constant 0 : index
    %c0_7 = arith.constant 0 : index
    %8 = vector.load %arg3[%c0_6, %c0_7] : memref<1x128xf32, #tpu.memory_space<vmem>>, vector<1x128xf32>
    %9 = vector.broadcast %8 : vector<1x128xf32> to vector<2x128xf32>
    %10 = arith.addf %7, %9 : vector<2x128xf32>
    %c0_8 = arith.constant 0 : index
    %c0_9 = arith.constant 0 : index
    %11 = vector.load %arg4[%c0_8, %c0_9] : memref<2x128xf32, #tpu.memory_space<vmem>>, vector<2x128xf32>
    tpu.vector_store %arg4[%c0_8, %c0_9], %10 {strides = array<i32>} : memref<2x128xf32, #tpu.memory_space<vmem>>, vector<2x128xf32>,
    return
  }
  func.func @transform_0(%arg0: i32) -> (i32, i32, i32) {
    %c0_i32 = arith.constant 0 : i32
    %c0_i32_0 = arith.constant 0 : i32
    %c0_i32_1 = arith.constant 0 : i32
    return %arg0, %c0_i32, %c0_i32_0 : i32, i32, i32
  }
  func.func @transform_1(%arg0: i32) -> (i32, i32) {
    %c0_i32 = arith.constant 0 : i32
    %c0_i32_0 = arith.constant 0 : i32
    %c0_i32_1 = arith.constant 0 : i32
    return %c0_i32, %c0_i32_0 : i32, i32
  }
  func.func @transform_2(%arg0: i32) -> (i32, i32) {
    %c0_i32 = arith.constant 0 : i32
    %c0_i32_0 = arith.constant 0 : i32
    %c0_i32_1 = arith.constant 0 : i32
    return %c0_i32, %c0_i32_0 : i32, i32
  }
  func.func @transform_3(%arg0: i32) -> (i32, i32) {
    %c0_i32 = arith.constant 0 : i32
    %c0_i32_0 = arith.constant 0 : i32
    return %arg0, %c0_i32 : i32, i32
  }
}

</mosaic_0001>

<llo_original>
// kernel: _lambda_.8
$region0: #{_lambda_.8}
  #allocation0 [shape = 'u32[]', space=smem, size = 0x4, offset = 0x4, fixed_abs, tag = 'smem constant byte address 0x4 - core index']
  #allocation1 [shape = 'u32[72,128]{1,0:T(1,128)}', space=vmem, size = 0x9000, scoped, tag = 'internal scratch']
  %s0 = inlined_call_operand.vmem [shape: bf16[2,360,16], index: 0, kind: input, shape index: {}]
  %s1 = inlined_call_operand.vmem [shape: bf16[144,16], index: 1, kind: input, shape index: {}]
  %s2 = inlined_call_operand.vmem [shape: f32[1,16], index: 2, kind: input, shape index: {}]
  %s3 = inlined_call_operand.vmem [shape: bf16[576,16], index: 3, kind: output, shape index: {}]
  %s4 = sld [smem:[#allocation0]]
  $region45: #{_lambda_.8} parent=0
    _
  %s6 = ssub.s32 1, %s4
  %s7 = scalar_select 0, %s6, %s4
  loop: start=0, step=1, limit=4
  $region2: #{_lambda_.8} parent=0 // loop_pre_header
    _
  $region3: #{_lambda_.8} parent=0 // loop_header
    %s9 = sphi 0, %s13
    %p10 = scmp.ge.s32.totalorder %s9, 4
    %s19 = sphi 0, %s21
    %s22 = sphi 0, %s19
    %s23 = sphi 0, %s22
    %s39 = sphi 0, %s23
    %s43 = sphi 0, %s43
    %s45 = sphi 0, %s43
    %s46 = sphi 0, %s45
    %s60 = sphi 0, %s46
    %s64 = sphi 0, %s64
    %s66 = sphi 0, %s64
    %s67 = sphi 0, %s66
    %s81 = sphi 0, %s67
    %s87 = sphi 0, %s89
    %s90 = sphi 0, %s87
    %s91 = sphi 0, %s90
    %s107 = sphi 0, %s91
  $region4: #{_lambda_.8} parent=0 // loop_header_branch
    %12 = sbr.rel (%p10) target = $region8
  $region5: #{_lambda_.8} parent=0 // loop_body
    %s14 = ssub.s32 %s9, 1
    %s15 = ssub.s32 %s9, 2
    %s16 = sadd.s32 %s9, 1
    %s17 = ssub.s32 %s9, %s16
    %p18 = scmp.eq.s32.totalorder %s17, 0
    %s20 = sadd.s32 %s19, 1
    %s21 = scalar_select %p18, %s19, %s20
    %p24 = pneg %p18
    %p25 = scmp.eq.s32.totalorder %s9, 1
    %p26 = por %p24, %p25
    %p27 = scmp.ne.s32.totalorder %s19, %s22
    %p28 = scmp.eq.s32.totalorder %s9, 0
    %p29 = por %p27, %p28
    %p30 = scmp.ne.s32.totalorder %s19, %s22
    %p31 = scmp.eq.s32.totalorder %s14, 1
    %p32 = por %p30, %p31
    %p33 = scmp.ne.s32.totalorder %s22, %s23
    %p34 = scmp.eq.s32.totalorder %s14, 0
    %p35 = por %p33, %p34
    %p36 = scmp.ne.s32.totalorder %s22, %s23
    %p37 = scmp.eq.s32.totalorder %s15, 1
    %p38 = por %p36, %p37
    %p40 = scmp.ne.s32.totalorder %s23, %s39
    %p41 = scmp.eq.s32.totalorder %s15, 0
    %p42 = por %p40, %p41
    %s44 = sadd.s32 %s43, 1
    %p47 = scmp.eq.s32.totalorder %s9, 1
    %p48 = scmp.ne.s32.totalorder %s43, %s45
    %p49 = scmp.eq.s32.totalorder %s9, 0
    %p50 = por %p48, %p49
    %p51 = scmp.ne.s32.totalorder %s43, %s45
    %p52 = scmp.eq.s32.totalorder %s14, 1
    %p53 = por %p51, %p52
    %p54 = scmp.ne.s32.totalorder %s45, %s46
    %p55 = scmp.eq.s32.totalorder %s14, 0
    %p56 = por %p54, %p55
    %p57 = scmp.ne.s32.totalorder %s45, %s46
    %p58 = scmp.eq.s32.totalorder %s15, 1
    %p59 = por %p57, %p58
    %p61 = scmp.ne.s32.totalorder %s46, %s60
    %p62 = scmp.eq.s32.totalorder %s15, 0
    %p63 = por %p61, %p62
    %s65 = sadd.s32 %s64, 1
    %p68 = scmp.eq.s32.totalorder %s9, 1
    %p69 = scmp.ne.s32.totalorder %s64, %s66
    %p70 = scmp.eq.s32.totalorder %s9, 0
    %p71 = por %p69, %p70
    %p72 = scmp.ne.s32.totalorder %s64, %s66
    %p73 = scmp.eq.s32.totalorder %s14, 1
    %p74 = por %p72, %p73
    %p75 = scmp.ne.s32.totalorder %s66, %s67
    %p76 = scmp.eq.s32.totalorder %s14, 0
    %p77 = por %p75, %p76
    %p78 = scmp.ne.s32.totalorder %s66, %s67
    %p79 = scmp.eq.s32.totalorder %s15, 1
    %p80 = por %p78, %p79
    %p82 = scmp.ne.s32.totalorder %s67, %s81
    %p83 = scmp.eq.s32.totalorder %s15, 0
    %p84 = por %p82, %p83
    %s85 = ssub.s32 %s9, %s16
    %p86 = scmp.eq.s32.totalorder %s85, 0
    %s88 = sadd.s32 %s87, 1
    %s89 = scalar_select %p86, %s87, %s88
    %p92 = pneg %p86
    %p93 = scmp.eq.s32.totalorder %s9, 1
    %p94 = por %p92, %p93
    %p95 = scmp.ne.s32.totalorder %s87, %s90
    %p96 = scmp.eq.s32.totalorder %s9, 0
    %p97 = por %p95, %p96
    %p98 = scmp.ne.s32.totalorder %s87, %s90
    %p99 = scmp.eq.s32.totalorder %s14, 1
    %p100 = por %p98, %p99
    %p101 = scmp.ne.s32.totalorder %s90, %s91
    %p102 = scmp.eq.s32.totalorder %s14, 0
    %p103 = por %p101, %p102
    %p104 = scmp.ne.s32.totalorder %s90, %s91
    %p105 = scmp.eq.s32.totalorder %s15, 1
    %p106 = por %p104, %p105
    %p108 = scmp.ne.s32.totalorder %s91, %s107
    %p109 = scmp.eq.s32.totalorder %s15, 0
    %p110 = por %p108, %p109
    %p111 = scmp.le.s32.totalorder 1, %s9
    %p112 = scmp.lt.s32.totalorder %s9, 3
    %p113 = pnand %p111, %p112
    %p114 = pneg %p113
    // Predicated region
    $region9: #{_lambda_.8} parent=5 // pred_check
      _
    $region10: #{_lambda_.8} parent=5 // pred_check_branch
      %116 = sbr.rel (%p113) target = $region12
    $region11: #{_lambda_.8} parent=5 // pred_region
      %s117 = ssub.s32 %s9, 1
      // Predicated region
      $region13: #{_lambda_.8} parent=11 // pred_check
        %p118 = pneg %p56
      $region14: #{_lambda_.8} parent=11 // pred_check_branch
        %120 = sbr.rel (%p118) target = $region16
      $region15: #{_lambda_.8} parent=11 // pred_region
        _
      $region16: #{_lambda_.8} parent=11 // pred_fallthru
        _
      // Predicated region
      $region17: #{_lambda_.8} parent=11 // pred_check
        %p121 = pneg %p77
      $region18: #{_lambda_.8} parent=11 // pred_check_branch
        %123 = sbr.rel (%p121) target = $region20
      $region19: #{_lambda_.8} parent=11 // pred_region
        _
      $region20: #{_lambda_.8} parent=11 // pred_fallthru
        _
    $region12: #{_lambda_.8} parent=5 // pred_fallthru
      _
    %p124 = scmp.lt.s32.totalorder %s9, 2
    // Predicated region
    $region21: #{_lambda_.8} parent=5 // pred_check
      %p125 = pneg %p124
    $region22: #{_lambda_.8} parent=5 // pred_check_branch
      %127 = sbr.rel (%p125) target = $region24
    $region23: #{_lambda_.8} parent=5 // pred_region
      // Predicated region
      $region25: #{_lambda_.8} parent=23 // pred_check
        %p128 = pneg %p29
      $region26: #{_lambda_.8} parent=23 // pred_check_branch
        %130 = sbr.rel (%p128) target = $region28
      $region27: #{_lambda_.8} parent=23 // pred_region
        %p131 = scmp.lt.s32.totalorder %s9, 1
        %s132 = scalar_select %p131, %s9, 1
        %s133 = smul.addr %s132, 45
        %s134 = smul.addr %s133, 4
        %s135 = scalar_lea.vmem %s0, %s134
      $region28: #{_lambda_.8} parent=23 // pred_fallthru
        _
    $region24: #{_lambda_.8} parent=5 // pred_fallthru
      _
    %p136 = scmp.le.s32.totalorder 1, %s9
    %p137 = scmp.lt.s32.totalorder %s9, 3
    %p138 = pnand %p136, %p137
    %p139 = pneg %p138
    // Predicated region
    $region29: #{_lambda_.8} parent=5 // pred_check
      _
    $region30: #{_lambda_.8} parent=5 // pred_check_branch
      %141 = sbr.rel (%p138) target = $region32
    $region31: #{_lambda_.8} parent=5 // pred_region
      %s142 = ssub.s32 %s9, 1
      %p143 = scmp.lt.s32.totalorder %s14, 1
      %s144 = scalar_select %p143, %s14, 1
      %s145 = smul.addr %s144, 45
      %s146 = smul.addr %s145, 4
      %s147 = scalar_lea.vmem %s0, %s146
      %p148 = pneg %p35
      %p149 = pneg %p32
      %p150 = pneg %p56
      %p151 = pneg %p53
      %p152 = pneg %p77
      %p153 = pneg %p74
      %p154 = pneg %p103
      %p155 = pneg %p100
      %s156 = smul.u32 36, %s14
      %p157 = scmp.lt.s32.totalorder %s156, 71
      %s158 = scalar_select %p157, %s156, 71
      %s159 = smul.addr %s158, 4
      %s160 = scalar_lea.vmem %s3, %s159
      %p161 = scmp.lt.s32.totalorder %s14, 1
      %s162 = scalar_select %p161, %s14, 1
      %s163 = smul.addr %s162, 45
      %s164 = smul.addr %s163, 4
      %s165 = scalar_lea.vmem %s0, %s164
      %s166 = smul.u32 36, %s14
      %p167 = scmp.lt.s32.totalorder %s166, 71
      %s168 = scalar_select %p167, %s166, 71
      %s169 = smul.addr %s168, 4
      %s170 = scalar_lea.vmem %s3, %s169
      %s171 = smul.u32 36, %s14
      %v173 = vld [vmem:[%s165] sm:$0xf]
      %v174 = vld [vmem:[%s165 + $0x4] sm:$0xf]
      %v175 = vld [vmem:[%s165 + $0x8] sm:$0xf]
      %v176 = vld [vmem:[%s165 + $0xc] sm:$0xf]
      %v177 = vld [vmem:[%s165 + $0x10] sm:$0xf]
      %v178 = vld [vmem:[%s165 + $0x14] sm:$0xf]
      %v179 = vld [vmem:[%s165 + $0x18] sm:$0xf]
      %v180 = vld [vmem:[%s165 + $0x1c] sm:$0xf]
      %v181 = vld [vmem:[%s165 + $0x20] sm:$0xf]
      %v182 = vld [vmem:[%s165 + $0x24] sm:$0xf]
      %v183 = vld [vmem:[%s165 + $0x28] sm:$0xf]
      %v184 = vld [vmem:[%s165 + $0x2c] sm:$0xf]
      %v185 = vld [vmem:[%s165 + $0x30] sm:$0xf]
      %v186 = vld [vmem:[%s165 + $0x34] sm:$0xf]
      %v187 = vld [vmem:[%s165 + $0x38] sm:$0xf]
      %v188 = vld [vmem:[%s165 + $0x3c] sm:$0xf]
      %v189 = vld [vmem:[%s165 + $0x40] sm:$0xf]
      %v190 = vld [vmem:[%s165 + $0x44] sm:$0xf]
      %v191 = vld [vmem:[%s165 + $0x48] sm:$0xf]
      %v192 = vld [vmem:[%s165 + $0x4c] sm:$0xf]
      %v193 = vld [vmem:[%s165 + $0x50] sm:$0xf]
      %v194 = vld [vmem:[%s165 + $0x54] sm:$0xf]
      %v195 = vld [vmem:[%s165 + $0x58] sm:$0xf]
      %v196 = vld [vmem:[%s165 + $0x5c] sm:$0xf]
      %v197 = vld [vmem:[%s165 + $0x60] sm:$0xf]
      %v198 = vld [vmem:[%s165 + $0x64] sm:$0xf]
      %v199 = vld [vmem:[%s165 + $0x68] sm:$0xf]
      %v200 = vld [vmem:[%s165 + $0x6c] sm:$0xf]
      %v201 = vld [vmem:[%s165 + $0x70] sm:$0xf]
      %v202 = vld [vmem:[%s165 + $0x74] sm:$0xf]
      %v203 = vld [vmem:[%s165 + $0x78] sm:$0xf]
      %v204 = vld [vmem:[%s165 + $0x7c] sm:$0xf]
      %v205 = vld [vmem:[%s165 + $0x80] sm:$0xf]
      %v206 = vld [vmem:[%s165 + $0x84] sm:$0xf]
      %v207 = vld [vmem:[%s165 + $0x88] sm:$0xf]
      %v208 = vld [vmem:[%s165 + $0x8c] sm:$0xf]
      %v209 = vld [vmem:[%s1] sm:$0xf]
      %v210 = vld [vmem:[%s1 + $0x4] sm:$0xf]
      %v211 = vld [vmem:[%s165 + $0x90] sm:$0x1]
      %v212 = vld [vmem:[%s1 + $0x8] sm:$0xf]
      %v213 = vld [vmem:[%s1 + $0xc] sm:$0xf]
      %v251 = vunpack.c.l.b16 %v173
      %v252 = vunpack.c.l.b16 %v174
      %v253 = vunpack.c.l.b16 %v175
      %v254 = vunpack.c.l.b16 %v176
      %v255 = vunpack.c.l.b16 %v177
      %v256 = vunpack.c.l.b16 %v178
      %v257 = vunpack.c.l.b16 %v179
      %v258 = vunpack.c.l.b16 %v180
      %v259 = vunpack.c.l.b16 %v181
      %v260 = vunpack.c.l.b16 %v182
      %v261 = vunpack.c.l.b16 %v183
      %v262 = vunpack.c.l.b16 %v184
      %v263 = vunpack.c.l.b16 %v185
      %v264 = vunpack.c.l.b16 %v186
      %v265 = vunpack.c.l.b16 %v187
      %v266 = vunpack.c.l.b16 %v188
      %v267 = vunpack.c.l.b16 %v189
      %v268 = vunpack.c.l.b16 %v190
      %v269 = vunpack.c.l.b16 %v191
      %v270 = vunpack.c.l.b16 %v192
      %v271 = vunpack.c.l.b16 %v193
      %v272 = vunpack.c.l.b16 %v194
      %v273 = vunpack.c.l.b16 %v195
      %v274 = vunpack.c.l.b16 %v196
      %v275 = vunpack.c.l.b16 %v197
      %v276 = vunpack.c.l.b16 %v198
      %v277 = vunpack.c.l.b16 %v199
      %v278 = vunpack.c.l.b16 %v200
      %v279 = vunpack.c.l.b16 %v201
      %v280 = vunpack.c.l.b16 %v202
      %v281 = vunpack.c.l.b16 %v203
      %v282 = vunpack.c.l.b16 %v204
      %v283 = vunpack.c.l.b16 %v205
      %v284 = vunpack.c.l.b16 %v206
      %v285 = vunpack.c.l.b16 %v207
      %v286 = vunpack.c.l.b16 %v208
      %v287 = vunpack.c.l.b16 %v211
      %v288 = vpack.c.b16 %v252, %v251
      %v289 = vpack.c.b16 %v254, %v253
      %v290 = vpack.c.b16 %v256, %v255
      %v291 = vpack.c.b16 %v258, %v257
      %v292 = vpack.c.b16 %v260, %v259
      %v293 = vpack.c.b16 %v262, %v261
      %v294 = vpack.c.b16 %v264, %v263
      %v295 = vpack.c.b16 %v266, %v265
      %v296 = vpack.c.b16 %v268, %v267
      %v297 = vpack.c.b16 %v270, %v269
      %v298 = vpack.c.b16 %v272, %v271
      %v299 = vpack.c.b16 %v274, %v273
      %v300 = vpack.c.b16 %v276, %v275
      %v301 = vpack.c.b16 %v278, %v277
      %v302 = vpack.c.b16 %v280, %v279
      %v303 = vpack.c.b16 %v282, %v281
      %v304 = vpack.c.b16 %v284, %v283
      %v305 = vpack.c.b16 %v286, %v285
      %v306 = vpack.c.b16 %v287, %v287
      %vm307 = vsmask.f32 7424
      %v309 = vshrl.u32 %v288, 16
      %v311 = vshll.u32 %v288, 16
      %v313 = vrot.slane %v311, 1
      %v314 = vor.u32 %v309, %v313
      %v316 = vshll.u32 %v289, 16
      %v318 = vrot.slane %v316, 1
      %v319 = vsel %vm307, %v314, %v318
      %v320 = vshrl.u32 %v289, 16
      %v322 = vor.u32 %v320, %v318
      %v324 = vshll.u32 %v290, 16
      %v326 = vrot.slane %v324, 1
      %v327 = vsel %vm307, %v322, %v326
      %v328 = vshrl.u32 %v290, 16
      %v330 = vor.u32 %v328, %v326
      %v332 = vshll.u32 %v291, 16
      %v334 = vrot.slane %v332, 1
      %v335 = vsel %vm307, %v330, %v334
      %v336 = vshrl.u32 %v291, 16
      %v338 = vor.u32 %v336, %v334
      %v340 = vshll.u32 %v292, 16
      %v342 = vrot.slane %v340, 1
      %v343 = vsel %vm307, %v338, %v342
      %v344 = vshrl.u32 %v292, 16
      %v346 = vor.u32 %v344, %v342
      %v348 = vshll.u32 %v293, 16
      %v350 = vrot.slane %v348, 1
      %v351 = vsel %vm307, %v346, %v350
      %v352 = vshrl.u32 %v293, 16
      %v354 = vor.u32 %v352, %v350
      %v356 = vshll.u32 %v294, 16
      %v358 = vrot.slane %v356, 1
      %v359 = vsel %vm307, %v354, %v358
      %v360 = vshrl.u32 %v294, 16
      %v362 = vor.u32 %v360, %v358
      %v364 = vshll.u32 %v295, 16
      %v366 = vrot.slane %v364, 1
      %v367 = vsel %vm307, %v362, %v366
      %v368 = vshrl.u32 %v295, 16
      %v370 = vor.u32 %v368, %v366
      %v372 = vshll.u32 %v296, 16
      %v374 = vrot.slane %v372, 1
      %v375 = vsel %vm307, %v370, %v374
      %v376 = vshrl.u32 %v296, 16
      %v378 = vor.u32 %v376, %v374
      %v380 = vshll.u32 %v297, 16
      %v382 = vrot.slane %v380, 1
      %v383 = vsel %vm307, %v378, %v382
      %v384 = vshrl.u32 %v297, 16
      %v386 = vor.u32 %v384, %v382
      %v388 = vshll.u32 %v298, 16
      %v390 = vrot.slane %v388, 1
      %v391 = vsel %vm307, %v386, %v390
      %v392 = vshrl.u32 %v298, 16
      %v394 = vor.u32 %v392, %v390
      %v396 = vshll.u32 %v299, 16
      %v398 = vrot.slane %v396, 1
      %v399 = vsel %vm307, %v394, %v398
      %v400 = vshrl.u32 %v299, 16
      %v402 = vor.u32 %v400, %v398
      %v404 = vshll.u32 %v300, 16
      %v406 = vrot.slane %v404, 1
      %v407 = vsel %vm307, %v402, %v406
      %v408 = vshrl.u32 %v300, 16
      %v410 = vor.u32 %v408, %v406
      %v412 = vshll.u32 %v301, 16
      %v414 = vrot.slane %v412, 1
      %v415 = vsel %vm307, %v410, %v414
      %v416 = vshrl.u32 %v301, 16
      %v418 = vor.u32 %v416, %v414
      %v420 = vshll.u32 %v302, 16
      %v422 = vrot.slane %v420, 1
      %v423 = vsel %vm307, %v418, %v422
      %v424 = vshrl.u32 %v302, 16
      %v426 = vor.u32 %v424, %v422
      %v428 = vshll.u32 %v303, 16
      %v430 = vrot.slane %v428, 1
      %v431 = vsel %vm307, %v426, %v430
      %v432 = vshrl.u32 %v303, 16
      %v434 = vor.u32 %v432, %v430
      %v436 = vshll.u32 %v304, 16
      %v438 = vrot.slane %v436, 1
      %v439 = vsel %vm307, %v434, %v438
      %v440 = vshrl.u32 %v304, 16
      %v442 = vor.u32 %v440, %v438
      %v444 = vshll.u32 %v305, 16
      %v446 = vrot.slane %v444, 1
      %v447 = vsel %vm307, %v442, %v446
      %v448 = vshrl.u32 %v305, 16
      %v450 = vor.u32 %v448, %v446
      %v452 = vshll.u32 %v306, 16
      %v454 = vrot.slane %v452, 1
      %v455 = vsel %vm307, %v450, %v454
      %v458 = vunpack.c.l.b16 %v212
      %v459 = vunpack.c.l.b16 %v213
      %v460 = vpack.c.b16 %v459, %v458
      %vm462 = vcmask 130048
      %v464 = vsel %vm462, %v319, 0
      %v467 = vsel %vm462, %v327, 0
      %v470 = vsel %vm462, %v335, 0
      %v473 = vsel %vm462, %v343, 0
      %v476 = vsel %vm462, %v351, 0
      %v479 = vsel %vm462, %v359, 0
      %v482 = vsel %vm462, %v367, 0
      %v485 = vsel %vm462, %v375, 0
      %v488 = vsel %vm462, %v383, 0
      %v491 = vsel %vm462, %v391, 0
      %v494 = vsel %vm462, %v399, 0
      %v497 = vsel %vm462, %v407, 0
      %v500 = vsel %vm462, %v415, 0
      %v503 = vsel %vm462, %v423, 0
      %v506 = vsel %vm462, %v431, 0
      %v509 = vsel %vm462, %v439, 0
      %v512 = vsel %vm462, %v447, 0
      %v515 = vsel %vm462, %v455, 0
      %517 = vmatpush.bf16.msra.mxu0 0
      %518 = vmatpush.bf16.msra.mxu0 0
      %519 = vmatpush.bf16.msra.mxu0 0
      %520 = vmatpush.bf16.msra.mxu0 0
      %521 = vmatpush.bf16.msra.mxu0 0
      %522 = vmatpush.bf16.msra.mxu0 0
      %523 = vmatpush.bf16.msra.mxu0 0
      %524 = vmatpush.bf16.msra.mxu0 %v460
      %525 = vmatmul.bf16.gmra.mxu0 %v464
      %v526 = vpop.f32.mrf.mxu0
      %v527 = vadd.f32 0.0, %v526
      %v528 = vpop.f32.mrf.mxu0
      %v529 = vadd.f32 0.0, %v528
      %530 = vmatmul.bf16.gmra.mxu0 %v467
      %v531 = vpop.f32.mrf.mxu0
      %v532 = vadd.f32 0.0, %v531
      %v533 = vpop.f32.mrf.mxu0
      %v534 = vadd.f32 0.0, %v533
      %535 = vmatmul.bf16.gmra.mxu0 %v470
      %v536 = vpop.f32.mrf.mxu0
      %v537 = vadd.f32 0.0, %v536
      %v538 = vpop.f32.mrf.mxu0
      %v539 = vadd.f32 0.0, %v538
      %540 = vmatmul.bf16.gmra.mxu0 %v473
      %v541 = vpop.f32.mrf.mxu0
      %v542 = vadd.f32 0.0, %v541
      %v543 = vpop.f32.mrf.mxu0
      %v544 = vadd.f32 0.0, %v543
      %545 = vmatmul.bf16.gmra.mxu0 %v476
      %v546 = vpop.f32.mrf.mxu0
      %v547 = vadd.f32 0.0, %v546
      %v548 = vpop.f32.mrf.mxu0
      %v549 = vadd.f32 0.0, %v548
      %550 = vmatmul.bf16.gmra.mxu0 %v479
      %v551 = vpop.f32.mrf.mxu0
      %v552 = vadd.f32 0.0, %v551
      %v553 = vpop.f32.mrf.mxu0
      %v554 = vadd.f32 0.0, %v553
      %555 = vmatmul.bf16.gmra.mxu0 %v482
      %v556 = vpop.f32.mrf.mxu0
      %v557 = vadd.f32 0.0, %v556
      %v558 = vpop.f32.mrf.mxu0
      %v559 = vadd.f32 0.0, %v558
      %560 = vmatmul.bf16.gmra.mxu0 %v485
      %v561 = vpop.f32.mrf.mxu0
      %v562 = vadd.f32 0.0, %v561
      %v563 = vpop.f32.mrf.mxu0
      %v564 = vadd.f32 0.0, %v563
      %565 = vmatmul.bf16.gmra.mxu0 %v488
      %v566 = vpop.f32.mrf.mxu0
      %v567 = vadd.f32 0.0, %v566
      %v568 = vpop.f32.mrf.mxu0
      %v569 = vadd.f32 0.0, %v568
      %570 = vmatmul.bf16.gmra.mxu0 %v491
      %v571 = vpop.f32.mrf.mxu0
      %v572 = vadd.f32 0.0, %v571
      %v573 = vpop.f32.mrf.mxu0
      %v574 = vadd.f32 0.0, %v573
      %575 = vmatmul.bf16.gmra.mxu0 %v494
      %v576 = vpop.f32.mrf.mxu0
      %v577 = vadd.f32 0.0, %v576
      %v578 = vpop.f32.mrf.mxu0
      %v579 = vadd.f32 0.0, %v578
      %580 = vmatmul.bf16.gmra.mxu0 %v497
      %v581 = vpop.f32.mrf.mxu0
      %v582 = vadd.f32 0.0, %v581
      %v583 = vpop.f32.mrf.mxu0
      %v584 = vadd.f32 0.0, %v583
      %585 = vmatmul.bf16.gmra.mxu0 %v500
      %v586 = vpop.f32.mrf.mxu0
      %v587 = vadd.f32 0.0, %v586
      %v588 = vpop.f32.mrf.mxu0
      %v589 = vadd.f32 0.0, %v588
      %590 = vmatmul.bf16.gmra.mxu0 %v503
      %v591 = vpop.f32.mrf.mxu0
      %v592 = vadd.f32 0.0, %v591
      %v593 = vpop.f32.mrf.mxu0
      %v594 = vadd.f32 0.0, %v593
      %595 = vmatmul.bf16.gmra.mxu0 %v506
      %v596 = vpop.f32.mrf.mxu0
      %v597 = vadd.f32 0.0, %v596
      %v598 = vpop.f32.mrf.mxu0
      %v599 = vadd.f32 0.0, %v598
      %600 = vmatmul.bf16.gmra.mxu0 %v509
      %v601 = vpop.f32.mrf.mxu0
      %v602 = vadd.f32 0.0, %v601
      %v603 = vpop.f32.mrf.mxu0
      %v604 = vadd.f32 0.0, %v603
      %605 = vmatmul.bf16.gmra.mxu0 %v512
      %v606 = vpop.f32.mrf.mxu0
      %v607 = vadd.f32 0.0, %v606
      %v608 = vpop.f32.mrf.mxu0
      %v609 = vadd.f32 0.0, %v608
      %610 = vmatmul.bf16.gmra.mxu0 %v515
      %v611 = vpop.f32.mrf.mxu0
      %v612 = vadd.f32 0.0, %v611
      %v613 = vpop.f32.mrf.mxu0
      %v614 = vadd.f32 0.0, %v613
      %615 = vdwg.mxu0
      %v618 = vunpack.c.l.b16 %v209
      %v619 = vunpack.c.l.b16 %v210
      %v620 = vpack.c.b16 %v619, %v618
      %v622 = vsel %vm462, %v288, 0
      %v624 = vsel %vm462, %v289, 0
      %v626 = vsel %vm462, %v290, 0
      %v628 = vsel %vm462, %v291, 0
      %v630 = vsel %vm462, %v292, 0
      %v632 = vsel %vm462, %v293, 0
      %v634 = vsel %vm462, %v294, 0
      %v636 = vsel %vm462, %v295, 0
      %v638 = vsel %vm462, %v296, 0
      %v640 = vsel %vm462, %v297, 0
      %v642 = vsel %vm462, %v298, 0
      %v644 = vsel %vm462, %v299, 0
      %v646 = vsel %vm462, %v300, 0
      %v648 = vsel %vm462, %v301, 0
      %v650 = vsel %vm462, %v302, 0
      %v652 = vsel %vm462, %v303, 0
      %v654 = vsel %vm462, %v304, 0
      %v656 = vsel %vm462, %v305, 0
      %658 = vmatpush.bf16.msra.mxu0 0
      %659 = vmatpush.bf16.msra.mxu0 0
      %660 = vmatpush.bf16.msra.mxu0 0
      %661 = vmatpush.bf16.msra.mxu0 0
      %662 = vmatpush.bf16.msra.mxu0 0
      %663 = vmatpush.bf16.msra.mxu0 0
      %664 = vmatpush.bf16.msra.mxu0 0
      %665 = vmatpush.bf16.msra.mxu0 %v620
      %666 = vmatmul.bf16.gmra.mxu0 %v622
      %v667 = vpop.f32.mrf.mxu0
      %v668 = vadd.f32 %v527, %v667
      %v669 = vpop.f32.mrf.mxu0
      %v670 = vadd.f32 %v529, %v669
      %671 = vmatmul.bf16.gmra.mxu0 %v624
      %v672 = vpop.f32.mrf.mxu0
      %v673 = vadd.f32 %v532, %v672
      %v674 = vpop.f32.mrf.mxu0
      %v675 = vadd.f32 %v534, %v674
      %676 = vmatmul.bf16.gmra.mxu0 %v626
      %v677 = vpop.f32.mrf.mxu0
      %v678 = vadd.f32 %v537, %v677
      %v679 = vpop.f32.mrf.mxu0
      %v680 = vadd.f32 %v539, %v679
      %681 = vmatmul.bf16.gmra.mxu0 %v628
      %v682 = vpop.f32.mrf.mxu0
      %v683 = vadd.f32 %v542, %v682
      %v684 = vpop.f32.mrf.mxu0
      %v685 = vadd.f32 %v544, %v684
      %686 = vmatmul.bf16.gmra.mxu0 %v630
      %v687 = vpop.f32.mrf.mxu0
      %v688 = vadd.f32 %v547, %v687
      %v689 = vpop.f32.mrf.mxu0
      %v690 = vadd.f32 %v549, %v689
      %691 = vmatmul.bf16.gmra.mxu0 %v632
      %v692 = vpop.f32.mrf.mxu0
      %v693 = vadd.f32 %v552, %v692
      %v694 = vpop.f32.mrf.mxu0
      %v695 = vadd.f32 %v554, %v694
      %696 = vmatmul.bf16.gmra.mxu0 %v634
      %v697 = vpop.f32.mrf.mxu0
      %v698 = vadd.f32 %v557, %v697
      %v699 = vpop.f32.mrf.mxu0
      %v700 = vadd.f32 %v559, %v699
      %701 = vmatmul.bf16.gmra.mxu0 %v636
      %v702 = vpop.f32.mrf.mxu0
      %v703 = vadd.f32 %v562, %v702
      %v704 = vpop.f32.mrf.mxu0
      %v705 = vadd.f32 %v564, %v704
      %706 = vmatmul.bf16.gmra.mxu0 %v638
      %v707 = vpop.f32.mrf.mxu0
      %v708 = vadd.f32 %v567, %v707
      %v709 = vpop.f32.mrf.mxu0
      %v710 = vadd.f32 %v569, %v709
      %711 = vmatmul.bf16.gmra.mxu0 %v640
      %v712 = vpop.f32.mrf.mxu0
      %v713 = vadd.f32 %v572, %v712
      %v714 = vpop.f32.mrf.mxu0
      %v715 = vadd.f32 %v574, %v714
      %716 = vmatmul.bf16.gmra.mxu0 %v642
      %v717 = vpop.f32.mrf.mxu0
      %v718 = vadd.f32 %v577, %v717
      %v719 = vpop.f32.mrf.mxu0
      %v720 = vadd.f32 %v579, %v719
      %721 = vmatmul.bf16.gmra.mxu0 %v644
      %v722 = vpop.f32.mrf.mxu0
      %v723 = vadd.f32 %v582, %v722
      %v724 = vpop.f32.mrf.mxu0
      %v725 = vadd.f32 %v584, %v724
      %726 = vmatmul.bf16.gmra.mxu0 %v646
      %v727 = vpop.f32.mrf.mxu0
      %v728 = vadd.f32 %v587, %v727
      %v729 = vpop.f32.mrf.mxu0
      %v730 = vadd.f32 %v589, %v729
      %731 = vmatmul.bf16.gmra.mxu0 %v648
      %v732 = vpop.f32.mrf.mxu0
      %v733 = vadd.f32 %v592, %v732
      %v734 = vpop.f32.mrf.mxu0
      %v735 = vadd.f32 %v594, %v734
      %736 = vmatmul.bf16.gmra.mxu0 %v650
      %v737 = vpop.f32.mrf.mxu0
      %v738 = vadd.f32 %v597, %v737
      %v739 = vpop.f32.mrf.mxu0
      %v740 = vadd.f32 %v599, %v739
      %741 = vmatmul.bf16.gmra.mxu0 %v652
      %v742 = vpop.f32.mrf.mxu0
      %v743 = vadd.f32 %v602, %v742
      %v744 = vpop.f32.mrf.mxu0
      %v745 = vadd.f32 %v604, %v744
      %746 = vmatmul.bf16.gmra.mxu0 %v654
      %v747 = vpop.f32.mrf.mxu0
      %v748 = vadd.f32 %v607, %v747
      %v749 = vpop.f32.mrf.mxu0
      %v750 = vadd.f32 %v609, %v749
      %751 = vmatmul.bf16.gmra.mxu0 %v656
      %v752 = vpop.f32.mrf.mxu0
      %v753 = vadd.f32 %v612, %v752
      %v754 = vpop.f32.mrf.mxu0
      %v755 = vadd.f32 %v614, %v754
      %756 = vdwg.mxu0
      %v757 = vld [vmem:[%s165] sm:$0xe]
      %v758 = vld [vmem:[%s1 + $0x10] sm:$0xf]
      %v759 = vld [vmem:[%s1 + $0x14] sm:$0xf]
      %v761 = vunpack.c.l.b16 %v757
      %v762 = vpack.c.b16 %v252, %v761
      %vm763 = vcmask 1046528
      %v764 = vrot.slane %v762, 1
      %v765 = vrot.slane %v289, 1
      %v766 = vsel %vm763, %v764, %v765
      %v767 = vrot.slane %v290, 1
      %v768 = vsel %vm763, %v765, %v767
      %v769 = vrot.slane %v291, 1
      %v770 = vsel %vm763, %v767, %v769
      %v771 = vrot.slane %v292, 1
      %v772 = vsel %vm763, %v769, %v771
      %v773 = vrot.slane %v293, 1
      %v774 = vsel %vm763, %v771, %v773
      %v775 = vrot.slane %v294, 1
      %v776 = vsel %vm763, %v773, %v775
      %v777 = vrot.slane %v295, 1
      %v778 = vsel %vm763, %v775, %v777
      %v779 = vrot.slane %v296, 1
      %v780 = vsel %vm763, %v777, %v779
      %v781 = vrot.slane %v297, 1
      %v782 = vsel %vm763, %v779, %v781
      %v783 = vrot.slane %v298, 1
      %v784 = vsel %vm763, %v781, %v783
      %v785 = vrot.slane %v299, 1
      %v786 = vsel %vm763, %v783, %v785
      %v787 = vrot.slane %v300, 1
      %v788 = vsel %vm763, %v785, %v787
      %v789 = vrot.slane %v301, 1
      %v790 = vsel %vm763, %v787, %v789
      %v791 = vrot.slane %v302, 1
      %v792 = vsel %vm763, %v789, %v791
      %v793 = vrot.slane %v303, 1
      %v794 = vsel %vm763, %v791, %v793
      %v795 = vrot.slane %v304, 1
      %v796 = vsel %vm763, %v793, %v795
      %v797 = vrot.slane %v305, 1
      %v798 = vsel %vm763, %v795, %v797
      %v799 = vrot.slane %v306, 1
      %v800 = vsel %vm763, %v797, %v799
      %v803 = vunpack.c.l.b16 %v758
      %v804 = vunpack.c.l.b16 %v759
      %v805 = vpack.c.b16 %v804, %v803
      %v808 = vsel %vm462, %v766, 0
      %v811 = vsel %vm462, %v768, 0
      %v814 = vsel %vm462, %v770, 0
      %v817 = vsel %vm462, %v772, 0
      %v820 = vsel %vm462, %v774, 0
      %v823 = vsel %vm462, %v776, 0
      %v826 = vsel %vm462, %v778, 0
      %v829 = vsel %vm462, %v780, 0
      %v832 = vsel %vm462, %v782, 0
      %v835 = vsel %vm462, %v784, 0
      %v838 = vsel %vm462, %v786, 0
      %v841 = vsel %vm462, %v788, 0
      %v844 = vsel %vm462, %v790, 0
      %v847 = vsel %vm462, %v792, 0
      %v850 = vsel %vm462, %v794, 0
      %v853 = vsel %vm462, %v796, 0
      %v856 = vsel %vm462, %v798, 0
      %v859 = vsel %vm462, %v800, 0
      %861 = vmatpush.bf16.msra.mxu0 0
      %862 = vmatpush.bf16.msra.mxu0 0
      %863 = vmatpush.bf16.msra.mxu0 0
      %864 = vmatpush.bf16.msra.mxu0 0
      %865 = vmatpush.bf16.msra.mxu0 0
      %866 = vmatpush.bf16.msra.mxu0 0
      %867 = vmatpush.bf16.msra.mxu0 0
      %868 = vmatpush.bf16.msra.mxu0 %v805
      %869 = vmatmul.bf16.gmra.mxu0 %v808
      %v870 = vpop.f32.mrf.mxu0
      %v871 = vadd.f32 0.0, %v870
      %v872 = vpop.f32.mrf.mxu0
      %v873 = vadd.f32 0.0, %v872
      %874 = vmatmul.bf16.gmra.mxu0 %v811
      %v875 = vpop.f32.mrf.mxu0
      %v876 = vadd.f32 0.0, %v875
      %v877 = vpop.f32.mrf.mxu0
      %v878 = vadd.f32 0.0, %v877
      %879 = vmatmul.bf16.gmra.mxu0 %v814
      %v880 = vpop.f32.mrf.mxu0
      %v881 = vadd.f32 0.0, %v880
      %v882 = vpop.f32.mrf.mxu0
      %v883 = vadd.f32 0.0, %v882
      %884 = vmatmul.bf16.gmra.mxu0 %v817
      %v885 = vpop.f32.mrf.mxu0
      %v886 = vadd.f32 0.0, %v885
      %v887 = vpop.f32.mrf.mxu0
      %v888 = vadd.f32 0.0, %v887
      %889 = vmatmul.bf16.gmra.mxu0 %v820
      %v890 = vpop.f32.mrf.mxu0
      %v891 = vadd.f32 0.0, %v890
      %v892 = vpop.f32.mrf.mxu0
      %v893 = vadd.f32 0.0, %v892
      %894 = vmatmul.bf16.gmra.mxu0 %v823
      %v895 = vpop.f32.mrf.mxu0
      %v896 = vadd.f32 0.0, %v895
      %v897 = vpop.f32.mrf.mxu0
      %v898 = vadd.f32 0.0, %v897
      %899 = vmatmul.bf16.gmra.mxu0 %v826
      %v900 = vpop.f32.mrf.mxu0
      %v901 = vadd.f32 0.0, %v900
      %v902 = vpop.f32.mrf.mxu0
      %v903 = vadd.f32 0.0, %v902
      %904 = vmatmul.bf16.gmra.mxu0 %v829
      %v905 = vpop.f32.mrf.mxu0
      %v906 = vadd.f32 0.0, %v905
      %v907 = vpop.f32.mrf.mxu0
      %v908 = vadd.f32 0.0, %v907
      %909 = vmatmul.bf16.gmra.mxu0 %v832
      %v910 = vpop.f32.mrf.mxu0
      %v911 = vadd.f32 0.0, %v910
      %v912 = vpop.f32.mrf.mxu0
      %v913 = vadd.f32 0.0, %v912
      %914 = vmatmul.bf16.gmra.mxu0 %v835
      %v915 = vpop.f32.mrf.mxu0
      %v916 = vadd.f32 0.0, %v915
      %v917 = vpop.f32.mrf.mxu0
      %v918 = vadd.f32 0.0, %v917
      %919 = vmatmul.bf16.gmra.mxu0 %v838
      %v920 = vpop.f32.mrf.mxu0
      %v921 = vadd.f32 0.0, %v920
      %v922 = vpop.f32.mrf.mxu0
      %v923 = vadd.f32 0.0, %v922
      %924 = vmatmul.bf16.gmra.mxu0 %v841
      %v925 = vpop.f32.mrf.mxu0
      %v926 = vadd.f32 0.0, %v925
      %v927 = vpop.f32.mrf.mxu0
      %v928 = vadd.f32 0.0, %v927
      %929 = vmatmul.bf16.gmra.mxu0 %v844
      %v930 = vpop.f32.mrf.mxu0
      %v931 = vadd.f32 0.0, %v930
      %v932 = vpop.f32.mrf.mxu0
      %v933 = vadd.f32 0.0, %v932
      %934 = vmatmul.bf16.gmra.mxu0 %v847
      %v935 = vpop.f32.mrf.mxu0
      %v936 = vadd.f32 0.0, %v935
      %v937 = vpop.f32.mrf.mxu0
      %v938 = vadd.f32 0.0, %v937
      %939 = vmatmul.bf16.gmra.mxu0 %v850
      %v940 = vpop.f32.mrf.mxu0
      %v941 = vadd.f32 0.0, %v940
      %v942 = vpop.f32.mrf.mxu0
      %v943 = vadd.f32 0.0, %v942
      %944 = vmatmul.bf16.gmra.mxu0 %v853
      %v945 = vpop.f32.mrf.mxu0
      %v946 = vadd.f32 0.0, %v945
      %v947 = vpop.f32.mrf.mxu0
      %v948 = vadd.f32 0.0, %v947
      %949 = vmatmul.bf16.gmra.mxu0 %v856
      %v950 = vpop.f32.mrf.mxu0
      %v951 = vadd.f32 0.0, %v950
      %v952 = vpop.f32.mrf.mxu0
      %v953 = vadd.f32 0.0, %v952
      %954 = vmatmul.bf16.gmra.mxu0 %v859
      %v955 = vpop.f32.mrf.mxu0
      %v956 = vadd.f32 0.0, %v955
      %v957 = vpop.f32.mrf.mxu0
      %v958 = vadd.f32 0.0, %v957
      %959 = vdwg.mxu0
      %v960 = vadd.f32 %v668, %v871
      %v961 = vadd.f32 %v670, %v873
      %v962 = vadd.f32 %v673, %v876
      %v963 = vadd.f32 %v675, %v878
      %v964 = vadd.f32 %v678, %v881
      %v965 = vadd.f32 %v680, %v883
      %v966 = vadd.f32 %v683, %v886
      %v967 = vadd.f32 %v685, %v888
      %v968 = vadd.f32 %v688, %v891
      %v969 = vadd.f32 %v690, %v893
      %v970 = vadd.f32 %v693, %v896
      %v971 = vadd.f32 %v695, %v898
      %v972 = vadd.f32 %v698, %v901
      %v973 = vadd.f32 %v700, %v903
      %v974 = vadd.f32 %v703, %v906
      %v975 = vadd.f32 %v705, %v908
      %v976 = vadd.f32 %v708, %v911
      %v977 = vadd.f32 %v710, %v913
      %v978 = vadd.f32 %v713, %v916
      %v979 = vadd.f32 %v715, %v918
      %v980 = vadd.f32 %v718, %v921
      %v981 = vadd.f32 %v720, %v923
      %v982 = vadd.f32 %v723, %v926
      %v983 = vadd.f32 %v725, %v928
      %v984 = vadd.f32 %v728, %v931
      %v985 = vadd.f32 %v730, %v933
      %v986 = vadd.f32 %v733, %v936
      %v987 = vadd.f32 %v735, %v938
      %v988 = vadd.f32 %v738, %v941
      %v989 = vadd.f32 %v740, %v943
      %v990 = vadd.f32 %v743, %v946
      %v991 = vadd.f32 %v745, %v948
      %v992 = vadd.f32 %v748, %v951
      %v993 = vadd.f32 %v750, %v953
      %v994 = vadd.f32 %v753, %v956
      %v995 = vadd.f32 %v755, %v958
      %v996 = vld [vmem:[%s165 + $0x8] sm:$0xe]
      %v997 = vld [vmem:[%s165 + $0xc] sm:$0xf]
      %v998 = vld [vmem:[%s165 + $0x10] sm:$0xf]
      %v999 = vld [vmem:[%s165 + $0x14] sm:$0xf]
      %v1000 = vld [vmem:[%s165 + $0x18] sm:$0xf]
      %v1001 = vld [vmem:[%s165 + $0x1c] sm:$0xf]
      %v1002 = vld [vmem:[%s165 + $0x20] sm:$0xf]
      %v1003 = vld [vmem:[%s165 + $0x24] sm:$0xf]
      %v1004 = vld [vmem:[%s165 + $0x28] sm:$0xf]
      %v1005 = vld [vmem:[%s165 + $0x2c] sm:$0xf]
      %v1006 = vld [vmem:[%s165 + $0x30] sm:$0xf]
      %v1007 = vld [vmem:[%s165 + $0x34] sm:$0xf]
      %v1008 = vld [vmem:[%s165 + $0x38] sm:$0xf]
      %v1009 = vld [vmem:[%s165 + $0x3c] sm:$0xf]
      %v1010 = vld [vmem:[%s165 + $0x40] sm:$0xf]
      %v1011 = vld [vmem:[%s165 + $0x44] sm:$0xf]
      %v1012 = vld [vmem:[%s165 + $0x48] sm:$0xf]
      %v1013 = vld [vmem:[%s165 + $0x4c] sm:$0xf]
      %v1014 = vld [vmem:[%s165 + $0x50] sm:$0xf]
      %v1015 = vld [vmem:[%s165 + $0x54] sm:$0xf]
      %v1016 = vld [vmem:[%s165 + $0x58] sm:$0xf]
      %v1017 = vld [vmem:[%s165 + $0x5c] sm:$0xf]
      %v1018 = vld [vmem:[%s165 + $0x60] sm:$0xf]
      %v1019 = vld [vmem:[%s165 + $0x64] sm:$0xf]
      %v1020 = vld [vmem:[%s165 + $0x68] sm:$0xf]
      %v1021 = vld [vmem:[%s165 + $0x6c] sm:$0xf]
      %v1022 = vld [vmem:[%s165 + $0x70] sm:$0xf]
      %v1023 = vld [vmem:[%s165 + $0x74] sm:$0xf]
      %v1024 = vld [vmem:[%s165 + $0x78] sm:$0xf]
      %v1025 = vld [vmem:[%s165 + $0x7c] sm:$0xf]
      %v1026 = vld [vmem:[%s165 + $0x80] sm:$0xf]
      %v1027 = vld [vmem:[%s165 + $0x84] sm:$0xf]
      %v1028 = vld [vmem:[%s165 + $0x88] sm:$0xf]
      %v1029 = vld [vmem:[%s165 + $0x8c] sm:$0xf]
      %v1030 = vld [vmem:[%s165 + $0x90] sm:$0xf]
      %v1031 = vld [vmem:[%s165 + $0x94] sm:$0xf]
      %v1032 = vld [vmem:[%s165 + $0x98] sm:$0x1]
      %v1033 = vld [vmem:[%s1 + $0x18] sm:$0xf]
      %v1034 = vld [vmem:[%s1 + $0x1c] sm:$0xf]
      %v1072 = vunpack.c.l.b16 %v996
      %v1073 = vunpack.c.l.b16 %v997
      %v1074 = vunpack.c.l.b16 %v998
      %v1075 = vunpack.c.l.b16 %v999
      %v1076 = vunpack.c.l.b16 %v1000
      %v1077 = vunpack.c.l.b16 %v1001
      %v1078 = vunpack.c.l.b16 %v1002
      %v1079 = vunpack.c.l.b16 %v1003
      %v1080 = vunpack.c.l.b16 %v1004
      %v1081 = vunpack.c.l.b16 %v1005
      %v1082 = vunpack.c.l.b16 %v1006
      %v1083 = vunpack.c.l.b16 %v1007
      %v1084 = vunpack.c.l.b16 %v1008
      %v1085 = vunpack.c.l.b16 %v1009
      %v1086 = vunpack.c.l.b16 %v1010
      %v1087 = vunpack.c.l.b16 %v1011
      %v1088 = vunpack.c.l.b16 %v1012
      %v1089 = vunpack.c.l.b16 %v1013
      %v1090 = vunpack.c.l.b16 %v1014
      %v1091 = vunpack.c.l.b16 %v1015
      %v1092 = vunpack.c.l.b16 %v1016
      %v1093 = vunpack.c.l.b16 %v1017
      %v1094 = vunpack.c.l.b16 %v1018
      %v1095 = vunpack.c.l.b16 %v1019
      %v1096 = vunpack.c.l.b16 %v1020
      %v1097 = vunpack.c.l.b16 %v1021
      %v1098 = vunpack.c.l.b16 %v1022
      %v1099 = vunpack.c.l.b16 %v1023
      %v1100 = vunpack.c.l.b16 %v1024
      %v1101 = vunpack.c.l.b16 %v1025
      %v1102 = vunpack.c.l.b16 %v1026
      %v1103 = vunpack.c.l.b16 %v1027
      %v1104 = vunpack.c.l.b16 %v1028
      %v1105 = vunpack.c.l.b16 %v1029
      %v1106 = vunpack.c.l.b16 %v1030
      %v1107 = vunpack.c.l.b16 %v1031
      %v1108 = vunpack.c.l.b16 %v1032
      %v1109 = vpack.c.b16 %v1073, %v1072
      %v1110 = vpack.c.b16 %v1075, %v1074
      %v1111 = vpack.c.b16 %v1077, %v1076
      %v1112 = vpack.c.b16 %v1079, %v1078
      %v1113 = vpack.c.b16 %v1081, %v1080
      %v1114 = vpack.c.b16 %v1083, %v1082
      %v1115 = vpack.c.b16 %v1085, %v1084
      %v1116 = vpack.c.b16 %v1087, %v1086
      %v1117 = vpack.c.b16 %v1089, %v1088
      %v1118 = vpack.c.b16 %v1091, %v1090
      %v1119 = vpack.c.b16 %v1093, %v1092
      %v1120 = vpack.c.b16 %v1095, %v1094
      %v1121 = vpack.c.b16 %v1097, %v1096
      %v1122 = vpack.c.b16 %v1099, %v1098
      %v1123 = vpack.c.b16 %v1101, %v1100
      %v1124 = vpack.c.b16 %v1103, %v1102
      %v1125 = vpack.c.b16 %v1105, %v1104
      %v1126 = vpack.c.b16 %v1107, %v1106
      %v1127 = vpack.c.b16 %v1108, %v1108
      %v1128 = vrot.slane %v1109, 1
      %v1129 = vrot.slane %v1110, 1
      %v1130 = vsel %vm763, %v1128, %v1129
      %v1131 = vrot.slane %v1111, 1
      %v1132 = vsel %vm763, %v1129, %v1131
      %v1133 = vrot.slane %v1112, 1
      %v1134 = vsel %vm763, %v1131, %v1133
      %v1135 = vrot.slane %v1113, 1
      %v1136 = vsel %vm763, %v1133, %v1135
      %v1137 = vrot.slane %v1114, 1
      %v1138 = vsel %vm763, %v1135, %v1137
      %v1139 = vrot.slane %v1115, 1
      %v1140 = vsel %vm763, %v1137, %v1139
      %v1141 = vrot.slane %v1116, 1
      %v1142 = vsel %vm763, %v1139, %v1141
      %v1143 = vrot.slane %v1117, 1
      %v1144 = vsel %vm763, %v1141, %v1143
      %v1145 = vrot.slane %v1118, 1
      %v1146 = vsel %vm763, %v1143, %v1145
      %v1147 = vrot.slane %v1119, 1
      %v1148 = vsel %vm763, %v1145, %v1147
      %v1149 = vrot.slane %v1120, 1
      %v1150 = vsel %vm763, %v1147, %v1149
      %v1151 = vrot.slane %v1121, 1
      %v1152 = vsel %vm763, %v1149, %v1151
      %v1153 = vrot.slane %v1122, 1
      %v1154 = vsel %vm763, %v1151, %v1153
      %v1155 = vrot.slane %v1123, 1
      %v1156 = vsel %vm763, %v1153, %v1155
      %v1157 = vrot.slane %v1124, 1
      %v1158 = vsel %vm763, %v1155, %v1157
      %v1159 = vrot.slane %v1125, 1
      %v1160 = vsel %vm763, %v1157, %v1159
      %v1161 = vrot.slane %v1126, 1
      %v1162 = vsel %vm763, %v1159, %v1161
      %v1163 = vrot.slane %v1127, 1
      %v1164 = vsel %vm763, %v1161, %v1163
      %v1167 = vunpack.c.l.b16 %v1033
      %v1168 = vunpack.c.l.b16 %v1034
      %v1169 = vpack.c.b16 %v1168, %v1167
      %v1172 = vsel %vm462, %v1130, 0
      %v1175 = vsel %vm462, %v1132, 0
      %v1178 = vsel %vm462, %v1134, 0
      %v1181 = vsel %vm462, %v1136, 0
      %v1184 = vsel %vm462, %v1138, 0
      %v1187 = vsel %vm462, %v1140, 0
      %v1190 = vsel %vm462, %v1142, 0
      %v1193 = vsel %vm462, %v1144, 0
      %v1196 = vsel %vm462, %v1146, 0
      %v1199 = vsel %vm462, %v1148, 0
      %v1202 = vsel %vm462, %v1150, 0
      %v1205 = vsel %vm462, %v1152, 0
      %v1208 = vsel %vm462, %v1154, 0
      %v1211 = vsel %vm462, %v1156, 0
      %v1214 = vsel %vm462, %v1158, 0
      %v1217 = vsel %vm462, %v1160, 0
      %v1220 = vsel %vm462, %v1162, 0
      %v1223 = vsel %vm462, %v1164, 0
      %1225 = vmatpush.bf16.msra.mxu0 0
      %1226 = vmatpush.bf16.msra.mxu0 0
      %1227 = vmatpush.bf16.msra.mxu0 0
      %1228 = vmatpush.bf16.msra.mxu0 0
      %1229 = vmatpush.bf16.msra.mxu0 0
      %1230 = vmatpush.bf16.msra.mxu0 0
      %1231 = vmatpush.bf16.msra.mxu0 0
      %1232 = vmatpush.bf16.msra.mxu0 %v1169
      %1233 = vmatmul.bf16.gmra.mxu0 %v1172
      %v1234 = vpop.f32.mrf.mxu0
      %v1235 = vadd.f32 0.0, %v1234
      %v1236 = vpop.f32.mrf.mxu0
      %v1237 = vadd.f32 0.0, %v1236
      %1238 = vmatmul.bf16.gmra.mxu0 %v1175
      %v1239 = vpop.f32.mrf.mxu0
      %v1240 = vadd.f32 0.0, %v1239
      %v1241 = vpop.f32.mrf.mxu0
      %v1242 = vadd.f32 0.0, %v1241
      %1243 = vmatmul.bf16.gmra.mxu0 %v1178
      %v1244 = vpop.f32.mrf.mxu0
      %v1245 = vadd.f32 0.0, %v1244
      %v1246 = vpop.f32.mrf.mxu0
      %v1247 = vadd.f32 0.0, %v1246
      %1248 = vmatmul.bf16.gmra.mxu0 %v1181
      %v1249 = vpop.f32.mrf.mxu0
      %v1250 = vadd.f32 0.0, %v1249
      %v1251 = vpop.f32.mrf.mxu0
      %v1252 = vadd.f32 0.0, %v1251
      %1253 = vmatmul.bf16.gmra.mxu0 %v1184
      %v1254 = vpop.f32.mrf.mxu0
      %v1255 = vadd.f32 0.0, %v1254
      %v1256 = vpop.f32.mrf.mxu0
      %v1257 = vadd.f32 0.0, %v1256
      %1258 = vmatmul.bf16.gmra.mxu0 %v1187
      %v1259 = vpop.f32.mrf.mxu0
      %v1260 = vadd.f32 0.0, %v1259
      %v1261 = vpop.f32.mrf.mxu0
      %v1262 = vadd.f32 0.0, %v1261
      %1263 = vmatmul.bf16.gmra.mxu0 %v1190
      %v1264 = vpop.f32.mrf.mxu0
      %v1265 = vadd.f32 0.0, %v1264
      %v1266 = vpop.f32.mrf.mxu0
      %v1267 = vadd.f32 0.0, %v1266
      %1268 = vmatmul.bf16.gmra.mxu0 %v1193
      %v1269 = vpop.f32.mrf.mxu0
      %v1270 = vadd.f32 0.0, %v1269
      %v1271 = vpop.f32.mrf.mxu0
      %v1272 = vadd.f32 0.0, %v1271
      %1273 = vmatmul.bf16.gmra.mxu0 %v1196
      %v1274 = vpop.f32.mrf.mxu0
      %v1275 = vadd.f32 0.0, %v1274
      %v1276 = vpop.f32.mrf.mxu0
      %v1277 = vadd.f32 0.0, %v1276
      %1278 = vmatmul.bf16.gmra.mxu0 %v1199
      %v1279 = vpop.f32.mrf.mxu0
      %v1280 = vadd.f32 0.0, %v1279
      %v1281 = vpop.f32.mrf.mxu0
      %v1282 = vadd.f32 0.0, %v1281
      %1283 = vmatmul.bf16.gmra.mxu0 %v1202
      %v1284 = vpop.f32.mrf.mxu0
      %v1285 = vadd.f32 0.0, %v1284
      %v1286 = vpop.f32.mrf.mxu0
      %v1287 = vadd.f32 0.0, %v1286
      %1288 = vmatmul.bf16.gmra.mxu0 %v1205
      %v1289 = vpop.f32.mrf.mxu0
      %v1290 = vadd.f32 0.0, %v1289
      %v1291 = vpop.f32.mrf.mxu0
      %v1292 = vadd.f32 0.0, %v1291
      %1293 = vmatmul.bf16.gmra.mxu0 %v1208
      %v1294 = vpop.f32.mrf.mxu0
      %v1295 = vadd.f32 0.0, %v1294
      %v1296 = vpop.f32.mrf.mxu0
      %v1297 = vadd.f32 0.0, %v1296
      %1298 = vmatmul.bf16.gmra.mxu0 %v1211
      %v1299 = vpop.f32.mrf.mxu0
      %v1300 = vadd.f32 0.0, %v1299
      %v1301 = vpop.f32.mrf.mxu0
      %v1302 = vadd.f32 0.0, %v1301
      %1303 = vmatmul.bf16.gmra.mxu0 %v1214
      %v1304 = vpop.f32.mrf.mxu0
      %v1305 = vadd.f32 0.0, %v1304
      %v1306 = vpop.f32.mrf.mxu0
      %v1307 = vadd.f32 0.0, %v1306
      %1308 = vmatmul.bf16.gmra.mxu0 %v1217
      %v1309 = vpop.f32.mrf.mxu0
      %v1310 = vadd.f32 0.0, %v1309
      %v1311 = vpop.f32.mrf.mxu0
      %v1312 = vadd.f32 0.0, %v1311
      %1313 = vmatmul.bf16.gmra.mxu0 %v1220
      %v1314 = vpop.f32.mrf.mxu0
      %v1315 = vadd.f32 0.0, %v1314
      %v1316 = vpop.f32.mrf.mxu0
      %v1317 = vadd.f32 0.0, %v1316
      %1318 = vmatmul.bf16.gmra.mxu0 %v1223
      %v1319 = vpop.f32.mrf.mxu0
      %v1320 = vadd.f32 0.0, %v1319
      %v1321 = vpop.f32.mrf.mxu0
      %v1322 = vadd.f32 0.0, %v1321
      %1323 = vdwg.mxu0
      %v1324 = vadd.f32 %v960, %v1235
      %v1325 = vadd.f32 %v961, %v1237
      %v1326 = vadd.f32 %v962, %v1240
      %v1327 = vadd.f32 %v963, %v1242
      %v1328 = vadd.f32 %v964, %v1245
      %v1329 = vadd.f32 %v965, %v1247
      %v1330 = vadd.f32 %v966, %v1250
      %v1331 = vadd.f32 %v967, %v1252
      %v1332 = vadd.f32 %v968, %v1255
      %v1333 = vadd.f32 %v969, %v1257
      %v1334 = vadd.f32 %v970, %v1260
      %v1335 = vadd.f32 %v971, %v1262
      %v1336 = vadd.f32 %v972, %v1265
      %v1337 = vadd.f32 %v973, %v1267
      %v1338 = vadd.f32 %v974, %v1270
      %v1339 = vadd.f32 %v975, %v1272
      %v1340 = vadd.f32 %v976, %v1275
      %v1341 = vadd.f32 %v977, %v1277
      %v1342 = vadd.f32 %v978, %v1280
      %v1343 = vadd.f32 %v979, %v1282
      %v1344 = vadd.f32 %v980, %v1285
      %v1345 = vadd.f32 %v981, %v1287
      %v1346 = vadd.f32 %v982, %v1290
      %v1347 = vadd.f32 %v983, %v1292
      %v1348 = vadd.f32 %v984, %v1295
      %v1349 = vadd.f32 %v985, %v1297
      %v1350 = vadd.f32 %v986, %v1300
      %v1351 = vadd.f32 %v987, %v1302
      %v1352 = vadd.f32 %v988, %v1305
      %v1353 = vadd.f32 %v989, %v1307
      %v1354 = vadd.f32 %v990, %v1310
      %v1355 = vadd.f32 %v991, %v1312
      %v1356 = vadd.f32 %v992, %v1315
      %v1357 = vadd.f32 %v993, %v1317
      %v1358 = vadd.f32 %v994, %v1320
      %v1359 = vadd.f32 %v995, %v1322
      %v1360 = vld [vmem:[%s165 + $0x98] sm:$0x3]
      %v1361 = vld [vmem:[%s1 + $0x20] sm:$0xf]
      %v1362 = vld [vmem:[%s1 + $0x24] sm:$0xf]
      %v1364 = vunpack.c.l.b16 %v1360
      %v1365 = vpack.c.b16 %v1364, %v1364
      %vm1366 = vsmask.f32 6400
      %v1368 = vshrl.u32 %v1109, 16
      %v1370 = vrot.slane %v1368, 1
      %v1371 = vshll.u32 %v1109, 16
      %v1373 = vrot.slane %v1371, 2
      %v1374 = vor.u32 %v1370, %v1373
      %v1376 = vshrl.u32 %v1110, 16
      %v1378 = vrot.slane %v1376, 1
      %v1379 = vshll.u32 %v1110, 16
      %v1381 = vrot.slane %v1379, 2
      %v1382 = vor.u32 %v1378, %v1381
      %v1383 = vsel %vm1366, %v1374, %v1382
      %v1385 = vshrl.u32 %v1111, 16
      %v1387 = vrot.slane %v1385, 1
      %v1388 = vshll.u32 %v1111, 16
      %v1390 = vrot.slane %v1388, 2
      %v1391 = vor.u32 %v1387, %v1390
      %v1392 = vsel %vm1366, %v1382, %v1391
      %v1394 = vshrl.u32 %v1112, 16
      %v1396 = vrot.slane %v1394, 1
      %v1397 = vshll.u32 %v1112, 16
      %v1399 = vrot.slane %v1397, 2
      %v1400 = vor.u32 %v1396, %v1399
      %v1401 = vsel %vm1366, %v1391, %v1400
      %v1403 = vshrl.u32 %v1113, 16
      %v1405 = vrot.slane %v1403, 1
      %v1406 = vshll.u32 %v1113, 16
      %v1408 = vrot.slane %v1406, 2
      %v1409 = vor.u32 %v1405, %v1408
      %v1410 = vsel %vm1366, %v1400, %v1409
      %v1412 = vshrl.u32 %v1114, 16
      %v1414 = vrot.slane %v1412, 1
      %v1415 = vshll.u32 %v1114, 16
      %v1417 = vrot.slane %v1415, 2
      %v1418 = vor.u32 %v1414, %v1417
      %v1419 = vsel %vm1366, %v1409, %v1418
      %v1421 = vshrl.u32 %v1115, 16
      %v1423 = vrot.slane %v1421, 1
      %v1424 = vshll.u32 %v1115, 16
      %v1426 = vrot.slane %v1424, 2
      %v1427 = vor.u32 %v1423, %v1426
      %v1428 = vsel %vm1366, %v1418, %v1427
      %v1430 = vshrl.u32 %v1116, 16
      %v1432 = vrot.slane %v1430, 1
      %v1433 = vshll.u32 %v1116, 16
      %v1435 = vrot.slane %v1433, 2
      %v1436 = vor.u32 %v1432, %v1435
      %v1437 = vsel %vm1366, %v1427, %v1436
      %v1439 = vshrl.u32 %v1117, 16
      %v1441 = vrot.slane %v1439, 1
      %v1442 = vshll.u32 %v1117, 16
      %v1444 = vrot.slane %v1442, 2
      %v1445 = vor.u32 %v1441, %v1444
      %v1446 = vsel %vm1366, %v1436, %v1445
      %v1448 = vshrl.u32 %v1118, 16
      %v1450 = vrot.slane %v1448, 1
      %v1451 = vshll.u32 %v1118, 16
      %v1453 = vrot.slane %v1451, 2
      %v1454 = vor.u32 %v1450, %v1453
      %v1455 = vsel %vm1366, %v1445, %v1454
      %v1457 = vshrl.u32 %v1119, 16
      %v1459 = vrot.slane %v1457, 1
      %v1460 = vshll.u32 %v1119, 16
      %v1462 = vrot.slane %v1460, 2
      %v1463 = vor.u32 %v1459, %v1462
      %v1464 = vsel %vm1366, %v1454, %v1463
      %v1466 = vshrl.u32 %v1120, 16
      %v1468 = vrot.slane %v1466, 1
      %v1469 = vshll.u32 %v1120, 16
      %v1471 = vrot.slane %v1469, 2
      %v1472 = vor.u32 %v1468, %v1471
      %v1473 = vsel %vm1366, %v1463, %v1472
      %v1475 = vshrl.u32 %v1121, 16
      %v1477 = vrot.slane %v1475, 1
      %v1478 = vshll.u32 %v1121, 16
      %v1480 = vrot.slane %v1478, 2
      %v1481 = vor.u32 %v1477, %v1480
      %v1482 = vsel %vm1366, %v1472, %v1481
      %v1484 = vshrl.u32 %v1122, 16
      %v1486 = vrot.slane %v1484, 1
      %v1487 = vshll.u32 %v1122, 16
      %v1489 = vrot.slane %v1487, 2
      %v1490 = vor.u32 %v1486, %v1489
      %v1491 = vsel %vm1366, %v1481, %v1490
      %v1493 = vshrl.u32 %v1123, 16
      %v1495 = vrot.slane %v1493, 1
      %v1496 = vshll.u32 %v1123, 16
      %v1498 = vrot.slane %v1496, 2
      %v1499 = vor.u32 %v1495, %v1498
      %v1500 = vsel %vm1366, %v1490, %v1499
      %v1502 = vshrl.u32 %v1124, 16
      %v1504 = vrot.slane %v1502, 1
      %v1505 = vshll.u32 %v1124, 16
      %v1507 = vrot.slane %v1505, 2
      %v1508 = vor.u32 %v1504, %v1507
      %v1509 = vsel %vm1366, %v1499, %v1508
      %v1511 = vshrl.u32 %v1125, 16
      %v1513 = vrot.slane %v1511, 1
      %v1514 = vshll.u32 %v1125, 16
      %v1516 = vrot.slane %v1514, 2
      %v1517 = vor.u32 %v1513, %v1516
      %v1518 = vsel %vm1366, %v1508, %v1517
      %v1520 = vshrl.u32 %v1126, 16
      %v1522 = vrot.slane %v1520, 1
      %v1523 = vshll.u32 %v1126, 16
      %v1525 = vrot.slane %v1523, 2
      %v1526 = vor.u32 %v1522, %v1525
      %v1527 = vsel %vm1366, %v1517, %v1526
      %v1529 = vshrl.u32 %v1365, 16
      %v1531 = vrot.slane %v1529, 1
      %v1532 = vshll.u32 %v1365, 16
      %v1534 = vrot.slane %v1532, 2
      %v1535 = vor.u32 %v1531, %v1534
      %v1536 = vsel %vm1366, %v1526, %v1535
      %v1539 = vunpack.c.l.b16 %v1361
      %v1540 = vunpack.c.l.b16 %v1362
      %v1541 = vpack.c.b16 %v1540, %v1539
      %v1544 = vsel %vm462, %v1383, 0
      %v1547 = vsel %vm462, %v1392, 0
      %v1550 = vsel %vm462, %v1401, 0
      %v1553 = vsel %vm462, %v1410, 0
      %v1556 = vsel %vm462, %v1419, 0
      %v1559 = vsel %vm462, %v1428, 0
      %v1562 = vsel %vm462, %v1437, 0
      %v1565 = vsel %vm462, %v1446, 0
      %v1568 = vsel %vm462, %v1455, 0
      %v1571 = vsel %vm462, %v1464, 0
      %v1574 = vsel %vm462, %v1473, 0
      %v1577 = vsel %vm462, %v1482, 0
      %v1580 = vsel %vm462, %v1491, 0
      %v1583 = vsel %vm462, %v1500, 0
      %v1586 = vsel %vm462, %v1509, 0
      %v1589 = vsel %vm462, %v1518, 0
      %v1592 = vsel %vm462, %v1527, 0
      %v1595 = vsel %vm462, %v1536, 0
      %1597 = vmatpush.bf16.msra.mxu0 0
      %1598 = vmatpush.bf16.msra.mxu0 0
      %1599 = vmatpush.bf16.msra.mxu0 0
      %1600 = vmatpush.bf16.msra.mxu0 0
      %1601 = vmatpush.bf16.msra.mxu0 0
      %1602 = vmatpush.bf16.msra.mxu0 0
      %1603 = vmatpush.bf16.msra.mxu0 0
      %1604 = vmatpush.bf16.msra.mxu0 %v1541
      %1605 = vmatmul.bf16.gmra.mxu0 %v1544
      %v1606 = vpop.f32.mrf.mxu0
      %v1607 = vadd.f32 0.0, %v1606
      %v1608 = vpop.f32.mrf.mxu0
      %v1609 = vadd.f32 0.0, %v1608
      %1610 = vmatmul.bf16.gmra.mxu0 %v1547
      %v1611 = vpop.f32.mrf.mxu0
      %v1612 = vadd.f32 0.0, %v1611
      %v1613 = vpop.f32.mrf.mxu0
      %v1614 = vadd.f32 0.0, %v1613
      %1615 = vmatmul.bf16.gmra.mxu0 %v1550
      %v1616 = vpop.f32.mrf.mxu0
      %v1617 = vadd.f32 0.0, %v1616
      %v1618 = vpop.f32.mrf.mxu0
      %v1619 = vadd.f32 0.0, %v1618
      %1620 = vmatmul.bf16.gmra.mxu0 %v1553
      %v1621 = vpop.f32.mrf.mxu0
      %v1622 = vadd.f32 0.0, %v1621
      %v1623 = vpop.f32.mrf.mxu0
      %v1624 = vadd.f32 0.0, %v1623
      %1625 = vmatmul.bf16.gmra.mxu0 %v1556
      %v1626 = vpop.f32.mrf.mxu0
      %v1627 = vadd.f32 0.0, %v1626
      %v1628 = vpop.f32.mrf.mxu0
      %v1629 = vadd.f32 0.0, %v1628
      %1630 = vmatmul.bf16.gmra.mxu0 %v1559
      %v1631 = vpop.f32.mrf.mxu0
      %v1632 = vadd.f32 0.0, %v1631
      %v1633 = vpop.f32.mrf.mxu0
      %v1634 = vadd.f32 0.0, %v1633
      %1635 = vmatmul.bf16.gmra.mxu0 %v1562
      %v1636 = vpop.f32.mrf.mxu0
      %v1637 = vadd.f32 0.0, %v1636
      %v1638 = vpop.f32.mrf.mxu0
      %v1639 = vadd.f32 0.0, %v1638
      %1640 = vmatmul.bf16.gmra.mxu0 %v1565
      %v1641 = vpop.f32.mrf.mxu0
      %v1642 = vadd.f32 0.0, %v1641
      %v1643 = vpop.f32.mrf.mxu0
      %v1644 = vadd.f32 0.0, %v1643
      %1645 = vmatmul.bf16.gmra.mxu0 %v1568
      %v1646 = vpop.f32.mrf.mxu0
      %v1647 = vadd.f32 0.0, %v1646
      %v1648 = vpop.f32.mrf.mxu0
      %v1649 = vadd.f32 0.0, %v1648
      %1650 = vmatmul.bf16.gmra.mxu0 %v1571
      %v1651 = vpop.f32.mrf.mxu0
      %v1652 = vadd.f32 0.0, %v1651
      %v1653 = vpop.f32.mrf.mxu0
      %v1654 = vadd.f32 0.0, %v1653
      %1655 = vmatmul.bf16.gmra.mxu0 %v1574
      %v1656 = vpop.f32.mrf.mxu0
      %v1657 = vadd.f32 0.0, %v1656
      %v1658 = vpop.f32.mrf.mxu0
      %v1659 = vadd.f32 0.0, %v1658
      %1660 = vmatmul.bf16.gmra.mxu0 %v1577
      %v1661 = vpop.f32.mrf.mxu0
      %v1662 = vadd.f32 0.0, %v1661
      %v1663 = vpop.f32.mrf.mxu0
      %v1664 = vadd.f32 0.0, %v1663
      %1665 = vmatmul.bf16.gmra.mxu0 %v1580
      %v1666 = vpop.f32.mrf.mxu0
      %v1667 = vadd.f32 0.0, %v1666
      %v1668 = vpop.f32.mrf.mxu0
      %v1669 = vadd.f32 0.0, %v1668
      %1670 = vmatmul.bf16.gmra.mxu0 %v1583
      %v1671 = vpop.f32.mrf.mxu0
      %v1672 = vadd.f32 0.0, %v1671
      %v1673 = vpop.f32.mrf.mxu0
      %v1674 = vadd.f32 0.0, %v1673
      %1675 = vmatmul.bf16.gmra.mxu0 %v1586
      %v1676 = vpop.f32.mrf.mxu0
      %v1677 = vadd.f32 0.0, %v1676
      %v1678 = vpop.f32.mrf.mxu0
      %v1679 = vadd.f32 0.0, %v1678
      %1680 = vmatmul.bf16.gmra.mxu0 %v1589
      %v1681 = vpop.f32.mrf.mxu0
      %v1682 = vadd.f32 0.0, %v1681
      %v1683 = vpop.f32.mrf.mxu0
      %v1684 = vadd.f32 0.0, %v1683
      %1685 = vmatmul.bf16.gmra.mxu0 %v1592
      %v1686 = vpop.f32.mrf.mxu0
      %v1687 = vadd.f32 0.0, %v1686
      %v1688 = vpop.f32.mrf.mxu0
      %v1689 = vadd.f32 0.0, %v1688
      %1690 = vmatmul.bf16.gmra.mxu0 %v1595
      %v1691 = vpop.f32.mrf.mxu0
      %v1692 = vadd.f32 0.0, %v1691
      %v1693 = vpop.f32.mrf.mxu0
      %v1694 = vadd.f32 0.0, %v1693
      %1695 = vdwg.mxu0
      %v1696 = vadd.f32 %v1324, %v1607
      %v1697 = vadd.f32 %v1325, %v1609
      %v1698 = vadd.f32 %v1326, %v1612
      %v1699 = vadd.f32 %v1327, %v1614
      %v1700 = vadd.f32 %v1328, %v1617
      %v1701 = vadd.f32 %v1329, %v1619
      %v1702 = vadd.f32 %v1330, %v1622
      %v1703 = vadd.f32 %v1331, %v1624
      %v1704 = vadd.f32 %v1332, %v1627
      %v1705 = vadd.f32 %v1333, %v1629
      %v1706 = vadd.f32 %v1334, %v1632
      %v1707 = vadd.f32 %v1335, %v1634
      %v1708 = vadd.f32 %v1336, %v1637
      %v1709 = vadd.f32 %v1337, %v1639
      %v1710 = vadd.f32 %v1338, %v1642
      %v1711 = vadd.f32 %v1339, %v1644
      %v1712 = vadd.f32 %v1340, %v1647
      %v1713 = vadd.f32 %v1341, %v1649
      %v1714 = vadd.f32 %v1342, %v1652
      %v1715 = vadd.f32 %v1343, %v1654
      %v1716 = vadd.f32 %v1344, %v1657
      %v1717 = vadd.f32 %v1345, %v1659
      %v1718 = vadd.f32 %v1346, %v1662
      %v1719 = vadd.f32 %v1347, %v1664
      %v1720 = vadd.f32 %v1348, %v1667
      %v1721 = vadd.f32 %v1349, %v1669
      %v1722 = vadd.f32 %v1350, %v1672
      %v1723 = vadd.f32 %v1351, %v1674
      %v1724 = vadd.f32 %v1352, %v1677
      %v1725 = vadd.f32 %v1353, %v1679
      %v1726 = vadd.f32 %v1354, %v1682
      %v1727 = vadd.f32 %v1355, %v1684
      %v1728 = vadd.f32 %v1356, %v1687
      %v1729 = vadd.f32 %v1357, %v1689
      %v1730 = vadd.f32 %v1358, %v1692
      %v1731 = vadd.f32 %v1359, %v1694
      %v1732 = vld [vmem:[%s165 + $0x8] sm:$0xc]
      %v1733 = vld [vmem:[%s1 + $0x28] sm:$0xf]
      %v1734 = vld [vmem:[%s1 + $0x2c] sm:$0xf]
      %v1736 = vunpack.c.l.b16 %v1732
      %v1737 = vpack.c.b16 %v1073, %v1736
      %vm1738 = vcmask 1045504
      %v1739 = vrot.slane %v1737, 2
      %v1740 = vrot.slane %v1110, 2
      %v1741 = vsel %vm1738, %v1739, %v1740
      %v1742 = vrot.slane %v1111, 2
      %v1743 = vsel %vm1738, %v1740, %v1742
      %v1744 = vrot.slane %v1112, 2
      %v1745 = vsel %vm1738, %v1742, %v1744
      %v1746 = vrot.slane %v1113, 2
      %v1747 = vsel %vm1738, %v1744, %v1746
      %v1748 = vrot.slane %v1114, 2
      %v1749 = vsel %vm1738, %v1746, %v1748
      %v1750 = vrot.slane %v1115, 2
      %v1751 = vsel %vm1738, %v1748, %v1750
      %v1752 = vrot.slane %v1116, 2
      %v1753 = vsel %vm1738, %v1750, %v1752
      %v1754 = vrot.slane %v1117, 2
      %v1755 = vsel %vm1738, %v1752, %v1754
      %v1756 = vrot.slane %v1118, 2
      %v1757 = vsel %vm1738, %v1754, %v1756
      %v1758 = vrot.slane %v1119, 2
      %v1759 = vsel %vm1738, %v1756, %v1758
      %v1760 = vrot.slane %v1120, 2
      %v1761 = vsel %vm1738, %v1758, %v1760
      %v1762 = vrot.slane %v1121, 2
      %v1763 = vsel %vm1738, %v1760, %v1762
      %v1764 = vrot.slane %v1122, 2
      %v1765 = vsel %vm1738, %v1762, %v1764
      %v1766 = vrot.slane %v1123, 2
      %v1767 = vsel %vm1738, %v1764, %v1766
      %v1768 = vrot.slane %v1124, 2
      %v1769 = vsel %vm1738, %v1766, %v1768
      %v1770 = vrot.slane %v1125, 2
      %v1771 = vsel %vm1738, %v1768, %v1770
      %v1772 = vrot.slane %v1126, 2
      %v1773 = vsel %vm1738, %v1770, %v1772
      %v1774 = vrot.slane %v1365, 2
      %v1775 = vsel %vm1738, %v1772, %v1774
      %v1778 = vunpack.c.l.b16 %v1733
      %v1779 = vunpack.c.l.b16 %v1734
      %v1780 = vpack.c.b16 %v1779, %v1778
      %v1783 = vsel %vm462, %v1741, 0
      %v1786 = vsel %vm462, %v1743, 0
      %v1789 = vsel %vm462, %v1745, 0
      %v1792 = vsel %vm462, %v1747, 0
      %v1795 = vsel %vm462, %v1749, 0
      %v1798 = vsel %vm462, %v1751, 0
      %v1801 = vsel %vm462, %v1753, 0
      %v1804 = vsel %vm462, %v1755, 0
      %v1807 = vsel %vm462, %v1757, 0
      %v1810 = vsel %vm462, %v1759, 0
      %v1813 = vsel %vm462, %v1761, 0
      %v1816 = vsel %vm462, %v1763, 0
      %v1819 = vsel %vm462, %v1765, 0
      %v1822 = vsel %vm462, %v1767, 0
      %v1825 = vsel %vm462, %v1769, 0
      %v1828 = vsel %vm462, %v1771, 0
      %v1831 = vsel %vm462, %v1773, 0
      %v1834 = vsel %vm462, %v1775, 0
      %1836 = vmatpush.bf16.msra.mxu0 0
      %1837 = vmatpush.bf16.msra.mxu0 0
      %1838 = vmatpush.bf16.msra.mxu0 0
      %1839 = vmatpush.bf16.msra.mxu0 0
      %1840 = vmatpush.bf16.msra.mxu0 0
      %1841 = vmatpush.bf16.msra.mxu0 0
      %1842 = vmatpush.bf16.msra.mxu0 0
      %1843 = vmatpush.bf16.msra.mxu0 %v1780
      %1844 = vmatmul.bf16.gmra.mxu0 %v1783
      %v1845 = vpop.f32.mrf.mxu0
      %v1846 = vadd.f32 0.0, %v1845
      %v1847 = vpop.f32.mrf.mxu0
      %v1848 = vadd.f32 0.0, %v1847
      %1849 = vmatmul.bf16.gmra.mxu0 %v1786
      %v1850 = vpop.f32.mrf.mxu0
      %v1851 = vadd.f32 0.0, %v1850
      %v1852 = vpop.f32.mrf.mxu0
      %v1853 = vadd.f32 0.0, %v1852
      %1854 = vmatmul.bf16.gmra.mxu0 %v1789
      %v1855 = vpop.f32.mrf.mxu0
      %v1856 = vadd.f32 0.0, %v1855
      %v1857 = vpop.f32.mrf.mxu0
      %v1858 = vadd.f32 0.0, %v1857
      %1859 = vmatmul.bf16.gmra.mxu0 %v1792
      %v1860 = vpop.f32.mrf.mxu0
      %v1861 = vadd.f32 0.0, %v1860
      %v1862 = vpop.f32.mrf.mxu0
      %v1863 = vadd.f32 0.0, %v1862
      %1864 = vmatmul.bf16.gmra.mxu0 %v1795
      %v1865 = vpop.f32.mrf.mxu0
      %v1866 = vadd.f32 0.0, %v1865
      %v1867 = vpop.f32.mrf.mxu0
      %v1868 = vadd.f32 0.0, %v1867
      %1869 = vmatmul.bf16.gmra.mxu0 %v1798
      %v1870 = vpop.f32.mrf.mxu0
      %v1871 = vadd.f32 0.0, %v1870
      %v1872 = vpop.f32.mrf.mxu0
      %v1873 = vadd.f32 0.0, %v1872
      %1874 = vmatmul.bf16.gmra.mxu0 %v1801
      %v1875 = vpop.f32.mrf.mxu0
      %v1876 = vadd.f32 0.0, %v1875
      %v1877 = vpop.f32.mrf.mxu0
      %v1878 = vadd.f32 0.0, %v1877
      %1879 = vmatmul.bf16.gmra.mxu0 %v1804
      %v1880 = vpop.f32.mrf.mxu0
      %v1881 = vadd.f32 0.0, %v1880
      %v1882 = vpop.f32.mrf.mxu0
      %v1883 = vadd.f32 0.0, %v1882
      %1884 = vmatmul.bf16.gmra.mxu0 %v1807
      %v1885 = vpop.f32.mrf.mxu0
      %v1886 = vadd.f32 0.0, %v1885
      %v1887 = vpop.f32.mrf.mxu0
      %v1888 = vadd.f32 0.0, %v1887
      %1889 = vmatmul.bf16.gmra.mxu0 %v1810
      %v1890 = vpop.f32.mrf.mxu0
      %v1891 = vadd.f32 0.0, %v1890
      %v1892 = vpop.f32.mrf.mxu0
      %v1893 = vadd.f32 0.0, %v1892
      %1894 = vmatmul.bf16.gmra.mxu0 %v1813
      %v1895 = vpop.f32.mrf.mxu0
      %v1896 = vadd.f32 0.0, %v1895
      %v1897 = vpop.f32.mrf.mxu0
      %v1898 = vadd.f32 0.0, %v1897
      %1899 = vmatmul.bf16.gmra.mxu0 %v1816
      %v1900 = vpop.f32.mrf.mxu0
      %v1901 = vadd.f32 0.0, %v1900
      %v1902 = vpop.f32.mrf.mxu0
      %v1903 = vadd.f32 0.0, %v1902
      %1904 = vmatmul.bf16.gmra.mxu0 %v1819
      %v1905 = vpop.f32.mrf.mxu0
      %v1906 = vadd.f32 0.0, %v1905
      %v1907 = vpop.f32.mrf.mxu0
      %v1908 = vadd.f32 0.0, %v1907
      %1909 = vmatmul.bf16.gmra.mxu0 %v1822
      %v1910 = vpop.f32.mrf.mxu0
      %v1911 = vadd.f32 0.0, %v1910
      %v1912 = vpop.f32.mrf.mxu0
      %v1913 = vadd.f32 0.0, %v1912
      %1914 = vmatmul.bf16.gmra.mxu0 %v1825
      %v1915 = vpop.f32.mrf.mxu0
      %v1916 = vadd.f32 0.0, %v1915
      %v1917 = vpop.f32.mrf.mxu0
      %v1918 = vadd.f32 0.0, %v1917
      %1919 = vmatmul.bf16.gmra.mxu0 %v1828
      %v1920 = vpop.f32.mrf.mxu0
      %v1921 = vadd.f32 0.0, %v1920
      %v1922 = vpop.f32.mrf.mxu0
      %v1923 = vadd.f32 0.0, %v1922
      %1924 = vmatmul.bf16.gmra.mxu0 %v1831
      %v1925 = vpop.f32.mrf.mxu0
      %v1926 = vadd.f32 0.0, %v1925
      %v1927 = vpop.f32.mrf.mxu0
      %v1928 = vadd.f32 0.0, %v1927
      %1929 = vmatmul.bf16.gmra.mxu0 %v1834
      %v1930 = vpop.f32.mrf.mxu0
      %v1931 = vadd.f32 0.0, %v1930
      %v1932 = vpop.f32.mrf.mxu0
      %v1933 = vadd.f32 0.0, %v1932
      %1934 = vdwg.mxu0
      %v1935 = vadd.f32 %v1696, %v1846
      %v1936 = vadd.f32 %v1697, %v1848
      %v1937 = vadd.f32 %v1698, %v1851
      %v1938 = vadd.f32 %v1699, %v1853
      %v1939 = vadd.f32 %v1700, %v1856
      %v1940 = vadd.f32 %v1701, %v1858
      %v1941 = vadd.f32 %v1702, %v1861
      %v1942 = vadd.f32 %v1703, %v1863
      %v1943 = vadd.f32 %v1704, %v1866
      %v1944 = vadd.f32 %v1705, %v1868
      %v1945 = vadd.f32 %v1706, %v1871
      %v1946 = vadd.f32 %v1707, %v1873
      %v1947 = vadd.f32 %v1708, %v1876
      %v1948 = vadd.f32 %v1709, %v1878
      %v1949 = vadd.f32 %v1710, %v1881
      %v1950 = vadd.f32 %v1711, %v1883
      %v1951 = vadd.f32 %v1712, %v1886
      %v1952 = vadd.f32 %v1713, %v1888
      %v1953 = vadd.f32 %v1714, %v1891
      %v1954 = vadd.f32 %v1715, %v1893
      %v1955 = vadd.f32 %v1716, %v1896
      %v1956 = vadd.f32 %v1717, %v1898
      %v1957 = vadd.f32 %v1718, %v1901
      %v1958 = vadd.f32 %v1719, %v1903
      %v1959 = vadd.f32 %v1720, %v1906
      %v1960 = vadd.f32 %v1721, %v1908
      %v1961 = vadd.f32 %v1722, %v1911
      %v1962 = vadd.f32 %v1723, %v1913
      %v1963 = vadd.f32 %v1724, %v1916
      %v1964 = vadd.f32 %v1725, %v1918
      %v1965 = vadd.f32 %v1726, %v1921
      %v1966 = vadd.f32 %v1727, %v1923
      %v1967 = vadd.f32 %v1728, %v1926
      %v1968 = vadd.f32 %v1729, %v1928
      %v1969 = vadd.f32 %v1730, %v1931
      %v1970 = vadd.f32 %v1731, %v1933
      %v1971 = vld [vmem:[%s165 + $0x10] sm:$0xc]
      %v1972 = vld [vmem:[%s165 + $0x14] sm:$0xf]
      %v1973 = vld [vmem:[%s165 + $0x18] sm:$0xf]
      %v1974 = vld [vmem:[%s165 + $0x1c] sm:$0xf]
      %v1975 = vld [vmem:[%s165 + $0x20] sm:$0xf]
      %v1976 = vld [vmem:[%s165 + $0x24] sm:$0xf]
      %v1977 = vld [vmem:[%s165 + $0x28] sm:$0xf]
      %v1978 = vld [vmem:[%s165 + $0x2c] sm:$0xf]
      %v1979 = vld [vmem:[%s165 + $0x30] sm:$0xf]
      %v1980 = vld [vmem:[%s165 + $0x34] sm:$0xf]
      %v1981 = vld [vmem:[%s165 + $0x38] sm:$0xf]
      %v1982 = vld [vmem:[%s165 + $0x3c] sm:$0xf]
      %v1983 = vld [vmem:[%s165 + $0x40] sm:$0xf]
      %v1984 = vld [vmem:[%s165 + $0x44] sm:$0xf]
      %v1985 = vld [vmem:[%s165 + $0x48] sm:$0xf]
      %v1986 = vld [vmem:[%s165 + $0x4c] sm:$0xf]
      %v1987 = vld [vmem:[%s165 + $0x50] sm:$0xf]
      %v1988 = vld [vmem:[%s165 + $0x54] sm:$0xf]
      %v1989 = vld [vmem:[%s165 + $0x58] sm:$0xf]
      %v1990 = vld [vmem:[%s165 + $0x5c] sm:$0xf]
      %v1991 = vld [vmem:[%s165 + $0x60] sm:$0xf]
      %v1992 = vld [vmem:[%s165 + $0x64] sm:$0xf]
      %v1993 = vld [vmem:[%s165 + $0x68] sm:$0xf]
      %v1994 = vld [vmem:[%s165 + $0x6c] sm:$0xf]
      %v1995 = vld [vmem:[%s165 + $0x70] sm:$0xf]
      %v1996 = vld [vmem:[%s165 + $0x74] sm:$0xf]
      %v1997 = vld [vmem:[%s165 + $0x78] sm:$0xf]
      %v1998 = vld [vmem:[%s165 + $0x7c] sm:$0xf]
      %v1999 = vld [vmem:[%s165 + $0x80] sm:$0xf]
      %v2000 = vld [vmem:[%s165 + $0x84] sm:$0xf]
      %v2001 = vld [vmem:[%s165 + $0x88] sm:$0xf]
      %v2002 = vld [vmem:[%s165 + $0x8c] sm:$0xf]
      %v2003 = vld [vmem:[%s165 + $0x90] sm:$0xf]
      %v2004 = vld [vmem:[%s165 + $0x94] sm:$0xf]
      %v2005 = vld [vmem:[%s165 + $0x98] sm:$0xf]
      %v2006 = vld [vmem:[%s165 + $0x9c] sm:$0xf]
      %v2007 = vld [vmem:[%s165 + $0xa0] sm:$0x3]
      %v2008 = vld [vmem:[%s1 + $0x30] sm:$0xf]
      %v2009 = vld [vmem:[%s1 + $0x34] sm:$0xf]
      %v2047 = vunpack.c.l.b16 %v1971
      %v2048 = vunpack.c.l.b16 %v1972
      %v2049 = vunpack.c.l.b16 %v1973
      %v2050 = vunpack.c.l.b16 %v1974
      %v2051 = vunpack.c.l.b16 %v1975
      %v2052 = vunpack.c.l.b16 %v1976
      %v2053 = vunpack.c.l.b16 %v1977
      %v2054 = vunpack.c.l.b16 %v1978
      %v2055 = vunpack.c.l.b16 %v1979
      %v2056 = vunpack.c.l.b16 %v1980
      %v2057 = vunpack.c.l.b16 %v1981
      %v2058 = vunpack.c.l.b16 %v1982
      %v2059 = vunpack.c.l.b16 %v1983
      %v2060 = vunpack.c.l.b16 %v1984
      %v2061 = vunpack.c.l.b16 %v1985
      %v2062 = vunpack.c.l.b16 %v1986
      %v2063 = vunpack.c.l.b16 %v1987
      %v2064 = vunpack.c.l.b16 %v1988
      %v2065 = vunpack.c.l.b16 %v1989
      %v2066 = vunpack.c.l.b16 %v1990
      %v2067 = vunpack.c.l.b16 %v1991
      %v2068 = vunpack.c.l.b16 %v1992
      %v2069 = vunpack.c.l.b16 %v1993
      %v2070 = vunpack.c.l.b16 %v1994
      %v2071 = vunpack.c.l.b16 %v1995
      %v2072 = vunpack.c.l.b16 %v1996
      %v2073 = vunpack.c.l.b16 %v1997
      %v2074 = vunpack.c.l.b16 %v1998
      %v2075 = vunpack.c.l.b16 %v1999
      %v2076 = vunpack.c.l.b16 %v2000
      %v2077 = vunpack.c.l.b16 %v2001
      %v2078 = vunpack.c.l.b16 %v2002
      %v2079 = vunpack.c.l.b16 %v2003
      %v2080 = vunpack.c.l.b16 %v2004
      %v2081 = vunpack.c.l.b16 %v2005
      %v2082 = vunpack.c.l.b16 %v2006
      %v2083 = vunpack.c.l.b16 %v2007
      %v2084 = vpack.c.b16 %v2048, %v2047
      %v2085 = vpack.c.b16 %v2050, %v2049
      %v2086 = vpack.c.b16 %v2052, %v2051
      %v2087 = vpack.c.b16 %v2054, %v2053
      %v2088 = vpack.c.b16 %v2056, %v2055
      %v2089 = vpack.c.b16 %v2058, %v2057
      %v2090 = vpack.c.b16 %v2060, %v2059
      %v2091 = vpack.c.b16 %v2062, %v2061
      %v2092 = vpack.c.b16 %v2064, %v2063
      %v2093 = vpack.c.b16 %v2066, %v2065
      %v2094 = vpack.c.b16 %v2068, %v2067
      %v2095 = vpack.c.b16 %v2070, %v2069
      %v2096 = vpack.c.b16 %v2072, %v2071
      %v2097 = vpack.c.b16 %v2074, %v2073
      %v2098 = vpack.c.b16 %v2076, %v2075
      %v2099 = vpack.c.b16 %v2078, %v2077
      %v2100 = vpack.c.b16 %v2080, %v2079
      %v2101 = vpack.c.b16 %v2082, %v2081
      %v2102 = vpack.c.b16 %v2083, %v2083
      %v2103 = vrot.slane %v2084, 2
      %v2104 = vrot.slane %v2085, 2
      %v2105 = vsel %vm1738, %v2103, %v2104
      %v2106 = vrot.slane %v2086, 2
      %v2107 = vsel %vm1738, %v2104, %v2106
      %v2108 = vrot.slane %v2087, 2
      %v2109 = vsel %vm1738, %v2106, %v2108
      %v2110 = vrot.slane %v2088, 2
      %v2111 = vsel %vm1738, %v2108, %v2110
      %v2112 = vrot.slane %v2089, 2
      %v2113 = vsel %vm1738, %v2110, %v2112
      %v2114 = vrot.slane %v2090, 2
      %v2115 = vsel %vm1738, %v2112, %v2114
      %v2116 = vrot.slane %v2091, 2
      %v2117 = vsel %vm1738, %v2114, %v2116
      %v2118 = vrot.slane %v2092, 2
      %v2119 = vsel %vm1738, %v2116, %v2118
      %v2120 = vrot.slane %v2093, 2
      %v2121 = vsel %vm1738, %v2118, %v2120
      %v2122 = vrot.slane %v2094, 2
      %v2123 = vsel %vm1738, %v2120, %v2122
      %v2124 = vrot.slane %v2095, 2
      %v2125 = vsel %vm1738, %v2122, %v2124
      %v2126 = vrot.slane %v2096, 2
      %v2127 = vsel %vm1738, %v2124, %v2126
      %v2128 = vrot.slane %v2097, 2
      %v2129 = vsel %vm1738, %v2126, %v2128
      %v2130 = vrot.slane %v2098, 2
      %v2131 = vsel %vm1738, %v2128, %v2130
      %v2132 = vrot.slane %v2099, 2
      %v2133 = vsel %vm1738, %v2130, %v2132
      %v2134 = vrot.slane %v2100, 2
      %v2135 = vsel %vm1738, %v2132, %v2134
      %v2136 = vrot.slane %v2101, 2
      %v2137 = vsel %vm1738, %v2134, %v2136
      %v2138 = vrot.slane %v2102, 2
      %v2139 = vsel %vm1738, %v2136, %v2138
      %v2142 = vunpack.c.l.b16 %v2008
      %v2143 = vunpack.c.l.b16 %v2009
      %v2144 = vpack.c.b16 %v2143, %v2142
      %v2147 = vsel %vm462, %v2105, 0
      %v2150 = vsel %vm462, %v2107, 0
      %v2153 = vsel %vm462, %v2109, 0
      %v2156 = vsel %vm462, %v2111, 0
      %v2159 = vsel %vm462, %v2113, 0
      %v2162 = vsel %vm462, %v2115, 0
      %v2165 = vsel %vm462, %v2117, 0
      %v2168 = vsel %vm462, %v2119, 0
      %v2171 = vsel %vm462, %v2121, 0
      %v2174 = vsel %vm462, %v2123, 0
      %v2177 = vsel %vm462, %v2125, 0
      %v2180 = vsel %vm462, %v2127, 0
      %v2183 = vsel %vm462, %v2129, 0
      %v2186 = vsel %vm462, %v2131, 0
      %v2189 = vsel %vm462, %v2133, 0
      %v2192 = vsel %vm462, %v2135, 0
      %v2195 = vsel %vm462, %v2137, 0
      %v2198 = vsel %vm462, %v2139, 0
      %2200 = vmatpush.bf16.msra.mxu0 0
      %2201 = vmatpush.bf16.msra.mxu0 0
      %2202 = vmatpush.bf16.msra.mxu0 0
      %2203 = vmatpush.bf16.msra.mxu0 0
      %2204 = vmatpush.bf16.msra.mxu0 0
      %2205 = vmatpush.bf16.msra.mxu0 0
      %2206 = vmatpush.bf16.msra.mxu0 0
      %2207 = vmatpush.bf16.msra.mxu0 %v2144
      %2208 = vmatmul.bf16.gmra.mxu0 %v2147
      %v2209 = vpop.f32.mrf.mxu0
      %v2210 = vadd.f32 0.0, %v2209
      %v2211 = vpop.f32.mrf.mxu0
      %v2212 = vadd.f32 0.0, %v2211
      %2213 = vmatmul.bf16.gmra.mxu0 %v2150
      %v2214 = vpop.f32.mrf.mxu0
      %v2215 = vadd.f32 0.0, %v2214
      %v2216 = vpop.f32.mrf.mxu0
      %v2217 = vadd.f32 0.0, %v2216
      %2218 = vmatmul.bf16.gmra.mxu0 %v2153
      %v2219 = vpop.f32.mrf.mxu0
      %v2220 = vadd.f32 0.0, %v2219
      %v2221 = vpop.f32.mrf.mxu0
      %v2222 = vadd.f32 0.0, %v2221
      %2223 = vmatmul.bf16.gmra.mxu0 %v2156
      %v2224 = vpop.f32.mrf.mxu0
      %v2225 = vadd.f32 0.0, %v2224
      %v2226 = vpop.f32.mrf.mxu0
      %v2227 = vadd.f32 0.0, %v2226
      %2228 = vmatmul.bf16.gmra.mxu0 %v2159
      %v2229 = vpop.f32.mrf.mxu0
      %v2230 = vadd.f32 0.0, %v2229
      %v2231 = vpop.f32.mrf.mxu0
      %v2232 = vadd.f32 0.0, %v2231
      %2233 = vmatmul.bf16.gmra.mxu0 %v2162
      %v2234 = vpop.f32.mrf.mxu0
      %v2235 = vadd.f32 0.0, %v2234
      %v2236 = vpop.f32.mrf.mxu0
      %v2237 = vadd.f32 0.0, %v2236
      %2238 = vmatmul.bf16.gmra.mxu0 %v2165
      %v2239 = vpop.f32.mrf.mxu0
      %v2240 = vadd.f32 0.0, %v2239
      %v2241 = vpop.f32.mrf.mxu0
      %v2242 = vadd.f32 0.0, %v2241
      %2243 = vmatmul.bf16.gmra.mxu0 %v2168
      %v2244 = vpop.f32.mrf.mxu0
      %v2245 = vadd.f32 0.0, %v2244
      %v2246 = vpop.f32.mrf.mxu0
      %v2247 = vadd.f32 0.0, %v2246
      %2248 = vmatmul.bf16.gmra.mxu0 %v2171
      %v2249 = vpop.f32.mrf.mxu0
      %v2250 = vadd.f32 0.0, %v2249
      %v2251 = vpop.f32.mrf.mxu0
      %v2252 = vadd.f32 0.0, %v2251
      %2253 = vmatmul.bf16.gmra.mxu0 %v2174
      %v2254 = vpop.f32.mrf.mxu0
      %v2255 = vadd.f32 0.0, %v2254
      %v2256 = vpop.f32.mrf.mxu0
      %v2257 = vadd.f32 0.0, %v2256
      %2258 = vmatmul.bf16.gmra.mxu0 %v2177
      %v2259 = vpop.f32.mrf.mxu0
      %v2260 = vadd.f32 0.0, %v2259
      %v2261 = vpop.f32.mrf.mxu0
      %v2262 = vadd.f32 0.0, %v2261
      %2263 = vmatmul.bf16.gmra.mxu0 %v2180
      %v2264 = vpop.f32.mrf.mxu0
      %v2265 = vadd.f32 0.0, %v2264
      %v2266 = vpop.f32.mrf.mxu0
      %v2267 = vadd.f32 0.0, %v2266
      %2268 = vmatmul.bf16.gmra.mxu0 %v2183
      %v2269 = vpop.f32.mrf.mxu0
      %v2270 = vadd.f32 0.0, %v2269
      %v2271 = vpop.f32.mrf.mxu0
      %v2272 = vadd.f32 0.0, %v2271
      %2273 = vmatmul.bf16.gmra.mxu0 %v2186
      %v2274 = vpop.f32.mrf.mxu0
      %v2275 = vadd.f32 0.0, %v2274
      %v2276 = vpop.f32.mrf.mxu0
      %v2277 = vadd.f32 0.0, %v2276
      %2278 = vmatmul.bf16.gmra.mxu0 %v2189
      %v2279 = vpop.f32.mrf.mxu0
      %v2280 = vadd.f32 0.0, %v2279
      %v2281 = vpop.f32.mrf.mxu0
      %v2282 = vadd.f32 0.0, %v2281
      %2283 = vmatmul.bf16.gmra.mxu0 %v2192
      %v2284 = vpop.f32.mrf.mxu0
      %v2285 = vadd.f32 0.0, %v2284
      %v2286 = vpop.f32.mrf.mxu0
      %v2287 = vadd.f32 0.0, %v2286
      %2288 = vmatmul.bf16.gmra.mxu0 %v2195
      %v2289 = vpop.f32.mrf.mxu0
      %v2290 = vadd.f32 0.0, %v2289
      %v2291 = vpop.f32.mrf.mxu0
      %v2292 = vadd.f32 0.0, %v2291
      %2293 = vmatmul.bf16.gmra.mxu0 %v2198
      %v2294 = vpop.f32.mrf.mxu0
      %v2295 = vadd.f32 0.0, %v2294
      %v2296 = vpop.f32.mrf.mxu0
      %v2297 = vadd.f32 0.0, %v2296
      %2298 = vdwg.mxu0
      %v2299 = vadd.f32 %v1935, %v2210
      %v2300 = vadd.f32 %v1936, %v2212
      %v2301 = vadd.f32 %v1937, %v2215
      %v2302 = vadd.f32 %v1938, %v2217
      %v2303 = vadd.f32 %v1939, %v2220
      %v2304 = vadd.f32 %v1940, %v2222
      %v2305 = vadd.f32 %v1941, %v2225
      %v2306 = vadd.f32 %v1942, %v2227
      %v2307 = vadd.f32 %v1943, %v2230
      %v2308 = vadd.f32 %v1944, %v2232
      %v2309 = vadd.f32 %v1945, %v2235
      %v2310 = vadd.f32 %v1946, %v2237
      %v2311 = vadd.f32 %v1947, %v2240
      %v2312 = vadd.f32 %v1948, %v2242
      %v2313 = vadd.f32 %v1949, %v2245
      %v2314 = vadd.f32 %v1950, %v2247
      %v2315 = vadd.f32 %v1951, %v2250
      %v2316 = vadd.f32 %v1952, %v2252
      %v2317 = vadd.f32 %v1953, %v2255
      %v2318 = vadd.f32 %v1954, %v2257
      %v2319 = vadd.f32 %v1955, %v2260
      %v2320 = vadd.f32 %v1956, %v2262
      %v2321 = vadd.f32 %v1957, %v2265
      %v2322 = vadd.f32 %v1958, %v2267
      %v2323 = vadd.f32 %v1959, %v2270
      %v2324 = vadd.f32 %v1960, %v2272
      %v2325 = vadd.f32 %v1961, %v2275
      %v2326 = vadd.f32 %v1962, %v2277
      %v2327 = vadd.f32 %v1963, %v2280
      %v2328 = vadd.f32 %v1964, %v2282
      %v2329 = vadd.f32 %v1965, %v2285
      %v2330 = vadd.f32 %v1966, %v2287
      %v2331 = vadd.f32 %v1967, %v2290
      %v2332 = vadd.f32 %v1968, %v2292
      %v2333 = vadd.f32 %v1969, %v2295
      %v2334 = vadd.f32 %v1970, %v2297
      %v2335 = vld [vmem:[%s165 + $0xa0] sm:$0x7]
      %v2336 = vld [vmem:[%s1 + $0x38] sm:$0xf]
      %v2337 = vld [vmem:[%s1 + $0x3c] sm:$0xf]
      %v2339 = vunpack.c.l.b16 %v2335
      %v2340 = vpack.c.b16 %v2339, %v2339
      %vm2341 = vsmask.f32 5376
      %v2343 = vshrl.u32 %v2084, 16
      %v2345 = vrot.slane %v2343, 2
      %v2346 = vshll.u32 %v2084, 16
      %v2348 = vrot.slane %v2346, 3
      %v2349 = vor.u32 %v2345, %v2348
      %v2351 = vshrl.u32 %v2085, 16
      %v2353 = vrot.slane %v2351, 2
      %v2354 = vshll.u32 %v2085, 16
      %v2356 = vrot.slane %v2354, 3
      %v2357 = vor.u32 %v2353, %v2356
      %v2358 = vsel %vm2341, %v2349, %v2357
      %v2360 = vshrl.u32 %v2086, 16
      %v2362 = vrot.slane %v2360, 2
      %v2363 = vshll.u32 %v2086, 16
      %v2365 = vrot.slane %v2363, 3
      %v2366 = vor.u32 %v2362, %v2365
      %v2367 = vsel %vm2341, %v2357, %v2366
      %v2369 = vshrl.u32 %v2087, 16
      %v2371 = vrot.slane %v2369, 2
      %v2372 = vshll.u32 %v2087, 16
      %v2374 = vrot.slane %v2372, 3
      %v2375 = vor.u32 %v2371, %v2374
      %v2376 = vsel %vm2341, %v2366, %v2375
      %v2378 = vshrl.u32 %v2088, 16
      %v2380 = vrot.slane %v2378, 2
      %v2381 = vshll.u32 %v2088, 16
      %v2383 = vrot.slane %v2381, 3
      %v2384 = vor.u32 %v2380, %v2383
      %v2385 = vsel %vm2341, %v2375, %v2384
      %v2387 = vshrl.u32 %v2089, 16
      %v2389 = vrot.slane %v2387, 2
      %v2390 = vshll.u32 %v2089, 16
      %v2392 = vrot.slane %v2390, 3
      %v2393 = vor.u32 %v2389, %v2392
      %v2394 = vsel %vm2341, %v2384, %v2393
      %v2396 = vshrl.u32 %v2090, 16
      %v2398 = vrot.slane %v2396, 2
      %v2399 = vshll.u32 %v2090, 16
      %v2401 = vrot.slane %v2399, 3
      %v2402 = vor.u32 %v2398, %v2401
      %v2403 = vsel %vm2341, %v2393, %v2402
      %v2405 = vshrl.u32 %v2091, 16
      %v2407 = vrot.slane %v2405, 2
      %v2408 = vshll.u32 %v2091, 16
      %v2410 = vrot.slane %v2408, 3
      %v2411 = vor.u32 %v2407, %v2410
      %v2412 = vsel %vm2341, %v2402, %v2411
      %v2414 = vshrl.u32 %v2092, 16
      %v2416 = vrot.slane %v2414, 2
      %v2417 = vshll.u32 %v2092, 16
      %v2419 = vrot.slane %v2417, 3
      %v2420 = vor.u32 %v2416, %v2419
      %v2421 = vsel %vm2341, %v2411, %v2420
      %v2423 = vshrl.u32 %v2093, 16
      %v2425 = vrot.slane %v2423, 2
      %v2426 = vshll.u32 %v2093, 16
      %v2428 = vrot.slane %v2426, 3
      %v2429 = vor.u32 %v2425, %v2428
      %v2430 = vsel %vm2341, %v2420, %v2429
      %v2432 = vshrl.u32 %v2094, 16
      %v2434 = vrot.slane %v2432, 2
      %v2435 = vshll.u32 %v2094, 16
      %v2437 = vrot.slane %v2435, 3
      %v2438 = vor.u32 %v2434, %v2437
      %v2439 = vsel %vm2341, %v2429, %v2438
      %v2441 = vshrl.u32 %v2095, 16
      %v2443 = vrot.slane %v2441, 2
      %v2444 = vshll.u32 %v2095, 16
      %v2446 = vrot.slane %v2444, 3
      %v2447 = vor.u32 %v2443, %v2446
      %v2448 = vsel %vm2341, %v2438, %v2447
      %v2450 = vshrl.u32 %v2096, 16
      %v2452 = vrot.slane %v2450, 2
      %v2453 = vshll.u32 %v2096, 16
      %v2455 = vrot.slane %v2453, 3
      %v2456 = vor.u32 %v2452, %v2455
      %v2457 = vsel %vm2341, %v2447, %v2456
      %v2459 = vshrl.u32 %v2097, 16
      %v2461 = vrot.slane %v2459, 2
      %v2462 = vshll.u32 %v2097, 16
      %v2464 = vrot.slane %v2462, 3
      %v2465 = vor.u32 %v2461, %v2464
      %v2466 = vsel %vm2341, %v2456, %v2465
      %v2468 = vshrl.u32 %v2098, 16
      %v2470 = vrot.slane %v2468, 2
      %v2471 = vshll.u32 %v2098, 16
      %v2473 = vrot.slane %v2471, 3
      %v2474 = vor.u32 %v2470, %v2473
      %v2475 = vsel %vm2341, %v2465, %v2474
      %v2477 = vshrl.u32 %v2099, 16
      %v2479 = vrot.slane %v2477, 2
      %v2480 = vshll.u32 %v2099, 16
      %v2482 = vrot.slane %v2480, 3
      %v2483 = vor.u32 %v2479, %v2482
      %v2484 = vsel %vm2341, %v2474, %v2483
      %v2486 = vshrl.u32 %v2100, 16
      %v2488 = vrot.slane %v2486, 2
      %v2489 = vshll.u32 %v2100, 16
      %v2491 = vrot.slane %v2489, 3
      %v2492 = vor.u32 %v2488, %v2491
      %v2493 = vsel %vm2341, %v2483, %v2492
      %v2495 = vshrl.u32 %v2101, 16
      %v2497 = vrot.slane %v2495, 2
      %v2498 = vshll.u32 %v2101, 16
      %v2500 = vrot.slane %v2498, 3
      %v2501 = vor.u32 %v2497, %v2500
      %v2502 = vsel %vm2341, %v2492, %v2501
      %v2504 = vshrl.u32 %v2340, 16
      %v2506 = vrot.slane %v2504, 2
      %v2507 = vshll.u32 %v2340, 16
      %v2509 = vrot.slane %v2507, 3
      %v2510 = vor.u32 %v2506, %v2509
      %v2511 = vsel %vm2341, %v2501, %v2510
      %v2514 = vunpack.c.l.b16 %v2336
      %v2515 = vunpack.c.l.b16 %v2337
      %v2516 = vpack.c.b16 %v2515, %v2514
      %v2519 = vsel %vm462, %v2358, 0
      %v2522 = vsel %vm462, %v2367, 0
      %v2525 = vsel %vm462, %v2376, 0
      %v2528 = vsel %vm462, %v2385, 0
      %v2531 = vsel %vm462, %v2394, 0
      %v2534 = vsel %vm462, %v2403, 0
      %v2537 = vsel %vm462, %v2412, 0
      %v2540 = vsel %vm462, %v2421, 0
      %v2543 = vsel %vm462, %v2430, 0
      %v2546 = vsel %vm462, %v2439, 0
      %v2549 = vsel %vm462, %v2448, 0
      %v2552 = vsel %vm462, %v2457, 0
      %v2555 = vsel %vm462, %v2466, 0
      %v2558 = vsel %vm462, %v2475, 0
      %v2561 = vsel %vm462, %v2484, 0
      %v2564 = vsel %vm462, %v2493, 0
      %v2567 = vsel %vm462, %v2502, 0
      %v2570 = vsel %vm462, %v2511, 0
      %2572 = vmatpush.bf16.msra.mxu0 0
      %2573 = vmatpush.bf16.msra.mxu0 0
      %2574 = vmatpush.bf16.msra.mxu0 0
      %2575 = vmatpush.bf16.msra.mxu0 0
      %2576 = vmatpush.bf16.msra.mxu0 0
      %2577 = vmatpush.bf16.msra.mxu0 0
      %2578 = vmatpush.bf16.msra.mxu0 0
      %2579 = vmatpush.bf16.msra.mxu0 %v2516
      %2580 = vmatmul.bf16.gmra.mxu0 %v2519
      %v2581 = vpop.f32.mrf.mxu0
      %v2582 = vadd.f32 0.0, %v2581
      %v2583 = vpop.f32.mrf.mxu0
      %v2584 = vadd.f32 0.0, %v2583
      %2585 = vmatmul.bf16.gmra.mxu0 %v2522
      %v2586 = vpop.f32.mrf.mxu0
      %v2587 = vadd.f32 0.0, %v2586
      %v2588 = vpop.f32.mrf.mxu0
      %v2589 = vadd.f32 0.0, %v2588
      %2590 = vmatmul.bf16.gmra.mxu0 %v2525
      %v2591 = vpop.f32.mrf.mxu0
      %v2592 = vadd.f32 0.0, %v2591
      %v2593 = vpop.f32.mrf.mxu0
      %v2594 = vadd.f32 0.0, %v2593
      %2595 = vmatmul.bf16.gmra.mxu0 %v2528
      %v2596 = vpop.f32.mrf.mxu0
      %v2597 = vadd.f32 0.0, %v2596
      %v2598 = vpop.f32.mrf.mxu0
      %v2599 = vadd.f32 0.0, %v2598
      %2600 = vmatmul.bf16.gmra.mxu0 %v2531
      %v2601 = vpop.f32.mrf.mxu0
      %v2602 = vadd.f32 0.0, %v2601
      %v2603 = vpop.f32.mrf.mxu0
      %v2604 = vadd.f32 0.0, %v2603
      %2605 = vmatmul.bf16.gmra.mxu0 %v2534
      %v2606 = vpop.f32.mrf.mxu0
      %v2607 = vadd.f32 0.0, %v2606
      %v2608 = vpop.f32.mrf.mxu0
      %v2609 = vadd.f32 0.0, %v2608
      %2610 = vmatmul.bf16.gmra.mxu0 %v2537
      %v2611 = vpop.f32.mrf.mxu0
      %v2612 = vadd.f32 0.0, %v2611
      %v2613 = vpop.f32.mrf.mxu0
      %v2614 = vadd.f32 0.0, %v2613
      %2615 = vmatmul.bf16.gmra.mxu0 %v2540
      %v2616 = vpop.f32.mrf.mxu0
      %v2617 = vadd.f32 0.0, %v2616
      %v2618 = vpop.f32.mrf.mxu0
      %v2619 = vadd.f32 0.0, %v2618
      %2620 = vmatmul.bf16.gmra.mxu0 %v2543
      %v2621 = vpop.f32.mrf.mxu0
      %v2622 = vadd.f32 0.0, %v2621
      %v2623 = vpop.f32.mrf.mxu0
      %v2624 = vadd.f32 0.0, %v2623
      %2625 = vmatmul.bf16.gmra.mxu0 %v2546
      %v2626 = vpop.f32.mrf.mxu0
      %v2627 = vadd.f32 0.0, %v2626
      %v2628 = vpop.f32.mrf.mxu0
      %v2629 = vadd.f32 0.0, %v2628
      %2630 = vmatmul.bf16.gmra.mxu0 %v2549
      %v2631 = vpop.f32.mrf.mxu0
      %v2632 = vadd.f32 0.0, %v2631
      %v2633 = vpop.f32.mrf.mxu0
      %v2634 = vadd.f32 0.0, %v2633
      %2635 = vmatmul.bf16.gmra.mxu0 %v2552
      %v2636 = vpop.f32.mrf.mxu0
      %v2637 = vadd.f32 0.0, %v2636
      %v2638 = vpop.f32.mrf.mxu0
      %v2639 = vadd.f32 0.0, %v2638
      %2640 = vmatmul.bf16.gmra.mxu0 %v2555
      %v2641 = vpop.f32.mrf.mxu0
      %v2642 = vadd.f32 0.0, %v2641
      %v2643 = vpop.f32.mrf.mxu0
      %v2644 = vadd.f32 0.0, %v2643
      %2645 = vmatmul.bf16.gmra.mxu0 %v2558
      %v2646 = vpop.f32.mrf.mxu0
      %v2647 = vadd.f32 0.0, %v2646
      %v2648 = vpop.f32.mrf.mxu0
      %v2649 = vadd.f32 0.0, %v2648
      %2650 = vmatmul.bf16.gmra.mxu0 %v2561
      %v2651 = vpop.f32.mrf.mxu0
      %v2652 = vadd.f32 0.0, %v2651
      %v2653 = vpop.f32.mrf.mxu0
      %v2654 = vadd.f32 0.0, %v2653
      %2655 = vmatmul.bf16.gmra.mxu0 %v2564
      %v2656 = vpop.f32.mrf.mxu0
      %v2657 = vadd.f32 0.0, %v2656
      %v2658 = vpop.f32.mrf.mxu0
      %v2659 = vadd.f32 0.0, %v2658
      %2660 = vmatmul.bf16.gmra.mxu0 %v2567
      %v2661 = vpop.f32.mrf.mxu0
      %v2662 = vadd.f32 0.0, %v2661
      %v2663 = vpop.f32.mrf.mxu0
      %v2664 = vadd.f32 0.0, %v2663
      %2665 = vmatmul.bf16.gmra.mxu0 %v2570
      %v2666 = vpop.f32.mrf.mxu0
      %v2667 = vadd.f32 0.0, %v2666
      %v2668 = vpop.f32.mrf.mxu0
      %v2669 = vadd.f32 0.0, %v2668
      %2670 = vdwg.mxu0
      %v2671 = vadd.f32 %v2299, %v2582
      %v2672 = vadd.f32 %v2300, %v2584
      %v2673 = vadd.f32 %v2301, %v2587
      %v2674 = vadd.f32 %v2302, %v2589
      %v2675 = vadd.f32 %v2303, %v2592
      %v2676 = vadd.f32 %v2304, %v2594
      %v2677 = vadd.f32 %v2305, %v2597
      %v2678 = vadd.f32 %v2306, %v2599
      %v2679 = vadd.f32 %v2307, %v2602
      %v2680 = vadd.f32 %v2308, %v2604
      %v2681 = vadd.f32 %v2309, %v2607
      %v2682 = vadd.f32 %v2310, %v2609
      %v2683 = vadd.f32 %v2311, %v2612
      %v2684 = vadd.f32 %v2312, %v2614
      %v2685 = vadd.f32 %v2313, %v2617
      %v2686 = vadd.f32 %v2314, %v2619
      %v2687 = vadd.f32 %v2315, %v2622
      %v2688 = vadd.f32 %v2316, %v2624
      %v2689 = vadd.f32 %v2317, %v2627
      %v2690 = vadd.f32 %v2318, %v2629
      %v2691 = vadd.f32 %v2319, %v2632
      %v2692 = vadd.f32 %v2320, %v2634
      %v2693 = vadd.f32 %v2321, %v2637
      %v2694 = vadd.f32 %v2322, %v2639
      %v2695 = vadd.f32 %v2323, %v2642
      %v2696 = vadd.f32 %v2324, %v2644
      %v2697 = vadd.f32 %v2325, %v2647
      %v2698 = vadd.f32 %v2326, %v2649
      %v2699 = vadd.f32 %v2327, %v2652
      %v2700 = vadd.f32 %v2328, %v2654
      %v2701 = vadd.f32 %v2329, %v2657
      %v2702 = vadd.f32 %v2330, %v2659
      %v2703 = vadd.f32 %v2331, %v2662
      %v2704 = vadd.f32 %v2332, %v2664
      %v2705 = vadd.f32 %v2333, %v2667
      %v2706 = vadd.f32 %v2334, %v2669
      %v2707 = vld [vmem:[%s165 + $0x10] sm:$0x8]
      %v2708 = vld [vmem:[%s1 + $0x40] sm:$0xf]
      %v2709 = vld [vmem:[%s1 + $0x44] sm:$0xf]
      %v2711 = vunpack.c.l.b16 %v2707
      %v2712 = vpack.c.b16 %v2048, %v2711
      %vm2713 = vcmask 1044480
      %v2714 = vrot.slane %v2712, 3
      %v2715 = vrot.slane %v2085, 3
      %v2716 = vsel %vm2713, %v2714, %v2715
      %v2717 = vrot.slane %v2086, 3
      %v2718 = vsel %vm2713, %v2715, %v2717
      %v2719 = vrot.slane %v2087, 3
      %v2720 = vsel %vm2713, %v2717, %v2719
      %v2721 = vrot.slane %v2088, 3
      %v2722 = vsel %vm2713, %v2719, %v2721
      %v2723 = vrot.slane %v2089, 3
      %v2724 = vsel %vm2713, %v2721, %v2723
      %v2725 = vrot.slane %v2090, 3
      %v2726 = vsel %vm2713, %v2723, %v2725
      %v2727 = vrot.slane %v2091, 3
      %v2728 = vsel %vm2713, %v2725, %v2727
      %v2729 = vrot.slane %v2092, 3
      %v2730 = vsel %vm2713, %v2727, %v2729
      %v2731 = vrot.slane %v2093, 3
      %v2732 = vsel %vm2713, %v2729, %v2731
      %v2733 = vrot.slane %v2094, 3
      %v2734 = vsel %vm2713, %v2731, %v2733
      %v2735 = vrot.slane %v2095, 3
      %v2736 = vsel %vm2713, %v2733, %v2735
      %v2737 = vrot.slane %v2096, 3
      %v2738 = vsel %vm2713, %v2735, %v2737
      %v2739 = vrot.slane %v2097, 3
      %v2740 = vsel %vm2713, %v2737, %v2739
      %v2741 = vrot.slane %v2098, 3
      %v2742 = vsel %vm2713, %v2739, %v2741
      %v2743 = vrot.slane %v2099, 3
      %v2744 = vsel %vm2713, %v2741, %v2743
      %v2745 = vrot.slane %v2100, 3
      %v2746 = vsel %vm2713, %v2743, %v2745
      %v2747 = vrot.slane %v2101, 3
      %v2748 = vsel %vm2713, %v2745, %v2747
      %v2749 = vrot.slane %v2340, 3
      %v2750 = vsel %vm2713, %v2747, %v2749
      %v2753 = vunpack.c.l.b16 %v2708
      %v2754 = vunpack.c.l.b16 %v2709
      %v2755 = vpack.c.b16 %v2754, %v2753
      %v2758 = vsel %vm462, %v2716, 0
      %v2761 = vsel %vm462, %v2718, 0
      %v2764 = vsel %vm462, %v2720, 0
      %v2767 = vsel %vm462, %v2722, 0
      %v2770 = vsel %vm462, %v2724, 0
      %v2773 = vsel %vm462, %v2726, 0
      %v2776 = vsel %vm462, %v2728, 0
      %v2779 = vsel %vm462, %v2730, 0
      %v2782 = vsel %vm462, %v2732, 0
      %v2785 = vsel %vm462, %v2734, 0
      %v2788 = vsel %vm462, %v2736, 0
      %v2791 = vsel %vm462, %v2738, 0
      %v2794 = vsel %vm462, %v2740, 0
      %v2797 = vsel %vm462, %v2742, 0
      %v2800 = vsel %vm462, %v2744, 0
      %v2803 = vsel %vm462, %v2746, 0
      %v2806 = vsel %vm462, %v2748, 0
      %v2809 = vsel %vm462, %v2750, 0
      %2811 = vmatpush.bf16.msra.mxu0 0
      %2812 = vmatpush.bf16.msra.mxu0 0
      %2813 = vmatpush.bf16.msra.mxu0 0
      %2814 = vmatpush.bf16.msra.mxu0 0
      %2815 = vmatpush.bf16.msra.mxu0 0
      %2816 = vmatpush.bf16.msra.mxu0 0
      %2817 = vmatpush.bf16.msra.mxu0 0
      %2818 = vmatpush.bf16.msra.mxu0 %v2755
      %2819 = vmatmul.bf16.gmra.mxu0 %v2758
      %v2820 = vpop.f32.mrf.mxu0
      %v2821 = vadd.f32 0.0, %v2820
      %v2822 = vpop.f32.mrf.mxu0
      %v2823 = vadd.f32 0.0, %v2822
      %2824 = vmatmul.bf16.gmra.mxu0 %v2761
      %v2825 = vpop.f32.mrf.mxu0
      %v2826 = vadd.f32 0.0, %v2825
      %v2827 = vpop.f32.mrf.mxu0
      %v2828 = vadd.f32 0.0, %v2827
      %2829 = vmatmul.bf16.gmra.mxu0 %v2764
      %v2830 = vpop.f32.mrf.mxu0
      %v2831 = vadd.f32 0.0, %v2830
      %v2832 = vpop.f32.mrf.mxu0
      %v2833 = vadd.f32 0.0, %v2832
      %2834 = vmatmul.bf16.gmra.mxu0 %v2767
      %v2835 = vpop.f32.mrf.mxu0
      %v2836 = vadd.f32 0.0, %v2835
      %v2837 = vpop.f32.mrf.mxu0
      %v2838 = vadd.f32 0.0, %v2837
      %2839 = vmatmul.bf16.gmra.mxu0 %v2770
      %v2840 = vpop.f32.mrf.mxu0
      %v2841 = vadd.f32 0.0, %v2840
      %v2842 = vpop.f32.mrf.mxu0
      %v2843 = vadd.f32 0.0, %v2842
      %2844 = vmatmul.bf16.gmra.mxu0 %v2773
      %v2845 = vpop.f32.mrf.mxu0
      %v2846 = vadd.f32 0.0, %v2845
      %v2847 = vpop.f32.mrf.mxu0
      %v2848 = vadd.f32 0.0, %v2847
      %2849 = vmatmul.bf16.gmra.mxu0 %v2776
      %v2850 = vpop.f32.mrf.mxu0
      %v2851 = vadd.f32 0.0, %v2850
      %v2852 = vpop.f32.mrf.mxu0
      %v2853 = vadd.f32 0.0, %v2852
      %2854 = vmatmul.bf16.gmra.mxu0 %v2779
      %v2855 = vpop.f32.mrf.mxu0
      %v2856 = vadd.f32 0.0, %v2855
      %v2857 = vpop.f32.mrf.mxu0
      %v2858 = vadd.f32 0.0, %v2857
      %2859 = vmatmul.bf16.gmra.mxu0 %v2782
      %v2860 = vpop.f32.mrf.mxu0
      %v2861 = vadd.f32 0.0, %v2860
      %v2862 = vpop.f32.mrf.mxu0
      %v2863 = vadd.f32 0.0, %v2862
      %2864 = vmatmul.bf16.gmra.mxu0 %v2785
      %v2865 = vpop.f32.mrf.mxu0
      %v2866 = vadd.f32 0.0, %v2865
      %v2867 = vpop.f32.mrf.mxu0
      %v2868 = vadd.f32 0.0, %v2867
      %2869 = vmatmul.bf16.gmra.mxu0 %v2788
      %v2870 = vpop.f32.mrf.mxu0
      %v2871 = vadd.f32 0.0, %v2870
      %v2872 = vpop.f32.mrf.mxu0
      %v2873 = vadd.f32 0.0, %v2872
      %2874 = vmatmul.bf16.gmra.mxu0 %v2791
      %v2875 = vpop.f32.mrf.mxu0
      %v2876 = vadd.f32 0.0, %v2875
      %v2877 = vpop.f32.mrf.mxu0
      %v2878 = vadd.f32 0.0, %v2877
      %2879 = vmatmul.bf16.gmra.mxu0 %v2794
      %v2880 = vpop.f32.mrf.mxu0
      %v2881 = vadd.f32 0.0, %v2880
      %v2882 = vpop.f32.mrf.mxu0
      %v2883 = vadd.f32 0.0, %v2882
      %2884 = vmatmul.bf16.gmra.mxu0 %v2797
      %v2885 = vpop.f32.mrf.mxu0
      %v2886 = vadd.f32 0.0, %v2885
      %v2887 = vpop.f32.mrf.mxu0
      %v2888 = vadd.f32 0.0, %v2887
      %2889 = vmatmul.bf16.gmra.mxu0 %v2800
      %v2890 = vpop.f32.mrf.mxu0
      %v2891 = vadd.f32 0.0, %v2890
      %v2892 = vpop.f32.mrf.mxu0
      %v2893 = vadd.f32 0.0, %v2892
      %2894 = vmatmul.bf16.gmra.mxu0 %v2803
      %v2895 = vpop.f32.mrf.mxu0
      %v2896 = vadd.f32 0.0, %v2895
      %v2897 = vpop.f32.mrf.mxu0
      %v2898 = vadd.f32 0.0, %v2897
      %2899 = vmatmul.bf16.gmra.mxu0 %v2806
      %v2900 = vpop.f32.mrf.mxu0
      %v2901 = vadd.f32 0.0, %v2900
      %v2902 = vpop.f32.mrf.mxu0
      %v2903 = vadd.f32 0.0, %v2902
      %2904 = vmatmul.bf16.gmra.mxu0 %v2809
      %v2905 = vpop.f32.mrf.mxu0
      %v2906 = vadd.f32 0.0, %v2905
      %v2907 = vpop.f32.mrf.mxu0
      %v2908 = vadd.f32 0.0, %v2907
      %2909 = vdwg.mxu0
      %v2910 = vadd.f32 %v2671, %v2821
      %v2911 = vadd.f32 %v2672, %v2823
      %v2912 = vadd.f32 %v2673, %v2826
      %v2913 = vadd.f32 %v2674, %v2828
      %v2914 = vadd.f32 %v2675, %v2831
      %v2915 = vadd.f32 %v2676, %v2833
      %v2916 = vadd.f32 %v2677, %v2836
      %v2917 = vadd.f32 %v2678, %v2838
      %v2918 = vadd.f32 %v2679, %v2841
      %v2919 = vadd.f32 %v2680, %v2843
      %v2920 = vadd.f32 %v2681, %v2846
      %v2921 = vadd.f32 %v2682, %v2848
      %v2922 = vadd.f32 %v2683, %v2851
      %v2923 = vadd.f32 %v2684, %v2853
      %v2924 = vadd.f32 %v2685, %v2856
      %v2925 = vadd.f32 %v2686, %v2858
      %v2926 = vadd.f32 %v2687, %v2861
      %v2927 = vadd.f32 %v2688, %v2863
      %v2928 = vadd.f32 %v2689, %v2866
      %v2929 = vadd.f32 %v2690, %v2868
      %v2930 = vadd.f32 %v2691, %v2871
      %v2931 = vadd.f32 %v2692, %v2873
      %v2932 = vadd.f32 %v2693, %v2876
      %v2933 = vadd.f32 %v2694, %v2878
      %v2934 = vadd.f32 %v2695, %v2881
      %v2935 = vadd.f32 %v2696, %v2883
      %v2936 = vadd.f32 %v2697, %v2886
      %v2937 = vadd.f32 %v2698, %v2888
      %v2938 = vadd.f32 %v2699, %v2891
      %v2939 = vadd.f32 %v2700, %v2893
      %v2940 = vadd.f32 %v2701, %v2896
      %v2941 = vadd.f32 %v2702, %v2898
      %v2942 = vadd.f32 %v2703, %v2901
      %v2943 = vadd.f32 %v2704, %v2903
      %v2944 = vadd.f32 %v2705, %v2906
      %v2945 = vadd.f32 %v2706, %v2908
      %v2946 = vld [vmem:[%s2] sm:$0x1]
      %v2948 = vperm.slane %v2946, 0
      %v2950 = vadd.f32 %v2910, %v2948
      %v2951 = vadd.f32 %v2911, %v2948
      %v2952 = vadd.f32 %v2912, %v2948
      %v2953 = vadd.f32 %v2913, %v2948
      %v2954 = vadd.f32 %v2914, %v2948
      %v2955 = vadd.f32 %v2915, %v2948
      %v2956 = vadd.f32 %v2916, %v2948
      %v2957 = vadd.f32 %v2917, %v2948
      %v2958 = vadd.f32 %v2918, %v2948
      %v2959 = vadd.f32 %v2919, %v2948
      %v2960 = vadd.f32 %v2920, %v2948
      %v2961 = vadd.f32 %v2921, %v2948
      %v2962 = vadd.f32 %v2922, %v2948
      %v2963 = vadd.f32 %v2923, %v2948
      %v2964 = vadd.f32 %v2924, %v2948
      %v2965 = vadd.f32 %v2925, %v2948
      %v2966 = vadd.f32 %v2926, %v2948
      %v2967 = vadd.f32 %v2927, %v2948
      %v2968 = vadd.f32 %v2928, %v2948
      %v2969 = vadd.f32 %v2929, %v2948
      %v2970 = vadd.f32 %v2930, %v2948
      %v2971 = vadd.f32 %v2931, %v2948
      %v2972 = vadd.f32 %v2932, %v2948
      %v2973 = vadd.f32 %v2933, %v2948
      %v2974 = vadd.f32 %v2934, %v2948
      %v2975 = vadd.f32 %v2935, %v2948
      %v2976 = vadd.f32 %v2936, %v2948
      %v2977 = vadd.f32 %v2937, %v2948
      %v2978 = vadd.f32 %v2938, %v2948
      %v2979 = vadd.f32 %v2939, %v2948
      %v2980 = vadd.f32 %v2940, %v2948
      %v2981 = vadd.f32 %v2941, %v2948
      %v2982 = vadd.f32 %v2942, %v2948
      %v2983 = vadd.f32 %v2943, %v2948
      %v2984 = vadd.f32 %v2944, %v2948
      %v2985 = vadd.f32 %v2945, %v2948
      %v2986 = vmax.f32 %v2950, 0.0
      %v2987 = vmax.f32 %v2951, 0.0
      %v2988 = vmax.f32 %v2952, 0.0
      %v2989 = vmax.f32 %v2953, 0.0
      %v2990 = vmax.f32 %v2954, 0.0
      %v2991 = vmax.f32 %v2955, 0.0
      %v2992 = vmax.f32 %v2956, 0.0
      %v2993 = vmax.f32 %v2957, 0.0
      %v2994 = vmax.f32 %v2958, 0.0
      %v2995 = vmax.f32 %v2959, 0.0
      %v2996 = vmax.f32 %v2960, 0.0
      %v2997 = vmax.f32 %v2961, 0.0
      %v2998 = vmax.f32 %v2962, 0.0
      %v2999 = vmax.f32 %v2963, 0.0
      %v3000 = vmax.f32 %v2964, 0.0
      %v3001 = vmax.f32 %v2965, 0.0
      %v3002 = vmax.f32 %v2966, 0.0
      %v3003 = vmax.f32 %v2967, 0.0
      %v3004 = vmax.f32 %v2968, 0.0
      %v3005 = vmax.f32 %v2969, 0.0
      %v3006 = vmax.f32 %v2970, 0.0
      %v3007 = vmax.f32 %v2971, 0.0
      %v3008 = vmax.f32 %v2972, 0.0
      %v3009 = vmax.f32 %v2973, 0.0
      %v3010 = vmax.f32 %v2974, 0.0
      %v3011 = vmax.f32 %v2975, 0.0
      %v3012 = vmax.f32 %v2976, 0.0
      %v3013 = vmax.f32 %v2977, 0.0
      %v3014 = vmax.f32 %v2978, 0.0
      %v3015 = vmax.f32 %v2979, 0.0
      %v3016 = vmax.f32 %v2980, 0.0
      %v3017 = vmax.f32 %v2981, 0.0
      %v3018 = vmax.f32 %v2982, 0.0
      %v3019 = vmax.f32 %v2983, 0.0
      %v3020 = vmax.f32 %v2984, 0.0
      %v3021 = vmax.f32 %v2985, 0.0
      %v3022 = vpack.c.bf16 %v2986, %v2986
      %v3023 = vpack.c.bf16 %v2987, %v2987
      %v3024 = vpack.c.bf16 %v2988, %v2988
      %v3025 = vpack.c.bf16 %v2989, %v2989
      %v3026 = vpack.c.bf16 %v2990, %v2990
      %v3027 = vpack.c.bf16 %v2991, %v2991
      %v3028 = vpack.c.bf16 %v2992, %v2992
      %v3029 = vpack.c.bf16 %v2993, %v2993
      %v3030 = vpack.c.bf16 %v2994, %v2994
      %v3031 = vpack.c.bf16 %v2995, %v2995
      %v3032 = vpack.c.bf16 %v2996, %v2996
      %v3033 = vpack.c.bf16 %v2997, %v2997
      %v3034 = vpack.c.bf16 %v2998, %v2998
      %v3035 = vpack.c.bf16 %v2999, %v2999
      %v3036 = vpack.c.bf16 %v3000, %v3000
      %v3037 = vpack.c.bf16 %v3001, %v3001
      %v3038 = vpack.c.bf16 %v3002, %v3002
      %v3039 = vpack.c.bf16 %v3003, %v3003
      %v3040 = vpack.c.bf16 %v3004, %v3004
      %v3041 = vpack.c.bf16 %v3005, %v3005
      %v3042 = vpack.c.bf16 %v3006, %v3006
      %v3043 = vpack.c.bf16 %v3007, %v3007
      %v3044 = vpack.c.bf16 %v3008, %v3008
      %v3045 = vpack.c.bf16 %v3009, %v3009
      %v3046 = vpack.c.bf16 %v3010, %v3010
      %v3047 = vpack.c.bf16 %v3011, %v3011
      %v3048 = vpack.c.bf16 %v3012, %v3012
      %v3049 = vpack.c.bf16 %v3013, %v3013
      %v3050 = vpack.c.bf16 %v3014, %v3014
      %v3051 = vpack.c.bf16 %v3015, %v3015
      %v3052 = vpack.c.bf16 %v3016, %v3016
      %v3053 = vpack.c.bf16 %v3017, %v3017
      %v3054 = vpack.c.bf16 %v3018, %v3018
      %v3055 = vpack.c.bf16 %v3019, %v3019
      %v3056 = vpack.c.bf16 %v3020, %v3020
      %v3057 = vpack.c.bf16 %v3021, %v3021
      %vm3058 = vcmask 125952
      %3059 = vst.msk [vmem:[%s170] sm:$0xf] %vm3058, %v3022
      %3060 = vst.msk [vmem:[%s170 + $0x4] sm:$0xf] %vm3058, %v3023
      %3061 = vst.msk [vmem:[%s170 + $0x8] sm:$0xf] %vm3058, %v3024
      %3062 = vst.msk [vmem:[%s170 + $0xc] sm:$0xf] %vm3058, %v3025
      %3063 = vst.msk [vmem:[%s170 + $0x10] sm:$0xf] %vm3058, %v3026
      %3064 = vst.msk [vmem:[%s170 + $0x14] sm:$0xf] %vm3058, %v3027
      %3065 = vst.msk [vmem:[%s170 + $0x18] sm:$0xf] %vm3058, %v3028
      %3066 = vst.msk [vmem:[%s170 + $0x1c] sm:$0xf] %vm3058, %v3029
      %3067 = vst.msk [vmem:[%s170 + $0x20] sm:$0xf] %vm3058, %v3030
      %3068 = vst.msk [vmem:[%s170 + $0x24] sm:$0xf] %vm3058, %v3031
      %3069 = vst.msk [vmem:[%s170 + $0x28] sm:$0xf] %vm3058, %v3032
      %3070 = vst.msk [vmem:[%s170 + $0x2c] sm:$0xf] %vm3058, %v3033
      %3071 = vst.msk [vmem:[%s170 + $0x30] sm:$0xf] %vm3058, %v3034
      %3072 = vst.msk [vmem:[%s170 + $0x34] sm:$0xf] %vm3058, %v3035
      %3073 = vst.msk [vmem:[%s170 + $0x38] sm:$0xf] %vm3058, %v3036
      %3074 = vst.msk [vmem:[%s170 + $0x3c] sm:$0xf] %vm3058, %v3037
      %3075 = vst.msk [vmem:[%s170 + $0x40] sm:$0xf] %vm3058, %v3038
      %3076 = vst.msk [vmem:[%s170 + $0x44] sm:$0xf] %vm3058, %v3039
      %3077 = vst.msk [vmem:[%s170 + $0x48] sm:$0xf] %vm3058, %v3040
      %3078 = vst.msk [vmem:[%s170 + $0x4c] sm:$0xf] %vm3058, %v3041
      %3079 = vst.msk [vmem:[%s170 + $0x50] sm:$0xf] %vm3058, %v3042
      %3080 = vst.msk [vmem:[%s170 + $0x54] sm:$0xf] %vm3058, %v3043
      %3081 = vst.msk [vmem:[%s170 + $0x58] sm:$0xf] %vm3058, %v3044
      %3082 = vst.msk [vmem:[%s170 + $0x5c] sm:$0xf] %vm3058, %v3045
      %3083 = vst.msk [vmem:[%s170 + $0x60] sm:$0xf] %vm3058, %v3046
      %3084 = vst.msk [vmem:[%s170 + $0x64] sm:$0xf] %vm3058, %v3047
      %3085 = vst.msk [vmem:[%s170 + $0x68] sm:$0xf] %vm3058, %v3048
      %3086 = vst.msk [vmem:[%s170 + $0x6c] sm:$0xf] %vm3058, %v3049
      %3087 = vst.msk [vmem:[%s170 + $0x70] sm:$0xf] %vm3058, %v3050
      %3088 = vst.msk [vmem:[%s170 + $0x74] sm:$0xf] %vm3058, %v3051
      %3089 = vst.msk [vmem:[%s170 + $0x78] sm:$0xf] %vm3058, %v3052
      %3090 = vst.msk [vmem:[%s170 + $0x7c] sm:$0xf] %vm3058, %v3053
      %3091 = vst.msk [vmem:[%s170 + $0x80] sm:$0xf] %vm3058, %v3054
      %3092 = vst.msk [vmem:[%s170 + $0x84] sm:$0xf] %vm3058, %v3055
      %3093 = vst.msk [vmem:[%s170 + $0x88] sm:$0xf] %vm3058, %v3056
      %3094 = vst.msk [vmem:[%s170 + $0x8c] sm:$0xf] %vm3058, %v3057
      %s3095 = smul.u32 36, %s14
      %p3096 = scmp.lt.s32.totalorder %s3095, 71
      %s3097 = scalar_select %p3096, %s3095, 71
      %s3098 = smul.addr %s3097, 4
      %s3099 = scalar_lea.vmem %s3, %s3098
      // Predicated region
      $region33: #{_lambda_.8} parent=31 // pred_check
        %p3100 = pneg %p100
      $region34: #{_lambda_.8} parent=31 // pred_check_branch
        %3102 = sbr.rel (%p3100) target = $region36
      $region35: #{_lambda_.8} parent=31 // pred_region
        %s3103 = smul.u32 36, %s14
      $region36: #{_lambda_.8} parent=31 // pred_fallthru
        _
    $region32: #{_lambda_.8} parent=5 // pred_fallthru
      _
    %p3104 = scmp.le.s32.totalorder 2, %s9
    // Predicated region
    $region37: #{_lambda_.8} parent=5 // pred_check
      %p3105 = pneg %p3104
    $region38: #{_lambda_.8} parent=5 // pred_check_branch
      %3107 = sbr.rel (%p3105) target = $region40
    $region39: #{_lambda_.8} parent=5 // pred_region
      %s3108 = ssub.s32 %s9, 2
      // Predicated region
      $region41: #{_lambda_.8} parent=39 // pred_check
        %p3109 = pneg %p106
      $region42: #{_lambda_.8} parent=39 // pred_check_branch
        %3111 = sbr.rel (%p3109) target = $region44
      $region43: #{_lambda_.8} parent=39 // pred_region
        %s3112 = smul.u32 36, %s15
        %p3113 = scmp.lt.s32.totalorder %s3112, 71
        %s3114 = scalar_select %p3113, %s3112, 71
        %s3115 = smul.addr %s3114, 4
        %s3116 = scalar_lea.vmem %s3, %s3115
      $region44: #{_lambda_.8} parent=39 // pred_fallthru
        _
    $region40: #{_lambda_.8} parent=5 // pred_fallthru
      _
  $region6: #{_lambda_.8} parent=0 // loop_footer
    %s13 = sadd.s32 1, %s9
  $region7: #{_lambda_.8} parent=0 // loop_footer_branch
    %8 = sbr.rel target = $region3
  $region8: #{_lambda_.8} parent=0 // loop_exit
    _

// kernel: _lambda_.10
$region0: #{_lambda_.10}
  #allocation0 [shape = 'u32[]', space=smem, size = 0x4, offset = 0x4, fixed_abs, tag = 'smem constant byte address 0x4 - core index']
  #allocation1 [shape = 'u32[72,128]{1,0:T(1,128)}', space=vmem, size = 0x9000, scoped, tag = 'internal scratch']
  %s0 = inlined_call_operand.vmem [shape: bf16[2,360,16], index: 0, kind: input, shape index: {}]
  %s1 = inlined_call_operand.vmem [shape: bf16[144,16], index: 1, kind: input, shape index: {}]
  %s2 = inlined_call_operand.vmem [shape: f32[1,16], index: 2, kind: input, shape index: {}]
  %s3 = inlined_call_operand.vmem [shape: bf16[576,16], index: 3, kind: input, shape index: {}]
  %s4 = inlined_call_operand.vmem [shape: bf16[576,16], index: 4, kind: output, shape index: {}]
  %s5 = sld [smem:[#allocation0]]
  $region49: #{_lambda_.10} parent=0
    _
  %s7 = ssub.s32 1, %s5
  %s8 = scalar_select 0, %s7, %s5
  loop: start=0, step=1, limit=4
  $region2: #{_lambda_.10} parent=0 // loop_pre_header
    _
  $region3: #{_lambda_.10} parent=0 // loop_header
    %s10 = sphi 0, %s14
    %p11 = scmp.ge.s32.totalorder %s10, 4
    %s20 = sphi 0, %s22
    %s23 = sphi 0, %s20
    %s24 = sphi 0, %s23
    %s40 = sphi 0, %s24
    %s44 = sphi 0, %s44
    %s46 = sphi 0, %s44
    %s47 = sphi 0, %s46
    %s61 = sphi 0, %s47
    %s65 = sphi 0, %s65
    %s67 = sphi 0, %s65
    %s68 = sphi 0, %s67
    %s82 = sphi 0, %s68
    %s88 = sphi 0, %s90
    %s91 = sphi 0, %s88
    %s92 = sphi 0, %s91
    %s108 = sphi 0, %s92
    %s114 = sphi 0, %s116
    %s117 = sphi 0, %s114
    %s118 = sphi 0, %s117
    %s134 = sphi 0, %s118
  $region4: #{_lambda_.10} parent=0 // loop_header_branch
    %13 = sbr.rel (%p11) target = $region8
  $region5: #{_lambda_.10} parent=0 // loop_body
    %s15 = ssub.s32 %s10, 1
    %s16 = ssub.s32 %s10, 2
    %s17 = sadd.s32 %s10, 1
    %s18 = ssub.s32 %s10, %s17
    %p19 = scmp.eq.s32.totalorder %s18, 0
    %s21 = sadd.s32 %s20, 1
    %s22 = scalar_select %p19, %s20, %s21
    %p25 = pneg %p19
    %p26 = scmp.eq.s32.totalorder %s10, 1
    %p27 = por %p25, %p26
    %p28 = scmp.ne.s32.totalorder %s20, %s23
    %p29 = scmp.eq.s32.totalorder %s10, 0
    %p30 = por %p28, %p29
    %p31 = scmp.ne.s32.totalorder %s20, %s23
    %p32 = scmp.eq.s32.totalorder %s15, 1
    %p33 = por %p31, %p32
    %p34 = scmp.ne.s32.totalorder %s23, %s24
    %p35 = scmp.eq.s32.totalorder %s15, 0
    %p36 = por %p34, %p35
    %p37 = scmp.ne.s32.totalorder %s23, %s24
    %p38 = scmp.eq.s32.totalorder %s16, 1
    %p39 = por %p37, %p38
    %p41 = scmp.ne.s32.totalorder %s24, %s40
    %p42 = scmp.eq.s32.totalorder %s16, 0
    %p43 = por %p41, %p42
    %s45 = sadd.s32 %s44, 1
    %p48 = scmp.eq.s32.totalorder %s10, 1
    %p49 = scmp.ne.s32.totalorder %s44, %s46
    %p50 = scmp.eq.s32.totalorder %s10, 0
    %p51 = por %p49, %p50
    %p52 = scmp.ne.s32.totalorder %s44, %s46
    %p53 = scmp.eq.s32.totalorder %s15, 1
    %p54 = por %p52, %p53
    %p55 = scmp.ne.s32.totalorder %s46, %s47
    %p56 = scmp.eq.s32.totalorder %s15, 0
    %p57 = por %p55, %p56
    %p58 = scmp.ne.s32.totalorder %s46, %s47
    %p59 = scmp.eq.s32.totalorder %s16, 1
    %p60 = por %p58, %p59
    %p62 = scmp.ne.s32.totalorder %s47, %s61
    %p63 = scmp.eq.s32.totalorder %s16, 0
    %p64 = por %p62, %p63
    %s66 = sadd.s32 %s65, 1
    %p69 = scmp.eq.s32.totalorder %s10, 1
    %p70 = scmp.ne.s32.totalorder %s65, %s67
    %p71 = scmp.eq.s32.totalorder %s10, 0
    %p72 = por %p70, %p71
    %p73 = scmp.ne.s32.totalorder %s65, %s67
    %p74 = scmp.eq.s32.totalorder %s15, 1
    %p75 = por %p73, %p74
    %p76 = scmp.ne.s32.totalorder %s67, %s68
    %p77 = scmp.eq.s32.totalorder %s15, 0
    %p78 = por %p76, %p77
    %p79 = scmp.ne.s32.totalorder %s67, %s68
    %p80 = scmp.eq.s32.totalorder %s16, 1
    %p81 = por %p79, %p80
    %p83 = scmp.ne.s32.totalorder %s68, %s82
    %p84 = scmp.eq.s32.totalorder %s16, 0
    %p85 = por %p83, %p84
    %s86 = ssub.s32 %s10, %s17
    %p87 = scmp.eq.s32.totalorder %s86, 0
    %s89 = sadd.s32 %s88, 1
    %s90 = scalar_select %p87, %s88, %s89
    %p93 = pneg %p87
    %p94 = scmp.eq.s32.totalorder %s10, 1
    %p95 = por %p93, %p94
    %p96 = scmp.ne.s32.totalorder %s88, %s91
    %p97 = scmp.eq.s32.totalorder %s10, 0
    %p98 = por %p96, %p97
    %p99 = scmp.ne.s32.totalorder %s88, %s91
    %p100 = scmp.eq.s32.totalorder %s15, 1
    %p101 = por %p99, %p100
    %p102 = scmp.ne.s32.totalorder %s91, %s92
    %p103 = scmp.eq.s32.totalorder %s15, 0
    %p104 = por %p102, %p103
    %p105 = scmp.ne.s32.totalorder %s91, %s92
    %p106 = scmp.eq.s32.totalorder %s16, 1
    %p107 = por %p105, %p106
    %p109 = scmp.ne.s32.totalorder %s92, %s108
    %p110 = scmp.eq.s32.totalorder %s16, 0
    %p111 = por %p109, %p110
    %s112 = ssub.s32 %s10, %s17
    %p113 = scmp.eq.s32.totalorder %s112, 0
    %s115 = sadd.s32 %s114, 1
    %s116 = scalar_select %p113, %s114, %s115
    %p119 = pneg %p113
    %p120 = scmp.eq.s32.totalorder %s10, 1
    %p121 = por %p119, %p120
    %p122 = scmp.ne.s32.totalorder %s114, %s117
    %p123 = scmp.eq.s32.totalorder %s10, 0
    %p124 = por %p122, %p123
    %p125 = scmp.ne.s32.totalorder %s114, %s117
    %p126 = scmp.eq.s32.totalorder %s15, 1
    %p127 = por %p125, %p126
    %p128 = scmp.ne.s32.totalorder %s117, %s118
    %p129 = scmp.eq.s32.totalorder %s15, 0
    %p130 = por %p128, %p129
    %p131 = scmp.ne.s32.totalorder %s117, %s118
    %p132 = scmp.eq.s32.totalorder %s16, 1
    %p133 = por %p131, %p132
    %p135 = scmp.ne.s32.totalorder %s118, %s134
    %p136 = scmp.eq.s32.totalorder %s16, 0
    %p137 = por %p135, %p136
    %p138 = scmp.le.s32.totalorder 1, %s10
    %p139 = scmp.lt.s32.totalorder %s10, 3
    %p140 = pnand %p138, %p139
    %p141 = pneg %p140
    // Predicated region
    $region9: #{_lambda_.10} parent=5 // pred_check
      _
    $region10: #{_lambda_.10} parent=5 // pred_check_branch
      %143 = sbr.rel (%p140) target = $region12
    $region11: #{_lambda_.10} parent=5 // pred_region
      %s144 = ssub.s32 %s10, 1
      // Predicated region
      $region13: #{_lambda_.10} parent=11 // pred_check
        %p145 = pneg %p57
      $region14: #{_lambda_.10} parent=11 // pred_check_branch
        %147 = sbr.rel (%p145) target = $region16
      $region15: #{_lambda_.10} parent=11 // pred_region
        _
      $region16: #{_lambda_.10} parent=11 // pred_fallthru
        _
      // Predicated region
      $region17: #{_lambda_.10} parent=11 // pred_check
        %p148 = pneg %p78
      $region18: #{_lambda_.10} parent=11 // pred_check_branch
        %150 = sbr.rel (%p148) target = $region20
      $region19: #{_lambda_.10} parent=11 // pred_region
        _
      $region20: #{_lambda_.10} parent=11 // pred_fallthru
        _
    $region12: #{_lambda_.10} parent=5 // pred_fallthru
      _
    %p151 = scmp.lt.s32.totalorder %s10, 2
    // Predicated region
    $region21: #{_lambda_.10} parent=5 // pred_check
      %p152 = pneg %p151
    $region22: #{_lambda_.10} parent=5 // pred_check_branch
      %154 = sbr.rel (%p152) target = $region24
    $region23: #{_lambda_.10} parent=5 // pred_region
      // Predicated region
      $region25: #{_lambda_.10} parent=23 // pred_check
        %p155 = pneg %p30
      $region26: #{_lambda_.10} parent=23 // pred_check_branch
        %157 = sbr.rel (%p155) target = $region28
      $region27: #{_lambda_.10} parent=23 // pred_region
        %p158 = scmp.lt.s32.totalorder %s10, 1
        %s159 = scalar_select %p158, %s10, 1
        %s160 = smul.addr %s159, 45
        %s161 = smul.addr %s160, 4
        %s162 = scalar_lea.vmem %s0, %s161
      $region28: #{_lambda_.10} parent=23 // pred_fallthru
        _
      // Predicated region
      $region29: #{_lambda_.10} parent=23 // pred_check
        %p163 = pneg %p98
      $region30: #{_lambda_.10} parent=23 // pred_check_branch
        %165 = sbr.rel (%p163) target = $region32
      $region31: #{_lambda_.10} parent=23 // pred_region
        %s166 = smul.u32 36, %s10
        %p167 = scmp.lt.s32.totalorder %s166, 71
        %s168 = scalar_select %p167, %s166, 71
        %s169 = smul.addr %s168, 4
        %s170 = scalar_lea.vmem %s3, %s169
        %s171 = smul.u32 36, %s10
      $region32: #{_lambda_.10} parent=23 // pred_fallthru
        _
    $region24: #{_lambda_.10} parent=5 // pred_fallthru
      _
    %p172 = scmp.le.s32.totalorder 1, %s10
    %p173 = scmp.lt.s32.totalorder %s10, 3
    %p174 = pnand %p172, %p173
    %p175 = pneg %p174
    // Predicated region
    $region33: #{_lambda_.10} parent=5 // pred_check
      _
    $region34: #{_lambda_.10} parent=5 // pred_check_branch
      %177 = sbr.rel (%p174) target = $region36
    $region35: #{_lambda_.10} parent=5 // pred_region
      %s178 = ssub.s32 %s10, 1
      %p179 = scmp.lt.s32.totalorder %s15, 1
      %s180 = scalar_select %p179, %s15, 1
      %s181 = smul.addr %s180, 45
      %s182 = smul.addr %s181, 4
      %s183 = scalar_lea.vmem %s0, %s182
      %p184 = pneg %p36
      %p185 = pneg %p33
      %p186 = pneg %p57
      %p187 = pneg %p54
      %p188 = pneg %p78
      %p189 = pneg %p75
      %s190 = smul.u32 36, %s15
      %p191 = scmp.lt.s32.totalorder %s190, 71
      %s192 = scalar_select %p191, %s190, 71
      %s193 = smul.addr %s192, 4
      %s194 = scalar_lea.vmem %s3, %s193
      %p195 = pneg %p104
      %p196 = pneg %p101
      %p197 = pneg %p130
      %p198 = pneg %p127
      %s199 = smul.u32 36, %s15
      %p200 = scmp.lt.s32.totalorder %s199, 71
      %s201 = scalar_select %p200, %s199, 71
      %s202 = smul.addr %s201, 4
      %s203 = scalar_lea.vmem %s4, %s202
      %p204 = scmp.lt.s32.totalorder %s15, 1
      %s205 = scalar_select %p204, %s15, 1
      %s206 = smul.addr %s205, 45
      %s207 = smul.addr %s206, 4
      %s208 = scalar_lea.vmem %s0, %s207
      %s209 = smul.u32 36, %s15
      %p210 = scmp.lt.s32.totalorder %s209, 71
      %s211 = scalar_select %p210, %s209, 71
      %s212 = smul.addr %s211, 4
      %s213 = scalar_lea.vmem %s3, %s212
      %s214 = smul.u32 36, %s15
      %s215 = smul.u32 36, %s15
      %p216 = scmp.lt.s32.totalorder %s215, 71
      %s217 = scalar_select %p216, %s215, 71
      %s218 = smul.addr %s217, 4
      %s219 = scalar_lea.vmem %s4, %s218
      %s220 = smul.u32 36, %s15
      %v222 = vld [vmem:[%s208] sm:$0xf]
      %v223 = vld [vmem:[%s208 + $0x4] sm:$0xf]
      %v224 = vld [vmem:[%s208 + $0x8] sm:$0xf]
      %v225 = vld [vmem:[%s208 + $0xc] sm:$0xf]
      %v226 = vld [vmem:[%s208 + $0x10] sm:$0xf]
      %v227 = vld [vmem:[%s208 + $0x14] sm:$0xf]
      %v228 = vld [vmem:[%s208 + $0x18] sm:$0xf]
      %v229 = vld [vmem:[%s208 + $0x1c] sm:$0xf]
      %v230 = vld [vmem:[%s208 + $0x20] sm:$0xf]
      %v231 = vld [vmem:[%s208 + $0x24] sm:$0xf]
      %v232 = vld [vmem:[%s208 + $0x28] sm:$0xf]
      %v233 = vld [vmem:[%s208 + $0x2c] sm:$0xf]
      %v234 = vld [vmem:[%s208 + $0x30] sm:$0xf]
      %v235 = vld [vmem:[%s208 + $0x34] sm:$0xf]
      %v236 = vld [vmem:[%s208 + $0x38] sm:$0xf]
      %v237 = vld [vmem:[%s208 + $0x3c] sm:$0xf]
      %v238 = vld [vmem:[%s208 + $0x40] sm:$0xf]
      %v239 = vld [vmem:[%s208 + $0x44] sm:$0xf]
      %v240 = vld [vmem:[%s208 + $0x48] sm:$0xf]
      %v241 = vld [vmem:[%s208 + $0x4c] sm:$0xf]
      %v242 = vld [vmem:[%s208 + $0x50] sm:$0xf]
      %v243 = vld [vmem:[%s208 + $0x54] sm:$0xf]
      %v244 = vld [vmem:[%s208 + $0x58] sm:$0xf]
      %v245 = vld [vmem:[%s208 + $0x5c] sm:$0xf]
      %v246 = vld [vmem:[%s208 + $0x60] sm:$0xf]
      %v247 = vld [vmem:[%s208 + $0x64] sm:$0xf]
      %v248 = vld [vmem:[%s208 + $0x68] sm:$0xf]
      %v249 = vld [vmem:[%s208 + $0x6c] sm:$0xf]
      %v250 = vld [vmem:[%s208 + $0x70] sm:$0xf]
      %v251 = vld [vmem:[%s208 + $0x74] sm:$0xf]
      %v252 = vld [vmem:[%s208 + $0x78] sm:$0xf]
      %v253 = vld [vmem:[%s208 + $0x7c] sm:$0xf]
      %v254 = vld [vmem:[%s208 + $0x80] sm:$0xf]
      %v255 = vld [vmem:[%s208 + $0x84] sm:$0xf]
      %v256 = vld [vmem:[%s208 + $0x88] sm:$0xf]
      %v257 = vld [vmem:[%s208 + $0x8c] sm:$0xf]
      %v258 = vld [vmem:[%s1] sm:$0xf]
      %v259 = vld [vmem:[%s1 + $0x4] sm:$0xf]
      %v260 = vld [vmem:[%s208 + $0x90] sm:$0x1]
      %v261 = vld [vmem:[%s1 + $0x8] sm:$0xf]
      %v262 = vld [vmem:[%s1 + $0xc] sm:$0xf]
      %v300 = vunpack.c.l.b16 %v222
      %v301 = vunpack.c.l.b16 %v223
      %v302 = vunpack.c.l.b16 %v224
      %v303 = vunpack.c.l.b16 %v225
      %v304 = vunpack.c.l.b16 %v226
      %v305 = vunpack.c.l.b16 %v227
      %v306 = vunpack.c.l.b16 %v228
      %v307 = vunpack.c.l.b16 %v229
      %v308 = vunpack.c.l.b16 %v230
      %v309 = vunpack.c.l.b16 %v231
      %v310 = vunpack.c.l.b16 %v232
      %v311 = vunpack.c.l.b16 %v233
      %v312 = vunpack.c.l.b16 %v234
      %v313 = vunpack.c.l.b16 %v235
      %v314 = vunpack.c.l.b16 %v236
      %v315 = vunpack.c.l.b16 %v237
      %v316 = vunpack.c.l.b16 %v238
      %v317 = vunpack.c.l.b16 %v239
      %v318 = vunpack.c.l.b16 %v240
      %v319 = vunpack.c.l.b16 %v241
      %v320 = vunpack.c.l.b16 %v242
      %v321 = vunpack.c.l.b16 %v243
      %v322 = vunpack.c.l.b16 %v244
      %v323 = vunpack.c.l.b16 %v245
      %v324 = vunpack.c.l.b16 %v246
      %v325 = vunpack.c.l.b16 %v247
      %v326 = vunpack.c.l.b16 %v248
      %v327 = vunpack.c.l.b16 %v249
      %v328 = vunpack.c.l.b16 %v250
      %v329 = vunpack.c.l.b16 %v251
      %v330 = vunpack.c.l.b16 %v252
      %v331 = vunpack.c.l.b16 %v253
      %v332 = vunpack.c.l.b16 %v254
      %v333 = vunpack.c.l.b16 %v255
      %v334 = vunpack.c.l.b16 %v256
      %v335 = vunpack.c.l.b16 %v257
      %v336 = vunpack.c.l.b16 %v260
      %v337 = vpack.c.b16 %v301, %v300
      %v338 = vpack.c.b16 %v303, %v302
      %v339 = vpack.c.b16 %v305, %v304
      %v340 = vpack.c.b16 %v307, %v306
      %v341 = vpack.c.b16 %v309, %v308
      %v342 = vpack.c.b16 %v311, %v310
      %v343 = vpack.c.b16 %v313, %v312
      %v344 = vpack.c.b16 %v315, %v314
      %v345 = vpack.c.b16 %v317, %v316
      %v346 = vpack.c.b16 %v319, %v318
      %v347 = vpack.c.b16 %v321, %v320
      %v348 = vpack.c.b16 %v323, %v322
      %v349 = vpack.c.b16 %v325, %v324
      %v350 = vpack.c.b16 %v327, %v326
      %v351 = vpack.c.b16 %v329, %v328
      %v352 = vpack.c.b16 %v331, %v330
      %v353 = vpack.c.b16 %v333, %v332
      %v354 = vpack.c.b16 %v335, %v334
      %v355 = vpack.c.b16 %v336, %v336
      %vm356 = vsmask.f32 7424
      %v358 = vshrl.u32 %v337, 16
      %v360 = vshll.u32 %v337, 16
      %v362 = vrot.slane %v360, 1
      %v363 = vor.u32 %v358, %v362
      %v365 = vshll.u32 %v338, 16
      %v367 = vrot.slane %v365, 1
      %v368 = vsel %vm356, %v363, %v367
      %v369 = vshrl.u32 %v338, 16
      %v371 = vor.u32 %v369, %v367
      %v373 = vshll.u32 %v339, 16
      %v375 = vrot.slane %v373, 1
      %v376 = vsel %vm356, %v371, %v375
      %v377 = vshrl.u32 %v339, 16
      %v379 = vor.u32 %v377, %v375
      %v381 = vshll.u32 %v340, 16
      %v383 = vrot.slane %v381, 1
      %v384 = vsel %vm356, %v379, %v383
      %v385 = vshrl.u32 %v340, 16
      %v387 = vor.u32 %v385, %v383
      %v389 = vshll.u32 %v341, 16
      %v391 = vrot.slane %v389, 1
      %v392 = vsel %vm356, %v387, %v391
      %v393 = vshrl.u32 %v341, 16
      %v395 = vor.u32 %v393, %v391
      %v397 = vshll.u32 %v342, 16
      %v399 = vrot.slane %v397, 1
      %v400 = vsel %vm356, %v395, %v399
      %v401 = vshrl.u32 %v342, 16
      %v403 = vor.u32 %v401, %v399
      %v405 = vshll.u32 %v343, 16
      %v407 = vrot.slane %v405, 1
      %v408 = vsel %vm356, %v403, %v407
      %v409 = vshrl.u32 %v343, 16
      %v411 = vor.u32 %v409, %v407
      %v413 = vshll.u32 %v344, 16
      %v415 = vrot.slane %v413, 1
      %v416 = vsel %vm356, %v411, %v415
      %v417 = vshrl.u32 %v344, 16
      %v419 = vor.u32 %v417, %v415
      %v421 = vshll.u32 %v345, 16
      %v423 = vrot.slane %v421, 1
      %v424 = vsel %vm356, %v419, %v423
      %v425 = vshrl.u32 %v345, 16
      %v427 = vor.u32 %v425, %v423
      %v429 = vshll.u32 %v346, 16
      %v431 = vrot.slane %v429, 1
      %v432 = vsel %vm356, %v427, %v431
      %v433 = vshrl.u32 %v346, 16
      %v435 = vor.u32 %v433, %v431
      %v437 = vshll.u32 %v347, 16
      %v439 = vrot.slane %v437, 1
      %v440 = vsel %vm356, %v435, %v439
      %v441 = vshrl.u32 %v347, 16
      %v443 = vor.u32 %v441, %v439
      %v445 = vshll.u32 %v348, 16
      %v447 = vrot.slane %v445, 1
      %v448 = vsel %vm356, %v443, %v447
      %v449 = vshrl.u32 %v348, 16
      %v451 = vor.u32 %v449, %v447
      %v453 = vshll.u32 %v349, 16
      %v455 = vrot.slane %v453, 1
      %v456 = vsel %vm356, %v451, %v455
      %v457 = vshrl.u32 %v349, 16
      %v459 = vor.u32 %v457, %v455
      %v461 = vshll.u32 %v350, 16
      %v463 = vrot.slane %v461, 1
      %v464 = vsel %vm356, %v459, %v463
      %v465 = vshrl.u32 %v350, 16
      %v467 = vor.u32 %v465, %v463
      %v469 = vshll.u32 %v351, 16
      %v471 = vrot.slane %v469, 1
      %v472 = vsel %vm356, %v467, %v471
      %v473 = vshrl.u32 %v351, 16
      %v475 = vor.u32 %v473, %v471
      %v477 = vshll.u32 %v352, 16
      %v479 = vrot.slane %v477, 1
      %v480 = vsel %vm356, %v475, %v479
      %v481 = vshrl.u32 %v352, 16
      %v483 = vor.u32 %v481, %v479
      %v485 = vshll.u32 %v353, 16
      %v487 = vrot.slane %v485, 1
      %v488 = vsel %vm356, %v483, %v487
      %v489 = vshrl.u32 %v353, 16
      %v491 = vor.u32 %v489, %v487
      %v493 = vshll.u32 %v354, 16
      %v495 = vrot.slane %v493, 1
      %v496 = vsel %vm356, %v491, %v495
      %v497 = vshrl.u32 %v354, 16
      %v499 = vor.u32 %v497, %v495
      %v501 = vshll.u32 %v355, 16
      %v503 = vrot.slane %v501, 1
      %v504 = vsel %vm356, %v499, %v503
      %v507 = vunpack.c.l.b16 %v261
      %v508 = vunpack.c.l.b16 %v262
      %v509 = vpack.c.b16 %v508, %v507
      %vm511 = vcmask 130048
      %v513 = vsel %vm511, %v368, 0
      %v516 = vsel %vm511, %v376, 0
      %v519 = vsel %vm511, %v384, 0
      %v522 = vsel %vm511, %v392, 0
      %v525 = vsel %vm511, %v400, 0
      %v528 = vsel %vm511, %v408, 0
      %v531 = vsel %vm511, %v416, 0
      %v534 = vsel %vm511, %v424, 0
      %v537 = vsel %vm511, %v432, 0
      %v540 = vsel %vm511, %v440, 0
      %v543 = vsel %vm511, %v448, 0
      %v546 = vsel %vm511, %v456, 0
      %v549 = vsel %vm511, %v464, 0
      %v552 = vsel %vm511, %v472, 0
      %v555 = vsel %vm511, %v480, 0
      %v558 = vsel %vm511, %v488, 0
      %v561 = vsel %vm511, %v496, 0
      %v564 = vsel %vm511, %v504, 0
      %566 = vmatpush.bf16.msra.mxu0 0
      %567 = vmatpush.bf16.msra.mxu0 0
      %568 = vmatpush.bf16.msra.mxu0 0
      %569 = vmatpush.bf16.msra.mxu0 0
      %570 = vmatpush.bf16.msra.mxu0 0
      %571 = vmatpush.bf16.msra.mxu0 0
      %572 = vmatpush.bf16.msra.mxu0 0
      %573 = vmatpush.bf16.msra.mxu0 %v509
      %574 = vmatmul.bf16.gmra.mxu0 %v513
      %v575 = vpop.f32.mrf.mxu0
      %v576 = vadd.f32 0.0, %v575
      %v577 = vpop.f32.mrf.mxu0
      %v578 = vadd.f32 0.0, %v577
      %579 = vmatmul.bf16.gmra.mxu0 %v516
      %v580 = vpop.f32.mrf.mxu0
      %v581 = vadd.f32 0.0, %v580
      %v582 = vpop.f32.mrf.mxu0
      %v583 = vadd.f32 0.0, %v582
      %584 = vmatmul.bf16.gmra.mxu0 %v519
      %v585 = vpop.f32.mrf.mxu0
      %v586 = vadd.f32 0.0, %v585
      %v587 = vpop.f32.mrf.mxu0
      %v588 = vadd.f32 0.0, %v587
      %589 = vmatmul.bf16.gmra.mxu0 %v522
      %v590 = vpop.f32.mrf.mxu0
      %v591 = vadd.f32 0.0, %v590
      %v592 = vpop.f32.mrf.mxu0
      %v593 = vadd.f32 0.0, %v592
      %594 = vmatmul.bf16.gmra.mxu0 %v525
      %v595 = vpop.f32.mrf.mxu0
      %v596 = vadd.f32 0.0, %v595
      %v597 = vpop.f32.mrf.mxu0
      %v598 = vadd.f32 0.0, %v597
      %599 = vmatmul.bf16.gmra.mxu0 %v528
      %v600 = vpop.f32.mrf.mxu0
      %v601 = vadd.f32 0.0, %v600
      %v602 = vpop.f32.mrf.mxu0
      %v603 = vadd.f32 0.0, %v602
      %604 = vmatmul.bf16.gmra.mxu0 %v531
      %v605 = vpop.f32.mrf.mxu0
      %v606 = vadd.f32 0.0, %v605
      %v607 = vpop.f32.mrf.mxu0
      %v608 = vadd.f32 0.0, %v607
      %609 = vmatmul.bf16.gmra.mxu0 %v534
      %v610 = vpop.f32.mrf.mxu0
      %v611 = vadd.f32 0.0, %v610
      %v612 = vpop.f32.mrf.mxu0
      %v613 = vadd.f32 0.0, %v612
      %614 = vmatmul.bf16.gmra.mxu0 %v537
      %v615 = vpop.f32.mrf.mxu0
      %v616 = vadd.f32 0.0, %v615
      %v617 = vpop.f32.mrf.mxu0
      %v618 = vadd.f32 0.0, %v617
      %619 = vmatmul.bf16.gmra.mxu0 %v540
      %v620 = vpop.f32.mrf.mxu0
      %v621 = vadd.f32 0.0, %v620
      %v622 = vpop.f32.mrf.mxu0
      %v623 = vadd.f32 0.0, %v622
      %624 = vmatmul.bf16.gmra.mxu0 %v543
      %v625 = vpop.f32.mrf.mxu0
      %v626 = vadd.f32 0.0, %v625
      %v627 = vpop.f32.mrf.mxu0
      %v628 = vadd.f32 0.0, %v627
      %629 = vmatmul.bf16.gmra.mxu0 %v546
      %v630 = vpop.f32.mrf.mxu0
      %v631 = vadd.f32 0.0, %v630
      %v632 = vpop.f32.mrf.mxu0
      %v633 = vadd.f32 0.0, %v632
      %634 = vmatmul.bf16.gmra.mxu0 %v549
      %v635 = vpop.f32.mrf.mxu0
      %v636 = vadd.f32 0.0, %v635
      %v637 = vpop.f32.mrf.mxu0
      %v638 = vadd.f32 0.0, %v637
      %639 = vmatmul.bf16.gmra.mxu0 %v552
      %v640 = vpop.f32.mrf.mxu0
      %v641 = vadd.f32 0.0, %v640
      %v642 = vpop.f32.mrf.mxu0
      %v643 = vadd.f32 0.0, %v642
      %644 = vmatmul.bf16.gmra.mxu0 %v555
      %v645 = vpop.f32.mrf.mxu0
      %v646 = vadd.f32 0.0, %v645
      %v647 = vpop.f32.mrf.mxu0
      %v648 = vadd.f32 0.0, %v647
      %649 = vmatmul.bf16.gmra.mxu0 %v558
      %v650 = vpop.f32.mrf.mxu0
      %v651 = vadd.f32 0.0, %v650
      %v652 = vpop.f32.mrf.mxu0
      %v653 = vadd.f32 0.0, %v652
      %654 = vmatmul.bf16.gmra.mxu0 %v561
      %v655 = vpop.f32.mrf.mxu0
      %v656 = vadd.f32 0.0, %v655
      %v657 = vpop.f32.mrf.mxu0
      %v658 = vadd.f32 0.0, %v657
      %659 = vmatmul.bf16.gmra.mxu0 %v564
      %v660 = vpop.f32.mrf.mxu0
      %v661 = vadd.f32 0.0, %v660
      %v662 = vpop.f32.mrf.mxu0
      %v663 = vadd.f32 0.0, %v662
      %664 = vdwg.mxu0
      %v667 = vunpack.c.l.b16 %v258
      %v668 = vunpack.c.l.b16 %v259
      %v669 = vpack.c.b16 %v668, %v667
      %v671 = vsel %vm511, %v337, 0
      %v673 = vsel %vm511, %v338, 0
      %v675 = vsel %vm511, %v339, 0
      %v677 = vsel %vm511, %v340, 0
      %v679 = vsel %vm511, %v341, 0
      %v681 = vsel %vm511, %v342, 0
      %v683 = vsel %vm511, %v343, 0
      %v685 = vsel %vm511, %v344, 0
      %v687 = vsel %vm511, %v345, 0
      %v689 = vsel %vm511, %v346, 0
      %v691 = vsel %vm511, %v347, 0
      %v693 = vsel %vm511, %v348, 0
      %v695 = vsel %vm511, %v349, 0
      %v697 = vsel %vm511, %v350, 0
      %v699 = vsel %vm511, %v351, 0
      %v701 = vsel %vm511, %v352, 0
      %v703 = vsel %vm511, %v353, 0
      %v705 = vsel %vm511, %v354, 0
      %707 = vmatpush.bf16.msra.mxu0 0
      %708 = vmatpush.bf16.msra.mxu0 0
      %709 = vmatpush.bf16.msra.mxu0 0
      %710 = vmatpush.bf16.msra.mxu0 0
      %711 = vmatpush.bf16.msra.mxu0 0
      %712 = vmatpush.bf16.msra.mxu0 0
      %713 = vmatpush.bf16.msra.mxu0 0
      %714 = vmatpush.bf16.msra.mxu0 %v669
      %715 = vmatmul.bf16.gmra.mxu0 %v671
      %v716 = vpop.f32.mrf.mxu0
      %v717 = vadd.f32 %v576, %v716
      %v718 = vpop.f32.mrf.mxu0
      %v719 = vadd.f32 %v578, %v718
      %720 = vmatmul.bf16.gmra.mxu0 %v673
      %v721 = vpop.f32.mrf.mxu0
      %v722 = vadd.f32 %v581, %v721
      %v723 = vpop.f32.mrf.mxu0
      %v724 = vadd.f32 %v583, %v723
      %725 = vmatmul.bf16.gmra.mxu0 %v675
      %v726 = vpop.f32.mrf.mxu0
      %v727 = vadd.f32 %v586, %v726
      %v728 = vpop.f32.mrf.mxu0
      %v729 = vadd.f32 %v588, %v728
      %730 = vmatmul.bf16.gmra.mxu0 %v677
      %v731 = vpop.f32.mrf.mxu0
      %v732 = vadd.f32 %v591, %v731
      %v733 = vpop.f32.mrf.mxu0
      %v734 = vadd.f32 %v593, %v733
      %735 = vmatmul.bf16.gmra.mxu0 %v679
      %v736 = vpop.f32.mrf.mxu0
      %v737 = vadd.f32 %v596, %v736
      %v738 = vpop.f32.mrf.mxu0
      %v739 = vadd.f32 %v598, %v738
      %740 = vmatmul.bf16.gmra.mxu0 %v681
      %v741 = vpop.f32.mrf.mxu0
      %v742 = vadd.f32 %v601, %v741
      %v743 = vpop.f32.mrf.mxu0
      %v744 = vadd.f32 %v603, %v743
      %745 = vmatmul.bf16.gmra.mxu0 %v683
      %v746 = vpop.f32.mrf.mxu0
      %v747 = vadd.f32 %v606, %v746
      %v748 = vpop.f32.mrf.mxu0
      %v749 = vadd.f32 %v608, %v748
      %750 = vmatmul.bf16.gmra.mxu0 %v685
      %v751 = vpop.f32.mrf.mxu0
      %v752 = vadd.f32 %v611, %v751
      %v753 = vpop.f32.mrf.mxu0
      %v754 = vadd.f32 %v613, %v753
      %755 = vmatmul.bf16.gmra.mxu0 %v687
      %v756 = vpop.f32.mrf.mxu0
      %v757 = vadd.f32 %v616, %v756
      %v758 = vpop.f32.mrf.mxu0
      %v759 = vadd.f32 %v618, %v758
      %760 = vmatmul.bf16.gmra.mxu0 %v689
      %v761 = vpop.f32.mrf.mxu0
      %v762 = vadd.f32 %v621, %v761
      %v763 = vpop.f32.mrf.mxu0
      %v764 = vadd.f32 %v623, %v763
      %765 = vmatmul.bf16.gmra.mxu0 %v691
      %v766 = vpop.f32.mrf.mxu0
      %v767 = vadd.f32 %v626, %v766
      %v768 = vpop.f32.mrf.mxu0
      %v769 = vadd.f32 %v628, %v768
      %770 = vmatmul.bf16.gmra.mxu0 %v693
      %v771 = vpop.f32.mrf.mxu0
      %v772 = vadd.f32 %v631, %v771
      %v773 = vpop.f32.mrf.mxu0
      %v774 = vadd.f32 %v633, %v773
      %775 = vmatmul.bf16.gmra.mxu0 %v695
      %v776 = vpop.f32.mrf.mxu0
      %v777 = vadd.f32 %v636, %v776
      %v778 = vpop.f32.mrf.mxu0
      %v779 = vadd.f32 %v638, %v778
      %780 = vmatmul.bf16.gmra.mxu0 %v697
      %v781 = vpop.f32.mrf.mxu0
      %v782 = vadd.f32 %v641, %v781
      %v783 = vpop.f32.mrf.mxu0
      %v784 = vadd.f32 %v643, %v783
      %785 = vmatmul.bf16.gmra.mxu0 %v699
      %v786 = vpop.f32.mrf.mxu0
      %v787 = vadd.f32 %v646, %v786
      %v788 = vpop.f32.mrf.mxu0
      %v789 = vadd.f32 %v648, %v788
      %790 = vmatmul.bf16.gmra.mxu0 %v701
      %v791 = vpop.f32.mrf.mxu0
      %v792 = vadd.f32 %v651, %v791
      %v793 = vpop.f32.mrf.mxu0
      %v794 = vadd.f32 %v653, %v793
      %795 = vmatmul.bf16.gmra.mxu0 %v703
      %v796 = vpop.f32.mrf.mxu0
      %v797 = vadd.f32 %v656, %v796
      %v798 = vpop.f32.mrf.mxu0
      %v799 = vadd.f32 %v658, %v798
      %800 = vmatmul.bf16.gmra.mxu0 %v705
      %v801 = vpop.f32.mrf.mxu0
      %v802 = vadd.f32 %v661, %v801
      %v803 = vpop.f32.mrf.mxu0
      %v804 = vadd.f32 %v663, %v803
      %805 = vdwg.mxu0
      %v806 = vld [vmem:[%s208] sm:$0xe]
      %v807 = vld [vmem:[%s1 + $0x10] sm:$0xf]
      %v808 = vld [vmem:[%s1 + $0x14] sm:$0xf]
      %v810 = vunpack.c.l.b16 %v806
      %v811 = vpack.c.b16 %v301, %v810
      %vm812 = vcmask 1046528
      %v813 = vrot.slane %v811, 1
      %v814 = vrot.slane %v338, 1
      %v815 = vsel %vm812, %v813, %v814
      %v816 = vrot.slane %v339, 1
      %v817 = vsel %vm812, %v814, %v816
      %v818 = vrot.slane %v340, 1
      %v819 = vsel %vm812, %v816, %v818
      %v820 = vrot.slane %v341, 1
      %v821 = vsel %vm812, %v818, %v820
      %v822 = vrot.slane %v342, 1
      %v823 = vsel %vm812, %v820, %v822
      %v824 = vrot.slane %v343, 1
      %v825 = vsel %vm812, %v822, %v824
      %v826 = vrot.slane %v344, 1
      %v827 = vsel %vm812, %v824, %v826
      %v828 = vrot.slane %v345, 1
      %v829 = vsel %vm812, %v826, %v828
      %v830 = vrot.slane %v346, 1
      %v831 = vsel %vm812, %v828, %v830
      %v832 = vrot.slane %v347, 1
      %v833 = vsel %vm812, %v830, %v832
      %v834 = vrot.slane %v348, 1
      %v835 = vsel %vm812, %v832, %v834
      %v836 = vrot.slane %v349, 1
      %v837 = vsel %vm812, %v834, %v836
      %v838 = vrot.slane %v350, 1
      %v839 = vsel %vm812, %v836, %v838
      %v840 = vrot.slane %v351, 1
      %v841 = vsel %vm812, %v838, %v840
      %v842 = vrot.slane %v352, 1
      %v843 = vsel %vm812, %v840, %v842
      %v844 = vrot.slane %v353, 1
      %v845 = vsel %vm812, %v842, %v844
      %v846 = vrot.slane %v354, 1
      %v847 = vsel %vm812, %v844, %v846
      %v848 = vrot.slane %v355, 1
      %v849 = vsel %vm812, %v846, %v848
      %v852 = vunpack.c.l.b16 %v807
      %v853 = vunpack.c.l.b16 %v808
      %v854 = vpack.c.b16 %v853, %v852
      %v857 = vsel %vm511, %v815, 0
      %v860 = vsel %vm511, %v817, 0
      %v863 = vsel %vm511, %v819, 0
      %v866 = vsel %vm511, %v821, 0
      %v869 = vsel %vm511, %v823, 0
      %v872 = vsel %vm511, %v825, 0
      %v875 = vsel %vm511, %v827, 0
      %v878 = vsel %vm511, %v829, 0
      %v881 = vsel %vm511, %v831, 0
      %v884 = vsel %vm511, %v833, 0
      %v887 = vsel %vm511, %v835, 0
      %v890 = vsel %vm511, %v837, 0
      %v893 = vsel %vm511, %v839, 0
      %v896 = vsel %vm511, %v841, 0
      %v899 = vsel %vm511, %v843, 0
      %v902 = vsel %vm511, %v845, 0
      %v905 = vsel %vm511, %v847, 0
      %v908 = vsel %vm511, %v849, 0
      %910 = vmatpush.bf16.msra.mxu0 0
      %911 = vmatpush.bf16.msra.mxu0 0
      %912 = vmatpush.bf16.msra.mxu0 0
      %913 = vmatpush.bf16.msra.mxu0 0
      %914 = vmatpush.bf16.msra.mxu0 0
      %915 = vmatpush.bf16.msra.mxu0 0
      %916 = vmatpush.bf16.msra.mxu0 0
      %917 = vmatpush.bf16.msra.mxu0 %v854
      %918 = vmatmul.bf16.gmra.mxu0 %v857
      %v919 = vpop.f32.mrf.mxu0
      %v920 = vadd.f32 0.0, %v919
      %v921 = vpop.f32.mrf.mxu0
      %v922 = vadd.f32 0.0, %v921
      %923 = vmatmul.bf16.gmra.mxu0 %v860
      %v924 = vpop.f32.mrf.mxu0
      %v925 = vadd.f32 0.0, %v924
      %v926 = vpop.f32.mrf.mxu0
      %v927 = vadd.f32 0.0, %v926
      %928 = vmatmul.bf16.gmra.mxu0 %v863
      %v929 = vpop.f32.mrf.mxu0
      %v930 = vadd.f32 0.0, %v929
      %v931 = vpop.f32.mrf.mxu0
      %v932 = vadd.f32 0.0, %v931
      %933 = vmatmul.bf16.gmra.mxu0 %v866
      %v934 = vpop.f32.mrf.mxu0
      %v935 = vadd.f32 0.0, %v934
      %v936 = vpop.f32.mrf.mxu0
      %v937 = vadd.f32 0.0, %v936
      %938 = vmatmul.bf16.gmra.mxu0 %v869
      %v939 = vpop.f32.mrf.mxu0
      %v940 = vadd.f32 0.0, %v939
      %v941 = vpop.f32.mrf.mxu0
      %v942 = vadd.f32 0.0, %v941
      %943 = vmatmul.bf16.gmra.mxu0 %v872
      %v944 = vpop.f32.mrf.mxu0
      %v945 = vadd.f32 0.0, %v944
      %v946 = vpop.f32.mrf.mxu0
      %v947 = vadd.f32 0.0, %v946
      %948 = vmatmul.bf16.gmra.mxu0 %v875
      %v949 = vpop.f32.mrf.mxu0
      %v950 = vadd.f32 0.0, %v949
      %v951 = vpop.f32.mrf.mxu0
      %v952 = vadd.f32 0.0, %v951
      %953 = vmatmul.bf16.gmra.mxu0 %v878
      %v954 = vpop.f32.mrf.mxu0
      %v955 = vadd.f32 0.0, %v954
      %v956 = vpop.f32.mrf.mxu0
      %v957 = vadd.f32 0.0, %v956
      %958 = vmatmul.bf16.gmra.mxu0 %v881
      %v959 = vpop.f32.mrf.mxu0
      %v960 = vadd.f32 0.0, %v959
      %v961 = vpop.f32.mrf.mxu0
      %v962 = vadd.f32 0.0, %v961
      %963 = vmatmul.bf16.gmra.mxu0 %v884
      %v964 = vpop.f32.mrf.mxu0
      %v965 = vadd.f32 0.0, %v964
      %v966 = vpop.f32.mrf.mxu0
      %v967 = vadd.f32 0.0, %v966
      %968 = vmatmul.bf16.gmra.mxu0 %v887
      %v969 = vpop.f32.mrf.mxu0
      %v970 = vadd.f32 0.0, %v969
      %v971 = vpop.f32.mrf.mxu0
      %v972 = vadd.f32 0.0, %v971
      %973 = vmatmul.bf16.gmra.mxu0 %v890
      %v974 = vpop.f32.mrf.mxu0
      %v975 = vadd.f32 0.0, %v974
      %v976 = vpop.f32.mrf.mxu0
      %v977 = vadd.f32 0.0, %v976
      %978 = vmatmul.bf16.gmra.mxu0 %v893
      %v979 = vpop.f32.mrf.mxu0
      %v980 = vadd.f32 0.0, %v979
      %v981 = vpop.f32.mrf.mxu0
      %v982 = vadd.f32 0.0, %v981
      %983 = vmatmul.bf16.gmra.mxu0 %v896
      %v984 = vpop.f32.mrf.mxu0
      %v985 = vadd.f32 0.0, %v984
      %v986 = vpop.f32.mrf.mxu0
      %v987 = vadd.f32 0.0, %v986
      %988 = vmatmul.bf16.gmra.mxu0 %v899
      %v989 = vpop.f32.mrf.mxu0
      %v990 = vadd.f32 0.0, %v989
      %v991 = vpop.f32.mrf.mxu0
      %v992 = vadd.f32 0.0, %v991
      %993 = vmatmul.bf16.gmra.mxu0 %v902
      %v994 = vpop.f32.mrf.mxu0
      %v995 = vadd.f32 0.0, %v994
      %v996 = vpop.f32.mrf.mxu0
      %v997 = vadd.f32 0.0, %v996
      %998 = vmatmul.bf16.gmra.mxu0 %v905
      %v999 = vpop.f32.mrf.mxu0
      %v1000 = vadd.f32 0.0, %v999
      %v1001 = vpop.f32.mrf.mxu0
      %v1002 = vadd.f32 0.0, %v1001
      %1003 = vmatmul.bf16.gmra.mxu0 %v908
      %v1004 = vpop.f32.mrf.mxu0
      %v1005 = vadd.f32 0.0, %v1004
      %v1006 = vpop.f32.mrf.mxu0
      %v1007 = vadd.f32 0.0, %v1006
      %1008 = vdwg.mxu0
      %v1009 = vadd.f32 %v717, %v920
      %v1010 = vadd.f32 %v719, %v922
      %v1011 = vadd.f32 %v722, %v925
      %v1012 = vadd.f32 %v724, %v927
      %v1013 = vadd.f32 %v727, %v930
      %v1014 = vadd.f32 %v729, %v932
      %v1015 = vadd.f32 %v732, %v935
      %v1016 = vadd.f32 %v734, %v937
      %v1017 = vadd.f32 %v737, %v940
      %v1018 = vadd.f32 %v739, %v942
      %v1019 = vadd.f32 %v742, %v945
      %v1020 = vadd.f32 %v744, %v947
      %v1021 = vadd.f32 %v747, %v950
      %v1022 = vadd.f32 %v749, %v952
      %v1023 = vadd.f32 %v752, %v955
      %v1024 = vadd.f32 %v754, %v957
      %v1025 = vadd.f32 %v757, %v960
      %v1026 = vadd.f32 %v759, %v962
      %v1027 = vadd.f32 %v762, %v965
      %v1028 = vadd.f32 %v764, %v967
      %v1029 = vadd.f32 %v767, %v970
      %v1030 = vadd.f32 %v769, %v972
      %v1031 = vadd.f32 %v772, %v975
      %v1032 = vadd.f32 %v774, %v977
      %v1033 = vadd.f32 %v777, %v980
      %v1034 = vadd.f32 %v779, %v982
      %v1035 = vadd.f32 %v782, %v985
      %v1036 = vadd.f32 %v784, %v987
      %v1037 = vadd.f32 %v787, %v990
      %v1038 = vadd.f32 %v789, %v992
      %v1039 = vadd.f32 %v792, %v995
      %v1040 = vadd.f32 %v794, %v997
      %v1041 = vadd.f32 %v797, %v1000
      %v1042 = vadd.f32 %v799, %v1002
      %v1043 = vadd.f32 %v802, %v1005
      %v1044 = vadd.f32 %v804, %v1007
      %v1045 = vld [vmem:[%s208 + $0x8] sm:$0xe]
      %v1046 = vld [vmem:[%s208 + $0xc] sm:$0xf]
      %v1047 = vld [vmem:[%s208 + $0x10] sm:$0xf]
      %v1048 = vld [vmem:[%s208 + $0x14] sm:$0xf]
      %v1049 = vld [vmem:[%s208 + $0x18] sm:$0xf]
      %v1050 = vld [vmem:[%s208 + $0x1c] sm:$0xf]
      %v1051 = vld [vmem:[%s208 + $0x20] sm:$0xf]
      %v1052 = vld [vmem:[%s208 + $0x24] sm:$0xf]
      %v1053 = vld [vmem:[%s208 + $0x28] sm:$0xf]
      %v1054 = vld [vmem:[%s208 + $0x2c] sm:$0xf]
      %v1055 = vld [vmem:[%s208 + $0x30] sm:$0xf]
      %v1056 = vld [vmem:[%s208 + $0x34] sm:$0xf]
      %v1057 = vld [vmem:[%s208 + $0x38] sm:$0xf]
      %v1058 = vld [vmem:[%s208 + $0x3c] sm:$0xf]
      %v1059 = vld [vmem:[%s208 + $0x40] sm:$0xf]
      %v1060 = vld [vmem:[%s208 + $0x44] sm:$0xf]
      %v1061 = vld [vmem:[%s208 + $0x48] sm:$0xf]
      %v1062 = vld [vmem:[%s208 + $0x4c] sm:$0xf]
      %v1063 = vld [vmem:[%s208 + $0x50] sm:$0xf]
      %v1064 = vld [vmem:[%s208 + $0x54] sm:$0xf]
      %v1065 = vld [vmem:[%s208 + $0x58] sm:$0xf]
      %v1066 = vld [vmem:[%s208 + $0x5c] sm:$0xf]
      %v1067 = vld [vmem:[%s208 + $0x60] sm:$0xf]
      %v1068 = vld [vmem:[%s208 + $0x64] sm:$0xf]
      %v1069 = vld [vmem:[%s208 + $0x68] sm:$0xf]
      %v1070 = vld [vmem:[%s208 + $0x6c] sm:$0xf]
      %v1071 = vld [vmem:[%s208 + $0x70] sm:$0xf]
      %v1072 = vld [vmem:[%s208 + $0x74] sm:$0xf]
      %v1073 = vld [vmem:[%s208 + $0x78] sm:$0xf]
      %v1074 = vld [vmem:[%s208 + $0x7c] sm:$0xf]
      %v1075 = vld [vmem:[%s208 + $0x80] sm:$0xf]
      %v1076 = vld [vmem:[%s208 + $0x84] sm:$0xf]
      %v1077 = vld [vmem:[%s208 + $0x88] sm:$0xf]
      %v1078 = vld [vmem:[%s208 + $0x8c] sm:$0xf]
      %v1079 = vld [vmem:[%s208 + $0x90] sm:$0xf]
      %v1080 = vld [vmem:[%s208 + $0x94] sm:$0xf]
      %v1081 = vld [vmem:[%s208 + $0x98] sm:$0x1]
      %v1082 = vld [vmem:[%s1 + $0x18] sm:$0xf]
      %v1083 = vld [vmem:[%s1 + $0x1c] sm:$0xf]
      %v1121 = vunpack.c.l.b16 %v1045
      %v1122 = vunpack.c.l.b16 %v1046
      %v1123 = vunpack.c.l.b16 %v1047
      %v1124 = vunpack.c.l.b16 %v1048
      %v1125 = vunpack.c.l.b16 %v1049
      %v1126 = vunpack.c.l.b16 %v1050
      %v1127 = vunpack.c.l.b16 %v1051
      %v1128 = vunpack.c.l.b16 %v1052
      %v1129 = vunpack.c.l.b16 %v1053
      %v1130 = vunpack.c.l.b16 %v1054
      %v1131 = vunpack.c.l.b16 %v1055
      %v1132 = vunpack.c.l.b16 %v1056
      %v1133 = vunpack.c.l.b16 %v1057
      %v1134 = vunpack.c.l.b16 %v1058
      %v1135 = vunpack.c.l.b16 %v1059
      %v1136 = vunpack.c.l.b16 %v1060
      %v1137 = vunpack.c.l.b16 %v1061
      %v1138 = vunpack.c.l.b16 %v1062
      %v1139 = vunpack.c.l.b16 %v1063
      %v1140 = vunpack.c.l.b16 %v1064
      %v1141 = vunpack.c.l.b16 %v1065
      %v1142 = vunpack.c.l.b16 %v1066
      %v1143 = vunpack.c.l.b16 %v1067
      %v1144 = vunpack.c.l.b16 %v1068
      %v1145 = vunpack.c.l.b16 %v1069
      %v1146 = vunpack.c.l.b16 %v1070
      %v1147 = vunpack.c.l.b16 %v1071
      %v1148 = vunpack.c.l.b16 %v1072
      %v1149 = vunpack.c.l.b16 %v1073
      %v1150 = vunpack.c.l.b16 %v1074
      %v1151 = vunpack.c.l.b16 %v1075
      %v1152 = vunpack.c.l.b16 %v1076
      %v1153 = vunpack.c.l.b16 %v1077
      %v1154 = vunpack.c.l.b16 %v1078
      %v1155 = vunpack.c.l.b16 %v1079
      %v1156 = vunpack.c.l.b16 %v1080
      %v1157 = vunpack.c.l.b16 %v1081
      %v1158 = vpack.c.b16 %v1122, %v1121
      %v1159 = vpack.c.b16 %v1124, %v1123
      %v1160 = vpack.c.b16 %v1126, %v1125
      %v1161 = vpack.c.b16 %v1128, %v1127
      %v1162 = vpack.c.b16 %v1130, %v1129
      %v1163 = vpack.c.b16 %v1132, %v1131
      %v1164 = vpack.c.b16 %v1134, %v1133
      %v1165 = vpack.c.b16 %v1136, %v1135
      %v1166 = vpack.c.b16 %v1138, %v1137
      %v1167 = vpack.c.b16 %v1140, %v1139
      %v1168 = vpack.c.b16 %v1142, %v1141
      %v1169 = vpack.c.b16 %v1144, %v1143
      %v1170 = vpack.c.b16 %v1146, %v1145
      %v1171 = vpack.c.b16 %v1148, %v1147
      %v1172 = vpack.c.b16 %v1150, %v1149
      %v1173 = vpack.c.b16 %v1152, %v1151
      %v1174 = vpack.c.b16 %v1154, %v1153
      %v1175 = vpack.c.b16 %v1156, %v1155
      %v1176 = vpack.c.b16 %v1157, %v1157
      %v1177 = vrot.slane %v1158, 1
      %v1178 = vrot.slane %v1159, 1
      %v1179 = vsel %vm812, %v1177, %v1178
      %v1180 = vrot.slane %v1160, 1
      %v1181 = vsel %vm812, %v1178, %v1180
      %v1182 = vrot.slane %v1161, 1
      %v1183 = vsel %vm812, %v1180, %v1182
      %v1184 = vrot.slane %v1162, 1
      %v1185 = vsel %vm812, %v1182, %v1184
      %v1186 = vrot.slane %v1163, 1
      %v1187 = vsel %vm812, %v1184, %v1186
      %v1188 = vrot.slane %v1164, 1
      %v1189 = vsel %vm812, %v1186, %v1188
      %v1190 = vrot.slane %v1165, 1
      %v1191 = vsel %vm812, %v1188, %v1190
      %v1192 = vrot.slane %v1166, 1
      %v1193 = vsel %vm812, %v1190, %v1192
      %v1194 = vrot.slane %v1167, 1
      %v1195 = vsel %vm812, %v1192, %v1194
      %v1196 = vrot.slane %v1168, 1
      %v1197 = vsel %vm812, %v1194, %v1196
      %v1198 = vrot.slane %v1169, 1
      %v1199 = vsel %vm812, %v1196, %v1198
      %v1200 = vrot.slane %v1170, 1
      %v1201 = vsel %vm812, %v1198, %v1200
      %v1202 = vrot.slane %v1171, 1
      %v1203 = vsel %vm812, %v1200, %v1202
      %v1204 = vrot.slane %v1172, 1
      %v1205 = vsel %vm812, %v1202, %v1204
      %v1206 = vrot.slane %v1173, 1
      %v1207 = vsel %vm812, %v1204, %v1206
      %v1208 = vrot.slane %v1174, 1
      %v1209 = vsel %vm812, %v1206, %v1208
      %v1210 = vrot.slane %v1175, 1
      %v1211 = vsel %vm812, %v1208, %v1210
      %v1212 = vrot.slane %v1176, 1
      %v1213 = vsel %vm812, %v1210, %v1212
      %v1216 = vunpack.c.l.b16 %v1082
      %v1217 = vunpack.c.l.b16 %v1083
      %v1218 = vpack.c.b16 %v1217, %v1216
      %v1221 = vsel %vm511, %v1179, 0
      %v1224 = vsel %vm511, %v1181, 0
      %v1227 = vsel %vm511, %v1183, 0
      %v1230 = vsel %vm511, %v1185, 0
      %v1233 = vsel %vm511, %v1187, 0
      %v1236 = vsel %vm511, %v1189, 0
      %v1239 = vsel %vm511, %v1191, 0
      %v1242 = vsel %vm511, %v1193, 0
      %v1245 = vsel %vm511, %v1195, 0
      %v1248 = vsel %vm511, %v1197, 0
      %v1251 = vsel %vm511, %v1199, 0
      %v1254 = vsel %vm511, %v1201, 0
      %v1257 = vsel %vm511, %v1203, 0
      %v1260 = vsel %vm511, %v1205, 0
      %v1263 = vsel %vm511, %v1207, 0
      %v1266 = vsel %vm511, %v1209, 0
      %v1269 = vsel %vm511, %v1211, 0
      %v1272 = vsel %vm511, %v1213, 0
      %1274 = vmatpush.bf16.msra.mxu0 0
      %1275 = vmatpush.bf16.msra.mxu0 0
      %1276 = vmatpush.bf16.msra.mxu0 0
      %1277 = vmatpush.bf16.msra.mxu0 0
      %1278 = vmatpush.bf16.msra.mxu0 0
      %1279 = vmatpush.bf16.msra.mxu0 0
      %1280 = vmatpush.bf16.msra.mxu0 0
      %1281 = vmatpush.bf16.msra.mxu0 %v1218
      %1282 = vmatmul.bf16.gmra.mxu0 %v1221
      %v1283 = vpop.f32.mrf.mxu0
      %v1284 = vadd.f32 0.0, %v1283
      %v1285 = vpop.f32.mrf.mxu0
      %v1286 = vadd.f32 0.0, %v1285
      %1287 = vmatmul.bf16.gmra.mxu0 %v1224
      %v1288 = vpop.f32.mrf.mxu0
      %v1289 = vadd.f32 0.0, %v1288
      %v1290 = vpop.f32.mrf.mxu0
      %v1291 = vadd.f32 0.0, %v1290
      %1292 = vmatmul.bf16.gmra.mxu0 %v1227
      %v1293 = vpop.f32.mrf.mxu0
      %v1294 = vadd.f32 0.0, %v1293
      %v1295 = vpop.f32.mrf.mxu0
      %v1296 = vadd.f32 0.0, %v1295
      %1297 = vmatmul.bf16.gmra.mxu0 %v1230
      %v1298 = vpop.f32.mrf.mxu0
      %v1299 = vadd.f32 0.0, %v1298
      %v1300 = vpop.f32.mrf.mxu0
      %v1301 = vadd.f32 0.0, %v1300
      %1302 = vmatmul.bf16.gmra.mxu0 %v1233
      %v1303 = vpop.f32.mrf.mxu0
      %v1304 = vadd.f32 0.0, %v1303
      %v1305 = vpop.f32.mrf.mxu0
      %v1306 = vadd.f32 0.0, %v1305
      %1307 = vmatmul.bf16.gmra.mxu0 %v1236
      %v1308 = vpop.f32.mrf.mxu0
      %v1309 = vadd.f32 0.0, %v1308
      %v1310 = vpop.f32.mrf.mxu0
      %v1311 = vadd.f32 0.0, %v1310
      %1312 = vmatmul.bf16.gmra.mxu0 %v1239
      %v1313 = vpop.f32.mrf.mxu0
      %v1314 = vadd.f32 0.0, %v1313
      %v1315 = vpop.f32.mrf.mxu0
      %v1316 = vadd.f32 0.0, %v1315
      %1317 = vmatmul.bf16.gmra.mxu0 %v1242
      %v1318 = vpop.f32.mrf.mxu0
      %v1319 = vadd.f32 0.0, %v1318
      %v1320 = vpop.f32.mrf.mxu0
      %v1321 = vadd.f32 0.0, %v1320
      %1322 = vmatmul.bf16.gmra.mxu0 %v1245
      %v1323 = vpop.f32.mrf.mxu0
      %v1324 = vadd.f32 0.0, %v1323
      %v1325 = vpop.f32.mrf.mxu0
      %v1326 = vadd.f32 0.0, %v1325
      %1327 = vmatmul.bf16.gmra.mxu0 %v1248
      %v1328 = vpop.f32.mrf.mxu0
      %v1329 = vadd.f32 0.0, %v1328
      %v1330 = vpop.f32.mrf.mxu0
      %v1331 = vadd.f32 0.0, %v1330
      %1332 = vmatmul.bf16.gmra.mxu0 %v1251
      %v1333 = vpop.f32.mrf.mxu0
      %v1334 = vadd.f32 0.0, %v1333
      %v1335 = vpop.f32.mrf.mxu0
      %v1336 = vadd.f32 0.0, %v1335
      %1337 = vmatmul.bf16.gmra.mxu0 %v1254
      %v1338 = vpop.f32.mrf.mxu0
      %v1339 = vadd.f32 0.0, %v1338
      %v1340 = vpop.f32.mrf.mxu0
      %v1341 = vadd.f32 0.0, %v1340
      %1342 = vmatmul.bf16.gmra.mxu0 %v1257
      %v1343 = vpop.f32.mrf.mxu0
      %v1344 = vadd.f32 0.0, %v1343
      %v1345 = vpop.f32.mrf.mxu0
      %v1346 = vadd.f32 0.0, %v1345
      %1347 = vmatmul.bf16.gmra.mxu0 %v1260
      %v1348 = vpop.f32.mrf.mxu0
      %v1349 = vadd.f32 0.0, %v1348
      %v1350 = vpop.f32.mrf.mxu0
      %v1351 = vadd.f32 0.0, %v1350
      %1352 = vmatmul.bf16.gmra.mxu0 %v1263
      %v1353 = vpop.f32.mrf.mxu0
      %v1354 = vadd.f32 0.0, %v1353
      %v1355 = vpop.f32.mrf.mxu0
      %v1356 = vadd.f32 0.0, %v1355
      %1357 = vmatmul.bf16.gmra.mxu0 %v1266
      %v1358 = vpop.f32.mrf.mxu0
      %v1359 = vadd.f32 0.0, %v1358
      %v1360 = vpop.f32.mrf.mxu0
      %v1361 = vadd.f32 0.0, %v1360
      %1362 = vmatmul.bf16.gmra.mxu0 %v1269
      %v1363 = vpop.f32.mrf.mxu0
      %v1364 = vadd.f32 0.0, %v1363
      %v1365 = vpop.f32.mrf.mxu0
      %v1366 = vadd.f32 0.0, %v1365
      %1367 = vmatmul.bf16.gmra.mxu0 %v1272
      %v1368 = vpop.f32.mrf.mxu0
      %v1369 = vadd.f32 0.0, %v1368
      %v1370 = vpop.f32.mrf.mxu0
      %v1371 = vadd.f32 0.0, %v1370
      %1372 = vdwg.mxu0
      %v1373 = vadd.f32 %v1009, %v1284
      %v1374 = vadd.f32 %v1010, %v1286
      %v1375 = vadd.f32 %v1011, %v1289
      %v1376 = vadd.f32 %v1012, %v1291
      %v1377 = vadd.f32 %v1013, %v1294
      %v1378 = vadd.f32 %v1014, %v1296
      %v1379 = vadd.f32 %v1015, %v1299
      %v1380 = vadd.f32 %v1016, %v1301
      %v1381 = vadd.f32 %v1017, %v1304
      %v1382 = vadd.f32 %v1018, %v1306
      %v1383 = vadd.f32 %v1019, %v1309
      %v1384 = vadd.f32 %v1020, %v1311
      %v1385 = vadd.f32 %v1021, %v1314
      %v1386 = vadd.f32 %v1022, %v1316
      %v1387 = vadd.f32 %v1023, %v1319
      %v1388 = vadd.f32 %v1024, %v1321
      %v1389 = vadd.f32 %v1025, %v1324
      %v1390 = vadd.f32 %v1026, %v1326
      %v1391 = vadd.f32 %v1027, %v1329
      %v1392 = vadd.f32 %v1028, %v1331
      %v1393 = vadd.f32 %v1029, %v1334
      %v1394 = vadd.f32 %v1030, %v1336
      %v1395 = vadd.f32 %v1031, %v1339
      %v1396 = vadd.f32 %v1032, %v1341
      %v1397 = vadd.f32 %v1033, %v1344
      %v1398 = vadd.f32 %v1034, %v1346
      %v1399 = vadd.f32 %v1035, %v1349
      %v1400 = vadd.f32 %v1036, %v1351
      %v1401 = vadd.f32 %v1037, %v1354
      %v1402 = vadd.f32 %v1038, %v1356
      %v1403 = vadd.f32 %v1039, %v1359
      %v1404 = vadd.f32 %v1040, %v1361
      %v1405 = vadd.f32 %v1041, %v1364
      %v1406 = vadd.f32 %v1042, %v1366
      %v1407 = vadd.f32 %v1043, %v1369
      %v1408 = vadd.f32 %v1044, %v1371
      %v1409 = vld [vmem:[%s208 + $0x98] sm:$0x3]
      %v1410 = vld [vmem:[%s1 + $0x20] sm:$0xf]
      %v1411 = vld [vmem:[%s1 + $0x24] sm:$0xf]
      %v1413 = vunpack.c.l.b16 %v1409
      %v1414 = vpack.c.b16 %v1413, %v1413
      %vm1415 = vsmask.f32 6400
      %v1417 = vshrl.u32 %v1158, 16
      %v1419 = vrot.slane %v1417, 1
      %v1420 = vshll.u32 %v1158, 16
      %v1422 = vrot.slane %v1420, 2
      %v1423 = vor.u32 %v1419, %v1422
      %v1425 = vshrl.u32 %v1159, 16
      %v1427 = vrot.slane %v1425, 1
      %v1428 = vshll.u32 %v1159, 16
      %v1430 = vrot.slane %v1428, 2
      %v1431 = vor.u32 %v1427, %v1430
      %v1432 = vsel %vm1415, %v1423, %v1431
      %v1434 = vshrl.u32 %v1160, 16
      %v1436 = vrot.slane %v1434, 1
      %v1437 = vshll.u32 %v1160, 16
      %v1439 = vrot.slane %v1437, 2
      %v1440 = vor.u32 %v1436, %v1439
      %v1441 = vsel %vm1415, %v1431, %v1440
      %v1443 = vshrl.u32 %v1161, 16
      %v1445 = vrot.slane %v1443, 1
      %v1446 = vshll.u32 %v1161, 16
      %v1448 = vrot.slane %v1446, 2
      %v1449 = vor.u32 %v1445, %v1448
      %v1450 = vsel %vm1415, %v1440, %v1449
      %v1452 = vshrl.u32 %v1162, 16
      %v1454 = vrot.slane %v1452, 1
      %v1455 = vshll.u32 %v1162, 16
      %v1457 = vrot.slane %v1455, 2
      %v1458 = vor.u32 %v1454, %v1457
      %v1459 = vsel %vm1415, %v1449, %v1458
      %v1461 = vshrl.u32 %v1163, 16
      %v1463 = vrot.slane %v1461, 1
      %v1464 = vshll.u32 %v1163, 16
      %v1466 = vrot.slane %v1464, 2
      %v1467 = vor.u32 %v1463, %v1466
      %v1468 = vsel %vm1415, %v1458, %v1467
      %v1470 = vshrl.u32 %v1164, 16
      %v1472 = vrot.slane %v1470, 1
      %v1473 = vshll.u32 %v1164, 16
      %v1475 = vrot.slane %v1473, 2
      %v1476 = vor.u32 %v1472, %v1475
      %v1477 = vsel %vm1415, %v1467, %v1476
      %v1479 = vshrl.u32 %v1165, 16
      %v1481 = vrot.slane %v1479, 1
      %v1482 = vshll.u32 %v1165, 16
      %v1484 = vrot.slane %v1482, 2
      %v1485 = vor.u32 %v1481, %v1484
      %v1486 = vsel %vm1415, %v1476, %v1485
      %v1488 = vshrl.u32 %v1166, 16
      %v1490 = vrot.slane %v1488, 1
      %v1491 = vshll.u32 %v1166, 16
      %v1493 = vrot.slane %v1491, 2
      %v1494 = vor.u32 %v1490, %v1493
      %v1495 = vsel %vm1415, %v1485, %v1494
      %v1497 = vshrl.u32 %v1167, 16
      %v1499 = vrot.slane %v1497, 1
      %v1500 = vshll.u32 %v1167, 16
      %v1502 = vrot.slane %v1500, 2
      %v1503 = vor.u32 %v1499, %v1502
      %v1504 = vsel %vm1415, %v1494, %v1503
      %v1506 = vshrl.u32 %v1168, 16
      %v1508 = vrot.slane %v1506, 1
      %v1509 = vshll.u32 %v1168, 16
      %v1511 = vrot.slane %v1509, 2
      %v1512 = vor.u32 %v1508, %v1511
      %v1513 = vsel %vm1415, %v1503, %v1512
      %v1515 = vshrl.u32 %v1169, 16
      %v1517 = vrot.slane %v1515, 1
      %v1518 = vshll.u32 %v1169, 16
      %v1520 = vrot.slane %v1518, 2
      %v1521 = vor.u32 %v1517, %v1520
      %v1522 = vsel %vm1415, %v1512, %v1521
      %v1524 = vshrl.u32 %v1170, 16
      %v1526 = vrot.slane %v1524, 1
      %v1527 = vshll.u32 %v1170, 16
      %v1529 = vrot.slane %v1527, 2
      %v1530 = vor.u32 %v1526, %v1529
      %v1531 = vsel %vm1415, %v1521, %v1530
      %v1533 = vshrl.u32 %v1171, 16
      %v1535 = vrot.slane %v1533, 1
      %v1536 = vshll.u32 %v1171, 16
      %v1538 = vrot.slane %v1536, 2
      %v1539 = vor.u32 %v1535, %v1538
      %v1540 = vsel %vm1415, %v1530, %v1539
      %v1542 = vshrl.u32 %v1172, 16
      %v1544 = vrot.slane %v1542, 1
      %v1545 = vshll.u32 %v1172, 16
      %v1547 = vrot.slane %v1545, 2
      %v1548 = vor.u32 %v1544, %v1547
      %v1549 = vsel %vm1415, %v1539, %v1548
      %v1551 = vshrl.u32 %v1173, 16
      %v1553 = vrot.slane %v1551, 1
      %v1554 = vshll.u32 %v1173, 16
      %v1556 = vrot.slane %v1554, 2
      %v1557 = vor.u32 %v1553, %v1556
      %v1558 = vsel %vm1415, %v1548, %v1557
      %v1560 = vshrl.u32 %v1174, 16
      %v1562 = vrot.slane %v1560, 1
      %v1563 = vshll.u32 %v1174, 16
      %v1565 = vrot.slane %v1563, 2
      %v1566 = vor.u32 %v1562, %v1565
      %v1567 = vsel %vm1415, %v1557, %v1566
      %v1569 = vshrl.u32 %v1175, 16
      %v1571 = vrot.slane %v1569, 1
      %v1572 = vshll.u32 %v1175, 16
      %v1574 = vrot.slane %v1572, 2
      %v1575 = vor.u32 %v1571, %v1574
      %v1576 = vsel %vm1415, %v1566, %v1575
      %v1578 = vshrl.u32 %v1414, 16
      %v1580 = vrot.slane %v1578, 1
      %v1581 = vshll.u32 %v1414, 16
      %v1583 = vrot.slane %v1581, 2
      %v1584 = vor.u32 %v1580, %v1583
      %v1585 = vsel %vm1415, %v1575, %v1584
      %v1588 = vunpack.c.l.b16 %v1410
      %v1589 = vunpack.c.l.b16 %v1411
      %v1590 = vpack.c.b16 %v1589, %v1588
      %v1593 = vsel %vm511, %v1432, 0
      %v1596 = vsel %vm511, %v1441, 0
      %v1599 = vsel %vm511, %v1450, 0
      %v1602 = vsel %vm511, %v1459, 0
      %v1605 = vsel %vm511, %v1468, 0
      %v1608 = vsel %vm511, %v1477, 0
      %v1611 = vsel %vm511, %v1486, 0
      %v1614 = vsel %vm511, %v1495, 0
      %v1617 = vsel %vm511, %v1504, 0
      %v1620 = vsel %vm511, %v1513, 0
      %v1623 = vsel %vm511, %v1522, 0
      %v1626 = vsel %vm511, %v1531, 0
      %v1629 = vsel %vm511, %v1540, 0
      %v1632 = vsel %vm511, %v1549, 0
      %v1635 = vsel %vm511, %v1558, 0
      %v1638 = vsel %vm511, %v1567, 0
      %v1641 = vsel %vm511, %v1576, 0
      %v1644 = vsel %vm511, %v1585, 0
      %1646 = vmatpush.bf16.msra.mxu0 0
      %1647 = vmatpush.bf16.msra.mxu0 0
      %1648 = vmatpush.bf16.msra.mxu0 0
      %1649 = vmatpush.bf16.msra.mxu0 0
      %1650 = vmatpush.bf16.msra.mxu0 0
      %1651 = vmatpush.bf16.msra.mxu0 0
      %1652 = vmatpush.bf16.msra.mxu0 0
      %1653 = vmatpush.bf16.msra.mxu0 %v1590
      %1654 = vmatmul.bf16.gmra.mxu0 %v1593
      %v1655 = vpop.f32.mrf.mxu0
      %v1656 = vadd.f32 0.0, %v1655
      %v1657 = vpop.f32.mrf.mxu0
      %v1658 = vadd.f32 0.0, %v1657
      %1659 = vmatmul.bf16.gmra.mxu0 %v1596
      %v1660 = vpop.f32.mrf.mxu0
      %v1661 = vadd.f32 0.0, %v1660
      %v1662 = vpop.f32.mrf.mxu0
      %v1663 = vadd.f32 0.0, %v1662
      %1664 = vmatmul.bf16.gmra.mxu0 %v1599
      %v1665 = vpop.f32.mrf.mxu0
      %v1666 = vadd.f32 0.0, %v1665
      %v1667 = vpop.f32.mrf.mxu0
      %v1668 = vadd.f32 0.0, %v1667
      %1669 = vmatmul.bf16.gmra.mxu0 %v1602
      %v1670 = vpop.f32.mrf.mxu0
      %v1671 = vadd.f32 0.0, %v1670
      %v1672 = vpop.f32.mrf.mxu0
      %v1673 = vadd.f32 0.0, %v1672
      %1674 = vmatmul.bf16.gmra.mxu0 %v1605
      %v1675 = vpop.f32.mrf.mxu0
      %v1676 = vadd.f32 0.0, %v1675
      %v1677 = vpop.f32.mrf.mxu0
      %v1678 = vadd.f32 0.0, %v1677
      %1679 = vmatmul.bf16.gmra.mxu0 %v1608
      %v1680 = vpop.f32.mrf.mxu0
      %v1681 = vadd.f32 0.0, %v1680
      %v1682 = vpop.f32.mrf.mxu0
      %v1683 = vadd.f32 0.0, %v1682
      %1684 = vmatmul.bf16.gmra.mxu0 %v1611
      %v1685 = vpop.f32.mrf.mxu0
      %v1686 = vadd.f32 0.0, %v1685
      %v1687 = vpop.f32.mrf.mxu0
      %v1688 = vadd.f32 0.0, %v1687
      %1689 = vmatmul.bf16.gmra.mxu0 %v1614
      %v1690 = vpop.f32.mrf.mxu0
      %v1691 = vadd.f32 0.0, %v1690
      %v1692 = vpop.f32.mrf.mxu0
      %v1693 = vadd.f32 0.0, %v1692
      %1694 = vmatmul.bf16.gmra.mxu0 %v1617
      %v1695 = vpop.f32.mrf.mxu0
      %v1696 = vadd.f32 0.0, %v1695
      %v1697 = vpop.f32.mrf.mxu0
      %v1698 = vadd.f32 0.0, %v1697
      %1699 = vmatmul.bf16.gmra.mxu0 %v1620
      %v1700 = vpop.f32.mrf.mxu0
      %v1701 = vadd.f32 0.0, %v1700
      %v1702 = vpop.f32.mrf.mxu0
      %v1703 = vadd.f32 0.0, %v1702
      %1704 = vmatmul.bf16.gmra.mxu0 %v1623
      %v1705 = vpop.f32.mrf.mxu0
      %v1706 = vadd.f32 0.0, %v1705
      %v1707 = vpop.f32.mrf.mxu0
      %v1708 = vadd.f32 0.0, %v1707
      %1709 = vmatmul.bf16.gmra.mxu0 %v1626
      %v1710 = vpop.f32.mrf.mxu0
      %v1711 = vadd.f32 0.0, %v1710
      %v1712 = vpop.f32.mrf.mxu0
      %v1713 = vadd.f32 0.0, %v1712
      %1714 = vmatmul.bf16.gmra.mxu0 %v1629
      %v1715 = vpop.f32.mrf.mxu0
      %v1716 = vadd.f32 0.0, %v1715
      %v1717 = vpop.f32.mrf.mxu0
      %v1718 = vadd.f32 0.0, %v1717
      %1719 = vmatmul.bf16.gmra.mxu0 %v1632
      %v1720 = vpop.f32.mrf.mxu0
      %v1721 = vadd.f32 0.0, %v1720
      %v1722 = vpop.f32.mrf.mxu0
      %v1723 = vadd.f32 0.0, %v1722
      %1724 = vmatmul.bf16.gmra.mxu0 %v1635
      %v1725 = vpop.f32.mrf.mxu0
      %v1726 = vadd.f32 0.0, %v1725
      %v1727 = vpop.f32.mrf.mxu0
      %v1728 = vadd.f32 0.0, %v1727
      %1729 = vmatmul.bf16.gmra.mxu0 %v1638
      %v1730 = vpop.f32.mrf.mxu0
      %v1731 = vadd.f32 0.0, %v1730
      %v1732 = vpop.f32.mrf.mxu0
      %v1733 = vadd.f32 0.0, %v1732
      %1734 = vmatmul.bf16.gmra.mxu0 %v1641
      %v1735 = vpop.f32.mrf.mxu0
      %v1736 = vadd.f32 0.0, %v1735
      %v1737 = vpop.f32.mrf.mxu0
      %v1738 = vadd.f32 0.0, %v1737
      %1739 = vmatmul.bf16.gmra.mxu0 %v1644
      %v1740 = vpop.f32.mrf.mxu0
      %v1741 = vadd.f32 0.0, %v1740
      %v1742 = vpop.f32.mrf.mxu0
      %v1743 = vadd.f32 0.0, %v1742
      %1744 = vdwg.mxu0
      %v1745 = vadd.f32 %v1373, %v1656
      %v1746 = vadd.f32 %v1374, %v1658
      %v1747 = vadd.f32 %v1375, %v1661
      %v1748 = vadd.f32 %v1376, %v1663
      %v1749 = vadd.f32 %v1377, %v1666
      %v1750 = vadd.f32 %v1378, %v1668
      %v1751 = vadd.f32 %v1379, %v1671
      %v1752 = vadd.f32 %v1380, %v1673
      %v1753 = vadd.f32 %v1381, %v1676
      %v1754 = vadd.f32 %v1382, %v1678
      %v1755 = vadd.f32 %v1383, %v1681
      %v1756 = vadd.f32 %v1384, %v1683
      %v1757 = vadd.f32 %v1385, %v1686
      %v1758 = vadd.f32 %v1386, %v1688
      %v1759 = vadd.f32 %v1387, %v1691
      %v1760 = vadd.f32 %v1388, %v1693
      %v1761 = vadd.f32 %v1389, %v1696
      %v1762 = vadd.f32 %v1390, %v1698
      %v1763 = vadd.f32 %v1391, %v1701
      %v1764 = vadd.f32 %v1392, %v1703
      %v1765 = vadd.f32 %v1393, %v1706
      %v1766 = vadd.f32 %v1394, %v1708
      %v1767 = vadd.f32 %v1395, %v1711
      %v1768 = vadd.f32 %v1396, %v1713
      %v1769 = vadd.f32 %v1397, %v1716
      %v1770 = vadd.f32 %v1398, %v1718
      %v1771 = vadd.f32 %v1399, %v1721
      %v1772 = vadd.f32 %v1400, %v1723
      %v1773 = vadd.f32 %v1401, %v1726
      %v1774 = vadd.f32 %v1402, %v1728
      %v1775 = vadd.f32 %v1403, %v1731
      %v1776 = vadd.f32 %v1404, %v1733
      %v1777 = vadd.f32 %v1405, %v1736
      %v1778 = vadd.f32 %v1406, %v1738
      %v1779 = vadd.f32 %v1407, %v1741
      %v1780 = vadd.f32 %v1408, %v1743
      %v1781 = vld [vmem:[%s208 + $0x8] sm:$0xc]
      %v1782 = vld [vmem:[%s1 + $0x28] sm:$0xf]
      %v1783 = vld [vmem:[%s1 + $0x2c] sm:$0xf]
      %v1785 = vunpack.c.l.b16 %v1781
      %v1786 = vpack.c.b16 %v1122, %v1785
      %vm1787 = vcmask 1045504
      %v1788 = vrot.slane %v1786, 2
      %v1789 = vrot.slane %v1159, 2
      %v1790 = vsel %vm1787, %v1788, %v1789
      %v1791 = vrot.slane %v1160, 2
      %v1792 = vsel %vm1787, %v1789, %v1791
      %v1793 = vrot.slane %v1161, 2
      %v1794 = vsel %vm1787, %v1791, %v1793
      %v1795 = vrot.slane %v1162, 2
      %v1796 = vsel %vm1787, %v1793, %v1795
      %v1797 = vrot.slane %v1163, 2
      %v1798 = vsel %vm1787, %v1795, %v1797
      %v1799 = vrot.slane %v1164, 2
      %v1800 = vsel %vm1787, %v1797, %v1799
      %v1801 = vrot.slane %v1165, 2
      %v1802 = vsel %vm1787, %v1799, %v1801
      %v1803 = vrot.slane %v1166, 2
      %v1804 = vsel %vm1787, %v1801, %v1803
      %v1805 = vrot.slane %v1167, 2
      %v1806 = vsel %vm1787, %v1803, %v1805
      %v1807 = vrot.slane %v1168, 2
      %v1808 = vsel %vm1787, %v1805, %v1807
      %v1809 = vrot.slane %v1169, 2
      %v1810 = vsel %vm1787, %v1807, %v1809
      %v1811 = vrot.slane %v1170, 2
      %v1812 = vsel %vm1787, %v1809, %v1811
      %v1813 = vrot.slane %v1171, 2
      %v1814 = vsel %vm1787, %v1811, %v1813
      %v1815 = vrot.slane %v1172, 2
      %v1816 = vsel %vm1787, %v1813, %v1815
      %v1817 = vrot.slane %v1173, 2
      %v1818 = vsel %vm1787, %v1815, %v1817
      %v1819 = vrot.slane %v1174, 2
      %v1820 = vsel %vm1787, %v1817, %v1819
      %v1821 = vrot.slane %v1175, 2
      %v1822 = vsel %vm1787, %v1819, %v1821
      %v1823 = vrot.slane %v1414, 2
      %v1824 = vsel %vm1787, %v1821, %v1823
      %v1827 = vunpack.c.l.b16 %v1782
      %v1828 = vunpack.c.l.b16 %v1783
      %v1829 = vpack.c.b16 %v1828, %v1827
      %v1832 = vsel %vm511, %v1790, 0
      %v1835 = vsel %vm511, %v1792, 0
      %v1838 = vsel %vm511, %v1794, 0
      %v1841 = vsel %vm511, %v1796, 0
      %v1844 = vsel %vm511, %v1798, 0
      %v1847 = vsel %vm511, %v1800, 0
      %v1850 = vsel %vm511, %v1802, 0
      %v1853 = vsel %vm511, %v1804, 0
      %v1856 = vsel %vm511, %v1806, 0
      %v1859 = vsel %vm511, %v1808, 0
      %v1862 = vsel %vm511, %v1810, 0
      %v1865 = vsel %vm511, %v1812, 0
      %v1868 = vsel %vm511, %v1814, 0
      %v1871 = vsel %vm511, %v1816, 0
      %v1874 = vsel %vm511, %v1818, 0
      %v1877 = vsel %vm511, %v1820, 0
      %v1880 = vsel %vm511, %v1822, 0
      %v1883 = vsel %vm511, %v1824, 0
      %1885 = vmatpush.bf16.msra.mxu0 0
      %1886 = vmatpush.bf16.msra.mxu0 0
      %1887 = vmatpush.bf16.msra.mxu0 0
      %1888 = vmatpush.bf16.msra.mxu0 0
      %1889 = vmatpush.bf16.msra.mxu0 0
      %1890 = vmatpush.bf16.msra.mxu0 0
      %1891 = vmatpush.bf16.msra.mxu0 0
      %1892 = vmatpush.bf16.msra.mxu0 %v1829
      %1893 = vmatmul.bf16.gmra.mxu0 %v1832
      %v1894 = vpop.f32.mrf.mxu0
      %v1895 = vadd.f32 0.0, %v1894
      %v1896 = vpop.f32.mrf.mxu0
      %v1897 = vadd.f32 0.0, %v1896
      %1898 = vmatmul.bf16.gmra.mxu0 %v1835
      %v1899 = vpop.f32.mrf.mxu0
      %v1900 = vadd.f32 0.0, %v1899
      %v1901 = vpop.f32.mrf.mxu0
      %v1902 = vadd.f32 0.0, %v1901
      %1903 = vmatmul.bf16.gmra.mxu0 %v1838
      %v1904 = vpop.f32.mrf.mxu0
      %v1905 = vadd.f32 0.0, %v1904
      %v1906 = vpop.f32.mrf.mxu0
      %v1907 = vadd.f32 0.0, %v1906
      %1908 = vmatmul.bf16.gmra.mxu0 %v1841
      %v1909 = vpop.f32.mrf.mxu0
      %v1910 = vadd.f32 0.0, %v1909
      %v1911 = vpop.f32.mrf.mxu0
      %v1912 = vadd.f32 0.0, %v1911
      %1913 = vmatmul.bf16.gmra.mxu0 %v1844
      %v1914 = vpop.f32.mrf.mxu0
      %v1915 = vadd.f32 0.0, %v1914
      %v1916 = vpop.f32.mrf.mxu0
      %v1917 = vadd.f32 0.0, %v1916
      %1918 = vmatmul.bf16.gmra.mxu0 %v1847
      %v1919 = vpop.f32.mrf.mxu0
      %v1920 = vadd.f32 0.0, %v1919
      %v1921 = vpop.f32.mrf.mxu0
      %v1922 = vadd.f32 0.0, %v1921
      %1923 = vmatmul.bf16.gmra.mxu0 %v1850
      %v1924 = vpop.f32.mrf.mxu0
      %v1925 = vadd.f32 0.0, %v1924
      %v1926 = vpop.f32.mrf.mxu0
      %v1927 = vadd.f32 0.0, %v1926
      %1928 = vmatmul.bf16.gmra.mxu0 %v1853
      %v1929 = vpop.f32.mrf.mxu0
      %v1930 = vadd.f32 0.0, %v1929
      %v1931 = vpop.f32.mrf.mxu0
      %v1932 = vadd.f32 0.0, %v1931
      %1933 = vmatmul.bf16.gmra.mxu0 %v1856
      %v1934 = vpop.f32.mrf.mxu0
      %v1935 = vadd.f32 0.0, %v1934
      %v1936 = vpop.f32.mrf.mxu0
      %v1937 = vadd.f32 0.0, %v1936
      %1938 = vmatmul.bf16.gmra.mxu0 %v1859
      %v1939 = vpop.f32.mrf.mxu0
      %v1940 = vadd.f32 0.0, %v1939
      %v1941 = vpop.f32.mrf.mxu0
      %v1942 = vadd.f32 0.0, %v1941
      %1943 = vmatmul.bf16.gmra.mxu0 %v1862
      %v1944 = vpop.f32.mrf.mxu0
      %v1945 = vadd.f32 0.0, %v1944
      %v1946 = vpop.f32.mrf.mxu0
      %v1947 = vadd.f32 0.0, %v1946
      %1948 = vmatmul.bf16.gmra.mxu0 %v1865
      %v1949 = vpop.f32.mrf.mxu0
      %v1950 = vadd.f32 0.0, %v1949
      %v1951 = vpop.f32.mrf.mxu0
      %v1952 = vadd.f32 0.0, %v1951
      %1953 = vmatmul.bf16.gmra.mxu0 %v1868
      %v1954 = vpop.f32.mrf.mxu0
      %v1955 = vadd.f32 0.0, %v1954
      %v1956 = vpop.f32.mrf.mxu0
      %v1957 = vadd.f32 0.0, %v1956
      %1958 = vmatmul.bf16.gmra.mxu0 %v1871
      %v1959 = vpop.f32.mrf.mxu0
      %v1960 = vadd.f32 0.0, %v1959
      %v1961 = vpop.f32.mrf.mxu0
      %v1962 = vadd.f32 0.0, %v1961
      %1963 = vmatmul.bf16.gmra.mxu0 %v1874
      %v1964 = vpop.f32.mrf.mxu0
      %v1965 = vadd.f32 0.0, %v1964
      %v1966 = vpop.f32.mrf.mxu0
      %v1967 = vadd.f32 0.0, %v1966
      %1968 = vmatmul.bf16.gmra.mxu0 %v1877
      %v1969 = vpop.f32.mrf.mxu0
      %v1970 = vadd.f32 0.0, %v1969
      %v1971 = vpop.f32.mrf.mxu0
      %v1972 = vadd.f32 0.0, %v1971
      %1973 = vmatmul.bf16.gmra.mxu0 %v1880
      %v1974 = vpop.f32.mrf.mxu0
      %v1975 = vadd.f32 0.0, %v1974
      %v1976 = vpop.f32.mrf.mxu0
      %v1977 = vadd.f32 0.0, %v1976
      %1978 = vmatmul.bf16.gmra.mxu0 %v1883
      %v1979 = vpop.f32.mrf.mxu0
      %v1980 = vadd.f32 0.0, %v1979
      %v1981 = vpop.f32.mrf.mxu0
      %v1982 = vadd.f32 0.0, %v1981
      %1983 = vdwg.mxu0
      %v1984 = vadd.f32 %v1745, %v1895
      %v1985 = vadd.f32 %v1746, %v1897
      %v1986 = vadd.f32 %v1747, %v1900
      %v1987 = vadd.f32 %v1748, %v1902
      %v1988 = vadd.f32 %v1749, %v1905
      %v1989 = vadd.f32 %v1750, %v1907
      %v1990 = vadd.f32 %v1751, %v1910
      %v1991 = vadd.f32 %v1752, %v1912
      %v1992 = vadd.f32 %v1753, %v1915
      %v1993 = vadd.f32 %v1754, %v1917
      %v1994 = vadd.f32 %v1755, %v1920
      %v1995 = vadd.f32 %v1756, %v1922
      %v1996 = vadd.f32 %v1757, %v1925
      %v1997 = vadd.f32 %v1758, %v1927
      %v1998 = vadd.f32 %v1759, %v1930
      %v1999 = vadd.f32 %v1760, %v1932
      %v2000 = vadd.f32 %v1761, %v1935
      %v2001 = vadd.f32 %v1762, %v1937
      %v2002 = vadd.f32 %v1763, %v1940
      %v2003 = vadd.f32 %v1764, %v1942
      %v2004 = vadd.f32 %v1765, %v1945
      %v2005 = vadd.f32 %v1766, %v1947
      %v2006 = vadd.f32 %v1767, %v1950
      %v2007 = vadd.f32 %v1768, %v1952
      %v2008 = vadd.f32 %v1769, %v1955
      %v2009 = vadd.f32 %v1770, %v1957
      %v2010 = vadd.f32 %v1771, %v1960
      %v2011 = vadd.f32 %v1772, %v1962
      %v2012 = vadd.f32 %v1773, %v1965
      %v2013 = vadd.f32 %v1774, %v1967
      %v2014 = vadd.f32 %v1775, %v1970
      %v2015 = vadd.f32 %v1776, %v1972
      %v2016 = vadd.f32 %v1777, %v1975
      %v2017 = vadd.f32 %v1778, %v1977
      %v2018 = vadd.f32 %v1779, %v1980
      %v2019 = vadd.f32 %v1780, %v1982
      %v2020 = vld [vmem:[%s208 + $0x10] sm:$0xc]
      %v2021 = vld [vmem:[%s208 + $0x14] sm:$0xf]
      %v2022 = vld [vmem:[%s208 + $0x18] sm:$0xf]
      %v2023 = vld [vmem:[%s208 + $0x1c] sm:$0xf]
      %v2024 = vld [vmem:[%s208 + $0x20] sm:$0xf]
      %v2025 = vld [vmem:[%s208 + $0x24] sm:$0xf]
      %v2026 = vld [vmem:[%s208 + $0x28] sm:$0xf]
      %v2027 = vld [vmem:[%s208 + $0x2c] sm:$0xf]
      %v2028 = vld [vmem:[%s208 + $0x30] sm:$0xf]
      %v2029 = vld [vmem:[%s208 + $0x34] sm:$0xf]
      %v2030 = vld [vmem:[%s208 + $0x38] sm:$0xf]
      %v2031 = vld [vmem:[%s208 + $0x3c] sm:$0xf]
      %v2032 = vld [vmem:[%s208 + $0x40] sm:$0xf]
      %v2033 = vld [vmem:[%s208 + $0x44] sm:$0xf]
      %v2034 = vld [vmem:[%s208 + $0x48] sm:$0xf]
      %v2035 = vld [vmem:[%s208 + $0x4c] sm:$0xf]
      %v2036 = vld [vmem:[%s208 + $0x50] sm:$0xf]
      %v2037 = vld [vmem:[%s208 + $0x54] sm:$0xf]
      %v2038 = vld [vmem:[%s208 + $0x58] sm:$0xf]
      %v2039 = vld [vmem:[%s208 + $0x5c] sm:$0xf]
      %v2040 = vld [vmem:[%s208 + $0x60] sm:$0xf]
      %v2041 = vld [vmem:[%s208 + $0x64] sm:$0xf]
      %v2042 = vld [vmem:[%s208 + $0x68] sm:$0xf]
      %v2043 = vld [vmem:[%s208 + $0x6c] sm:$0xf]
      %v2044 = vld [vmem:[%s208 + $0x70] sm:$0xf]
      %v2045 = vld [vmem:[%s208 + $0x74] sm:$0xf]
      %v2046 = vld [vmem:[%s208 + $0x78] sm:$0xf]
      %v2047 = vld [vmem:[%s208 + $0x7c] sm:$0xf]
      %v2048 = vld [vmem:[%s208 + $0x80] sm:$0xf]
      %v2049 = vld [vmem:[%s208 + $0x84] sm:$0xf]
      %v2050 = vld [vmem:[%s208 + $0x88] sm:$0xf]
      %v2051 = vld [vmem:[%s208 + $0x8c] sm:$0xf]
      %v2052 = vld [vmem:[%s208 + $0x90] sm:$0xf]
      %v2053 = vld [vmem:[%s208 + $0x94] sm:$0xf]
      %v2054 = vld [vmem:[%s208 + $0x98] sm:$0xf]
      %v2055 = vld [vmem:[%s208 + $0x9c] sm:$0xf]
      %v2056 = vld [vmem:[%s208 + $0xa0] sm:$0x3]
      %v2057 = vld [vmem:[%s1 + $0x30] sm:$0xf]
      %v2058 = vld [vmem:[%s1 + $0x34] sm:$0xf]
      %v2096 = vunpack.c.l.b16 %v2020
      %v2097 = vunpack.c.l.b16 %v2021
      %v2098 = vunpack.c.l.b16 %v2022
      %v2099 = vunpack.c.l.b16 %v2023
      %v2100 = vunpack.c.l.b16 %v2024
      %v2101 = vunpack.c.l.b16 %v2025
      %v2102 = vunpack.c.l.b16 %v2026
      %v2103 = vunpack.c.l.b16 %v2027
      %v2104 = vunpack.c.l.b16 %v2028
      %v2105 = vunpack.c.l.b16 %v2029
      %v2106 = vunpack.c.l.b16 %v2030
      %v2107 = vunpack.c.l.b16 %v2031
      %v2108 = vunpack.c.l.b16 %v2032
      %v2109 = vunpack.c.l.b16 %v2033
      %v2110 = vunpack.c.l.b16 %v2034
      %v2111 = vunpack.c.l.b16 %v2035
      %v2112 = vunpack.c.l.b16 %v2036
      %v2113 = vunpack.c.l.b16 %v2037
      %v2114 = vunpack.c.l.b16 %v2038
      %v2115 = vunpack.c.l.b16 %v2039
      %v2116 = vunpack.c.l.b16 %v2040
      %v2117 = vunpack.c.l.b16 %v2041
      %v2118 = vunpack.c.l.b16 %v2042
      %v2119 = vunpack.c.l.b16 %v2043
      %v2120 = vunpack.c.l.b16 %v2044
      %v2121 = vunpack.c.l.b16 %v2045
      %v2122 = vunpack.c.l.b16 %v2046
      %v2123 = vunpack.c.l.b16 %v2047
      %v2124 = vunpack.c.l.b16 %v2048
      %v2125 = vunpack.c.l.b16 %v2049
      %v2126 = vunpack.c.l.b16 %v2050
      %v2127 = vunpack.c.l.b16 %v2051
      %v2128 = vunpack.c.l.b16 %v2052
      %v2129 = vunpack.c.l.b16 %v2053
      %v2130 = vunpack.c.l.b16 %v2054
      %v2131 = vunpack.c.l.b16 %v2055
      %v2132 = vunpack.c.l.b16 %v2056
      %v2133 = vpack.c.b16 %v2097, %v2096
      %v2134 = vpack.c.b16 %v2099, %v2098
      %v2135 = vpack.c.b16 %v2101, %v2100
      %v2136 = vpack.c.b16 %v2103, %v2102
      %v2137 = vpack.c.b16 %v2105, %v2104
      %v2138 = vpack.c.b16 %v2107, %v2106
      %v2139 = vpack.c.b16 %v2109, %v2108
      %v2140 = vpack.c.b16 %v2111, %v2110
      %v2141 = vpack.c.b16 %v2113, %v2112
      %v2142 = vpack.c.b16 %v2115, %v2114
      %v2143 = vpack.c.b16 %v2117, %v2116
      %v2144 = vpack.c.b16 %v2119, %v2118
      %v2145 = vpack.c.b16 %v2121, %v2120
      %v2146 = vpack.c.b16 %v2123, %v2122
      %v2147 = vpack.c.b16 %v2125, %v2124
      %v2148 = vpack.c.b16 %v2127, %v2126
      %v2149 = vpack.c.b16 %v2129, %v2128
      %v2150 = vpack.c.b16 %v2131, %v2130
      %v2151 = vpack.c.b16 %v2132, %v2132
      %v2152 = vrot.slane %v2133, 2
      %v2153 = vrot.slane %v2134, 2
      %v2154 = vsel %vm1787, %v2152, %v2153
      %v2155 = vrot.slane %v2135, 2
      %v2156 = vsel %vm1787, %v2153, %v2155
      %v2157 = vrot.slane %v2136, 2
      %v2158 = vsel %vm1787, %v2155, %v2157
      %v2159 = vrot.slane %v2137, 2
      %v2160 = vsel %vm1787, %v2157, %v2159
      %v2161 = vrot.slane %v2138, 2
      %v2162 = vsel %vm1787, %v2159, %v2161
      %v2163 = vrot.slane %v2139, 2
      %v2164 = vsel %vm1787, %v2161, %v2163
      %v2165 = vrot.slane %v2140, 2
      %v2166 = vsel %vm1787, %v2163, %v2165
      %v2167 = vrot.slane %v2141, 2
      %v2168 = vsel %vm1787, %v2165, %v2167
      %v2169 = vrot.slane %v2142, 2
      %v2170 = vsel %vm1787, %v2167, %v2169
      %v2171 = vrot.slane %v2143, 2
      %v2172 = vsel %vm1787, %v2169, %v2171
      %v2173 = vrot.slane %v2144, 2
      %v2174 = vsel %vm1787, %v2171, %v2173
      %v2175 = vrot.slane %v2145, 2
      %v2176 = vsel %vm1787, %v2173, %v2175
      %v2177 = vrot.slane %v2146, 2
      %v2178 = vsel %vm1787, %v2175, %v2177
      %v2179 = vrot.slane %v2147, 2
      %v2180 = vsel %vm1787, %v2177, %v2179
      %v2181 = vrot.slane %v2148, 2
      %v2182 = vsel %vm1787, %v2179, %v2181
      %v2183 = vrot.slane %v2149, 2
      %v2184 = vsel %vm1787, %v2181, %v2183
      %v2185 = vrot.slane %v2150, 2
      %v2186 = vsel %vm1787, %v2183, %v2185
      %v2187 = vrot.slane %v2151, 2
      %v2188 = vsel %vm1787, %v2185, %v2187
      %v2191 = vunpack.c.l.b16 %v2057
      %v2192 = vunpack.c.l.b16 %v2058
      %v2193 = vpack.c.b16 %v2192, %v2191
      %v2196 = vsel %vm511, %v2154, 0
      %v2199 = vsel %vm511, %v2156, 0
      %v2202 = vsel %vm511, %v2158, 0
      %v2205 = vsel %vm511, %v2160, 0
      %v2208 = vsel %vm511, %v2162, 0
      %v2211 = vsel %vm511, %v2164, 0
      %v2214 = vsel %vm511, %v2166, 0
      %v2217 = vsel %vm511, %v2168, 0
      %v2220 = vsel %vm511, %v2170, 0
      %v2223 = vsel %vm511, %v2172, 0
      %v2226 = vsel %vm511, %v2174, 0
      %v2229 = vsel %vm511, %v2176, 0
      %v2232 = vsel %vm511, %v2178, 0
      %v2235 = vsel %vm511, %v2180, 0
      %v2238 = vsel %vm511, %v2182, 0
      %v2241 = vsel %vm511, %v2184, 0
      %v2244 = vsel %vm511, %v2186, 0
      %v2247 = vsel %vm511, %v2188, 0
      %2249 = vmatpush.bf16.msra.mxu0 0
      %2250 = vmatpush.bf16.msra.mxu0 0
      %2251 = vmatpush.bf16.msra.mxu0 0
      %2252 = vmatpush.bf16.msra.mxu0 0
      %2253 = vmatpush.bf16.msra.mxu0 0
      %2254 = vmatpush.bf16.msra.mxu0 0
      %2255 = vmatpush.bf16.msra.mxu0 0
      %2256 = vmatpush.bf16.msra.mxu0 %v2193
      %2257 = vmatmul.bf16.gmra.mxu0 %v2196
      %v2258 = vpop.f32.mrf.mxu0
      %v2259 = vadd.f32 0.0, %v2258
      %v2260 = vpop.f32.mrf.mxu0
      %v2261 = vadd.f32 0.0, %v2260
      %2262 = vmatmul.bf16.gmra.mxu0 %v2199
      %v2263 = vpop.f32.mrf.mxu0
      %v2264 = vadd.f32 0.0, %v2263
      %v2265 = vpop.f32.mrf.mxu0
      %v2266 = vadd.f32 0.0, %v2265
      %2267 = vmatmul.bf16.gmra.mxu0 %v2202
      %v2268 = vpop.f32.mrf.mxu0
      %v2269 = vadd.f32 0.0, %v2268
      %v2270 = vpop.f32.mrf.mxu0
      %v2271 = vadd.f32 0.0, %v2270
      %2272 = vmatmul.bf16.gmra.mxu0 %v2205
      %v2273 = vpop.f32.mrf.mxu0
      %v2274 = vadd.f32 0.0, %v2273
      %v2275 = vpop.f32.mrf.mxu0
      %v2276 = vadd.f32 0.0, %v2275
      %2277 = vmatmul.bf16.gmra.mxu0 %v2208
      %v2278 = vpop.f32.mrf.mxu0
      %v2279 = vadd.f32 0.0, %v2278
      %v2280 = vpop.f32.mrf.mxu0
      %v2281 = vadd.f32 0.0, %v2280
      %2282 = vmatmul.bf16.gmra.mxu0 %v2211
      %v2283 = vpop.f32.mrf.mxu0
      %v2284 = vadd.f32 0.0, %v2283
      %v2285 = vpop.f32.mrf.mxu0
      %v2286 = vadd.f32 0.0, %v2285
      %2287 = vmatmul.bf16.gmra.mxu0 %v2214
      %v2288 = vpop.f32.mrf.mxu0
      %v2289 = vadd.f32 0.0, %v2288
      %v2290 = vpop.f32.mrf.mxu0
      %v2291 = vadd.f32 0.0, %v2290
      %2292 = vmatmul.bf16.gmra.mxu0 %v2217
      %v2293 = vpop.f32.mrf.mxu0
      %v2294 = vadd.f32 0.0, %v2293
      %v2295 = vpop.f32.mrf.mxu0
      %v2296 = vadd.f32 0.0, %v2295
      %2297 = vmatmul.bf16.gmra.mxu0 %v2220
      %v2298 = vpop.f32.mrf.mxu0
      %v2299 = vadd.f32 0.0, %v2298
      %v2300 = vpop.f32.mrf.mxu0
      %v2301 = vadd.f32 0.0, %v2300
      %2302 = vmatmul.bf16.gmra.mxu0 %v2223
      %v2303 = vpop.f32.mrf.mxu0
      %v2304 = vadd.f32 0.0, %v2303
      %v2305 = vpop.f32.mrf.mxu0
      %v2306 = vadd.f32 0.0, %v2305
      %2307 = vmatmul.bf16.gmra.mxu0 %v2226
      %v2308 = vpop.f32.mrf.mxu0
      %v2309 = vadd.f32 0.0, %v2308
      %v2310 = vpop.f32.mrf.mxu0
      %v2311 = vadd.f32 0.0, %v2310
      %2312 = vmatmul.bf16.gmra.mxu0 %v2229
      %v2313 = vpop.f32.mrf.mxu0
      %v2314 = vadd.f32 0.0, %v2313
      %v2315 = vpop.f32.mrf.mxu0
      %v2316 = vadd.f32 0.0, %v2315
      %2317 = vmatmul.bf16.gmra.mxu0 %v2232
      %v2318 = vpop.f32.mrf.mxu0
      %v2319 = vadd.f32 0.0, %v2318
      %v2320 = vpop.f32.mrf.mxu0
      %v2321 = vadd.f32 0.0, %v2320
      %2322 = vmatmul.bf16.gmra.mxu0 %v2235
      %v2323 = vpop.f32.mrf.mxu0
      %v2324 = vadd.f32 0.0, %v2323
      %v2325 = vpop.f32.mrf.mxu0
      %v2326 = vadd.f32 0.0, %v2325
      %2327 = vmatmul.bf16.gmra.mxu0 %v2238
      %v2328 = vpop.f32.mrf.mxu0
      %v2329 = vadd.f32 0.0, %v2328
      %v2330 = vpop.f32.mrf.mxu0
      %v2331 = vadd.f32 0.0, %v2330
      %2332 = vmatmul.bf16.gmra.mxu0 %v2241
      %v2333 = vpop.f32.mrf.mxu0
      %v2334 = vadd.f32 0.0, %v2333
      %v2335 = vpop.f32.mrf.mxu0
      %v2336 = vadd.f32 0.0, %v2335
      %2337 = vmatmul.bf16.gmra.mxu0 %v2244
      %v2338 = vpop.f32.mrf.mxu0
      %v2339 = vadd.f32 0.0, %v2338
      %v2340 = vpop.f32.mrf.mxu0
      %v2341 = vadd.f32 0.0, %v2340
      %2342 = vmatmul.bf16.gmra.mxu0 %v2247
      %v2343 = vpop.f32.mrf.mxu0
      %v2344 = vadd.f32 0.0, %v2343
      %v2345 = vpop.f32.mrf.mxu0
      %v2346 = vadd.f32 0.0, %v2345
      %2347 = vdwg.mxu0
      %v2348 = vadd.f32 %v1984, %v2259
      %v2349 = vadd.f32 %v1985, %v2261
      %v2350 = vadd.f32 %v1986, %v2264
      %v2351 = vadd.f32 %v1987, %v2266
      %v2352 = vadd.f32 %v1988, %v2269
      %v2353 = vadd.f32 %v1989, %v2271
      %v2354 = vadd.f32 %v1990, %v2274
      %v2355 = vadd.f32 %v1991, %v2276
      %v2356 = vadd.f32 %v1992, %v2279
      %v2357 = vadd.f32 %v1993, %v2281
      %v2358 = vadd.f32 %v1994, %v2284
      %v2359 = vadd.f32 %v1995, %v2286
      %v2360 = vadd.f32 %v1996, %v2289
      %v2361 = vadd.f32 %v1997, %v2291
      %v2362 = vadd.f32 %v1998, %v2294
      %v2363 = vadd.f32 %v1999, %v2296
      %v2364 = vadd.f32 %v2000, %v2299
      %v2365 = vadd.f32 %v2001, %v2301
      %v2366 = vadd.f32 %v2002, %v2304
      %v2367 = vadd.f32 %v2003, %v2306
      %v2368 = vadd.f32 %v2004, %v2309
      %v2369 = vadd.f32 %v2005, %v2311
      %v2370 = vadd.f32 %v2006, %v2314
      %v2371 = vadd.f32 %v2007, %v2316
      %v2372 = vadd.f32 %v2008, %v2319
      %v2373 = vadd.f32 %v2009, %v2321
      %v2374 = vadd.f32 %v2010, %v2324
      %v2375 = vadd.f32 %v2011, %v2326
      %v2376 = vadd.f32 %v2012, %v2329
      %v2377 = vadd.f32 %v2013, %v2331
      %v2378 = vadd.f32 %v2014, %v2334
      %v2379 = vadd.f32 %v2015, %v2336
      %v2380 = vadd.f32 %v2016, %v2339
      %v2381 = vadd.f32 %v2017, %v2341
      %v2382 = vadd.f32 %v2018, %v2344
      %v2383 = vadd.f32 %v2019, %v2346
      %v2384 = vld [vmem:[%s208 + $0xa0] sm:$0x7]
      %v2385 = vld [vmem:[%s1 + $0x38] sm:$0xf]
      %v2386 = vld [vmem:[%s1 + $0x3c] sm:$0xf]
      %v2388 = vunpack.c.l.b16 %v2384
      %v2389 = vpack.c.b16 %v2388, %v2388
      %vm2390 = vsmask.f32 5376
      %v2392 = vshrl.u32 %v2133, 16
      %v2394 = vrot.slane %v2392, 2
      %v2395 = vshll.u32 %v2133, 16
      %v2397 = vrot.slane %v2395, 3
      %v2398 = vor.u32 %v2394, %v2397
      %v2400 = vshrl.u32 %v2134, 16
      %v2402 = vrot.slane %v2400, 2
      %v2403 = vshll.u32 %v2134, 16
      %v2405 = vrot.slane %v2403, 3
      %v2406 = vor.u32 %v2402, %v2405
      %v2407 = vsel %vm2390, %v2398, %v2406
      %v2409 = vshrl.u32 %v2135, 16
      %v2411 = vrot.slane %v2409, 2
      %v2412 = vshll.u32 %v2135, 16
      %v2414 = vrot.slane %v2412, 3
      %v2415 = vor.u32 %v2411, %v2414
      %v2416 = vsel %vm2390, %v2406, %v2415
      %v2418 = vshrl.u32 %v2136, 16
      %v2420 = vrot.slane %v2418, 2
      %v2421 = vshll.u32 %v2136, 16
      %v2423 = vrot.slane %v2421, 3
      %v2424 = vor.u32 %v2420, %v2423
      %v2425 = vsel %vm2390, %v2415, %v2424
      %v2427 = vshrl.u32 %v2137, 16
      %v2429 = vrot.slane %v2427, 2
      %v2430 = vshll.u32 %v2137, 16
      %v2432 = vrot.slane %v2430, 3
      %v2433 = vor.u32 %v2429, %v2432
      %v2434 = vsel %vm2390, %v2424, %v2433
      %v2436 = vshrl.u32 %v2138, 16
      %v2438 = vrot.slane %v2436, 2
      %v2439 = vshll.u32 %v2138, 16
      %v2441 = vrot.slane %v2439, 3
      %v2442 = vor.u32 %v2438, %v2441
      %v2443 = vsel %vm2390, %v2433, %v2442
      %v2445 = vshrl.u32 %v2139, 16
      %v2447 = vrot.slane %v2445, 2
      %v2448 = vshll.u32 %v2139, 16
      %v2450 = vrot.slane %v2448, 3
      %v2451 = vor.u32 %v2447, %v2450
      %v2452 = vsel %vm2390, %v2442, %v2451
      %v2454 = vshrl.u32 %v2140, 16
      %v2456 = vrot.slane %v2454, 2
      %v2457 = vshll.u32 %v2140, 16
      %v2459 = vrot.slane %v2457, 3
      %v2460 = vor.u32 %v2456, %v2459
      %v2461 = vsel %vm2390, %v2451, %v2460
      %v2463 = vshrl.u32 %v2141, 16
      %v2465 = vrot.slane %v2463, 2
      %v2466 = vshll.u32 %v2141, 16
      %v2468 = vrot.slane %v2466, 3
      %v2469 = vor.u32 %v2465, %v2468
      %v2470 = vsel %vm2390, %v2460, %v2469
      %v2472 = vshrl.u32 %v2142, 16
      %v2474 = vrot.slane %v2472, 2
      %v2475 = vshll.u32 %v2142, 16
      %v2477 = vrot.slane %v2475, 3
      %v2478 = vor.u32 %v2474, %v2477
      %v2479 = vsel %vm2390, %v2469, %v2478
      %v2481 = vshrl.u32 %v2143, 16
      %v2483 = vrot.slane %v2481, 2
      %v2484 = vshll.u32 %v2143, 16
      %v2486 = vrot.slane %v2484, 3
      %v2487 = vor.u32 %v2483, %v2486
      %v2488 = vsel %vm2390, %v2478, %v2487
      %v2490 = vshrl.u32 %v2144, 16
      %v2492 = vrot.slane %v2490, 2
      %v2493 = vshll.u32 %v2144, 16
      %v2495 = vrot.slane %v2493, 3
      %v2496 = vor.u32 %v2492, %v2495
      %v2497 = vsel %vm2390, %v2487, %v2496
      %v2499 = vshrl.u32 %v2145, 16
      %v2501 = vrot.slane %v2499, 2
      %v2502 = vshll.u32 %v2145, 16
      %v2504 = vrot.slane %v2502, 3
      %v2505 = vor.u32 %v2501, %v2504
      %v2506 = vsel %vm2390, %v2496, %v2505
      %v2508 = vshrl.u32 %v2146, 16
      %v2510 = vrot.slane %v2508, 2
      %v2511 = vshll.u32 %v2146, 16
      %v2513 = vrot.slane %v2511, 3
      %v2514 = vor.u32 %v2510, %v2513
      %v2515 = vsel %vm2390, %v2505, %v2514
      %v2517 = vshrl.u32 %v2147, 16
      %v2519 = vrot.slane %v2517, 2
      %v2520 = vshll.u32 %v2147, 16
      %v2522 = vrot.slane %v2520, 3
      %v2523 = vor.u32 %v2519, %v2522
      %v2524 = vsel %vm2390, %v2514, %v2523
      %v2526 = vshrl.u32 %v2148, 16
      %v2528 = vrot.slane %v2526, 2
      %v2529 = vshll.u32 %v2148, 16
      %v2531 = vrot.slane %v2529, 3
      %v2532 = vor.u32 %v2528, %v2531
      %v2533 = vsel %vm2390, %v2523, %v2532
      %v2535 = vshrl.u32 %v2149, 16
      %v2537 = vrot.slane %v2535, 2
      %v2538 = vshll.u32 %v2149, 16
      %v2540 = vrot.slane %v2538, 3
      %v2541 = vor.u32 %v2537, %v2540
      %v2542 = vsel %vm2390, %v2532, %v2541
      %v2544 = vshrl.u32 %v2150, 16
      %v2546 = vrot.slane %v2544, 2
      %v2547 = vshll.u32 %v2150, 16
      %v2549 = vrot.slane %v2547, 3
      %v2550 = vor.u32 %v2546, %v2549
      %v2551 = vsel %vm2390, %v2541, %v2550
      %v2553 = vshrl.u32 %v2389, 16
      %v2555 = vrot.slane %v2553, 2
      %v2556 = vshll.u32 %v2389, 16
      %v2558 = vrot.slane %v2556, 3
      %v2559 = vor.u32 %v2555, %v2558
      %v2560 = vsel %vm2390, %v2550, %v2559
      %v2563 = vunpack.c.l.b16 %v2385
      %v2564 = vunpack.c.l.b16 %v2386
      %v2565 = vpack.c.b16 %v2564, %v2563
      %v2568 = vsel %vm511, %v2407, 0
      %v2571 = vsel %vm511, %v2416, 0
      %v2574 = vsel %vm511, %v2425, 0
      %v2577 = vsel %vm511, %v2434, 0
      %v2580 = vsel %vm511, %v2443, 0
      %v2583 = vsel %vm511, %v2452, 0
      %v2586 = vsel %vm511, %v2461, 0
      %v2589 = vsel %vm511, %v2470, 0
      %v2592 = vsel %vm511, %v2479, 0
      %v2595 = vsel %vm511, %v2488, 0
      %v2598 = vsel %vm511, %v2497, 0
      %v2601 = vsel %vm511, %v2506, 0
      %v2604 = vsel %vm511, %v2515, 0
      %v2607 = vsel %vm511, %v2524, 0
      %v2610 = vsel %vm511, %v2533, 0
      %v2613 = vsel %vm511, %v2542, 0
      %v2616 = vsel %vm511, %v2551, 0
      %v2619 = vsel %vm511, %v2560, 0
      %2621 = vmatpush.bf16.msra.mxu0 0
      %2622 = vmatpush.bf16.msra.mxu0 0
      %2623 = vmatpush.bf16.msra.mxu0 0
      %2624 = vmatpush.bf16.msra.mxu0 0
      %2625 = vmatpush.bf16.msra.mxu0 0
      %2626 = vmatpush.bf16.msra.mxu0 0
      %2627 = vmatpush.bf16.msra.mxu0 0
      %2628 = vmatpush.bf16.msra.mxu0 %v2565
      %2629 = vmatmul.bf16.gmra.mxu0 %v2568
      %v2630 = vpop.f32.mrf.mxu0
      %v2631 = vadd.f32 0.0, %v2630
      %v2632 = vpop.f32.mrf.mxu0
      %v2633 = vadd.f32 0.0, %v2632
      %2634 = vmatmul.bf16.gmra.mxu0 %v2571
      %v2635 = vpop.f32.mrf.mxu0
      %v2636 = vadd.f32 0.0, %v2635
      %v2637 = vpop.f32.mrf.mxu0
      %v2638 = vadd.f32 0.0, %v2637
      %2639 = vmatmul.bf16.gmra.mxu0 %v2574
      %v2640 = vpop.f32.mrf.mxu0
      %v2641 = vadd.f32 0.0, %v2640
      %v2642 = vpop.f32.mrf.mxu0
      %v2643 = vadd.f32 0.0, %v2642
      %2644 = vmatmul.bf16.gmra.mxu0 %v2577
      %v2645 = vpop.f32.mrf.mxu0
      %v2646 = vadd.f32 0.0, %v2645
      %v2647 = vpop.f32.mrf.mxu0
      %v2648 = vadd.f32 0.0, %v2647
      %2649 = vmatmul.bf16.gmra.mxu0 %v2580
      %v2650 = vpop.f32.mrf.mxu0
      %v2651 = vadd.f32 0.0, %v2650
      %v2652 = vpop.f32.mrf.mxu0
      %v2653 = vadd.f32 0.0, %v2652
      %2654 = vmatmul.bf16.gmra.mxu0 %v2583
      %v2655 = vpop.f32.mrf.mxu0
      %v2656 = vadd.f32 0.0, %v2655
      %v2657 = vpop.f32.mrf.mxu0
      %v2658 = vadd.f32 0.0, %v2657
      %2659 = vmatmul.bf16.gmra.mxu0 %v2586
      %v2660 = vpop.f32.mrf.mxu0
      %v2661 = vadd.f32 0.0, %v2660
      %v2662 = vpop.f32.mrf.mxu0
      %v2663 = vadd.f32 0.0, %v2662
      %2664 = vmatmul.bf16.gmra.mxu0 %v2589
      %v2665 = vpop.f32.mrf.mxu0
      %v2666 = vadd.f32 0.0, %v2665
      %v2667 = vpop.f32.mrf.mxu0
      %v2668 = vadd.f32 0.0, %v2667
      %2669 = vmatmul.bf16.gmra.mxu0 %v2592
      %v2670 = vpop.f32.mrf.mxu0
      %v2671 = vadd.f32 0.0, %v2670
      %v2672 = vpop.f32.mrf.mxu0
      %v2673 = vadd.f32 0.0, %v2672
      %2674 = vmatmul.bf16.gmra.mxu0 %v2595
      %v2675 = vpop.f32.mrf.mxu0
      %v2676 = vadd.f32 0.0, %v2675
      %v2677 = vpop.f32.mrf.mxu0
      %v2678 = vadd.f32 0.0, %v2677
      %2679 = vmatmul.bf16.gmra.mxu0 %v2598
      %v2680 = vpop.f32.mrf.mxu0
      %v2681 = vadd.f32 0.0, %v2680
      %v2682 = vpop.f32.mrf.mxu0
      %v2683 = vadd.f32 0.0, %v2682
      %2684 = vmatmul.bf16.gmra.mxu0 %v2601
      %v2685 = vpop.f32.mrf.mxu0
      %v2686 = vadd.f32 0.0, %v2685
      %v2687 = vpop.f32.mrf.mxu0
      %v2688 = vadd.f32 0.0, %v2687
      %2689 = vmatmul.bf16.gmra.mxu0 %v2604
      %v2690 = vpop.f32.mrf.mxu0
      %v2691 = vadd.f32 0.0, %v2690
      %v2692 = vpop.f32.mrf.mxu0
      %v2693 = vadd.f32 0.0, %v2692
      %2694 = vmatmul.bf16.gmra.mxu0 %v2607
      %v2695 = vpop.f32.mrf.mxu0
      %v2696 = vadd.f32 0.0, %v2695
      %v2697 = vpop.f32.mrf.mxu0
      %v2698 = vadd.f32 0.0, %v2697
      %2699 = vmatmul.bf16.gmra.mxu0 %v2610
      %v2700 = vpop.f32.mrf.mxu0
      %v2701 = vadd.f32 0.0, %v2700
      %v2702 = vpop.f32.mrf.mxu0
      %v2703 = vadd.f32 0.0, %v2702
      %2704 = vmatmul.bf16.gmra.mxu0 %v2613
      %v2705 = vpop.f32.mrf.mxu0
      %v2706 = vadd.f32 0.0, %v2705
      %v2707 = vpop.f32.mrf.mxu0
      %v2708 = vadd.f32 0.0, %v2707
      %2709 = vmatmul.bf16.gmra.mxu0 %v2616
      %v2710 = vpop.f32.mrf.mxu0
      %v2711 = vadd.f32 0.0, %v2710
      %v2712 = vpop.f32.mrf.mxu0
      %v2713 = vadd.f32 0.0, %v2712
      %2714 = vmatmul.bf16.gmra.mxu0 %v2619
      %v2715 = vpop.f32.mrf.mxu0
      %v2716 = vadd.f32 0.0, %v2715
      %v2717 = vpop.f32.mrf.mxu0
      %v2718 = vadd.f32 0.0, %v2717
      %2719 = vdwg.mxu0
      %v2720 = vadd.f32 %v2348, %v2631
      %v2721 = vadd.f32 %v2349, %v2633
      %v2722 = vadd.f32 %v2350, %v2636
      %v2723 = vadd.f32 %v2351, %v2638
      %v2724 = vadd.f32 %v2352, %v2641
      %v2725 = vadd.f32 %v2353, %v2643
      %v2726 = vadd.f32 %v2354, %v2646
      %v2727 = vadd.f32 %v2355, %v2648
      %v2728 = vadd.f32 %v2356, %v2651
      %v2729 = vadd.f32 %v2357, %v2653
      %v2730 = vadd.f32 %v2358, %v2656
      %v2731 = vadd.f32 %v2359, %v2658
      %v2732 = vadd.f32 %v2360, %v2661
      %v2733 = vadd.f32 %v2361, %v2663
      %v2734 = vadd.f32 %v2362, %v2666
      %v2735 = vadd.f32 %v2363, %v2668
      %v2736 = vadd.f32 %v2364, %v2671
      %v2737 = vadd.f32 %v2365, %v2673
      %v2738 = vadd.f32 %v2366, %v2676
      %v2739 = vadd.f32 %v2367, %v2678
      %v2740 = vadd.f32 %v2368, %v2681
      %v2741 = vadd.f32 %v2369, %v2683
      %v2742 = vadd.f32 %v2370, %v2686
      %v2743 = vadd.f32 %v2371, %v2688
      %v2744 = vadd.f32 %v2372, %v2691
      %v2745 = vadd.f32 %v2373, %v2693
      %v2746 = vadd.f32 %v2374, %v2696
      %v2747 = vadd.f32 %v2375, %v2698
      %v2748 = vadd.f32 %v2376, %v2701
      %v2749 = vadd.f32 %v2377, %v2703
      %v2750 = vadd.f32 %v2378, %v2706
      %v2751 = vadd.f32 %v2379, %v2708
      %v2752 = vadd.f32 %v2380, %v2711
      %v2753 = vadd.f32 %v2381, %v2713
      %v2754 = vadd.f32 %v2382, %v2716
      %v2755 = vadd.f32 %v2383, %v2718
      %v2756 = vld [vmem:[%s208 + $0x10] sm:$0x8]
      %v2757 = vld [vmem:[%s1 + $0x40] sm:$0xf]
      %v2758 = vld [vmem:[%s1 + $0x44] sm:$0xf]
      %v2760 = vunpack.c.l.b16 %v2756
      %v2761 = vpack.c.b16 %v2097, %v2760
      %vm2762 = vcmask 1044480
      %v2763 = vrot.slane %v2761, 3
      %v2764 = vrot.slane %v2134, 3
      %v2765 = vsel %vm2762, %v2763, %v2764
      %v2766 = vrot.slane %v2135, 3
      %v2767 = vsel %vm2762, %v2764, %v2766
      %v2768 = vrot.slane %v2136, 3
      %v2769 = vsel %vm2762, %v2766, %v2768
      %v2770 = vrot.slane %v2137, 3
      %v2771 = vsel %vm2762, %v2768, %v2770
      %v2772 = vrot.slane %v2138, 3
      %v2773 = vsel %vm2762, %v2770, %v2772
      %v2774 = vrot.slane %v2139, 3
      %v2775 = vsel %vm2762, %v2772, %v2774
      %v2776 = vrot.slane %v2140, 3
      %v2777 = vsel %vm2762, %v2774, %v2776
      %v2778 = vrot.slane %v2141, 3
      %v2779 = vsel %vm2762, %v2776, %v2778
      %v2780 = vrot.slane %v2142, 3
      %v2781 = vsel %vm2762, %v2778, %v2780
      %v2782 = vrot.slane %v2143, 3
      %v2783 = vsel %vm2762, %v2780, %v2782
      %v2784 = vrot.slane %v2144, 3
      %v2785 = vsel %vm2762, %v2782, %v2784
      %v2786 = vrot.slane %v2145, 3
      %v2787 = vsel %vm2762, %v2784, %v2786
      %v2788 = vrot.slane %v2146, 3
      %v2789 = vsel %vm2762, %v2786, %v2788
      %v2790 = vrot.slane %v2147, 3
      %v2791 = vsel %vm2762, %v2788, %v2790
      %v2792 = vrot.slane %v2148, 3
      %v2793 = vsel %vm2762, %v2790, %v2792
      %v2794 = vrot.slane %v2149, 3
      %v2795 = vsel %vm2762, %v2792, %v2794
      %v2796 = vrot.slane %v2150, 3
      %v2797 = vsel %vm2762, %v2794, %v2796
      %v2798 = vrot.slane %v2389, 3
      %v2799 = vsel %vm2762, %v2796, %v2798
      %v2802 = vunpack.c.l.b16 %v2757
      %v2803 = vunpack.c.l.b16 %v2758
      %v2804 = vpack.c.b16 %v2803, %v2802
      %v2807 = vsel %vm511, %v2765, 0
      %v2810 = vsel %vm511, %v2767, 0
      %v2813 = vsel %vm511, %v2769, 0
      %v2816 = vsel %vm511, %v2771, 0
      %v2819 = vsel %vm511, %v2773, 0
      %v2822 = vsel %vm511, %v2775, 0
      %v2825 = vsel %vm511, %v2777, 0
      %v2828 = vsel %vm511, %v2779, 0
      %v2831 = vsel %vm511, %v2781, 0
      %v2834 = vsel %vm511, %v2783, 0
      %v2837 = vsel %vm511, %v2785, 0
      %v2840 = vsel %vm511, %v2787, 0
      %v2843 = vsel %vm511, %v2789, 0
      %v2846 = vsel %vm511, %v2791, 0
      %v2849 = vsel %vm511, %v2793, 0
      %v2852 = vsel %vm511, %v2795, 0
      %v2855 = vsel %vm511, %v2797, 0
      %v2858 = vsel %vm511, %v2799, 0
      %2860 = vmatpush.bf16.msra.mxu0 0
      %2861 = vmatpush.bf16.msra.mxu0 0
      %2862 = vmatpush.bf16.msra.mxu0 0
      %2863 = vmatpush.bf16.msra.mxu0 0
      %2864 = vmatpush.bf16.msra.mxu0 0
      %2865 = vmatpush.bf16.msra.mxu0 0
      %2866 = vmatpush.bf16.msra.mxu0 0
      %2867 = vmatpush.bf16.msra.mxu0 %v2804
      %2868 = vmatmul.bf16.gmra.mxu0 %v2807
      %v2869 = vpop.f32.mrf.mxu0
      %v2870 = vadd.f32 0.0, %v2869
      %v2871 = vpop.f32.mrf.mxu0
      %v2872 = vadd.f32 0.0, %v2871
      %2873 = vmatmul.bf16.gmra.mxu0 %v2810
      %v2874 = vpop.f32.mrf.mxu0
      %v2875 = vadd.f32 0.0, %v2874
      %v2876 = vpop.f32.mrf.mxu0
      %v2877 = vadd.f32 0.0, %v2876
      %2878 = vmatmul.bf16.gmra.mxu0 %v2813
      %v2879 = vpop.f32.mrf.mxu0
      %v2880 = vadd.f32 0.0, %v2879
      %v2881 = vpop.f32.mrf.mxu0
      %v2882 = vadd.f32 0.0, %v2881
      %2883 = vmatmul.bf16.gmra.mxu0 %v2816
      %v2884 = vpop.f32.mrf.mxu0
      %v2885 = vadd.f32 0.0, %v2884
      %v2886 = vpop.f32.mrf.mxu0
      %v2887 = vadd.f32 0.0, %v2886
      %2888 = vmatmul.bf16.gmra.mxu0 %v2819
      %v2889 = vpop.f32.mrf.mxu0
      %v2890 = vadd.f32 0.0, %v2889
      %v2891 = vpop.f32.mrf.mxu0
      %v2892 = vadd.f32 0.0, %v2891
      %2893 = vmatmul.bf16.gmra.mxu0 %v2822
      %v2894 = vpop.f32.mrf.mxu0
      %v2895 = vadd.f32 0.0, %v2894
      %v2896 = vpop.f32.mrf.mxu0
      %v2897 = vadd.f32 0.0, %v2896
      %2898 = vmatmul.bf16.gmra.mxu0 %v2825
      %v2899 = vpop.f32.mrf.mxu0
      %v2900 = vadd.f32 0.0, %v2899
      %v2901 = vpop.f32.mrf.mxu0
      %v2902 = vadd.f32 0.0, %v2901
      %2903 = vmatmul.bf16.gmra.mxu0 %v2828
      %v2904 = vpop.f32.mrf.mxu0
      %v2905 = vadd.f32 0.0, %v2904
      %v2906 = vpop.f32.mrf.mxu0
      %v2907 = vadd.f32 0.0, %v2906
      %2908 = vmatmul.bf16.gmra.mxu0 %v2831
      %v2909 = vpop.f32.mrf.mxu0
      %v2910 = vadd.f32 0.0, %v2909
      %v2911 = vpop.f32.mrf.mxu0
      %v2912 = vadd.f32 0.0, %v2911
      %2913 = vmatmul.bf16.gmra.mxu0 %v2834
      %v2914 = vpop.f32.mrf.mxu0
      %v2915 = vadd.f32 0.0, %v2914
      %v2916 = vpop.f32.mrf.mxu0
      %v2917 = vadd.f32 0.0, %v2916
      %2918 = vmatmul.bf16.gmra.mxu0 %v2837
      %v2919 = vpop.f32.mrf.mxu0
      %v2920 = vadd.f32 0.0, %v2919
      %v2921 = vpop.f32.mrf.mxu0
      %v2922 = vadd.f32 0.0, %v2921
      %2923 = vmatmul.bf16.gmra.mxu0 %v2840
      %v2924 = vpop.f32.mrf.mxu0
      %v2925 = vadd.f32 0.0, %v2924
      %v2926 = vpop.f32.mrf.mxu0
      %v2927 = vadd.f32 0.0, %v2926
      %2928 = vmatmul.bf16.gmra.mxu0 %v2843
      %v2929 = vpop.f32.mrf.mxu0
      %v2930 = vadd.f32 0.0, %v2929
      %v2931 = vpop.f32.mrf.mxu0
      %v2932 = vadd.f32 0.0, %v2931
      %2933 = vmatmul.bf16.gmra.mxu0 %v2846
      %v2934 = vpop.f32.mrf.mxu0
      %v2935 = vadd.f32 0.0, %v2934
      %v2936 = vpop.f32.mrf.mxu0
      %v2937 = vadd.f32 0.0, %v2936
      %2938 = vmatmul.bf16.gmra.mxu0 %v2849
      %v2939 = vpop.f32.mrf.mxu0
      %v2940 = vadd.f32 0.0, %v2939
      %v2941 = vpop.f32.mrf.mxu0
      %v2942 = vadd.f32 0.0, %v2941
      %2943 = vmatmul.bf16.gmra.mxu0 %v2852
      %v2944 = vpop.f32.mrf.mxu0
      %v2945 = vadd.f32 0.0, %v2944
      %v2946 = vpop.f32.mrf.mxu0
      %v2947 = vadd.f32 0.0, %v2946
      %2948 = vmatmul.bf16.gmra.mxu0 %v2855
      %v2949 = vpop.f32.mrf.mxu0
      %v2950 = vadd.f32 0.0, %v2949
      %v2951 = vpop.f32.mrf.mxu0
      %v2952 = vadd.f32 0.0, %v2951
      %2953 = vmatmul.bf16.gmra.mxu0 %v2858
      %v2954 = vpop.f32.mrf.mxu0
      %v2955 = vadd.f32 0.0, %v2954
      %v2956 = vpop.f32.mrf.mxu0
      %v2957 = vadd.f32 0.0, %v2956
      %2958 = vdwg.mxu0
      %v2959 = vadd.f32 %v2720, %v2870
      %v2960 = vadd.f32 %v2721, %v2872
      %v2961 = vadd.f32 %v2722, %v2875
      %v2962 = vadd.f32 %v2723, %v2877
      %v2963 = vadd.f32 %v2724, %v2880
      %v2964 = vadd.f32 %v2725, %v2882
      %v2965 = vadd.f32 %v2726, %v2885
      %v2966 = vadd.f32 %v2727, %v2887
      %v2967 = vadd.f32 %v2728, %v2890
      %v2968 = vadd.f32 %v2729, %v2892
      %v2969 = vadd.f32 %v2730, %v2895
      %v2970 = vadd.f32 %v2731, %v2897
      %v2971 = vadd.f32 %v2732, %v2900
      %v2972 = vadd.f32 %v2733, %v2902
      %v2973 = vadd.f32 %v2734, %v2905
      %v2974 = vadd.f32 %v2735, %v2907
      %v2975 = vadd.f32 %v2736, %v2910
      %v2976 = vadd.f32 %v2737, %v2912
      %v2977 = vadd.f32 %v2738, %v2915
      %v2978 = vadd.f32 %v2739, %v2917
      %v2979 = vadd.f32 %v2740, %v2920
      %v2980 = vadd.f32 %v2741, %v2922
      %v2981 = vadd.f32 %v2742, %v2925
      %v2982 = vadd.f32 %v2743, %v2927
      %v2983 = vadd.f32 %v2744, %v2930
      %v2984 = vadd.f32 %v2745, %v2932
      %v2985 = vadd.f32 %v2746, %v2935
      %v2986 = vadd.f32 %v2747, %v2937
      %v2987 = vadd.f32 %v2748, %v2940
      %v2988 = vadd.f32 %v2749, %v2942
      %v2989 = vadd.f32 %v2750, %v2945
      %v2990 = vadd.f32 %v2751, %v2947
      %v2991 = vadd.f32 %v2752, %v2950
      %v2992 = vadd.f32 %v2753, %v2952
      %v2993 = vadd.f32 %v2754, %v2955
      %v2994 = vadd.f32 %v2755, %v2957
      %v2995 = vld [vmem:[%s2] sm:$0x1]
      %v2997 = vperm.slane %v2995, 0
      %v2999 = vadd.f32 %v2959, %v2997
      %v3000 = vadd.f32 %v2960, %v2997
      %v3001 = vadd.f32 %v2961, %v2997
      %v3002 = vadd.f32 %v2962, %v2997
      %v3003 = vadd.f32 %v2963, %v2997
      %v3004 = vadd.f32 %v2964, %v2997
      %v3005 = vadd.f32 %v2965, %v2997
      %v3006 = vadd.f32 %v2966, %v2997
      %v3007 = vadd.f32 %v2967, %v2997
      %v3008 = vadd.f32 %v2968, %v2997
      %v3009 = vadd.f32 %v2969, %v2997
      %v3010 = vadd.f32 %v2970, %v2997
      %v3011 = vadd.f32 %v2971, %v2997
      %v3012 = vadd.f32 %v2972, %v2997
      %v3013 = vadd.f32 %v2973, %v2997
      %v3014 = vadd.f32 %v2974, %v2997
      %v3015 = vadd.f32 %v2975, %v2997
      %v3016 = vadd.f32 %v2976, %v2997
      %v3017 = vadd.f32 %v2977, %v2997
      %v3018 = vadd.f32 %v2978, %v2997
      %v3019 = vadd.f32 %v2979, %v2997
      %v3020 = vadd.f32 %v2980, %v2997
      %v3021 = vadd.f32 %v2981, %v2997
      %v3022 = vadd.f32 %v2982, %v2997
      %v3023 = vadd.f32 %v2983, %v2997
      %v3024 = vadd.f32 %v2984, %v2997
      %v3025 = vadd.f32 %v2985, %v2997
      %v3026 = vadd.f32 %v2986, %v2997
      %v3027 = vadd.f32 %v2987, %v2997
      %v3028 = vadd.f32 %v2988, %v2997
      %v3029 = vadd.f32 %v2989, %v2997
      %v3030 = vadd.f32 %v2990, %v2997
      %v3031 = vadd.f32 %v2991, %v2997
      %v3032 = vadd.f32 %v2992, %v2997
      %v3033 = vadd.f32 %v2993, %v2997
      %v3034 = vadd.f32 %v2994, %v2997
      %v3035 = vld [vmem:[%s213] sm:$0xf]
      %v3036 = vld [vmem:[%s213 + $0x4] sm:$0xf]
      %v3037 = vld [vmem:[%s213 + $0x8] sm:$0xf]
      %v3038 = vld [vmem:[%s213 + $0xc] sm:$0xf]
      %v3039 = vld [vmem:[%s213 + $0x10] sm:$0xf]
      %v3040 = vld [vmem:[%s213 + $0x14] sm:$0xf]
      %v3041 = vld [vmem:[%s213 + $0x18] sm:$0xf]
      %v3042 = vld [vmem:[%s213 + $0x1c] sm:$0xf]
      %v3043 = vld [vmem:[%s213 + $0x20] sm:$0xf]
      %v3044 = vld [vmem:[%s213 + $0x24] sm:$0xf]
      %v3045 = vld [vmem:[%s213 + $0x28] sm:$0xf]
      %v3046 = vld [vmem:[%s213 + $0x2c] sm:$0xf]
      %v3047 = vld [vmem:[%s213 + $0x30] sm:$0xf]
      %v3048 = vld [vmem:[%s213 + $0x34] sm:$0xf]
      %v3049 = vld [vmem:[%s213 + $0x38] sm:$0xf]
      %v3050 = vld [vmem:[%s213 + $0x3c] sm:$0xf]
      %v3051 = vld [vmem:[%s213 + $0x40] sm:$0xf]
      %v3052 = vld [vmem:[%s213 + $0x44] sm:$0xf]
      %v3053 = vld [vmem:[%s213 + $0x48] sm:$0xf]
      %v3054 = vld [vmem:[%s213 + $0x4c] sm:$0xf]
      %v3055 = vld [vmem:[%s213 + $0x50] sm:$0xf]
      %v3056 = vld [vmem:[%s213 + $0x54] sm:$0xf]
      %v3057 = vld [vmem:[%s213 + $0x58] sm:$0xf]
      %v3058 = vld [vmem:[%s213 + $0x5c] sm:$0xf]
      %v3059 = vld [vmem:[%s213 + $0x60] sm:$0xf]
      %v3060 = vld [vmem:[%s213 + $0x64] sm:$0xf]
      %v3061 = vld [vmem:[%s213 + $0x68] sm:$0xf]
      %v3062 = vld [vmem:[%s213 + $0x6c] sm:$0xf]
      %v3063 = vld [vmem:[%s213 + $0x70] sm:$0xf]
      %v3064 = vld [vmem:[%s213 + $0x74] sm:$0xf]
      %v3065 = vld [vmem:[%s213 + $0x78] sm:$0xf]
      %v3066 = vld [vmem:[%s213 + $0x7c] sm:$0xf]
      %v3067 = vld [vmem:[%s213 + $0x80] sm:$0xf]
      %v3068 = vld [vmem:[%s213 + $0x84] sm:$0xf]
      %v3069 = vld [vmem:[%s213 + $0x88] sm:$0xf]
      %v3070 = vld [vmem:[%s213 + $0x8c] sm:$0xf]
      %v3071 = vunpack.c.l.bf16 %v3035
      %v3072 = vunpack.c.l.bf16 %v3036
      %v3073 = vunpack.c.l.bf16 %v3037
      %v3074 = vunpack.c.l.bf16 %v3038
      %v3075 = vunpack.c.l.bf16 %v3039
      %v3076 = vunpack.c.l.bf16 %v3040
      %v3077 = vunpack.c.l.bf16 %v3041
      %v3078 = vunpack.c.l.bf16 %v3042
      %v3079 = vunpack.c.l.bf16 %v3043
      %v3080 = vunpack.c.l.bf16 %v3044
      %v3081 = vunpack.c.l.bf16 %v3045
      %v3082 = vunpack.c.l.bf16 %v3046
      %v3083 = vunpack.c.l.bf16 %v3047
      %v3084 = vunpack.c.l.bf16 %v3048
      %v3085 = vunpack.c.l.bf16 %v3049
      %v3086 = vunpack.c.l.bf16 %v3050
      %v3087 = vunpack.c.l.bf16 %v3051
      %v3088 = vunpack.c.l.bf16 %v3052
      %v3089 = vunpack.c.l.bf16 %v3053
      %v3090 = vunpack.c.l.bf16 %v3054
      %v3091 = vunpack.c.l.bf16 %v3055
      %v3092 = vunpack.c.l.bf16 %v3056
      %v3093 = vunpack.c.l.bf16 %v3057
      %v3094 = vunpack.c.l.bf16 %v3058
      %v3095 = vunpack.c.l.bf16 %v3059
      %v3096 = vunpack.c.l.bf16 %v3060
      %v3097 = vunpack.c.l.bf16 %v3061
      %v3098 = vunpack.c.l.bf16 %v3062
      %v3099 = vunpack.c.l.bf16 %v3063
      %v3100 = vunpack.c.l.bf16 %v3064
      %v3101 = vunpack.c.l.bf16 %v3065
      %v3102 = vunpack.c.l.bf16 %v3066
      %v3103 = vunpack.c.l.bf16 %v3067
      %v3104 = vunpack.c.l.bf16 %v3068
      %v3105 = vunpack.c.l.bf16 %v3069
      %v3106 = vunpack.c.l.bf16 %v3070
      %v3107 = vadd.f32 %v2999, %v3071
      %v3108 = vadd.f32 %v3000, %v3072
      %v3109 = vadd.f32 %v3001, %v3073
      %v3110 = vadd.f32 %v3002, %v3074
      %v3111 = vadd.f32 %v3003, %v3075
      %v3112 = vadd.f32 %v3004, %v3076
      %v3113 = vadd.f32 %v3005, %v3077
      %v3114 = vadd.f32 %v3006, %v3078
      %v3115 = vadd.f32 %v3007, %v3079
      %v3116 = vadd.f32 %v3008, %v3080
      %v3117 = vadd.f32 %v3009, %v3081
      %v3118 = vadd.f32 %v3010, %v3082
      %v3119 = vadd.f32 %v3011, %v3083
      %v3120 = vadd.f32 %v3012, %v3084
      %v3121 = vadd.f32 %v3013, %v3085
      %v3122 = vadd.f32 %v3014, %v3086
      %v3123 = vadd.f32 %v3015, %v3087
      %v3124 = vadd.f32 %v3016, %v3088
      %v3125 = vadd.f32 %v3017, %v3089
      %v3126 = vadd.f32 %v3018, %v3090
      %v3127 = vadd.f32 %v3019, %v3091
      %v3128 = vadd.f32 %v3020, %v3092
      %v3129 = vadd.f32 %v3021, %v3093
      %v3130 = vadd.f32 %v3022, %v3094
      %v3131 = vadd.f32 %v3023, %v3095
      %v3132 = vadd.f32 %v3024, %v3096
      %v3133 = vadd.f32 %v3025, %v3097
      %v3134 = vadd.f32 %v3026, %v3098
      %v3135 = vadd.f32 %v3027, %v3099
      %v3136 = vadd.f32 %v3028, %v3100
      %v3137 = vadd.f32 %v3029, %v3101
      %v3138 = vadd.f32 %v3030, %v3102
      %v3139 = vadd.f32 %v3031, %v3103
      %v3140 = vadd.f32 %v3032, %v3104
      %v3141 = vadd.f32 %v3033, %v3105
      %v3142 = vadd.f32 %v3034, %v3106
      %v3143 = vmax.f32 %v3107, 0.0
      %v3144 = vmax.f32 %v3108, 0.0
      %v3145 = vmax.f32 %v3109, 0.0
      %v3146 = vmax.f32 %v3110, 0.0
      %v3147 = vmax.f32 %v3111, 0.0
      %v3148 = vmax.f32 %v3112, 0.0
      %v3149 = vmax.f32 %v3113, 0.0
      %v3150 = vmax.f32 %v3114, 0.0
      %v3151 = vmax.f32 %v3115, 0.0
      %v3152 = vmax.f32 %v3116, 0.0
      %v3153 = vmax.f32 %v3117, 0.0
      %v3154 = vmax.f32 %v3118, 0.0
      %v3155 = vmax.f32 %v3119, 0.0
      %v3156 = vmax.f32 %v3120, 0.0
      %v3157 = vmax.f32 %v3121, 0.0
      %v3158 = vmax.f32 %v3122, 0.0
      %v3159 = vmax.f32 %v3123, 0.0
      %v3160 = vmax.f32 %v3124, 0.0
      %v3161 = vmax.f32 %v3125, 0.0
      %v3162 = vmax.f32 %v3126, 0.0
      %v3163 = vmax.f32 %v3127, 0.0
      %v3164 = vmax.f32 %v3128, 0.0
      %v3165 = vmax.f32 %v3129, 0.0
      %v3166 = vmax.f32 %v3130, 0.0
      %v3167 = vmax.f32 %v3131, 0.0
      %v3168 = vmax.f32 %v3132, 0.0
      %v3169 = vmax.f32 %v3133, 0.0
      %v3170 = vmax.f32 %v3134, 0.0
      %v3171 = vmax.f32 %v3135, 0.0
      %v3172 = vmax.f32 %v3136, 0.0
      %v3173 = vmax.f32 %v3137, 0.0
      %v3174 = vmax.f32 %v3138, 0.0
      %v3175 = vmax.f32 %v3139, 0.0
      %v3176 = vmax.f32 %v3140, 0.0
      %v3177 = vmax.f32 %v3141, 0.0
      %v3178 = vmax.f32 %v3142, 0.0
      %v3179 = vpack.c.bf16 %v3143, %v3143
      %v3180 = vpack.c.bf16 %v3144, %v3144
      %v3181 = vpack.c.bf16 %v3145, %v3145
      %v3182 = vpack.c.bf16 %v3146, %v3146
      %v3183 = vpack.c.bf16 %v3147, %v3147
      %v3184 = vpack.c.bf16 %v3148, %v3148
      %v3185 = vpack.c.bf16 %v3149, %v3149
      %v3186 = vpack.c.bf16 %v3150, %v3150
      %v3187 = vpack.c.bf16 %v3151, %v3151
      %v3188 = vpack.c.bf16 %v3152, %v3152
      %v3189 = vpack.c.bf16 %v3153, %v3153
      %v3190 = vpack.c.bf16 %v3154, %v3154
      %v3191 = vpack.c.bf16 %v3155, %v3155
      %v3192 = vpack.c.bf16 %v3156, %v3156
      %v3193 = vpack.c.bf16 %v3157, %v3157
      %v3194 = vpack.c.bf16 %v3158, %v3158
      %v3195 = vpack.c.bf16 %v3159, %v3159
      %v3196 = vpack.c.bf16 %v3160, %v3160
      %v3197 = vpack.c.bf16 %v3161, %v3161
      %v3198 = vpack.c.bf16 %v3162, %v3162
      %v3199 = vpack.c.bf16 %v3163, %v3163
      %v3200 = vpack.c.bf16 %v3164, %v3164
      %v3201 = vpack.c.bf16 %v3165, %v3165
      %v3202 = vpack.c.bf16 %v3166, %v3166
      %v3203 = vpack.c.bf16 %v3167, %v3167
      %v3204 = vpack.c.bf16 %v3168, %v3168
      %v3205 = vpack.c.bf16 %v3169, %v3169
      %v3206 = vpack.c.bf16 %v3170, %v3170
      %v3207 = vpack.c.bf16 %v3171, %v3171
      %v3208 = vpack.c.bf16 %v3172, %v3172
      %v3209 = vpack.c.bf16 %v3173, %v3173
      %v3210 = vpack.c.bf16 %v3174, %v3174
      %v3211 = vpack.c.bf16 %v3175, %v3175
      %v3212 = vpack.c.bf16 %v3176, %v3176
      %v3213 = vpack.c.bf16 %v3177, %v3177
      %v3214 = vpack.c.bf16 %v3178, %v3178
      %vm3215 = vcmask 125952
      %3216 = vst.msk [vmem:[%s219] sm:$0xf] %vm3215, %v3179
      %3217 = vst.msk [vmem:[%s219 + $0x4] sm:$0xf] %vm3215, %v3180
      %3218 = vst.msk [vmem:[%s219 + $0x8] sm:$0xf] %vm3215, %v3181
      %3219 = vst.msk [vmem:[%s219 + $0xc] sm:$0xf] %vm3215, %v3182
      %3220 = vst.msk [vmem:[%s219 + $0x10] sm:$0xf] %vm3215, %v3183
      %3221 = vst.msk [vmem:[%s219 + $0x14] sm:$0xf] %vm3215, %v3184
      %3222 = vst.msk [vmem:[%s219 + $0x18] sm:$0xf] %vm3215, %v3185
      %3223 = vst.msk [vmem:[%s219 + $0x1c] sm:$0xf] %vm3215, %v3186
      %3224 = vst.msk [vmem:[%s219 + $0x20] sm:$0xf] %vm3215, %v3187
      %3225 = vst.msk [vmem:[%s219 + $0x24] sm:$0xf] %vm3215, %v3188
      %3226 = vst.msk [vmem:[%s219 + $0x28] sm:$0xf] %vm3215, %v3189
      %3227 = vst.msk [vmem:[%s219 + $0x2c] sm:$0xf] %vm3215, %v3190
      %3228 = vst.msk [vmem:[%s219 + $0x30] sm:$0xf] %vm3215, %v3191
      %3229 = vst.msk [vmem:[%s219 + $0x34] sm:$0xf] %vm3215, %v3192
      %3230 = vst.msk [vmem:[%s219 + $0x38] sm:$0xf] %vm3215, %v3193
      %3231 = vst.msk [vmem:[%s219 + $0x3c] sm:$0xf] %vm3215, %v3194
      %3232 = vst.msk [vmem:[%s219 + $0x40] sm:$0xf] %vm3215, %v3195
      %3233 = vst.msk [vmem:[%s219 + $0x44] sm:$0xf] %vm3215, %v3196
      %3234 = vst.msk [vmem:[%s219 + $0x48] sm:$0xf] %vm3215, %v3197
      %3235 = vst.msk [vmem:[%s219 + $0x4c] sm:$0xf] %vm3215, %v3198
      %3236 = vst.msk [vmem:[%s219 + $0x50] sm:$0xf] %vm3215, %v3199
      %3237 = vst.msk [vmem:[%s219 + $0x54] sm:$0xf] %vm3215, %v3200
      %3238 = vst.msk [vmem:[%s219 + $0x58] sm:$0xf] %vm3215, %v3201
      %3239 = vst.msk [vmem:[%s219 + $0x5c] sm:$0xf] %vm3215, %v3202
      %3240 = vst.msk [vmem:[%s219 + $0x60] sm:$0xf] %vm3215, %v3203
      %3241 = vst.msk [vmem:[%s219 + $0x64] sm:$0xf] %vm3215, %v3204
      %3242 = vst.msk [vmem:[%s219 + $0x68] sm:$0xf] %vm3215, %v3205
      %3243 = vst.msk [vmem:[%s219 + $0x6c] sm:$0xf] %vm3215, %v3206
      %3244 = vst.msk [vmem:[%s219 + $0x70] sm:$0xf] %vm3215, %v3207
      %3245 = vst.msk [vmem:[%s219 + $0x74] sm:$0xf] %vm3215, %v3208
      %3246 = vst.msk [vmem:[%s219 + $0x78] sm:$0xf] %vm3215, %v3209
      %3247 = vst.msk [vmem:[%s219 + $0x7c] sm:$0xf] %vm3215, %v3210
      %3248 = vst.msk [vmem:[%s219 + $0x80] sm:$0xf] %vm3215, %v3211
      %3249 = vst.msk [vmem:[%s219 + $0x84] sm:$0xf] %vm3215, %v3212
      %3250 = vst.msk [vmem:[%s219 + $0x88] sm:$0xf] %vm3215, %v3213
      %3251 = vst.msk [vmem:[%s219 + $0x8c] sm:$0xf] %vm3215, %v3214
      %s3252 = smul.u32 36, %s15
      %p3253 = scmp.lt.s32.totalorder %s3252, 71
      %s3254 = scalar_select %p3253, %s3252, 71
      %s3255 = smul.addr %s3254, 4
      %s3256 = scalar_lea.vmem %s4, %s3255
      // Predicated region
      $region37: #{_lambda_.10} parent=35 // pred_check
        %p3257 = pneg %p127
      $region38: #{_lambda_.10} parent=35 // pred_check_branch
        %3259 = sbr.rel (%p3257) target = $region40
      $region39: #{_lambda_.10} parent=35 // pred_region
        %s3260 = smul.u32 36, %s15
      $region40: #{_lambda_.10} parent=35 // pred_fallthru
        _
    $region36: #{_lambda_.10} parent=5 // pred_fallthru
      _
    %p3261 = scmp.le.s32.totalorder 2, %s10
    // Predicated region
    $region41: #{_lambda_.10} parent=5 // pred_check
      %p3262 = pneg %p3261
    $region42: #{_lambda_.10} parent=5 // pred_check_branch
      %3264 = sbr.rel (%p3262) target = $region44
    $region43: #{_lambda_.10} parent=5 // pred_region
      %s3265 = ssub.s32 %s10, 2
      // Predicated region
      $region45: #{_lambda_.10} parent=43 // pred_check
        %p3266 = pneg %p133
      $region46: #{_lambda_.10} parent=43 // pred_check_branch
        %3268 = sbr.rel (%p3266) target = $region48
      $region47: #{_lambda_.10} parent=43 // pred_region
        %s3269 = smul.u32 36, %s16
        %p3270 = scmp.lt.s32.totalorder %s3269, 71
        %s3271 = scalar_select %p3270, %s3269, 71
        %s3272 = smul.addr %s3271, 4
        %s3273 = scalar_lea.vmem %s4, %s3272
      $region48: #{_lambda_.10} parent=43 // pred_fallthru
        _
    $region44: #{_lambda_.10} parent=5 // pred_fallthru
      _
  $region6: #{_lambda_.10} parent=0 // loop_footer
    %s14 = sadd.s32 1, %s10
  $region7: #{_lambda_.10} parent=0 // loop_footer_branch
    %9 = sbr.rel target = $region3
  $region8: #{_lambda_.10} parent=0 // loop_exit
    _

// kernel: _lambda_.11
$region0: #{_lambda_.11}
  #allocation0 [shape = 'u32[]', space=smem, size = 0x4, offset = 0x4, fixed_abs, tag = 'smem constant byte address 0x4 - core index']
  #allocation1 [shape = 'u32[72,128]{1,0:T(1,128)}', space=vmem, size = 0x9000, scoped, tag = 'internal scratch']
  %s0 = inlined_call_operand.vmem [shape: bf16[2,360,16], index: 0, kind: input, shape index: {}]
  %s1 = inlined_call_operand.vmem [shape: bf16[144,32], index: 1, kind: input, shape index: {}]
  %s2 = inlined_call_operand.vmem [shape: f32[1,32], index: 2, kind: input, shape index: {}]
  %s3 = inlined_call_operand.vmem [shape: bf16[144,32], index: 3, kind: output, shape index: {}]
  %s4 = sld [smem:[#allocation0]]
  $region45: #{_lambda_.11} parent=0
    _
  %s6 = ssub.s32 1, %s4
  %s7 = scalar_select 0, %s6, %s4
  loop: start=0, step=1, limit=4
  $region2: #{_lambda_.11} parent=0 // loop_pre_header
    _
  $region3: #{_lambda_.11} parent=0 // loop_header
    %s9 = sphi 0, %s13
    %p10 = scmp.ge.s32.totalorder %s9, 4
    %s19 = sphi 0, %s21
    %s22 = sphi 0, %s19
    %s23 = sphi 0, %s22
    %s39 = sphi 0, %s23
    %s43 = sphi 0, %s43
    %s45 = sphi 0, %s43
    %s46 = sphi 0, %s45
    %s60 = sphi 0, %s46
    %s64 = sphi 0, %s64
    %s66 = sphi 0, %s64
    %s67 = sphi 0, %s66
    %s81 = sphi 0, %s67
    %s87 = sphi 0, %s89
    %s90 = sphi 0, %s87
    %s91 = sphi 0, %s90
    %s107 = sphi 0, %s91
  $region4: #{_lambda_.11} parent=0 // loop_header_branch
    %12 = sbr.rel (%p10) target = $region8
  $region5: #{_lambda_.11} parent=0 // loop_body
    %s14 = ssub.s32 %s9, 1
    %s15 = ssub.s32 %s9, 2
    %s16 = sadd.s32 %s9, 1
    %s17 = ssub.s32 %s9, %s16
    %p18 = scmp.eq.s32.totalorder %s17, 0
    %s20 = sadd.s32 %s19, 1
    %s21 = scalar_select %p18, %s19, %s20
    %p24 = pneg %p18
    %p25 = scmp.eq.s32.totalorder %s9, 1
    %p26 = por %p24, %p25
    %p27 = scmp.ne.s32.totalorder %s19, %s22
    %p28 = scmp.eq.s32.totalorder %s9, 0
    %p29 = por %p27, %p28
    %p30 = scmp.ne.s32.totalorder %s19, %s22
    %p31 = scmp.eq.s32.totalorder %s14, 1
    %p32 = por %p30, %p31
    %p33 = scmp.ne.s32.totalorder %s22, %s23
    %p34 = scmp.eq.s32.totalorder %s14, 0
    %p35 = por %p33, %p34
    %p36 = scmp.ne.s32.totalorder %s22, %s23
    %p37 = scmp.eq.s32.totalorder %s15, 1
    %p38 = por %p36, %p37
    %p40 = scmp.ne.s32.totalorder %s23, %s39
    %p41 = scmp.eq.s32.totalorder %s15, 0
    %p42 = por %p40, %p41
    %s44 = sadd.s32 %s43, 1
    %p47 = scmp.eq.s32.totalorder %s9, 1
    %p48 = scmp.ne.s32.totalorder %s43, %s45
    %p49 = scmp.eq.s32.totalorder %s9, 0
    %p50 = por %p48, %p49
    %p51 = scmp.ne.s32.totalorder %s43, %s45
    %p52 = scmp.eq.s32.totalorder %s14, 1
    %p53 = por %p51, %p52
    %p54 = scmp.ne.s32.totalorder %s45, %s46
    %p55 = scmp.eq.s32.totalorder %s14, 0
    %p56 = por %p54, %p55
    %p57 = scmp.ne.s32.totalorder %s45, %s46
    %p58 = scmp.eq.s32.totalorder %s15, 1
    %p59 = por %p57, %p58
    %p61 = scmp.ne.s32.totalorder %s46, %s60
    %p62 = scmp.eq.s32.totalorder %s15, 0
    %p63 = por %p61, %p62
    %s65 = sadd.s32 %s64, 1
    %p68 = scmp.eq.s32.totalorder %s9, 1
    %p69 = scmp.ne.s32.totalorder %s64, %s66
    %p70 = scmp.eq.s32.totalorder %s9, 0
    %p71 = por %p69, %p70
    %p72 = scmp.ne.s32.totalorder %s64, %s66
    %p73 = scmp.eq.s32.totalorder %s14, 1
    %p74 = por %p72, %p73
    %p75 = scmp.ne.s32.totalorder %s66, %s67
    %p76 = scmp.eq.s32.totalorder %s14, 0
    %p77 = por %p75, %p76
    %p78 = scmp.ne.s32.totalorder %s66, %s67
    %p79 = scmp.eq.s32.totalorder %s15, 1
    %p80 = por %p78, %p79
    %p82 = scmp.ne.s32.totalorder %s67, %s81
    %p83 = scmp.eq.s32.totalorder %s15, 0
    %p84 = por %p82, %p83
    %s85 = ssub.s32 %s9, %s16
    %p86 = scmp.eq.s32.totalorder %s85, 0
    %s88 = sadd.s32 %s87, 1
    %s89 = scalar_select %p86, %s87, %s88
    %p92 = pneg %p86
    %p93 = scmp.eq.s32.totalorder %s9, 1
    %p94 = por %p92, %p93
    %p95 = scmp.ne.s32.totalorder %s87, %s90
    %p96 = scmp.eq.s32.totalorder %s9, 0
    %p97 = por %p95, %p96
    %p98 = scmp.ne.s32.totalorder %s87, %s90
    %p99 = scmp.eq.s32.totalorder %s14, 1
    %p100 = por %p98, %p99
    %p101 = scmp.ne.s32.totalorder %s90, %s91
    %p102 = scmp.eq.s32.totalorder %s14, 0
    %p103 = por %p101, %p102
    %p104 = scmp.ne.s32.totalorder %s90, %s91
    %p105 = scmp.eq.s32.totalorder %s15, 1
    %p106 = por %p104, %p105
    %p108 = scmp.ne.s32.totalorder %s91, %s107
    %p109 = scmp.eq.s32.totalorder %s15, 0
    %p110 = por %p108, %p109
    %p111 = scmp.le.s32.totalorder 1, %s9
    %p112 = scmp.lt.s32.totalorder %s9, 3
    %p113 = pnand %p111, %p112
    %p114 = pneg %p113
    // Predicated region
    $region9: #{_lambda_.11} parent=5 // pred_check
      _
    $region10: #{_lambda_.11} parent=5 // pred_check_branch
      %116 = sbr.rel (%p113) target = $region12
    $region11: #{_lambda_.11} parent=5 // pred_region
      %s117 = ssub.s32 %s9, 1
      // Predicated region
      $region13: #{_lambda_.11} parent=11 // pred_check
        %p118 = pneg %p56
      $region14: #{_lambda_.11} parent=11 // pred_check_branch
        %120 = sbr.rel (%p118) target = $region16
      $region15: #{_lambda_.11} parent=11 // pred_region
        _
      $region16: #{_lambda_.11} parent=11 // pred_fallthru
        _
      // Predicated region
      $region17: #{_lambda_.11} parent=11 // pred_check
        %p121 = pneg %p77
      $region18: #{_lambda_.11} parent=11 // pred_check_branch
        %123 = sbr.rel (%p121) target = $region20
      $region19: #{_lambda_.11} parent=11 // pred_region
        _
      $region20: #{_lambda_.11} parent=11 // pred_fallthru
        _
    $region12: #{_lambda_.11} parent=5 // pred_fallthru
      _
    %p124 = scmp.lt.s32.totalorder %s9, 2
    // Predicated region
    $region21: #{_lambda_.11} parent=5 // pred_check
      %p125 = pneg %p124
    $region22: #{_lambda_.11} parent=5 // pred_check_branch
      %127 = sbr.rel (%p125) target = $region24
    $region23: #{_lambda_.11} parent=5 // pred_region
      // Predicated region
      $region25: #{_lambda_.11} parent=23 // pred_check
        %p128 = pneg %p29
      $region26: #{_lambda_.11} parent=23 // pred_check_branch
        %130 = sbr.rel (%p128) target = $region28
      $region27: #{_lambda_.11} parent=23 // pred_region
        %p131 = scmp.lt.s32.totalorder %s9, 1
        %s132 = scalar_select %p131, %s9, 1
        %s133 = smul.addr %s132, 45
        %s134 = smul.addr %s133, 4
        %s135 = scalar_lea.vmem %s0, %s134
      $region28: #{_lambda_.11} parent=23 // pred_fallthru
        _
    $region24: #{_lambda_.11} parent=5 // pred_fallthru
      _
    %p136 = scmp.le.s32.totalorder 1, %s9
    %p137 = scmp.lt.s32.totalorder %s9, 3
    %p138 = pnand %p136, %p137
    %p139 = pneg %p138
    // Predicated region
    $region29: #{_lambda_.11} parent=5 // pred_check
      _
    $region30: #{_lambda_.11} parent=5 // pred_check_branch
      %141 = sbr.rel (%p138) target = $region32
    $region31: #{_lambda_.11} parent=5 // pred_region
      %s142 = ssub.s32 %s9, 1
      %p143 = scmp.lt.s32.totalorder %s14, 1
      %s144 = scalar_select %p143, %s14, 1
      %s145 = smul.addr %s144, 45
      %s146 = smul.addr %s145, 4
      %s147 = scalar_lea.vmem %s0, %s146
      %p148 = pneg %p35
      %p149 = pneg %p32
      %p150 = pneg %p56
      %p151 = pneg %p53
      %p152 = pneg %p77
      %p153 = pneg %p74
      %p154 = pneg %p103
      %p155 = pneg %p100
      %s156 = smul.u32 9, %s14
      %p157 = scmp.lt.s32.totalorder %s156, 17
      %s158 = scalar_select %p157, %s156, 17
      %s159 = smul.addr %s158, 4
      %s160 = scalar_lea.vmem %s3, %s159
      %p161 = scmp.lt.s32.totalorder %s14, 1
      %s162 = scalar_select %p161, %s14, 1
      %s163 = smul.addr %s162, 45
      %s164 = smul.addr %s163, 4
      %s165 = scalar_lea.vmem %s0, %s164
      %s166 = smul.u32 9, %s14
      %p167 = scmp.lt.s32.totalorder %s166, 17
      %s168 = scalar_select %p167, %s166, 17
      %s169 = smul.addr %s168, 4
      %s170 = scalar_lea.vmem %s3, %s169
      %s171 = smul.u32 9, %s14
      %v173 = vld [vmem:[%s165] sm:$0xf]
      %v174 = vld [vmem:[%s165 + $0x4] sm:$0xf]
      %v175 = vld [vmem:[%s165 + $0x8] sm:$0xf]
      %v176 = vld [vmem:[%s165 + $0xc] sm:$0xf]
      %v177 = vld [vmem:[%s165 + $0x10] sm:$0xf]
      %v178 = vld [vmem:[%s165 + $0x14] sm:$0xf]
      %v179 = vld [vmem:[%s165 + $0x18] sm:$0xf]
      %v180 = vld [vmem:[%s165 + $0x1c] sm:$0xf]
      %v181 = vld [vmem:[%s165 + $0x20] sm:$0xf]
      %v182 = vld [vmem:[%s1] sm:$0xf]
      %v183 = vld [vmem:[%s1 + $0x4] sm:$0xf]
      %v184 = vld [vmem:[%s165 + $0x2c] sm:$0xe]
      %v185 = vld [vmem:[%s165 + $0x30] sm:$0xf]
      %v186 = vld [vmem:[%s165 + $0x34] sm:$0xf]
      %v187 = vld [vmem:[%s165 + $0x38] sm:$0xf]
      %v188 = vld [vmem:[%s165 + $0x3c] sm:$0xf]
      %v189 = vld [vmem:[%s165 + $0x40] sm:$0xf]
      %v190 = vld [vmem:[%s165 + $0x44] sm:$0xf]
      %v191 = vld [vmem:[%s165 + $0x48] sm:$0xf]
      %v192 = vld [vmem:[%s165 + $0x4c] sm:$0xf]
      %v193 = vld [vmem:[%s165 + $0x50] sm:$0x1]
      %v194 = vld [vmem:[%s1 + $0x8] sm:$0xf]
      %v195 = vld [vmem:[%s1 + $0xc] sm:$0xf]
      %v206 = vunpack.c.l.b16 %v184
      %v207 = vunpack.c.l.b16 %v185
      %v208 = vunpack.c.l.b16 %v186
      %v209 = vunpack.c.l.b16 %v187
      %v210 = vunpack.c.l.b16 %v188
      %v211 = vunpack.c.l.b16 %v189
      %v212 = vunpack.c.l.b16 %v190
      %v213 = vunpack.c.l.b16 %v191
      %v214 = vunpack.c.l.b16 %v192
      %v215 = vunpack.c.l.b16 %v193
      %v216 = vpack.c.b16 %v207, %v206
      %v217 = vpack.c.b16 %v209, %v208
      %v218 = vpack.c.b16 %v211, %v210
      %v219 = vpack.c.b16 %v213, %v212
      %v220 = vpack.c.b16 %v215, %v214
      %vm221 = vcmask 1046528
      %v222 = vrot.slane %v216, 1
      %v223 = vrot.slane %v217, 1
      %v224 = vsel %vm221, %v222, %v223
      %v225 = vrot.slane %v218, 1
      %v226 = vsel %vm221, %v223, %v225
      %v227 = vrot.slane %v219, 1
      %v228 = vsel %vm221, %v225, %v227
      %v229 = vrot.slane %v220, 1
      %v230 = vsel %vm221, %v227, %v229
      %v233 = vunpack.c.l.b16 %v194
      %v234 = vunpack.c.l.b16 %v195
      %v235 = vpack.c.b16 %v234, %v233
      %vm237 = vcmask 130048
      %v239 = vsel %vm237, %v224, 0
      %v242 = vsel %vm237, %v226, 0
      %v245 = vsel %vm237, %v228, 0
      %v248 = vsel %vm237, %v230, 0
      %v251 = vsel %vm237, %v229, 0
      %253 = vmatpush.bf16.msra.mxu0 0
      %254 = vmatpush.bf16.msra.mxu0 0
      %255 = vmatpush.bf16.msra.mxu0 0
      %256 = vmatpush.bf16.msra.mxu0 0
      %257 = vmatpush.bf16.msra.mxu0 0
      %258 = vmatpush.bf16.msra.mxu0 0
      %259 = vmatpush.bf16.msra.mxu0 0
      %260 = vmatpush.bf16.msra.mxu0 %v235
      %261 = vmatmul.bf16.gmra.mxu0 %v239
      %v262 = vpop.f32.mrf.mxu0
      %v263 = vadd.f32 0.0, %v262
      %v264 = vpop.f32.mrf.mxu0
      %v265 = vadd.f32 0.0, %v264
      %266 = vmatmul.bf16.gmra.mxu0 %v242
      %v267 = vpop.f32.mrf.mxu0
      %v268 = vadd.f32 0.0, %v267
      %v269 = vpop.f32.mrf.mxu0
      %v270 = vadd.f32 0.0, %v269
      %271 = vmatmul.bf16.gmra.mxu0 %v245
      %v272 = vpop.f32.mrf.mxu0
      %v273 = vadd.f32 0.0, %v272
      %v274 = vpop.f32.mrf.mxu0
      %v275 = vadd.f32 0.0, %v274
      %276 = vmatmul.bf16.gmra.mxu0 %v248
      %v277 = vpop.f32.mrf.mxu0
      %v278 = vadd.f32 0.0, %v277
      %v279 = vpop.f32.mrf.mxu0
      %v280 = vadd.f32 0.0, %v279
      %281 = vmatmul.bf16.gmra.mxu0 %v251
      %v282 = vpop.f32.mrf.mxu0
      %v283 = vadd.f32 0.0, %v282
      %v284 = vpop.f32.mrf.mxu0
      %285 = vdwg.mxu0
      %v295 = vunpack.c.l.b16 %v173
      %v296 = vunpack.c.l.b16 %v174
      %v297 = vunpack.c.l.b16 %v175
      %v298 = vunpack.c.l.b16 %v176
      %v299 = vunpack.c.l.b16 %v177
      %v300 = vunpack.c.l.b16 %v178
      %v301 = vunpack.c.l.b16 %v179
      %v302 = vunpack.c.l.b16 %v180
      %v303 = vunpack.c.l.b16 %v181
      %v304 = vpack.c.b16 %v296, %v295
      %v305 = vpack.c.b16 %v298, %v297
      %v306 = vpack.c.b16 %v300, %v299
      %v307 = vpack.c.b16 %v302, %v301
      %v308 = vpack.c.b16 %v303, %v303
      %v311 = vunpack.c.l.b16 %v182
      %v312 = vunpack.c.l.b16 %v183
      %v313 = vpack.c.b16 %v312, %v311
      %v316 = vsel %vm237, %v304, 0
      %v319 = vsel %vm237, %v305, 0
      %v322 = vsel %vm237, %v306, 0
      %v325 = vsel %vm237, %v307, 0
      %v328 = vsel %vm237, %v308, 0
      %330 = vmatpush.bf16.msra.mxu0 0
      %331 = vmatpush.bf16.msra.mxu0 0
      %332 = vmatpush.bf16.msra.mxu0 0
      %333 = vmatpush.bf16.msra.mxu0 0
      %334 = vmatpush.bf16.msra.mxu0 0
      %335 = vmatpush.bf16.msra.mxu0 0
      %336 = vmatpush.bf16.msra.mxu0 0
      %337 = vmatpush.bf16.msra.mxu0 %v313
      %338 = vmatmul.bf16.gmra.mxu0 %v316
      %v339 = vpop.f32.mrf.mxu0
      %v340 = vadd.f32 %v263, %v339
      %v341 = vpop.f32.mrf.mxu0
      %v342 = vadd.f32 %v265, %v341
      %343 = vmatmul.bf16.gmra.mxu0 %v319
      %v344 = vpop.f32.mrf.mxu0
      %v345 = vadd.f32 %v268, %v344
      %v346 = vpop.f32.mrf.mxu0
      %v347 = vadd.f32 %v270, %v346
      %348 = vmatmul.bf16.gmra.mxu0 %v322
      %v349 = vpop.f32.mrf.mxu0
      %v350 = vadd.f32 %v273, %v349
      %v351 = vpop.f32.mrf.mxu0
      %v352 = vadd.f32 %v275, %v351
      %353 = vmatmul.bf16.gmra.mxu0 %v325
      %v354 = vpop.f32.mrf.mxu0
      %v355 = vadd.f32 %v278, %v354
      %v356 = vpop.f32.mrf.mxu0
      %v357 = vadd.f32 %v280, %v356
      %358 = vmatmul.bf16.gmra.mxu0 %v328
      %v359 = vpop.f32.mrf.mxu0
      %v360 = vadd.f32 %v283, %v359
      %v361 = vpop.f32.mrf.mxu0
      %362 = vdwg.mxu0
      %v363 = vld [vmem:[%s165] sm:$0xf]
      %v364 = vld [vmem:[%s165 + $0x4] sm:$0xf]
      %v365 = vld [vmem:[%s165 + $0x8] sm:$0xf]
      %v366 = vld [vmem:[%s165 + $0xc] sm:$0xf]
      %v367 = vld [vmem:[%s165 + $0x10] sm:$0xf]
      %v368 = vld [vmem:[%s165 + $0x14] sm:$0xf]
      %v369 = vld [vmem:[%s165 + $0x18] sm:$0xf]
      %v370 = vld [vmem:[%s165 + $0x1c] sm:$0xf]
      %v371 = vld [vmem:[%s165 + $0x20] sm:$0xf]
      %v372 = vld [vmem:[%s165 + $0x24] sm:$0x1]
      %v373 = vld [vmem:[%s1 + $0x10] sm:$0xf]
      %v374 = vld [vmem:[%s1 + $0x14] sm:$0xf]
      %v385 = vunpack.c.l.b16 %v363
      %v386 = vunpack.c.l.b16 %v364
      %v387 = vunpack.c.l.b16 %v365
      %v388 = vunpack.c.l.b16 %v366
      %v389 = vunpack.c.l.b16 %v367
      %v390 = vunpack.c.l.b16 %v368
      %v391 = vunpack.c.l.b16 %v369
      %v392 = vunpack.c.l.b16 %v370
      %v393 = vunpack.c.l.b16 %v371
      %v394 = vunpack.c.l.b16 %v372
      %v395 = vpack.c.b16 %v386, %v385
      %v396 = vpack.c.b16 %v388, %v387
      %v397 = vpack.c.b16 %v390, %v389
      %v398 = vpack.c.b16 %v392, %v391
      %v399 = vpack.c.b16 %v394, %v393
      %vm400 = vsmask.f32 7424
      %v402 = vshrl.u32 %v395, 16
      %v404 = vshll.u32 %v395, 16
      %v406 = vrot.slane %v404, 1
      %v407 = vor.u32 %v402, %v406
      %v409 = vshll.u32 %v396, 16
      %v411 = vrot.slane %v409, 1
      %v412 = vsel %vm400, %v407, %v411
      %v413 = vshrl.u32 %v396, 16
      %v415 = vor.u32 %v413, %v411
      %v417 = vshll.u32 %v397, 16
      %v419 = vrot.slane %v417, 1
      %v420 = vsel %vm400, %v415, %v419
      %v421 = vshrl.u32 %v397, 16
      %v423 = vor.u32 %v421, %v419
      %v425 = vshll.u32 %v398, 16
      %v427 = vrot.slane %v425, 1
      %v428 = vsel %vm400, %v423, %v427
      %v429 = vshrl.u32 %v398, 16
      %v431 = vor.u32 %v429, %v427
      %v433 = vshll.u32 %v399, 16
      %v435 = vrot.slane %v433, 1
      %v436 = vsel %vm400, %v431, %v435
      %v437 = vshrl.u32 %v399, 16
      %v439 = vor.u32 %v437, %v435
      %v442 = vunpack.c.l.b16 %v373
      %v443 = vunpack.c.l.b16 %v374
      %v444 = vpack.c.b16 %v443, %v442
      %v447 = vsel %vm237, %v412, 0
      %v450 = vsel %vm237, %v420, 0
      %v453 = vsel %vm237, %v428, 0
      %v456 = vsel %vm237, %v436, 0
      %v459 = vsel %vm237, %v439, 0
      %461 = vmatpush.bf16.msra.mxu0 0
      %462 = vmatpush.bf16.msra.mxu0 0
      %463 = vmatpush.bf16.msra.mxu0 0
      %464 = vmatpush.bf16.msra.mxu0 0
      %465 = vmatpush.bf16.msra.mxu0 0
      %466 = vmatpush.bf16.msra.mxu0 0
      %467 = vmatpush.bf16.msra.mxu0 0
      %468 = vmatpush.bf16.msra.mxu0 %v444
      %469 = vmatmul.bf16.gmra.mxu0 %v447
      %v470 = vpop.f32.mrf.mxu0
      %v471 = vadd.f32 0.0, %v470
      %v472 = vpop.f32.mrf.mxu0
      %v473 = vadd.f32 0.0, %v472
      %474 = vmatmul.bf16.gmra.mxu0 %v450
      %v475 = vpop.f32.mrf.mxu0
      %v476 = vadd.f32 0.0, %v475
      %v477 = vpop.f32.mrf.mxu0
      %v478 = vadd.f32 0.0, %v477
      %479 = vmatmul.bf16.gmra.mxu0 %v453
      %v480 = vpop.f32.mrf.mxu0
      %v481 = vadd.f32 0.0, %v480
      %v482 = vpop.f32.mrf.mxu0
      %v483 = vadd.f32 0.0, %v482
      %484 = vmatmul.bf16.gmra.mxu0 %v456
      %v485 = vpop.f32.mrf.mxu0
      %v486 = vadd.f32 0.0, %v485
      %v487 = vpop.f32.mrf.mxu0
      %v488 = vadd.f32 0.0, %v487
      %489 = vmatmul.bf16.gmra.mxu0 %v459
      %v490 = vpop.f32.mrf.mxu0
      %v491 = vadd.f32 0.0, %v490
      %v492 = vpop.f32.mrf.mxu0
      %493 = vdwg.mxu0
      %v494 = vadd.f32 %v340, %v471
      %v495 = vadd.f32 %v342, %v473
      %v496 = vadd.f32 %v345, %v476
      %v497 = vadd.f32 %v347, %v478
      %v498 = vadd.f32 %v350, %v481
      %v499 = vadd.f32 %v352, %v483
      %v500 = vadd.f32 %v355, %v486
      %v501 = vadd.f32 %v357, %v488
      %v502 = vadd.f32 %v360, %v491
      %v503 = vld [vmem:[%s165 + $0x58] sm:$0xc]
      %v504 = vld [vmem:[%s165 + $0x5c] sm:$0xf]
      %v505 = vld [vmem:[%s165 + $0x60] sm:$0xf]
      %v506 = vld [vmem:[%s165 + $0x64] sm:$0xf]
      %v507 = vld [vmem:[%s165 + $0x68] sm:$0xf]
      %v508 = vld [vmem:[%s165 + $0x6c] sm:$0xf]
      %v509 = vld [vmem:[%s165 + $0x70] sm:$0xf]
      %v510 = vld [vmem:[%s165 + $0x74] sm:$0xf]
      %v511 = vld [vmem:[%s165 + $0x78] sm:$0xf]
      %v512 = vld [vmem:[%s165 + $0x7c] sm:$0x3]
      %v513 = vld [vmem:[%s1 + $0x18] sm:$0xf]
      %v514 = vld [vmem:[%s1 + $0x1c] sm:$0xf]
      %v525 = vunpack.c.l.b16 %v503
      %v526 = vunpack.c.l.b16 %v504
      %v527 = vunpack.c.l.b16 %v505
      %v528 = vunpack.c.l.b16 %v506
      %v529 = vunpack.c.l.b16 %v507
      %v530 = vunpack.c.l.b16 %v508
      %v531 = vunpack.c.l.b16 %v509
      %v532 = vunpack.c.l.b16 %v510
      %v533 = vunpack.c.l.b16 %v511
      %v534 = vunpack.c.l.b16 %v512
      %v535 = vpack.c.b16 %v526, %v525
      %v536 = vpack.c.b16 %v528, %v527
      %v537 = vpack.c.b16 %v530, %v529
      %v538 = vpack.c.b16 %v532, %v531
      %v539 = vpack.c.b16 %v534, %v533
      %vm540 = vcmask 1045504
      %v541 = vrot.slane %v535, 2
      %v542 = vrot.slane %v536, 2
      %v543 = vsel %vm540, %v541, %v542
      %v544 = vrot.slane %v537, 2
      %v545 = vsel %vm540, %v542, %v544
      %v546 = vrot.slane %v538, 2
      %v547 = vsel %vm540, %v544, %v546
      %v548 = vrot.slane %v539, 2
      %v549 = vsel %vm540, %v546, %v548
      %v552 = vunpack.c.l.b16 %v513
      %v553 = vunpack.c.l.b16 %v514
      %v554 = vpack.c.b16 %v553, %v552
      %v557 = vsel %vm237, %v543, 0
      %v560 = vsel %vm237, %v545, 0
      %v563 = vsel %vm237, %v547, 0
      %v566 = vsel %vm237, %v549, 0
      %v569 = vsel %vm237, %v548, 0
      %571 = vmatpush.bf16.msra.mxu0 0
      %572 = vmatpush.bf16.msra.mxu0 0
      %573 = vmatpush.bf16.msra.mxu0 0
      %574 = vmatpush.bf16.msra.mxu0 0
      %575 = vmatpush.bf16.msra.mxu0 0
      %576 = vmatpush.bf16.msra.mxu0 0
      %577 = vmatpush.bf16.msra.mxu0 0
      %578 = vmatpush.bf16.msra.mxu0 %v554
      %579 = vmatmul.bf16.gmra.mxu0 %v557
      %v580 = vpop.f32.mrf.mxu0
      %v581 = vadd.f32 0.0, %v580
      %v582 = vpop.f32.mrf.mxu0
      %v583 = vadd.f32 0.0, %v582
      %584 = vmatmul.bf16.gmra.mxu0 %v560
      %v585 = vpop.f32.mrf.mxu0
      %v586 = vadd.f32 0.0, %v585
      %v587 = vpop.f32.mrf.mxu0
      %v588 = vadd.f32 0.0, %v587
      %589 = vmatmul.bf16.gmra.mxu0 %v563
      %v590 = vpop.f32.mrf.mxu0
      %v591 = vadd.f32 0.0, %v590
      %v592 = vpop.f32.mrf.mxu0
      %v593 = vadd.f32 0.0, %v592
      %594 = vmatmul.bf16.gmra.mxu0 %v566
      %v595 = vpop.f32.mrf.mxu0
      %v596 = vadd.f32 0.0, %v595
      %v597 = vpop.f32.mrf.mxu0
      %v598 = vadd.f32 0.0, %v597
      %599 = vmatmul.bf16.gmra.mxu0 %v569
      %v600 = vpop.f32.mrf.mxu0
      %v601 = vadd.f32 0.0, %v600
      %v602 = vpop.f32.mrf.mxu0
      %603 = vdwg.mxu0
      %v604 = vadd.f32 %v494, %v581
      %v605 = vadd.f32 %v495, %v583
      %v606 = vadd.f32 %v496, %v586
      %v607 = vadd.f32 %v497, %v588
      %v608 = vadd.f32 %v498, %v591
      %v609 = vadd.f32 %v499, %v593
      %v610 = vadd.f32 %v500, %v596
      %v611 = vadd.f32 %v501, %v598
      %v612 = vadd.f32 %v502, %v601
      %v613 = vld [vmem:[%s165 + $0x84] sm:$0x8]
      %v614 = vld [vmem:[%s165 + $0x88] sm:$0xf]
      %v615 = vld [vmem:[%s165 + $0x8c] sm:$0xf]
      %v616 = vld [vmem:[%s165 + $0x90] sm:$0xf]
      %v617 = vld [vmem:[%s165 + $0x94] sm:$0xf]
      %v618 = vld [vmem:[%s165 + $0x98] sm:$0xf]
      %v619 = vld [vmem:[%s165 + $0x9c] sm:$0xf]
      %v620 = vld [vmem:[%s165 + $0xa0] sm:$0xf]
      %v621 = vld [vmem:[%s165 + $0xa4] sm:$0xf]
      %v622 = vld [vmem:[%s165 + $0xa8] sm:$0x7]
      %v623 = vld [vmem:[%s1 + $0x20] sm:$0xf]
      %v624 = vld [vmem:[%s1 + $0x24] sm:$0xf]
      %v635 = vunpack.c.l.b16 %v613
      %v636 = vunpack.c.l.b16 %v614
      %v637 = vunpack.c.l.b16 %v615
      %v638 = vunpack.c.l.b16 %v616
      %v639 = vunpack.c.l.b16 %v617
      %v640 = vunpack.c.l.b16 %v618
      %v641 = vunpack.c.l.b16 %v619
      %v642 = vunpack.c.l.b16 %v620
      %v643 = vunpack.c.l.b16 %v621
      %v644 = vunpack.c.l.b16 %v622
      %v645 = vpack.c.b16 %v636, %v635
      %v646 = vpack.c.b16 %v638, %v637
      %v647 = vpack.c.b16 %v640, %v639
      %v648 = vpack.c.b16 %v642, %v641
      %v649 = vpack.c.b16 %v644, %v643
      %vm650 = vcmask 1044480
      %v651 = vrot.slane %v645, 3
      %v652 = vrot.slane %v646, 3
      %v653 = vsel %vm650, %v651, %v652
      %v654 = vrot.slane %v647, 3
      %v655 = vsel %vm650, %v652, %v654
      %v656 = vrot.slane %v648, 3
      %v657 = vsel %vm650, %v654, %v656
      %v658 = vrot.slane %v649, 3
      %v659 = vsel %vm650, %v656, %v658
      %v662 = vunpack.c.l.b16 %v623
      %v663 = vunpack.c.l.b16 %v624
      %v664 = vpack.c.b16 %v663, %v662
      %v667 = vsel %vm237, %v653, 0
      %v670 = vsel %vm237, %v655, 0
      %v673 = vsel %vm237, %v657, 0
      %v676 = vsel %vm237, %v659, 0
      %v679 = vsel %vm237, %v658, 0
      %681 = vmatpush.bf16.msra.mxu0 0
      %682 = vmatpush.bf16.msra.mxu0 0
      %683 = vmatpush.bf16.msra.mxu0 0
      %684 = vmatpush.bf16.msra.mxu0 0
      %685 = vmatpush.bf16.msra.mxu0 0
      %686 = vmatpush.bf16.msra.mxu0 0
      %687 = vmatpush.bf16.msra.mxu0 0
      %688 = vmatpush.bf16.msra.mxu0 %v664
      %689 = vmatmul.bf16.gmra.mxu0 %v667
      %v690 = vpop.f32.mrf.mxu0
      %v691 = vadd.f32 0.0, %v690
      %v692 = vpop.f32.mrf.mxu0
      %v693 = vadd.f32 0.0, %v692
      %694 = vmatmul.bf16.gmra.mxu0 %v670
      %v695 = vpop.f32.mrf.mxu0
      %v696 = vadd.f32 0.0, %v695
      %v697 = vpop.f32.mrf.mxu0
      %v698 = vadd.f32 0.0, %v697
      %699 = vmatmul.bf16.gmra.mxu0 %v673
      %v700 = vpop.f32.mrf.mxu0
      %v701 = vadd.f32 0.0, %v700
      %v702 = vpop.f32.mrf.mxu0
      %v703 = vadd.f32 0.0, %v702
      %704 = vmatmul.bf16.gmra.mxu0 %v676
      %v705 = vpop.f32.mrf.mxu0
      %v706 = vadd.f32 0.0, %v705
      %v707 = vpop.f32.mrf.mxu0
      %v708 = vadd.f32 0.0, %v707
      %709 = vmatmul.bf16.gmra.mxu0 %v679
      %v710 = vpop.f32.mrf.mxu0
      %v711 = vadd.f32 0.0, %v710
      %v712 = vpop.f32.mrf.mxu0
      %713 = vdwg.mxu0
      %v714 = vadd.f32 %v604, %v691
      %v715 = vadd.f32 %v605, %v693
      %v716 = vadd.f32 %v606, %v696
      %v717 = vadd.f32 %v607, %v698
      %v718 = vadd.f32 %v608, %v701
      %v719 = vadd.f32 %v609, %v703
      %v720 = vadd.f32 %v610, %v706
      %v721 = vadd.f32 %v611, %v708
      %v722 = vadd.f32 %v612, %v711
      %v723 = vld [vmem:[%s165 + $0x7c] sm:$0x7]
      %v724 = vld [vmem:[%s1 + $0x28] sm:$0xf]
      %v725 = vld [vmem:[%s1 + $0x2c] sm:$0xf]
      %v727 = vunpack.c.l.b16 %v723
      %v728 = vpack.c.b16 %v727, %v533
      %vm729 = vsmask.f32 5376
      %v731 = vshrl.u32 %v535, 16
      %v733 = vrot.slane %v731, 2
      %v734 = vshll.u32 %v535, 16
      %v736 = vrot.slane %v734, 3
      %v737 = vor.u32 %v733, %v736
      %v739 = vshrl.u32 %v536, 16
      %v741 = vrot.slane %v739, 2
      %v742 = vshll.u32 %v536, 16
      %v744 = vrot.slane %v742, 3
      %v745 = vor.u32 %v741, %v744
      %v746 = vsel %vm729, %v737, %v745
      %v748 = vshrl.u32 %v537, 16
      %v750 = vrot.slane %v748, 2
      %v751 = vshll.u32 %v537, 16
      %v753 = vrot.slane %v751, 3
      %v754 = vor.u32 %v750, %v753
      %v755 = vsel %vm729, %v745, %v754
      %v757 = vshrl.u32 %v538, 16
      %v759 = vrot.slane %v757, 2
      %v760 = vshll.u32 %v538, 16
      %v762 = vrot.slane %v760, 3
      %v763 = vor.u32 %v759, %v762
      %v764 = vsel %vm729, %v754, %v763
      %v766 = vshrl.u32 %v728, 16
      %v768 = vrot.slane %v766, 2
      %v769 = vshll.u32 %v728, 16
      %v771 = vrot.slane %v769, 3
      %v772 = vor.u32 %v768, %v771
      %v773 = vsel %vm729, %v763, %v772
      %v776 = vunpack.c.l.b16 %v724
      %v777 = vunpack.c.l.b16 %v725
      %v778 = vpack.c.b16 %v777, %v776
      %v781 = vsel %vm237, %v746, 0
      %v784 = vsel %vm237, %v755, 0
      %v787 = vsel %vm237, %v764, 0
      %v790 = vsel %vm237, %v773, 0
      %v793 = vsel %vm237, %v772, 0
      %795 = vmatpush.bf16.msra.mxu0 0
      %796 = vmatpush.bf16.msra.mxu0 0
      %797 = vmatpush.bf16.msra.mxu0 0
      %798 = vmatpush.bf16.msra.mxu0 0
      %799 = vmatpush.bf16.msra.mxu0 0
      %800 = vmatpush.bf16.msra.mxu0 0
      %801 = vmatpush.bf16.msra.mxu0 0
      %802 = vmatpush.bf16.msra.mxu0 %v778
      %803 = vmatmul.bf16.gmra.mxu0 %v781
      %v804 = vpop.f32.mrf.mxu0
      %v805 = vadd.f32 0.0, %v804
      %v806 = vpop.f32.mrf.mxu0
      %v807 = vadd.f32 0.0, %v806
      %808 = vmatmul.bf16.gmra.mxu0 %v784
      %v809 = vpop.f32.mrf.mxu0
      %v810 = vadd.f32 0.0, %v809
      %v811 = vpop.f32.mrf.mxu0
      %v812 = vadd.f32 0.0, %v811
      %813 = vmatmul.bf16.gmra.mxu0 %v787
      %v814 = vpop.f32.mrf.mxu0
      %v815 = vadd.f32 0.0, %v814
      %v816 = vpop.f32.mrf.mxu0
      %v817 = vadd.f32 0.0, %v816
      %818 = vmatmul.bf16.gmra.mxu0 %v790
      %v819 = vpop.f32.mrf.mxu0
      %v820 = vadd.f32 0.0, %v819
      %v821 = vpop.f32.mrf.mxu0
      %v822 = vadd.f32 0.0, %v821
      %823 = vmatmul.bf16.gmra.mxu0 %v793
      %v824 = vpop.f32.mrf.mxu0
      %v825 = vadd.f32 0.0, %v824
      %v826 = vpop.f32.mrf.mxu0
      %827 = vdwg.mxu0
      %v828 = vadd.f32 %v714, %v805
      %v829 = vadd.f32 %v715, %v807
      %v830 = vadd.f32 %v716, %v810
      %v831 = vadd.f32 %v717, %v812
      %v832 = vadd.f32 %v718, %v815
      %v833 = vadd.f32 %v719, %v817
      %v834 = vadd.f32 %v720, %v820
      %v835 = vadd.f32 %v721, %v822
      %v836 = vadd.f32 %v722, %v825
      %v837 = vld [vmem:[%s165 + $0x4] sm:$0xf]
      %v838 = vld [vmem:[%s165 + $0x8] sm:$0xf]
      %v839 = vld [vmem:[%s165 + $0xc] sm:$0xf]
      %v840 = vld [vmem:[%s165 + $0x10] sm:$0xf]
      %v841 = vld [vmem:[%s165 + $0x14] sm:$0xf]
      %v842 = vld [vmem:[%s165 + $0x18] sm:$0xf]
      %v843 = vld [vmem:[%s165 + $0x1c] sm:$0xf]
      %v844 = vld [vmem:[%s165 + $0x20] sm:$0xf]
      %v845 = vld [vmem:[%s165 + $0x24] sm:$0xf]
      %v846 = vld [vmem:[%s165 + $0x28] sm:$0x1]
      %v847 = vld [vmem:[%s1 + $0x30] sm:$0xf]
      %v848 = vld [vmem:[%s1 + $0x34] sm:$0xf]
      %v859 = vunpack.c.l.b16 %v837
      %v860 = vunpack.c.l.b16 %v838
      %v861 = vunpack.c.l.b16 %v839
      %v862 = vunpack.c.l.b16 %v840
      %v863 = vunpack.c.l.b16 %v841
      %v864 = vunpack.c.l.b16 %v842
      %v865 = vunpack.c.l.b16 %v843
      %v866 = vunpack.c.l.b16 %v844
      %v867 = vunpack.c.l.b16 %v845
      %v868 = vunpack.c.l.b16 %v846
      %v869 = vpack.c.b16 %v860, %v859
      %v870 = vpack.c.b16 %v862, %v861
      %v871 = vpack.c.b16 %v864, %v863
      %v872 = vpack.c.b16 %v866, %v865
      %v873 = vpack.c.b16 %v868, %v867
      %v875 = vshrl.u32 %v869, 16
      %v877 = vshll.u32 %v869, 16
      %v879 = vrot.slane %v877, 1
      %v880 = vor.u32 %v875, %v879
      %v882 = vshll.u32 %v870, 16
      %v884 = vrot.slane %v882, 1
      %v885 = vsel %vm400, %v880, %v884
      %v886 = vshrl.u32 %v870, 16
      %v888 = vor.u32 %v886, %v884
      %v890 = vshll.u32 %v871, 16
      %v892 = vrot.slane %v890, 1
      %v893 = vsel %vm400, %v888, %v892
      %v894 = vshrl.u32 %v871, 16
      %v896 = vor.u32 %v894, %v892
      %v898 = vshll.u32 %v872, 16
      %v900 = vrot.slane %v898, 1
      %v901 = vsel %vm400, %v896, %v900
      %v902 = vshrl.u32 %v872, 16
      %v904 = vor.u32 %v902, %v900
      %v906 = vshll.u32 %v873, 16
      %v908 = vrot.slane %v906, 1
      %v909 = vsel %vm400, %v904, %v908
      %v910 = vshrl.u32 %v873, 16
      %v912 = vor.u32 %v910, %v908
      %v915 = vunpack.c.l.b16 %v847
      %v916 = vunpack.c.l.b16 %v848
      %v917 = vpack.c.b16 %v916, %v915
      %v920 = vsel %vm237, %v885, 0
      %v923 = vsel %vm237, %v893, 0
      %v926 = vsel %vm237, %v901, 0
      %v929 = vsel %vm237, %v909, 0
      %v932 = vsel %vm237, %v912, 0
      %934 = vmatpush.bf16.msra.mxu0 0
      %935 = vmatpush.bf16.msra.mxu0 0
      %936 = vmatpush.bf16.msra.mxu0 0
      %937 = vmatpush.bf16.msra.mxu0 0
      %938 = vmatpush.bf16.msra.mxu0 0
      %939 = vmatpush.bf16.msra.mxu0 0
      %940 = vmatpush.bf16.msra.mxu0 0
      %941 = vmatpush.bf16.msra.mxu0 %v917
      %942 = vmatmul.bf16.gmra.mxu0 %v920
      %v943 = vpop.f32.mrf.mxu0
      %v944 = vadd.f32 0.0, %v943
      %v945 = vpop.f32.mrf.mxu0
      %v946 = vadd.f32 0.0, %v945
      %947 = vmatmul.bf16.gmra.mxu0 %v923
      %v948 = vpop.f32.mrf.mxu0
      %v949 = vadd.f32 0.0, %v948
      %v950 = vpop.f32.mrf.mxu0
      %v951 = vadd.f32 0.0, %v950
      %952 = vmatmul.bf16.gmra.mxu0 %v926
      %v953 = vpop.f32.mrf.mxu0
      %v954 = vadd.f32 0.0, %v953
      %v955 = vpop.f32.mrf.mxu0
      %v956 = vadd.f32 0.0, %v955
      %957 = vmatmul.bf16.gmra.mxu0 %v929
      %v958 = vpop.f32.mrf.mxu0
      %v959 = vadd.f32 0.0, %v958
      %v960 = vpop.f32.mrf.mxu0
      %v961 = vadd.f32 0.0, %v960
      %962 = vmatmul.bf16.gmra.mxu0 %v932
      %v963 = vpop.f32.mrf.mxu0
      %v964 = vadd.f32 0.0, %v963
      %v965 = vpop.f32.mrf.mxu0
      %966 = vdwg.mxu0
      %v967 = vadd.f32 %v828, %v944
      %v968 = vadd.f32 %v829, %v946
      %v969 = vadd.f32 %v830, %v949
      %v970 = vadd.f32 %v831, %v951
      %v971 = vadd.f32 %v832, %v954
      %v972 = vadd.f32 %v833, %v956
      %v973 = vadd.f32 %v834, %v959
      %v974 = vadd.f32 %v835, %v961
      %v975 = vadd.f32 %v836, %v964
      %v976 = vld [vmem:[%s165 + $0x30] sm:$0xe]
      %v977 = vld [vmem:[%s165 + $0x34] sm:$0xf]
      %v978 = vld [vmem:[%s165 + $0x38] sm:$0xf]
      %v979 = vld [vmem:[%s165 + $0x3c] sm:$0xf]
      %v980 = vld [vmem:[%s165 + $0x40] sm:$0xf]
      %v981 = vld [vmem:[%s165 + $0x44] sm:$0xf]
      %v982 = vld [vmem:[%s165 + $0x48] sm:$0xf]
      %v983 = vld [vmem:[%s165 + $0x4c] sm:$0xf]
      %v984 = vld [vmem:[%s165 + $0x50] sm:$0xf]
      %v985 = vld [vmem:[%s165 + $0x54] sm:$0x3]
      %v986 = vld [vmem:[%s1 + $0x38] sm:$0xf]
      %v987 = vld [vmem:[%s1 + $0x3c] sm:$0xf]
      %v998 = vunpack.c.l.b16 %v976
      %v999 = vunpack.c.l.b16 %v977
      %v1000 = vunpack.c.l.b16 %v978
      %v1001 = vunpack.c.l.b16 %v979
      %v1002 = vunpack.c.l.b16 %v980
      %v1003 = vunpack.c.l.b16 %v981
      %v1004 = vunpack.c.l.b16 %v982
      %v1005 = vunpack.c.l.b16 %v983
      %v1006 = vunpack.c.l.b16 %v984
      %v1007 = vunpack.c.l.b16 %v985
      %v1008 = vpack.c.b16 %v999, %v998
      %v1009 = vpack.c.b16 %v1001, %v1000
      %v1010 = vpack.c.b16 %v1003, %v1002
      %v1011 = vpack.c.b16 %v1005, %v1004
      %v1012 = vpack.c.b16 %v1007, %v1006
      %vm1013 = vsmask.f32 6400
      %v1015 = vshrl.u32 %v1008, 16
      %v1017 = vrot.slane %v1015, 1
      %v1018 = vshll.u32 %v1008, 16
      %v1020 = vrot.slane %v1018, 2
      %v1021 = vor.u32 %v1017, %v1020
      %v1023 = vshrl.u32 %v1009, 16
      %v1025 = vrot.slane %v1023, 1
      %v1026 = vshll.u32 %v1009, 16
      %v1028 = vrot.slane %v1026, 2
      %v1029 = vor.u32 %v1025, %v1028
      %v1030 = vsel %vm1013, %v1021, %v1029
      %v1032 = vshrl.u32 %v1010, 16
      %v1034 = vrot.slane %v1032, 1
      %v1035 = vshll.u32 %v1010, 16
      %v1037 = vrot.slane %v1035, 2
      %v1038 = vor.u32 %v1034, %v1037
      %v1039 = vsel %vm1013, %v1029, %v1038
      %v1041 = vshrl.u32 %v1011, 16
      %v1043 = vrot.slane %v1041, 1
      %v1044 = vshll.u32 %v1011, 16
      %v1046 = vrot.slane %v1044, 2
      %v1047 = vor.u32 %v1043, %v1046
      %v1048 = vsel %vm1013, %v1038, %v1047
      %v1050 = vshrl.u32 %v1012, 16
      %v1052 = vrot.slane %v1050, 1
      %v1053 = vshll.u32 %v1012, 16
      %v1055 = vrot.slane %v1053, 2
      %v1056 = vor.u32 %v1052, %v1055
      %v1057 = vsel %vm1013, %v1047, %v1056
      %v1060 = vunpack.c.l.b16 %v986
      %v1061 = vunpack.c.l.b16 %v987
      %v1062 = vpack.c.b16 %v1061, %v1060
      %v1065 = vsel %vm237, %v1030, 0
      %v1068 = vsel %vm237, %v1039, 0
      %v1071 = vsel %vm237, %v1048, 0
      %v1074 = vsel %vm237, %v1057, 0
      %v1077 = vsel %vm237, %v1056, 0
      %1079 = vmatpush.bf16.msra.mxu0 0
      %1080 = vmatpush.bf16.msra.mxu0 0
      %1081 = vmatpush.bf16.msra.mxu0 0
      %1082 = vmatpush.bf16.msra.mxu0 0
      %1083 = vmatpush.bf16.msra.mxu0 0
      %1084 = vmatpush.bf16.msra.mxu0 0
      %1085 = vmatpush.bf16.msra.mxu0 0
      %1086 = vmatpush.bf16.msra.mxu0 %v1062
      %1087 = vmatmul.bf16.gmra.mxu0 %v1065
      %v1088 = vpop.f32.mrf.mxu0
      %v1089 = vadd.f32 0.0, %v1088
      %v1090 = vpop.f32.mrf.mxu0
      %v1091 = vadd.f32 0.0, %v1090
      %1092 = vmatmul.bf16.gmra.mxu0 %v1068
      %v1093 = vpop.f32.mrf.mxu0
      %v1094 = vadd.f32 0.0, %v1093
      %v1095 = vpop.f32.mrf.mxu0
      %v1096 = vadd.f32 0.0, %v1095
      %1097 = vmatmul.bf16.gmra.mxu0 %v1071
      %v1098 = vpop.f32.mrf.mxu0
      %v1099 = vadd.f32 0.0, %v1098
      %v1100 = vpop.f32.mrf.mxu0
      %v1101 = vadd.f32 0.0, %v1100
      %1102 = vmatmul.bf16.gmra.mxu0 %v1074
      %v1103 = vpop.f32.mrf.mxu0
      %v1104 = vadd.f32 0.0, %v1103
      %v1105 = vpop.f32.mrf.mxu0
      %v1106 = vadd.f32 0.0, %v1105
      %1107 = vmatmul.bf16.gmra.mxu0 %v1077
      %v1108 = vpop.f32.mrf.mxu0
      %v1109 = vadd.f32 0.0, %v1108
      %v1110 = vpop.f32.mrf.mxu0
      %1111 = vdwg.mxu0
      %v1112 = vadd.f32 %v967, %v1089
      %v1113 = vadd.f32 %v968, %v1091
      %v1114 = vadd.f32 %v969, %v1094
      %v1115 = vadd.f32 %v970, %v1096
      %v1116 = vadd.f32 %v971, %v1099
      %v1117 = vadd.f32 %v972, %v1101
      %v1118 = vadd.f32 %v973, %v1104
      %v1119 = vadd.f32 %v974, %v1106
      %v1120 = vadd.f32 %v975, %v1109
      %v1121 = vld [vmem:[%s165 + $0x4] sm:$0xe]
      %v1122 = vld [vmem:[%s1 + $0x40] sm:$0xf]
      %v1123 = vld [vmem:[%s1 + $0x44] sm:$0xf]
      %v1125 = vunpack.c.l.b16 %v1121
      %v1126 = vpack.c.b16 %v860, %v1125
      %v1127 = vrot.slane %v1126, 1
      %v1128 = vrot.slane %v870, 1
      %v1129 = vsel %vm221, %v1127, %v1128
      %v1130 = vrot.slane %v871, 1
      %v1131 = vsel %vm221, %v1128, %v1130
      %v1132 = vrot.slane %v872, 1
      %v1133 = vsel %vm221, %v1130, %v1132
      %v1134 = vrot.slane %v873, 1
      %v1135 = vsel %vm221, %v1132, %v1134
      %v1138 = vunpack.c.l.b16 %v1122
      %v1139 = vunpack.c.l.b16 %v1123
      %v1140 = vpack.c.b16 %v1139, %v1138
      %v1143 = vsel %vm237, %v1129, 0
      %v1146 = vsel %vm237, %v1131, 0
      %v1149 = vsel %vm237, %v1133, 0
      %v1152 = vsel %vm237, %v1135, 0
      %v1155 = vsel %vm237, %v1134, 0
      %1157 = vmatpush.bf16.msra.mxu0 0
      %1158 = vmatpush.bf16.msra.mxu0 0
      %1159 = vmatpush.bf16.msra.mxu0 0
      %1160 = vmatpush.bf16.msra.mxu0 0
      %1161 = vmatpush.bf16.msra.mxu0 0
      %1162 = vmatpush.bf16.msra.mxu0 0
      %1163 = vmatpush.bf16.msra.mxu0 0
      %1164 = vmatpush.bf16.msra.mxu0 %v1140
      %1165 = vmatmul.bf16.gmra.mxu0 %v1143
      %v1166 = vpop.f32.mrf.mxu0
      %v1167 = vadd.f32 0.0, %v1166
      %v1168 = vpop.f32.mrf.mxu0
      %v1169 = vadd.f32 0.0, %v1168
      %1170 = vmatmul.bf16.gmra.mxu0 %v1146
      %v1171 = vpop.f32.mrf.mxu0
      %v1172 = vadd.f32 0.0, %v1171
      %v1173 = vpop.f32.mrf.mxu0
      %v1174 = vadd.f32 0.0, %v1173
      %1175 = vmatmul.bf16.gmra.mxu0 %v1149
      %v1176 = vpop.f32.mrf.mxu0
      %v1177 = vadd.f32 0.0, %v1176
      %v1178 = vpop.f32.mrf.mxu0
      %v1179 = vadd.f32 0.0, %v1178
      %1180 = vmatmul.bf16.gmra.mxu0 %v1152
      %v1181 = vpop.f32.mrf.mxu0
      %v1182 = vadd.f32 0.0, %v1181
      %v1183 = vpop.f32.mrf.mxu0
      %v1184 = vadd.f32 0.0, %v1183
      %1185 = vmatmul.bf16.gmra.mxu0 %v1155
      %v1186 = vpop.f32.mrf.mxu0
      %v1187 = vadd.f32 0.0, %v1186
      %v1188 = vpop.f32.mrf.mxu0
      %1189 = vdwg.mxu0
      %v1190 = vadd.f32 %v1112, %v1167
      %v1191 = vadd.f32 %v1113, %v1169
      %v1192 = vadd.f32 %v1114, %v1172
      %v1193 = vadd.f32 %v1115, %v1174
      %v1194 = vadd.f32 %v1116, %v1177
      %v1195 = vadd.f32 %v1117, %v1179
      %v1196 = vadd.f32 %v1118, %v1182
      %v1197 = vadd.f32 %v1119, %v1184
      %v1198 = vadd.f32 %v1120, %v1187
      %v1199 = vld [vmem:[%s2] sm:$0x1]
      %v1201 = vperm.slane %v1199, 0
      %v1203 = vadd.f32 %v1190, %v1201
      %v1204 = vadd.f32 %v1191, %v1201
      %v1205 = vadd.f32 %v1192, %v1201
      %v1206 = vadd.f32 %v1193, %v1201
      %v1207 = vadd.f32 %v1194, %v1201
      %v1208 = vadd.f32 %v1195, %v1201
      %v1209 = vadd.f32 %v1196, %v1201
      %v1210 = vadd.f32 %v1197, %v1201
      %v1211 = vadd.f32 %v1198, %v1201
      %v1212 = vmax.f32 %v1203, 0.0
      %v1213 = vmax.f32 %v1204, 0.0
      %v1214 = vmax.f32 %v1205, 0.0
      %v1215 = vmax.f32 %v1206, 0.0
      %v1216 = vmax.f32 %v1207, 0.0
      %v1217 = vmax.f32 %v1208, 0.0
      %v1218 = vmax.f32 %v1209, 0.0
      %v1219 = vmax.f32 %v1210, 0.0
      %v1220 = vmax.f32 %v1211, 0.0
      %v1221 = vpack.c.bf16 %v1212, %v1212
      %v1222 = vpack.c.bf16 %v1213, %v1213
      %v1223 = vpack.c.bf16 %v1214, %v1214
      %v1224 = vpack.c.bf16 %v1215, %v1215
      %v1225 = vpack.c.bf16 %v1216, %v1216
      %v1226 = vpack.c.bf16 %v1217, %v1217
      %v1227 = vpack.c.bf16 %v1218, %v1218
      %v1228 = vpack.c.bf16 %v1219, %v1219
      %v1229 = vpack.c.bf16 %v1220, %v1220
      %vm1230 = vcmask 257024
      %1231 = vst.msk [vmem:[%s170] sm:$0xf] %vm1230, %v1221
      %1232 = vst.msk [vmem:[%s170 + $0x4] sm:$0xf] %vm1230, %v1222
      %1233 = vst.msk [vmem:[%s170 + $0x8] sm:$0xf] %vm1230, %v1223
      %1234 = vst.msk [vmem:[%s170 + $0xc] sm:$0xf] %vm1230, %v1224
      %1235 = vst.msk [vmem:[%s170 + $0x10] sm:$0xf] %vm1230, %v1225
      %1236 = vst.msk [vmem:[%s170 + $0x14] sm:$0xf] %vm1230, %v1226
      %1237 = vst.msk [vmem:[%s170 + $0x18] sm:$0xf] %vm1230, %v1227
      %1238 = vst.msk [vmem:[%s170 + $0x1c] sm:$0xf] %vm1230, %v1228
      %1239 = vst.msk [vmem:[%s170 + $0x20] sm:$0xf] %vm1230, %v1229
      %s1240 = smul.u32 9, %s14
      %p1241 = scmp.lt.s32.totalorder %s1240, 17
      %s1242 = scalar_select %p1241, %s1240, 17
      %s1243 = smul.addr %s1242, 4
      %s1244 = scalar_lea.vmem %s3, %s1243
      // Predicated region
      $region33: #{_lambda_.11} parent=31 // pred_check
        %p1245 = pneg %p100
      $region34: #{_lambda_.11} parent=31 // pred_check_branch
        %1247 = sbr.rel (%p1245) target = $region36
      $region35: #{_lambda_.11} parent=31 // pred_region
        %s1248 = smul.u32 9, %s14
      $region36: #{_lambda_.11} parent=31 // pred_fallthru
        _
    $region32: #{_lambda_.11} parent=5 // pred_fallthru
      _
    %p1249 = scmp.le.s32.totalorder 2, %s9
    // Predicated region
    $region37: #{_lambda_.11} parent=5 // pred_check
      %p1250 = pneg %p1249
    $region38: #{_lambda_.11} parent=5 // pred_check_branch
      %1252 = sbr.rel (%p1250) target = $region40
    $region39: #{_lambda_.11} parent=5 // pred_region
      %s1253 = ssub.s32 %s9, 2
      // Predicated region
      $region41: #{_lambda_.11} parent=39 // pred_check
        %p1254 = pneg %p106
      $region42: #{_lambda_.11} parent=39 // pred_check_branch
        %1256 = sbr.rel (%p1254) target = $region44
      $region43: #{_lambda_.11} parent=39 // pred_region
        %s1257 = smul.u32 9, %s15
        %p1258 = scmp.lt.s32.totalorder %s1257, 17
        %s1259 = scalar_select %p1258, %s1257, 17
        %s1260 = smul.addr %s1259, 4
        %s1261 = scalar_lea.vmem %s3, %s1260
      $region44: #{_lambda_.11} parent=39 // pred_fallthru
        _
    $region40: #{_lambda_.11} parent=5 // pred_fallthru
      _
  $region6: #{_lambda_.11} parent=0 // loop_footer
    %s13 = sadd.s32 1, %s9
  $region7: #{_lambda_.11} parent=0 // loop_footer_branch
    %8 = sbr.rel target = $region3
  $region8: #{_lambda_.11} parent=0 // loop_exit
    _

// kernel: _lambda_.12
$region0: #{_lambda_.12}
  #allocation0 [shape = 'u32[]', space=smem, size = 0x4, offset = 0x4, fixed_abs, tag = 'smem constant byte address 0x4 - core index']
  #allocation1 [shape = 'u32[72,128]{1,0:T(1,128)}', space=vmem, size = 0x9000, scoped, tag = 'internal scratch']
  %s0 = inlined_call_operand.vmem [shape: bf16[2,120,32], index: 0, kind: input, shape index: {}]
  %s1 = inlined_call_operand.vmem [shape: bf16[288,32], index: 1, kind: input, shape index: {}]
  %s2 = inlined_call_operand.vmem [shape: f32[1,32], index: 2, kind: input, shape index: {}]
  %s3 = inlined_call_operand.vmem [shape: bf16[160,32], index: 3, kind: input, shape index: {}]
  %s4 = inlined_call_operand.vmem [shape: bf16[160,32], index: 4, kind: output, shape index: {}]
  %s5 = sld [smem:[#allocation0]]
  $region49: #{_lambda_.12} parent=0
    _
  %s7 = ssub.s32 1, %s5
  %s8 = scalar_select 0, %s7, %s5
  loop: start=0, step=1, limit=4
  $region2: #{_lambda_.12} parent=0 // loop_pre_header
    _
  $region3: #{_lambda_.12} parent=0 // loop_header
    %s10 = sphi 0, %s14
    %p11 = scmp.ge.s32.totalorder %s10, 4
    %s20 = sphi 0, %s22
    %s23 = sphi 0, %s20
    %s24 = sphi 0, %s23
    %s40 = sphi 0, %s24
    %s44 = sphi 0, %s44
    %s46 = sphi 0, %s44
    %s47 = sphi 0, %s46
    %s61 = sphi 0, %s47
    %s65 = sphi 0, %s65
    %s67 = sphi 0, %s65
    %s68 = sphi 0, %s67
    %s82 = sphi 0, %s68
    %s88 = sphi 0, %s90
    %s91 = sphi 0, %s88
    %s92 = sphi 0, %s91
    %s108 = sphi 0, %s92
    %s114 = sphi 0, %s116
    %s117 = sphi 0, %s114
    %s118 = sphi 0, %s117
    %s134 = sphi 0, %s118
  $region4: #{_lambda_.12} parent=0 // loop_header_branch
    %13 = sbr.rel (%p11) target = $region8
  $region5: #{_lambda_.12} parent=0 // loop_body
    %s15 = ssub.s32 %s10, 1
    %s16 = ssub.s32 %s10, 2
    %s17 = sadd.s32 %s10, 1
    %s18 = ssub.s32 %s10, %s17
    %p19 = scmp.eq.s32.totalorder %s18, 0
    %s21 = sadd.s32 %s20, 1
    %s22 = scalar_select %p19, %s20, %s21
    %p25 = pneg %p19
    %p26 = scmp.eq.s32.totalorder %s10, 1
    %p27 = por %p25, %p26
    %p28 = scmp.ne.s32.totalorder %s20, %s23
    %p29 = scmp.eq.s32.totalorder %s10, 0
    %p30 = por %p28, %p29
    %p31 = scmp.ne.s32.totalorder %s20, %s23
    %p32 = scmp.eq.s32.totalorder %s15, 1
    %p33 = por %p31, %p32
    %p34 = scmp.ne.s32.totalorder %s23, %s24
    %p35 = scmp.eq.s32.totalorder %s15, 0
    %p36 = por %p34, %p35
    %p37 = scmp.ne.s32.totalorder %s23, %s24
    %p38 = scmp.eq.s32.totalorder %s16, 1
    %p39 = por %p37, %p38
    %p41 = scmp.ne.s32.totalorder %s24, %s40
    %p42 = scmp.eq.s32.totalorder %s16, 0
    %p43 = por %p41, %p42
    %s45 = sadd.s32 %s44, 1
    %p48 = scmp.eq.s32.totalorder %s10, 1
    %p49 = scmp.ne.s32.totalorder %s44, %s46
    %p50 = scmp.eq.s32.totalorder %s10, 0
    %p51 = por %p49, %p50
    %p52 = scmp.ne.s32.totalorder %s44, %s46
    %p53 = scmp.eq.s32.totalorder %s15, 1
    %p54 = por %p52, %p53
    %p55 = scmp.ne.s32.totalorder %s46, %s47
    %p56 = scmp.eq.s32.totalorder %s15, 0
    %p57 = por %p55, %p56
    %p58 = scmp.ne.s32.totalorder %s46, %s47
    %p59 = scmp.eq.s32.totalorder %s16, 1
    %p60 = por %p58, %p59
    %p62 = scmp.ne.s32.totalorder %s47, %s61
    %p63 = scmp.eq.s32.totalorder %s16, 0
    %p64 = por %p62, %p63
    %s66 = sadd.s32 %s65, 1
    %p69 = scmp.eq.s32.totalorder %s10, 1
    %p70 = scmp.ne.s32.totalorder %s65, %s67
    %p71 = scmp.eq.s32.totalorder %s10, 0
    %p72 = por %p70, %p71
    %p73 = scmp.ne.s32.totalorder %s65, %s67
    %p74 = scmp.eq.s32.totalorder %s15, 1
    %p75 = por %p73, %p74
    %p76 = scmp.ne.s32.totalorder %s67, %s68
    %p77 = scmp.eq.s32.totalorder %s15, 0
    %p78 = por %p76, %p77
    %p79 = scmp.ne.s32.totalorder %s67, %s68
    %p80 = scmp.eq.s32.totalorder %s16, 1
    %p81 = por %p79, %p80
    %p83 = scmp.ne.s32.totalorder %s68, %s82
    %p84 = scmp.eq.s32.totalorder %s16, 0
    %p85 = por %p83, %p84
    %s86 = ssub.s32 %s10, %s17
    %p87 = scmp.eq.s32.totalorder %s86, 0
    %s89 = sadd.s32 %s88, 1
    %s90 = scalar_select %p87, %s88, %s89
    %p93 = pneg %p87
    %p94 = scmp.eq.s32.totalorder %s10, 1
    %p95 = por %p93, %p94
    %p96 = scmp.ne.s32.totalorder %s88, %s91
    %p97 = scmp.eq.s32.totalorder %s10, 0
    %p98 = por %p96, %p97
    %p99 = scmp.ne.s32.totalorder %s88, %s91
    %p100 = scmp.eq.s32.totalorder %s15, 1
    %p101 = por %p99, %p100
    %p102 = scmp.ne.s32.totalorder %s91, %s92
    %p103 = scmp.eq.s32.totalorder %s15, 0
    %p104 = por %p102, %p103
    %p105 = scmp.ne.s32.totalorder %s91, %s92
    %p106 = scmp.eq.s32.totalorder %s16, 1
    %p107 = por %p105, %p106
    %p109 = scmp.ne.s32.totalorder %s92, %s108
    %p110 = scmp.eq.s32.totalorder %s16, 0
    %p111 = por %p109, %p110
    %s112 = ssub.s32 %s10, %s17
    %p113 = scmp.eq.s32.totalorder %s112, 0
    %s115 = sadd.s32 %s114, 1
    %s116 = scalar_select %p113, %s114, %s115
    %p119 = pneg %p113
    %p120 = scmp.eq.s32.totalorder %s10, 1
    %p121 = por %p119, %p120
    %p122 = scmp.ne.s32.totalorder %s114, %s117
    %p123 = scmp.eq.s32.totalorder %s10, 0
    %p124 = por %p122, %p123
    %p125 = scmp.ne.s32.totalorder %s114, %s117
    %p126 = scmp.eq.s32.totalorder %s15, 1
    %p127 = por %p125, %p126
    %p128 = scmp.ne.s32.totalorder %s117, %s118
    %p129 = scmp.eq.s32.totalorder %s15, 0
    %p130 = por %p128, %p129
    %p131 = scmp.ne.s32.totalorder %s117, %s118
    %p132 = scmp.eq.s32.totalorder %s16, 1
    %p133 = por %p131, %p132
    %p135 = scmp.ne.s32.totalorder %s118, %s134
    %p136 = scmp.eq.s32.totalorder %s16, 0
    %p137 = por %p135, %p136
    %p138 = scmp.le.s32.totalorder 1, %s10
    %p139 = scmp.lt.s32.totalorder %s10, 3
    %p140 = pnand %p138, %p139
    %p141 = pneg %p140
    // Predicated region
    $region9: #{_lambda_.12} parent=5 // pred_check
      _
    $region10: #{_lambda_.12} parent=5 // pred_check_branch
      %143 = sbr.rel (%p140) target = $region12
    $region11: #{_lambda_.12} parent=5 // pred_region
      %s144 = ssub.s32 %s10, 1
      // Predicated region
      $region13: #{_lambda_.12} parent=11 // pred_check
        %p145 = pneg %p57
      $region14: #{_lambda_.12} parent=11 // pred_check_branch
        %147 = sbr.rel (%p145) target = $region16
      $region15: #{_lambda_.12} parent=11 // pred_region
        _
      $region16: #{_lambda_.12} parent=11 // pred_fallthru
        _
      // Predicated region
      $region17: #{_lambda_.12} parent=11 // pred_check
        %p148 = pneg %p78
      $region18: #{_lambda_.12} parent=11 // pred_check_branch
        %150 = sbr.rel (%p148) target = $region20
      $region19: #{_lambda_.12} parent=11 // pred_region
        _
      $region20: #{_lambda_.12} parent=11 // pred_fallthru
        _
    $region12: #{_lambda_.12} parent=5 // pred_fallthru
      _
    %p151 = scmp.lt.s32.totalorder %s10, 2
    // Predicated region
    $region21: #{_lambda_.12} parent=5 // pred_check
      %p152 = pneg %p151
    $region22: #{_lambda_.12} parent=5 // pred_check_branch
      %154 = sbr.rel (%p152) target = $region24
    $region23: #{_lambda_.12} parent=5 // pred_region
      // Predicated region
      $region25: #{_lambda_.12} parent=23 // pred_check
        %p155 = pneg %p30
      $region26: #{_lambda_.12} parent=23 // pred_check_branch
        %157 = sbr.rel (%p155) target = $region28
      $region27: #{_lambda_.12} parent=23 // pred_region
        %p158 = scmp.lt.s32.totalorder %s10, 1
        %s159 = scalar_select %p158, %s10, 1
        %s160 = smul.addr %s159, 15
        %s161 = smul.addr %s160, 4
        %s162 = scalar_lea.vmem %s0, %s161
      $region28: #{_lambda_.12} parent=23 // pred_fallthru
        _
      // Predicated region
      $region29: #{_lambda_.12} parent=23 // pred_check
        %p163 = pneg %p98
      $region30: #{_lambda_.12} parent=23 // pred_check_branch
        %165 = sbr.rel (%p163) target = $region32
      $region31: #{_lambda_.12} parent=23 // pred_region
        %s166 = smul.u32 10, %s10
        %p167 = scmp.lt.s32.totalorder %s166, 19
        %s168 = scalar_select %p167, %s166, 19
        %s169 = smul.addr %s168, 4
        %s170 = scalar_lea.vmem %s3, %s169
        %s171 = smul.u32 10, %s10
      $region32: #{_lambda_.12} parent=23 // pred_fallthru
        _
    $region24: #{_lambda_.12} parent=5 // pred_fallthru
      _
    %p172 = scmp.le.s32.totalorder 1, %s10
    %p173 = scmp.lt.s32.totalorder %s10, 3
    %p174 = pnand %p172, %p173
    %p175 = pneg %p174
    // Predicated region
    $region33: #{_lambda_.12} parent=5 // pred_check
      _
    $region34: #{_lambda_.12} parent=5 // pred_check_branch
      %177 = sbr.rel (%p174) target = $region36
    $region35: #{_lambda_.12} parent=5 // pred_region
      %s178 = ssub.s32 %s10, 1
      %p179 = scmp.lt.s32.totalorder %s15, 1
      %s180 = scalar_select %p179, %s15, 1
      %s181 = smul.addr %s180, 15
      %s182 = smul.addr %s181, 4
      %s183 = scalar_lea.vmem %s0, %s182
      %p184 = pneg %p36
      %p185 = pneg %p33
      %p186 = pneg %p57
      %p187 = pneg %p54
      %p188 = pneg %p78
      %p189 = pneg %p75
      %s190 = smul.u32 10, %s15
      %p191 = scmp.lt.s32.totalorder %s190, 19
      %s192 = scalar_select %p191, %s190, 19
      %s193 = smul.addr %s192, 4
      %s194 = scalar_lea.vmem %s3, %s193
      %p195 = pneg %p104
      %p196 = pneg %p101
      %p197 = pneg %p130
      %p198 = pneg %p127
      %s199 = smul.u32 10, %s15
      %p200 = scmp.lt.s32.totalorder %s199, 19
      %s201 = scalar_select %p200, %s199, 19
      %s202 = smul.addr %s201, 4
      %s203 = scalar_lea.vmem %s4, %s202
      %p204 = scmp.lt.s32.totalorder %s15, 1
      %s205 = scalar_select %p204, %s15, 1
      %s206 = smul.addr %s205, 15
      %s207 = smul.addr %s206, 4
      %s208 = scalar_lea.vmem %s0, %s207
      %s209 = smul.u32 10, %s15
      %p210 = scmp.lt.s32.totalorder %s209, 19
      %s211 = scalar_select %p210, %s209, 19
      %s212 = smul.addr %s211, 4
      %s213 = scalar_lea.vmem %s3, %s212
      %s214 = smul.u32 10, %s15
      %s215 = smul.u32 10, %s15
      %p216 = scmp.lt.s32.totalorder %s215, 19
      %s217 = scalar_select %p216, %s215, 19
      %s218 = smul.addr %s217, 4
      %s219 = scalar_lea.vmem %s4, %s218
      %s220 = smul.u32 10, %s15
      %v222 = vld [vmem:[%s208] sm:$0xf]
      %v223 = vld [vmem:[%s208 + $0x4] sm:$0xf]
      %v224 = vld [vmem:[%s208 + $0x8] sm:$0xf]
      %v225 = vld [vmem:[%s208 + $0xc] sm:$0xf]
      %v226 = vld [vmem:[%s208 + $0x10] sm:$0xf]
      %v227 = vld [vmem:[%s208 + $0x14] sm:$0xf]
      %v228 = vld [vmem:[%s208 + $0x18] sm:$0xf]
      %v229 = vld [vmem:[%s208 + $0x1c] sm:$0xf]
      %v230 = vld [vmem:[%s208 + $0x20] sm:$0xf]
      %v231 = vld [vmem:[%s208 + $0x24] sm:$0xf]
      %v232 = vld [vmem:[%s1] sm:$0xf]
      %v233 = vld [vmem:[%s1 + $0x4] sm:$0xf]
      %v234 = vld [vmem:[%s1 + $0x8] sm:$0xf]
      %v235 = vld [vmem:[%s1 + $0xc] sm:$0xf]
      %v236 = vld [vmem:[%s208 + $0x28] sm:$0x1]
      %v237 = vld [vmem:[%s1 + $0x10] sm:$0xf]
      %v238 = vld [vmem:[%s1 + $0x14] sm:$0xf]
      %v239 = vld [vmem:[%s1 + $0x18] sm:$0xf]
      %v240 = vld [vmem:[%s1 + $0x1c] sm:$0xf]
      %v252 = vunpack.c.l.b16 %v222
      %v253 = vunpack.c.l.b16 %v223
      %v254 = vunpack.c.l.b16 %v224
      %v255 = vunpack.c.l.b16 %v225
      %v256 = vunpack.c.l.b16 %v226
      %v257 = vunpack.c.l.b16 %v227
      %v258 = vunpack.c.l.b16 %v228
      %v259 = vunpack.c.l.b16 %v229
      %v260 = vunpack.c.l.b16 %v230
      %v261 = vunpack.c.l.b16 %v231
      %v262 = vunpack.c.l.b16 %v236
      %v263 = vpack.c.b16 %v253, %v252
      %v264 = vpack.c.b16 %v255, %v254
      %v265 = vpack.c.b16 %v257, %v256
      %v266 = vpack.c.b16 %v259, %v258
      %v267 = vpack.c.b16 %v261, %v260
      %v268 = vpack.c.b16 %v262, %v262
      %vm269 = vsmask.f32 7424
      %v271 = vshrl.u32 %v263, 16
      %v273 = vshll.u32 %v263, 16
      %v275 = vrot.slane %v273, 1
      %v276 = vor.u32 %v271, %v275
      %v278 = vshll.u32 %v264, 16
      %v280 = vrot.slane %v278, 1
      %v281 = vsel %vm269, %v276, %v280
      %v282 = vshrl.u32 %v264, 16
      %v284 = vor.u32 %v282, %v280
      %v286 = vshll.u32 %v265, 16
      %v288 = vrot.slane %v286, 1
      %v289 = vsel %vm269, %v284, %v288
      %v290 = vshrl.u32 %v265, 16
      %v292 = vor.u32 %v290, %v288
      %v294 = vshll.u32 %v266, 16
      %v296 = vrot.slane %v294, 1
      %v297 = vsel %vm269, %v292, %v296
      %v298 = vshrl.u32 %v266, 16
      %v300 = vor.u32 %v298, %v296
      %v302 = vshll.u32 %v267, 16
      %v304 = vrot.slane %v302, 1
      %v305 = vsel %vm269, %v300, %v304
      %v306 = vshrl.u32 %v267, 16
      %v308 = vor.u32 %v306, %v304
      %v310 = vshll.u32 %v268, 16
      %v312 = vrot.slane %v310, 1
      %v313 = vsel %vm269, %v308, %v312
      %v318 = vunpack.c.l.b16 %v237
      %v319 = vunpack.c.l.b16 %v238
      %v320 = vunpack.c.l.b16 %v239
      %v321 = vunpack.c.l.b16 %v240
      %v322 = vpack.c.b16 %v319, %v318
      %v323 = vpack.c.b16 %v321, %v320
      %vm326 = vcmask 261120
      %v328 = vsel %vm326, %v281, 0
      %v331 = vsel %vm326, %v289, 0
      %v334 = vsel %vm326, %v297, 0
      %v337 = vsel %vm326, %v305, 0
      %v340 = vsel %vm326, %v313, 0
      %342 = vmatpush.bf16.msra.mxu0 0
      %343 = vmatpush.bf16.msra.mxu0 0
      %344 = vmatpush.bf16.msra.mxu0 0
      %345 = vmatpush.bf16.msra.mxu0 0
      %346 = vmatpush.bf16.msra.mxu0 0
      %347 = vmatpush.bf16.msra.mxu0 0
      %348 = vmatpush.bf16.msra.mxu0 %v323
      %349 = vmatpush.bf16.msra.mxu0 %v322
      %350 = vmatmul.bf16.gmra.mxu0 %v328
      %v351 = vpop.f32.mrf.mxu0
      %v352 = vadd.f32 0.0, %v351
      %v353 = vpop.f32.mrf.mxu0
      %v354 = vadd.f32 0.0, %v353
      %355 = vmatmul.bf16.gmra.mxu0 %v331
      %v356 = vpop.f32.mrf.mxu0
      %v357 = vadd.f32 0.0, %v356
      %v358 = vpop.f32.mrf.mxu0
      %v359 = vadd.f32 0.0, %v358
      %360 = vmatmul.bf16.gmra.mxu0 %v334
      %v361 = vpop.f32.mrf.mxu0
      %v362 = vadd.f32 0.0, %v361
      %v363 = vpop.f32.mrf.mxu0
      %v364 = vadd.f32 0.0, %v363
      %365 = vmatmul.bf16.gmra.mxu0 %v337
      %v366 = vpop.f32.mrf.mxu0
      %v367 = vadd.f32 0.0, %v366
      %v368 = vpop.f32.mrf.mxu0
      %v369 = vadd.f32 0.0, %v368
      %370 = vmatmul.bf16.gmra.mxu0 %v340
      %v371 = vpop.f32.mrf.mxu0
      %v372 = vadd.f32 0.0, %v371
      %v373 = vpop.f32.mrf.mxu0
      %v374 = vadd.f32 0.0, %v373
      %375 = vdwg.mxu0
      %v380 = vunpack.c.l.b16 %v232
      %v381 = vunpack.c.l.b16 %v233
      %v382 = vunpack.c.l.b16 %v234
      %v383 = vunpack.c.l.b16 %v235
      %v384 = vpack.c.b16 %v381, %v380
      %v385 = vpack.c.b16 %v383, %v382
      %v388 = vsel %vm326, %v263, 0
      %v390 = vsel %vm326, %v264, 0
      %v392 = vsel %vm326, %v265, 0
      %v394 = vsel %vm326, %v266, 0
      %v396 = vsel %vm326, %v267, 0
      %398 = vmatpush.bf16.msra.mxu0 0
      %399 = vmatpush.bf16.msra.mxu0 0
      %400 = vmatpush.bf16.msra.mxu0 0
      %401 = vmatpush.bf16.msra.mxu0 0
      %402 = vmatpush.bf16.msra.mxu0 0
      %403 = vmatpush.bf16.msra.mxu0 0
      %404 = vmatpush.bf16.msra.mxu0 %v385
      %405 = vmatpush.bf16.msra.mxu0 %v384
      %406 = vmatmul.bf16.gmra.mxu0 %v388
      %v407 = vpop.f32.mrf.mxu0
      %v408 = vadd.f32 %v352, %v407
      %v409 = vpop.f32.mrf.mxu0
      %v410 = vadd.f32 %v354, %v409
      %411 = vmatmul.bf16.gmra.mxu0 %v390
      %v412 = vpop.f32.mrf.mxu0
      %v413 = vadd.f32 %v357, %v412
      %v414 = vpop.f32.mrf.mxu0
      %v415 = vadd.f32 %v359, %v414
      %416 = vmatmul.bf16.gmra.mxu0 %v392
      %v417 = vpop.f32.mrf.mxu0
      %v418 = vadd.f32 %v362, %v417
      %v419 = vpop.f32.mrf.mxu0
      %v420 = vadd.f32 %v364, %v419
      %421 = vmatmul.bf16.gmra.mxu0 %v394
      %v422 = vpop.f32.mrf.mxu0
      %v423 = vadd.f32 %v367, %v422
      %v424 = vpop.f32.mrf.mxu0
      %v425 = vadd.f32 %v369, %v424
      %426 = vmatmul.bf16.gmra.mxu0 %v396
      %v427 = vpop.f32.mrf.mxu0
      %v428 = vadd.f32 %v372, %v427
      %v429 = vpop.f32.mrf.mxu0
      %v430 = vadd.f32 %v374, %v429
      %431 = vdwg.mxu0
      %v432 = vld [vmem:[%s208] sm:$0xe]
      %v433 = vld [vmem:[%s1 + $0x20] sm:$0xf]
      %v434 = vld [vmem:[%s1 + $0x24] sm:$0xf]
      %v435 = vld [vmem:[%s1 + $0x28] sm:$0xf]
      %v436 = vld [vmem:[%s1 + $0x2c] sm:$0xf]
      %v438 = vunpack.c.l.b16 %v432
      %v439 = vpack.c.b16 %v253, %v438
      %vm440 = vcmask 1046528
      %v441 = vrot.slane %v439, 1
      %v442 = vrot.slane %v264, 1
      %v443 = vsel %vm440, %v441, %v442
      %v444 = vrot.slane %v265, 1
      %v445 = vsel %vm440, %v442, %v444
      %v446 = vrot.slane %v266, 1
      %v447 = vsel %vm440, %v444, %v446
      %v448 = vrot.slane %v267, 1
      %v449 = vsel %vm440, %v446, %v448
      %v450 = vrot.slane %v268, 1
      %v451 = vsel %vm440, %v448, %v450
      %v456 = vunpack.c.l.b16 %v433
      %v457 = vunpack.c.l.b16 %v434
      %v458 = vunpack.c.l.b16 %v435
      %v459 = vunpack.c.l.b16 %v436
      %v460 = vpack.c.b16 %v457, %v456
      %v461 = vpack.c.b16 %v459, %v458
      %v465 = vsel %vm326, %v443, 0
      %v468 = vsel %vm326, %v445, 0
      %v471 = vsel %vm326, %v447, 0
      %v474 = vsel %vm326, %v449, 0
      %v477 = vsel %vm326, %v451, 0
      %479 = vmatpush.bf16.msra.mxu0 0
      %480 = vmatpush.bf16.msra.mxu0 0
      %481 = vmatpush.bf16.msra.mxu0 0
      %482 = vmatpush.bf16.msra.mxu0 0
      %483 = vmatpush.bf16.msra.mxu0 0
      %484 = vmatpush.bf16.msra.mxu0 0
      %485 = vmatpush.bf16.msra.mxu0 %v461
      %486 = vmatpush.bf16.msra.mxu0 %v460
      %487 = vmatmul.bf16.gmra.mxu0 %v465
      %v488 = vpop.f32.mrf.mxu0
      %v489 = vadd.f32 0.0, %v488
      %v490 = vpop.f32.mrf.mxu0
      %v491 = vadd.f32 0.0, %v490
      %492 = vmatmul.bf16.gmra.mxu0 %v468
      %v493 = vpop.f32.mrf.mxu0
      %v494 = vadd.f32 0.0, %v493
      %v495 = vpop.f32.mrf.mxu0
      %v496 = vadd.f32 0.0, %v495
      %497 = vmatmul.bf16.gmra.mxu0 %v471
      %v498 = vpop.f32.mrf.mxu0
      %v499 = vadd.f32 0.0, %v498
      %v500 = vpop.f32.mrf.mxu0
      %v501 = vadd.f32 0.0, %v500
      %502 = vmatmul.bf16.gmra.mxu0 %v474
      %v503 = vpop.f32.mrf.mxu0
      %v504 = vadd.f32 0.0, %v503
      %v505 = vpop.f32.mrf.mxu0
      %v506 = vadd.f32 0.0, %v505
      %507 = vmatmul.bf16.gmra.mxu0 %v477
      %v508 = vpop.f32.mrf.mxu0
      %v509 = vadd.f32 0.0, %v508
      %v510 = vpop.f32.mrf.mxu0
      %v511 = vadd.f32 0.0, %v510
      %512 = vdwg.mxu0
      %v513 = vadd.f32 %v408, %v489
      %v514 = vadd.f32 %v410, %v491
      %v515 = vadd.f32 %v413, %v494
      %v516 = vadd.f32 %v415, %v496
      %v517 = vadd.f32 %v418, %v499
      %v518 = vadd.f32 %v420, %v501
      %v519 = vadd.f32 %v423, %v504
      %v520 = vadd.f32 %v425, %v506
      %v521 = vadd.f32 %v428, %v509
      %v522 = vadd.f32 %v430, %v511
      %v523 = vld [vmem:[%s208 + $0x4] sm:$0xe]
      %v524 = vld [vmem:[%s208 + $0x8] sm:$0xf]
      %v525 = vld [vmem:[%s208 + $0xc] sm:$0xf]
      %v526 = vld [vmem:[%s208 + $0x10] sm:$0xf]
      %v527 = vld [vmem:[%s208 + $0x14] sm:$0xf]
      %v528 = vld [vmem:[%s208 + $0x18] sm:$0xf]
      %v529 = vld [vmem:[%s208 + $0x1c] sm:$0xf]
      %v530 = vld [vmem:[%s208 + $0x20] sm:$0xf]
      %v531 = vld [vmem:[%s208 + $0x24] sm:$0xf]
      %v532 = vld [vmem:[%s208 + $0x28] sm:$0xf]
      %v533 = vld [vmem:[%s208 + $0x2c] sm:$0x1]
      %v534 = vld [vmem:[%s1 + $0x30] sm:$0xf]
      %v535 = vld [vmem:[%s1 + $0x34] sm:$0xf]
      %v536 = vld [vmem:[%s1 + $0x38] sm:$0xf]
      %v537 = vld [vmem:[%s1 + $0x3c] sm:$0xf]
      %v549 = vunpack.c.l.b16 %v523
      %v550 = vunpack.c.l.b16 %v524
      %v551 = vunpack.c.l.b16 %v525
      %v552 = vunpack.c.l.b16 %v526
      %v553 = vunpack.c.l.b16 %v527
      %v554 = vunpack.c.l.b16 %v528
      %v555 = vunpack.c.l.b16 %v529
      %v556 = vunpack.c.l.b16 %v530
      %v557 = vunpack.c.l.b16 %v531
      %v558 = vunpack.c.l.b16 %v532
      %v559 = vunpack.c.l.b16 %v533
      %v560 = vpack.c.b16 %v550, %v549
      %v561 = vpack.c.b16 %v552, %v551
      %v562 = vpack.c.b16 %v554, %v553
      %v563 = vpack.c.b16 %v556, %v555
      %v564 = vpack.c.b16 %v558, %v557
      %v565 = vpack.c.b16 %v559, %v559
      %v566 = vrot.slane %v560, 1
      %v567 = vrot.slane %v561, 1
      %v568 = vsel %vm440, %v566, %v567
      %v569 = vrot.slane %v562, 1
      %v570 = vsel %vm440, %v567, %v569
      %v571 = vrot.slane %v563, 1
      %v572 = vsel %vm440, %v569, %v571
      %v573 = vrot.slane %v564, 1
      %v574 = vsel %vm440, %v571, %v573
      %v575 = vrot.slane %v565, 1
      %v576 = vsel %vm440, %v573, %v575
      %v581 = vunpack.c.l.b16 %v534
      %v582 = vunpack.c.l.b16 %v535
      %v583 = vunpack.c.l.b16 %v536
      %v584 = vunpack.c.l.b16 %v537
      %v585 = vpack.c.b16 %v582, %v581
      %v586 = vpack.c.b16 %v584, %v583
      %v590 = vsel %vm326, %v568, 0
      %v593 = vsel %vm326, %v570, 0
      %v596 = vsel %vm326, %v572, 0
      %v599 = vsel %vm326, %v574, 0
      %v602 = vsel %vm326, %v576, 0
      %604 = vmatpush.bf16.msra.mxu0 0
      %605 = vmatpush.bf16.msra.mxu0 0
      %606 = vmatpush.bf16.msra.mxu0 0
      %607 = vmatpush.bf16.msra.mxu0 0
      %608 = vmatpush.bf16.msra.mxu0 0
      %609 = vmatpush.bf16.msra.mxu0 0
      %610 = vmatpush.bf16.msra.mxu0 %v586
      %611 = vmatpush.bf16.msra.mxu0 %v585
      %612 = vmatmul.bf16.gmra.mxu0 %v590
      %v613 = vpop.f32.mrf.mxu0
      %v614 = vadd.f32 0.0, %v613
      %v615 = vpop.f32.mrf.mxu0
      %v616 = vadd.f32 0.0, %v615
      %617 = vmatmul.bf16.gmra.mxu0 %v593
      %v618 = vpop.f32.mrf.mxu0
      %v619 = vadd.f32 0.0, %v618
      %v620 = vpop.f32.mrf.mxu0
      %v621 = vadd.f32 0.0, %v620
      %622 = vmatmul.bf16.gmra.mxu0 %v596
      %v623 = vpop.f32.mrf.mxu0
      %v624 = vadd.f32 0.0, %v623
      %v625 = vpop.f32.mrf.mxu0
      %v626 = vadd.f32 0.0, %v625
      %627 = vmatmul.bf16.gmra.mxu0 %v599
      %v628 = vpop.f32.mrf.mxu0
      %v629 = vadd.f32 0.0, %v628
      %v630 = vpop.f32.mrf.mxu0
      %v631 = vadd.f32 0.0, %v630
      %632 = vmatmul.bf16.gmra.mxu0 %v602
      %v633 = vpop.f32.mrf.mxu0
      %v634 = vadd.f32 0.0, %v633
      %v635 = vpop.f32.mrf.mxu0
      %v636 = vadd.f32 0.0, %v635
      %637 = vdwg.mxu0
      %v638 = vadd.f32 %v513, %v614
      %v639 = vadd.f32 %v514, %v616
      %v640 = vadd.f32 %v515, %v619
      %v641 = vadd.f32 %v516, %v621
      %v642 = vadd.f32 %v517, %v624
      %v643 = vadd.f32 %v518, %v626
      %v644 = vadd.f32 %v519, %v629
      %v645 = vadd.f32 %v520, %v631
      %v646 = vadd.f32 %v521, %v634
      %v647 = vadd.f32 %v522, %v636
      %v648 = vld [vmem:[%s208 + $0x2c] sm:$0x3]
      %v649 = vld [vmem:[%s1 + $0x40] sm:$0xf]
      %v650 = vld [vmem:[%s1 + $0x44] sm:$0xf]
      %v651 = vld [vmem:[%s1 + $0x48] sm:$0xf]
      %v652 = vld [vmem:[%s1 + $0x4c] sm:$0xf]
      %v654 = vunpack.c.l.b16 %v648
      %v655 = vpack.c.b16 %v654, %v654
      %vm656 = vsmask.f32 6400
      %v658 = vshrl.u32 %v560, 16
      %v660 = vrot.slane %v658, 1
      %v661 = vshll.u32 %v560, 16
      %v663 = vrot.slane %v661, 2
      %v664 = vor.u32 %v660, %v663
      %v666 = vshrl.u32 %v561, 16
      %v668 = vrot.slane %v666, 1
      %v669 = vshll.u32 %v561, 16
      %v671 = vrot.slane %v669, 2
      %v672 = vor.u32 %v668, %v671
      %v673 = vsel %vm656, %v664, %v672
      %v675 = vshrl.u32 %v562, 16
      %v677 = vrot.slane %v675, 1
      %v678 = vshll.u32 %v562, 16
      %v680 = vrot.slane %v678, 2
      %v681 = vor.u32 %v677, %v680
      %v682 = vsel %vm656, %v672, %v681
      %v684 = vshrl.u32 %v563, 16
      %v686 = vrot.slane %v684, 1
      %v687 = vshll.u32 %v563, 16
      %v689 = vrot.slane %v687, 2
      %v690 = vor.u32 %v686, %v689
      %v691 = vsel %vm656, %v681, %v690
      %v693 = vshrl.u32 %v564, 16
      %v695 = vrot.slane %v693, 1
      %v696 = vshll.u32 %v564, 16
      %v698 = vrot.slane %v696, 2
      %v699 = vor.u32 %v695, %v698
      %v700 = vsel %vm656, %v690, %v699
      %v702 = vshrl.u32 %v655, 16
      %v704 = vrot.slane %v702, 1
      %v705 = vshll.u32 %v655, 16
      %v707 = vrot.slane %v705, 2
      %v708 = vor.u32 %v704, %v707
      %v709 = vsel %vm656, %v699, %v708
      %v714 = vunpack.c.l.b16 %v649
      %v715 = vunpack.c.l.b16 %v650
      %v716 = vunpack.c.l.b16 %v651
      %v717 = vunpack.c.l.b16 %v652
      %v718 = vpack.c.b16 %v715, %v714
      %v719 = vpack.c.b16 %v717, %v716
      %v723 = vsel %vm326, %v673, 0
      %v726 = vsel %vm326, %v682, 0
      %v729 = vsel %vm326, %v691, 0
      %v732 = vsel %vm326, %v700, 0
      %v735 = vsel %vm326, %v709, 0
      %737 = vmatpush.bf16.msra.mxu0 0
      %738 = vmatpush.bf16.msra.mxu0 0
      %739 = vmatpush.bf16.msra.mxu0 0
      %740 = vmatpush.bf16.msra.mxu0 0
      %741 = vmatpush.bf16.msra.mxu0 0
      %742 = vmatpush.bf16.msra.mxu0 0
      %743 = vmatpush.bf16.msra.mxu0 %v719
      %744 = vmatpush.bf16.msra.mxu0 %v718
      %745 = vmatmul.bf16.gmra.mxu0 %v723
      %v746 = vpop.f32.mrf.mxu0
      %v747 = vadd.f32 0.0, %v746
      %v748 = vpop.f32.mrf.mxu0
      %v749 = vadd.f32 0.0, %v748
      %750 = vmatmul.bf16.gmra.mxu0 %v726
      %v751 = vpop.f32.mrf.mxu0
      %v752 = vadd.f32 0.0, %v751
      %v753 = vpop.f32.mrf.mxu0
      %v754 = vadd.f32 0.0, %v753
      %755 = vmatmul.bf16.gmra.mxu0 %v729
      %v756 = vpop.f32.mrf.mxu0
      %v757 = vadd.f32 0.0, %v756
      %v758 = vpop.f32.mrf.mxu0
      %v759 = vadd.f32 0.0, %v758
      %760 = vmatmul.bf16.gmra.mxu0 %v732
      %v761 = vpop.f32.mrf.mxu0
      %v762 = vadd.f32 0.0, %v761
      %v763 = vpop.f32.mrf.mxu0
      %v764 = vadd.f32 0.0, %v763
      %765 = vmatmul.bf16.gmra.mxu0 %v735
      %v766 = vpop.f32.mrf.mxu0
      %v767 = vadd.f32 0.0, %v766
      %v768 = vpop.f32.mrf.mxu0
      %v769 = vadd.f32 0.0, %v768
      %770 = vdwg.mxu0
      %v771 = vadd.f32 %v638, %v747
      %v772 = vadd.f32 %v639, %v749
      %v773 = vadd.f32 %v640, %v752
      %v774 = vadd.f32 %v641, %v754
      %v775 = vadd.f32 %v642, %v757
      %v776 = vadd.f32 %v643, %v759
      %v777 = vadd.f32 %v644, %v762
      %v778 = vadd.f32 %v645, %v764
      %v779 = vadd.f32 %v646, %v767
      %v780 = vadd.f32 %v647, %v769
      %v781 = vld [vmem:[%s208 + $0x4] sm:$0xc]
      %v782 = vld [vmem:[%s1 + $0x50] sm:$0xf]
      %v783 = vld [vmem:[%s1 + $0x54] sm:$0xf]
      %v784 = vld [vmem:[%s1 + $0x58] sm:$0xf]
      %v785 = vld [vmem:[%s1 + $0x5c] sm:$0xf]
      %v787 = vunpack.c.l.b16 %v781
      %v788 = vpack.c.b16 %v550, %v787
      %vm789 = vcmask 1045504
      %v790 = vrot.slane %v788, 2
      %v791 = vrot.slane %v561, 2
      %v792 = vsel %vm789, %v790, %v791
      %v793 = vrot.slane %v562, 2
      %v794 = vsel %vm789, %v791, %v793
      %v795 = vrot.slane %v563, 2
      %v796 = vsel %vm789, %v793, %v795
      %v797 = vrot.slane %v564, 2
      %v798 = vsel %vm789, %v795, %v797
      %v799 = vrot.slane %v655, 2
      %v800 = vsel %vm789, %v797, %v799
      %v805 = vunpack.c.l.b16 %v782
      %v806 = vunpack.c.l.b16 %v783
      %v807 = vunpack.c.l.b16 %v784
      %v808 = vunpack.c.l.b16 %v785
      %v809 = vpack.c.b16 %v806, %v805
      %v810 = vpack.c.b16 %v808, %v807
      %v814 = vsel %vm326, %v792, 0
      %v817 = vsel %vm326, %v794, 0
      %v820 = vsel %vm326, %v796, 0
      %v823 = vsel %vm326, %v798, 0
      %v826 = vsel %vm326, %v800, 0
      %828 = vmatpush.bf16.msra.mxu0 0
      %829 = vmatpush.bf16.msra.mxu0 0
      %830 = vmatpush.bf16.msra.mxu0 0
      %831 = vmatpush.bf16.msra.mxu0 0
      %832 = vmatpush.bf16.msra.mxu0 0
      %833 = vmatpush.bf16.msra.mxu0 0
      %834 = vmatpush.bf16.msra.mxu0 %v810
      %835 = vmatpush.bf16.msra.mxu0 %v809
      %836 = vmatmul.bf16.gmra.mxu0 %v814
      %v837 = vpop.f32.mrf.mxu0
      %v838 = vadd.f32 0.0, %v837
      %v839 = vpop.f32.mrf.mxu0
      %v840 = vadd.f32 0.0, %v839
      %841 = vmatmul.bf16.gmra.mxu0 %v817
      %v842 = vpop.f32.mrf.mxu0
      %v843 = vadd.f32 0.0, %v842
      %v844 = vpop.f32.mrf.mxu0
      %v845 = vadd.f32 0.0, %v844
      %846 = vmatmul.bf16.gmra.mxu0 %v820
      %v847 = vpop.f32.mrf.mxu0
      %v848 = vadd.f32 0.0, %v847
      %v849 = vpop.f32.mrf.mxu0
      %v850 = vadd.f32 0.0, %v849
      %851 = vmatmul.bf16.gmra.mxu0 %v823
      %v852 = vpop.f32.mrf.mxu0
      %v853 = vadd.f32 0.0, %v852
      %v854 = vpop.f32.mrf.mxu0
      %v855 = vadd.f32 0.0, %v854
      %856 = vmatmul.bf16.gmra.mxu0 %v826
      %v857 = vpop.f32.mrf.mxu0
      %v858 = vadd.f32 0.0, %v857
      %v859 = vpop.f32.mrf.mxu0
      %v860 = vadd.f32 0.0, %v859
      %861 = vdwg.mxu0
      %v862 = vadd.f32 %v771, %v838
      %v863 = vadd.f32 %v772, %v840
      %v864 = vadd.f32 %v773, %v843
      %v865 = vadd.f32 %v774, %v845
      %v866 = vadd.f32 %v775, %v848
      %v867 = vadd.f32 %v776, %v850
      %v868 = vadd.f32 %v777, %v853
      %v869 = vadd.f32 %v778, %v855
      %v870 = vadd.f32 %v779, %v858
      %v871 = vadd.f32 %v780, %v860
      %v872 = vld [vmem:[%s208 + $0x8] sm:$0xc]
      %v873 = vld [vmem:[%s208 + $0xc] sm:$0xf]
      %v874 = vld [vmem:[%s208 + $0x10] sm:$0xf]
      %v875 = vld [vmem:[%s208 + $0x14] sm:$0xf]
      %v876 = vld [vmem:[%s208 + $0x18] sm:$0xf]
      %v877 = vld [vmem:[%s208 + $0x1c] sm:$0xf]
      %v878 = vld [vmem:[%s208 + $0x20] sm:$0xf]
      %v879 = vld [vmem:[%s208 + $0x24] sm:$0xf]
      %v880 = vld [vmem:[%s208 + $0x28] sm:$0xf]
      %v881 = vld [vmem:[%s208 + $0x2c] sm:$0xf]
      %v882 = vld [vmem:[%s208 + $0x30] sm:$0x3]
      %v883 = vld [vmem:[%s1 + $0x60] sm:$0xf]
      %v884 = vld [vmem:[%s1 + $0x64] sm:$0xf]
      %v885 = vld [vmem:[%s1 + $0x68] sm:$0xf]
      %v886 = vld [vmem:[%s1 + $0x6c] sm:$0xf]
      %v898 = vunpack.c.l.b16 %v872
      %v899 = vunpack.c.l.b16 %v873
      %v900 = vunpack.c.l.b16 %v874
      %v901 = vunpack.c.l.b16 %v875
      %v902 = vunpack.c.l.b16 %v876
      %v903 = vunpack.c.l.b16 %v877
      %v904 = vunpack.c.l.b16 %v878
      %v905 = vunpack.c.l.b16 %v879
      %v906 = vunpack.c.l.b16 %v880
      %v907 = vunpack.c.l.b16 %v881
      %v908 = vunpack.c.l.b16 %v882
      %v909 = vpack.c.b16 %v899, %v898
      %v910 = vpack.c.b16 %v901, %v900
      %v911 = vpack.c.b16 %v903, %v902
      %v912 = vpack.c.b16 %v905, %v904
      %v913 = vpack.c.b16 %v907, %v906
      %v914 = vpack.c.b16 %v908, %v908
      %v915 = vrot.slane %v909, 2
      %v916 = vrot.slane %v910, 2
      %v917 = vsel %vm789, %v915, %v916
      %v918 = vrot.slane %v911, 2
      %v919 = vsel %vm789, %v916, %v918
      %v920 = vrot.slane %v912, 2
      %v921 = vsel %vm789, %v918, %v920
      %v922 = vrot.slane %v913, 2
      %v923 = vsel %vm789, %v920, %v922
      %v924 = vrot.slane %v914, 2
      %v925 = vsel %vm789, %v922, %v924
      %v930 = vunpack.c.l.b16 %v883
      %v931 = vunpack.c.l.b16 %v884
      %v932 = vunpack.c.l.b16 %v885
      %v933 = vunpack.c.l.b16 %v886
      %v934 = vpack.c.b16 %v931, %v930
      %v935 = vpack.c.b16 %v933, %v932
      %v939 = vsel %vm326, %v917, 0
      %v942 = vsel %vm326, %v919, 0
      %v945 = vsel %vm326, %v921, 0
      %v948 = vsel %vm326, %v923, 0
      %v951 = vsel %vm326, %v925, 0
      %953 = vmatpush.bf16.msra.mxu0 0
      %954 = vmatpush.bf16.msra.mxu0 0
      %955 = vmatpush.bf16.msra.mxu0 0
      %956 = vmatpush.bf16.msra.mxu0 0
      %957 = vmatpush.bf16.msra.mxu0 0
      %958 = vmatpush.bf16.msra.mxu0 0
      %959 = vmatpush.bf16.msra.mxu0 %v935
      %960 = vmatpush.bf16.msra.mxu0 %v934
      %961 = vmatmul.bf16.gmra.mxu0 %v939
      %v962 = vpop.f32.mrf.mxu0
      %v963 = vadd.f32 0.0, %v962
      %v964 = vpop.f32.mrf.mxu0
      %v965 = vadd.f32 0.0, %v964
      %966 = vmatmul.bf16.gmra.mxu0 %v942
      %v967 = vpop.f32.mrf.mxu0
      %v968 = vadd.f32 0.0, %v967
      %v969 = vpop.f32.mrf.mxu0
      %v970 = vadd.f32 0.0, %v969
      %971 = vmatmul.bf16.gmra.mxu0 %v945
      %v972 = vpop.f32.mrf.mxu0
      %v973 = vadd.f32 0.0, %v972
      %v974 = vpop.f32.mrf.mxu0
      %v975 = vadd.f32 0.0, %v974
      %976 = vmatmul.bf16.gmra.mxu0 %v948
      %v977 = vpop.f32.mrf.mxu0
      %v978 = vadd.f32 0.0, %v977
      %v979 = vpop.f32.mrf.mxu0
      %v980 = vadd.f32 0.0, %v979
      %981 = vmatmul.bf16.gmra.mxu0 %v951
      %v982 = vpop.f32.mrf.mxu0
      %v983 = vadd.f32 0.0, %v982
      %v984 = vpop.f32.mrf.mxu0
      %v985 = vadd.f32 0.0, %v984
      %986 = vdwg.mxu0
      %v987 = vadd.f32 %v862, %v963
      %v988 = vadd.f32 %v863, %v965
      %v989 = vadd.f32 %v864, %v968
      %v990 = vadd.f32 %v865, %v970
      %v991 = vadd.f32 %v866, %v973
      %v992 = vadd.f32 %v867, %v975
      %v993 = vadd.f32 %v868, %v978
      %v994 = vadd.f32 %v869, %v980
      %v995 = vadd.f32 %v870, %v983
      %v996 = vadd.f32 %v871, %v985
      %v997 = vld [vmem:[%s208 + $0x30] sm:$0x7]
      %v998 = vld [vmem:[%s1 + $0x70] sm:$0xf]
      %v999 = vld [vmem:[%s1 + $0x74] sm:$0xf]
      %v1000 = vld [vmem:[%s1 + $0x78] sm:$0xf]
      %v1001 = vld [vmem:[%s1 + $0x7c] sm:$0xf]
      %v1003 = vunpack.c.l.b16 %v997
      %v1004 = vpack.c.b16 %v1003, %v1003
      %vm1005 = vsmask.f32 5376
      %v1007 = vshrl.u32 %v909, 16
      %v1009 = vrot.slane %v1007, 2
      %v1010 = vshll.u32 %v909, 16
      %v1012 = vrot.slane %v1010, 3
      %v1013 = vor.u32 %v1009, %v1012
      %v1015 = vshrl.u32 %v910, 16
      %v1017 = vrot.slane %v1015, 2
      %v1018 = vshll.u32 %v910, 16
      %v1020 = vrot.slane %v1018, 3
      %v1021 = vor.u32 %v1017, %v1020
      %v1022 = vsel %vm1005, %v1013, %v1021
      %v1024 = vshrl.u32 %v911, 16
      %v1026 = vrot.slane %v1024, 2
      %v1027 = vshll.u32 %v911, 16
      %v1029 = vrot.slane %v1027, 3
      %v1030 = vor.u32 %v1026, %v1029
      %v1031 = vsel %vm1005, %v1021, %v1030
      %v1033 = vshrl.u32 %v912, 16
      %v1035 = vrot.slane %v1033, 2
      %v1036 = vshll.u32 %v912, 16
      %v1038 = vrot.slane %v1036, 3
      %v1039 = vor.u32 %v1035, %v1038
      %v1040 = vsel %vm1005, %v1030, %v1039
      %v1042 = vshrl.u32 %v913, 16
      %v1044 = vrot.slane %v1042, 2
      %v1045 = vshll.u32 %v913, 16
      %v1047 = vrot.slane %v1045, 3
      %v1048 = vor.u32 %v1044, %v1047
      %v1049 = vsel %vm1005, %v1039, %v1048
      %v1051 = vshrl.u32 %v1004, 16
      %v1053 = vrot.slane %v1051, 2
      %v1054 = vshll.u32 %v1004, 16
      %v1056 = vrot.slane %v1054, 3
      %v1057 = vor.u32 %v1053, %v1056
      %v1058 = vsel %vm1005, %v1048, %v1057
      %v1063 = vunpack.c.l.b16 %v998
      %v1064 = vunpack.c.l.b16 %v999
      %v1065 = vunpack.c.l.b16 %v1000
      %v1066 = vunpack.c.l.b16 %v1001
      %v1067 = vpack.c.b16 %v1064, %v1063
      %v1068 = vpack.c.b16 %v1066, %v1065
      %v1072 = vsel %vm326, %v1022, 0
      %v1075 = vsel %vm326, %v1031, 0
      %v1078 = vsel %vm326, %v1040, 0
      %v1081 = vsel %vm326, %v1049, 0
      %v1084 = vsel %vm326, %v1058, 0
      %1086 = vmatpush.bf16.msra.mxu0 0
      %1087 = vmatpush.bf16.msra.mxu0 0
      %1088 = vmatpush.bf16.msra.mxu0 0
      %1089 = vmatpush.bf16.msra.mxu0 0
      %1090 = vmatpush.bf16.msra.mxu0 0
      %1091 = vmatpush.bf16.msra.mxu0 0
      %1092 = vmatpush.bf16.msra.mxu0 %v1068
      %1093 = vmatpush.bf16.msra.mxu0 %v1067
      %1094 = vmatmul.bf16.gmra.mxu0 %v1072
      %v1095 = vpop.f32.mrf.mxu0
      %v1096 = vadd.f32 0.0, %v1095
      %v1097 = vpop.f32.mrf.mxu0
      %v1098 = vadd.f32 0.0, %v1097
      %1099 = vmatmul.bf16.gmra.mxu0 %v1075
      %v1100 = vpop.f32.mrf.mxu0
      %v1101 = vadd.f32 0.0, %v1100
      %v1102 = vpop.f32.mrf.mxu0
      %v1103 = vadd.f32 0.0, %v1102
      %1104 = vmatmul.bf16.gmra.mxu0 %v1078
      %v1105 = vpop.f32.mrf.mxu0
      %v1106 = vadd.f32 0.0, %v1105
      %v1107 = vpop.f32.mrf.mxu0
      %v1108 = vadd.f32 0.0, %v1107
      %1109 = vmatmul.bf16.gmra.mxu0 %v1081
      %v1110 = vpop.f32.mrf.mxu0
      %v1111 = vadd.f32 0.0, %v1110
      %v1112 = vpop.f32.mrf.mxu0
      %v1113 = vadd.f32 0.0, %v1112
      %1114 = vmatmul.bf16.gmra.mxu0 %v1084
      %v1115 = vpop.f32.mrf.mxu0
      %v1116 = vadd.f32 0.0, %v1115
      %v1117 = vpop.f32.mrf.mxu0
      %v1118 = vadd.f32 0.0, %v1117
      %1119 = vdwg.mxu0
      %v1120 = vadd.f32 %v987, %v1096
      %v1121 = vadd.f32 %v988, %v1098
      %v1122 = vadd.f32 %v989, %v1101
      %v1123 = vadd.f32 %v990, %v1103
      %v1124 = vadd.f32 %v991, %v1106
      %v1125 = vadd.f32 %v992, %v1108
      %v1126 = vadd.f32 %v993, %v1111
      %v1127 = vadd.f32 %v994, %v1113
      %v1128 = vadd.f32 %v995, %v1116
      %v1129 = vadd.f32 %v996, %v1118
      %v1130 = vld [vmem:[%s208 + $0x8] sm:$0x8]
      %v1131 = vld [vmem:[%s1 + $0x80] sm:$0xf]
      %v1132 = vld [vmem:[%s1 + $0x84] sm:$0xf]
      %v1133 = vld [vmem:[%s1 + $0x88] sm:$0xf]
      %v1134 = vld [vmem:[%s1 + $0x8c] sm:$0xf]
      %v1136 = vunpack.c.l.b16 %v1130
      %v1137 = vpack.c.b16 %v899, %v1136
      %vm1138 = vcmask 1044480
      %v1139 = vrot.slane %v1137, 3
      %v1140 = vrot.slane %v910, 3
      %v1141 = vsel %vm1138, %v1139, %v1140
      %v1142 = vrot.slane %v911, 3
      %v1143 = vsel %vm1138, %v1140, %v1142
      %v1144 = vrot.slane %v912, 3
      %v1145 = vsel %vm1138, %v1142, %v1144
      %v1146 = vrot.slane %v913, 3
      %v1147 = vsel %vm1138, %v1144, %v1146
      %v1148 = vrot.slane %v1004, 3
      %v1149 = vsel %vm1138, %v1146, %v1148
      %v1154 = vunpack.c.l.b16 %v1131
      %v1155 = vunpack.c.l.b16 %v1132
      %v1156 = vunpack.c.l.b16 %v1133
      %v1157 = vunpack.c.l.b16 %v1134
      %v1158 = vpack.c.b16 %v1155, %v1154
      %v1159 = vpack.c.b16 %v1157, %v1156
      %v1163 = vsel %vm326, %v1141, 0
      %v1166 = vsel %vm326, %v1143, 0
      %v1169 = vsel %vm326, %v1145, 0
      %v1172 = vsel %vm326, %v1147, 0
      %v1175 = vsel %vm326, %v1149, 0
      %1177 = vmatpush.bf16.msra.mxu0 0
      %1178 = vmatpush.bf16.msra.mxu0 0
      %1179 = vmatpush.bf16.msra.mxu0 0
      %1180 = vmatpush.bf16.msra.mxu0 0
      %1181 = vmatpush.bf16.msra.mxu0 0
      %1182 = vmatpush.bf16.msra.mxu0 0
      %1183 = vmatpush.bf16.msra.mxu0 %v1159
      %1184 = vmatpush.bf16.msra.mxu0 %v1158
      %1185 = vmatmul.bf16.gmra.mxu0 %v1163
      %v1186 = vpop.f32.mrf.mxu0
      %v1187 = vadd.f32 0.0, %v1186
      %v1188 = vpop.f32.mrf.mxu0
      %v1189 = vadd.f32 0.0, %v1188
      %1190 = vmatmul.bf16.gmra.mxu0 %v1166
      %v1191 = vpop.f32.mrf.mxu0
      %v1192 = vadd.f32 0.0, %v1191
      %v1193 = vpop.f32.mrf.mxu0
      %v1194 = vadd.f32 0.0, %v1193
      %1195 = vmatmul.bf16.gmra.mxu0 %v1169
      %v1196 = vpop.f32.mrf.mxu0
      %v1197 = vadd.f32 0.0, %v1196
      %v1198 = vpop.f32.mrf.mxu0
      %v1199 = vadd.f32 0.0, %v1198
      %1200 = vmatmul.bf16.gmra.mxu0 %v1172
      %v1201 = vpop.f32.mrf.mxu0
      %v1202 = vadd.f32 0.0, %v1201
      %v1203 = vpop.f32.mrf.mxu0
      %v1204 = vadd.f32 0.0, %v1203
      %1205 = vmatmul.bf16.gmra.mxu0 %v1175
      %v1206 = vpop.f32.mrf.mxu0
      %v1207 = vadd.f32 0.0, %v1206
      %v1208 = vpop.f32.mrf.mxu0
      %v1209 = vadd.f32 0.0, %v1208
      %1210 = vdwg.mxu0
      %v1211 = vadd.f32 %v1120, %v1187
      %v1212 = vadd.f32 %v1121, %v1189
      %v1213 = vadd.f32 %v1122, %v1192
      %v1214 = vadd.f32 %v1123, %v1194
      %v1215 = vadd.f32 %v1124, %v1197
      %v1216 = vadd.f32 %v1125, %v1199
      %v1217 = vadd.f32 %v1126, %v1202
      %v1218 = vadd.f32 %v1127, %v1204
      %v1219 = vadd.f32 %v1128, %v1207
      %v1220 = vadd.f32 %v1129, %v1209
      %v1221 = vld [vmem:[%s2] sm:$0x1]
      %v1223 = vperm.slane %v1221, 0
      %v1225 = vadd.f32 %v1211, %v1223
      %v1226 = vadd.f32 %v1212, %v1223
      %v1227 = vadd.f32 %v1213, %v1223
      %v1228 = vadd.f32 %v1214, %v1223
      %v1229 = vadd.f32 %v1215, %v1223
      %v1230 = vadd.f32 %v1216, %v1223
      %v1231 = vadd.f32 %v1217, %v1223
      %v1232 = vadd.f32 %v1218, %v1223
      %v1233 = vadd.f32 %v1219, %v1223
      %v1234 = vadd.f32 %v1220, %v1223
      %v1235 = vld [vmem:[%s213] sm:$0xf]
      %v1236 = vld [vmem:[%s213 + $0x4] sm:$0xf]
      %v1237 = vld [vmem:[%s213 + $0x8] sm:$0xf]
      %v1238 = vld [vmem:[%s213 + $0xc] sm:$0xf]
      %v1239 = vld [vmem:[%s213 + $0x10] sm:$0xf]
      %v1240 = vld [vmem:[%s213 + $0x14] sm:$0xf]
      %v1241 = vld [vmem:[%s213 + $0x18] sm:$0xf]
      %v1242 = vld [vmem:[%s213 + $0x1c] sm:$0xf]
      %v1243 = vld [vmem:[%s213 + $0x20] sm:$0xf]
      %v1244 = vld [vmem:[%s213 + $0x24] sm:$0xf]
      %v1245 = vunpack.c.l.bf16 %v1235
      %v1246 = vunpack.c.l.bf16 %v1236
      %v1247 = vunpack.c.l.bf16 %v1237
      %v1248 = vunpack.c.l.bf16 %v1238
      %v1249 = vunpack.c.l.bf16 %v1239
      %v1250 = vunpack.c.l.bf16 %v1240
      %v1251 = vunpack.c.l.bf16 %v1241
      %v1252 = vunpack.c.l.bf16 %v1242
      %v1253 = vunpack.c.l.bf16 %v1243
      %v1254 = vunpack.c.l.bf16 %v1244
      %v1255 = vadd.f32 %v1225, %v1245
      %v1256 = vadd.f32 %v1226, %v1246
      %v1257 = vadd.f32 %v1227, %v1247
      %v1258 = vadd.f32 %v1228, %v1248
      %v1259 = vadd.f32 %v1229, %v1249
      %v1260 = vadd.f32 %v1230, %v1250
      %v1261 = vadd.f32 %v1231, %v1251
      %v1262 = vadd.f32 %v1232, %v1252
      %v1263 = vadd.f32 %v1233, %v1253
      %v1264 = vadd.f32 %v1234, %v1254
      %v1265 = vmax.f32 %v1255, 0.0
      %v1266 = vmax.f32 %v1256, 0.0
      %v1267 = vmax.f32 %v1257, 0.0
      %v1268 = vmax.f32 %v1258, 0.0
      %v1269 = vmax.f32 %v1259, 0.0
      %v1270 = vmax.f32 %v1260, 0.0
      %v1271 = vmax.f32 %v1261, 0.0
      %v1272 = vmax.f32 %v1262, 0.0
      %v1273 = vmax.f32 %v1263, 0.0
      %v1274 = vmax.f32 %v1264, 0.0
      %v1275 = vpack.c.bf16 %v1265, %v1265
      %v1276 = vpack.c.bf16 %v1266, %v1266
      %v1277 = vpack.c.bf16 %v1267, %v1267
      %v1278 = vpack.c.bf16 %v1268, %v1268
      %v1279 = vpack.c.bf16 %v1269, %v1269
      %v1280 = vpack.c.bf16 %v1270, %v1270
      %v1281 = vpack.c.bf16 %v1271, %v1271
      %v1282 = vpack.c.bf16 %v1272, %v1272
      %v1283 = vpack.c.bf16 %v1273, %v1273
      %v1284 = vpack.c.bf16 %v1274, %v1274
      %vm1285 = vcmask 257024
      %1286 = vst.msk [vmem:[%s219] sm:$0xf] %vm1285, %v1275
      %1287 = vst.msk [vmem:[%s219 + $0x4] sm:$0xf] %vm1285, %v1276
      %1288 = vst.msk [vmem:[%s219 + $0x8] sm:$0xf] %vm1285, %v1277
      %1289 = vst.msk [vmem:[%s219 + $0xc] sm:$0xf] %vm1285, %v1278
      %1290 = vst.msk [vmem:[%s219 + $0x10] sm:$0xf] %vm1285, %v1279
      %1291 = vst.msk [vmem:[%s219 + $0x14] sm:$0xf] %vm1285, %v1280
      %1292 = vst.msk [vmem:[%s219 + $0x18] sm:$0xf] %vm1285, %v1281
      %1293 = vst.msk [vmem:[%s219 + $0x1c] sm:$0xf] %vm1285, %v1282
      %1294 = vst.msk [vmem:[%s219 + $0x20] sm:$0xf] %vm1285, %v1283
      %1295 = vst.msk [vmem:[%s219 + $0x24] sm:$0xf] %vm1285, %v1284
      %s1296 = smul.u32 10, %s15
      %p1297 = scmp.lt.s32.totalorder %s1296, 19
      %s1298 = scalar_select %p1297, %s1296, 19
      %s1299 = smul.addr %s1298, 4
      %s1300 = scalar_lea.vmem %s4, %s1299
      // Predicated region
      $region37: #{_lambda_.12} parent=35 // pred_check
        %p1301 = pneg %p127
      $region38: #{_lambda_.12} parent=35 // pred_check_branch
        %1303 = sbr.rel (%p1301) target = $region40
      $region39: #{_lambda_.12} parent=35 // pred_region
        %s1304 = smul.u32 10, %s15
      $region40: #{_lambda_.12} parent=35 // pred_fallthru
        _
    $region36: #{_lambda_.12} parent=5 // pred_fallthru
      _
    %p1305 = scmp.le.s32.totalorder 2, %s10
    // Predicated region
    $region41: #{_lambda_.12} parent=5 // pred_check
      %p1306 = pneg %p1305
    $region42: #{_lambda_.12} parent=5 // pred_check_branch
      %1308 = sbr.rel (%p1306) target = $region44
    $region43: #{_lambda_.12} parent=5 // pred_region
      %s1309 = ssub.s32 %s10, 2
      // Predicated region
      $region45: #{_lambda_.12} parent=43 // pred_check
        %p1310 = pneg %p133
      $region46: #{_lambda_.12} parent=43 // pred_check_branch
        %1312 = sbr.rel (%p1310) target = $region48
      $region47: #{_lambda_.12} parent=43 // pred_region
        %s1313 = smul.u32 10, %s16
        %p1314 = scmp.lt.s32.totalorder %s1313, 19
        %s1315 = scalar_select %p1314, %s1313, 19
        %s1316 = smul.addr %s1315, 4
        %s1317 = scalar_lea.vmem %s4, %s1316
      $region48: #{_lambda_.12} parent=43 // pred_fallthru
        _
    $region44: #{_lambda_.12} parent=5 // pred_fallthru
      _
  $region6: #{_lambda_.12} parent=0 // loop_footer
    %s14 = sadd.s32 1, %s10
  $region7: #{_lambda_.12} parent=0 // loop_footer_branch
    %9 = sbr.rel target = $region3
  $region8: #{_lambda_.12} parent=0 // loop_exit
    _

// kernel: _lambda_.15
$region0: #{_lambda_.15}
  #allocation0 [shape = 'u32[]', space=smem, size = 0x4, offset = 0x4, fixed_abs, tag = 'smem constant byte address 0x4 - core index']
  #allocation1 [shape = 'u32[72,128]{1,0:T(1,128)}', space=vmem, size = 0x9000, scoped, tag = 'internal scratch']
  %s0 = inlined_call_operand.vmem [shape: bf16[2,16,64], index: 0, kind: input, shape index: {}]
  %s1 = inlined_call_operand.vmem [shape: bf16[64,128], index: 1, kind: input, shape index: {}]
  %s2 = inlined_call_operand.vmem [shape: f32[1,128], index: 2, kind: input, shape index: {}]
  %s3 = inlined_call_operand.hbm [shape: f32[2,128], index: 3, kind: output, shape index: {}]
  %s4 = sld [smem:[#allocation0]]
  $region22: #{_lambda_.15} parent=0
    _
  %s6 = ssub.s32 1, %s4
  %s7 = scalar_select 0, %s6, %s4
  $region1: #{_lambda_.15} parent=0
    #allocation2 [shape = 'u8[1024]{0}', space=vmem, size = 0x400, scoped, tag = 'output window, operand 0, single buffered']
    #allocation3 [shape = 's32[1]{0}', space=sflag, size = 0x4, scoped, tag = 'scoped memory for _lambda_.15']
    %8 = vsyncpa [#allocation3], 0
    // Predicated region
    $region2: #{_lambda_.15} parent=1 // pred_check
      _
    $region3: #{_lambda_.15} parent=1 // pred_check_branch
      %10 = sbr.rel (0) target = $region5
    $region4: #{_lambda_.15} parent=1 // pred_region
      _
    $region5: #{_lambda_.15} parent=1 // pred_fallthru
      _
    // Predicated region
    $region6: #{_lambda_.15} parent=1 // pred_check
      _
    $region7: #{_lambda_.15} parent=1 // pred_check_branch
      %12 = sbr.rel (0) target = $region9
    $region8: #{_lambda_.15} parent=1 // pred_region
      _
    $region9: #{_lambda_.15} parent=1 // pred_fallthru
      _
    // Predicated region
    $region10: #{_lambda_.15} parent=1 // pred_check
      _
    $region11: #{_lambda_.15} parent=1 // pred_check_branch
      %14 = sbr.rel (0) target = $region13
    $region12: #{_lambda_.15} parent=1 // pred_region
      _
    $region13: #{_lambda_.15} parent=1 // pred_fallthru
      _
    %v16 = vld [vmem:[%s0] sm:$0xf]
    %v17 = vld [vmem:[%s0 + $0x4] sm:$0xf]
    %v18 = vld [vmem:[%s0 + $0x8] sm:$0xf]
    %v19 = vld [vmem:[%s0 + $0xc] sm:$0xf]
    %v20 = vunpack.c.l.bf16 %v16
    %v21 = vunpack.c.l.bf16 %v17
    %v22 = vunpack.c.l.bf16 %v18
    %v23 = vunpack.c.l.bf16 %v19
    %vm24 = vcmask 523264
    %v25 = vsel %vm24, %v20, 0.0
    %v26 = vsel %vm24, %v21, 0.0
    %v27 = vadd.f32 %v25, %v26
    %v28 = vrot.slane %v27, 4
    %v29 = vadd.f32 %v27, %v28
    %v30 = vrot.slane %v29, 2
    %v31 = vadd.f32 %v29, %v30
    %v32 = vrot.slane %v31, 1
    %v33 = vadd.f32 %v31, %v32
    %v34 = vsel %vm24, %v22, 0.0
    %v35 = vsel %vm24, %v23, 0.0
    %v36 = vadd.f32 %v34, %v35
    %v37 = vrot.slane %v36, 4
    %v38 = vadd.f32 %v36, %v37
    %v39 = vrot.slane %v38, 2
    %v40 = vadd.f32 %v38, %v39
    %v41 = vrot.slane %v40, 1
    %v42 = vadd.f32 %v40, %v41
    %v43 = vmul.f32 %v33, 0.0625
    %v44 = vmul.f32 %v42, 0.0625
    %v45 = vpack.c.bf16 %v43, %v43
    %v46 = vpack.c.bf16 %v44, %v44
    %v47 = vld [vmem:[%s1] sm:$0xf]
    %v48 = vld [vmem:[%s1 + $0x4] sm:$0xf]
    %v49 = vld [vmem:[%s1 + $0x8] sm:$0xf]
    %v50 = vld [vmem:[%s1 + $0xc] sm:$0xf]
    %v51 = vld [vmem:[%s1 + $0x10] sm:$0xf]
    %v52 = vld [vmem:[%s1 + $0x14] sm:$0xf]
    %v53 = vld [vmem:[%s1 + $0x18] sm:$0xf]
    %v54 = vld [vmem:[%s1 + $0x1c] sm:$0xf]
    %v55 = vld [vmem:[%s2] sm:$0x1]
    %v57 = vperm.slane %v55, 0
    %v61 = vunpack.c.l.b16 %v45
    %v62 = vunpack.c.l.b16 %v46
    %vm63 = vcmask 1041409
    %v64 = vsel %vm63, %v62, %v61
    %v65 = vpack.c.b16 %v64, %v64
    %v74 = vunpack.c.l.b16 %v47
    %v75 = vunpack.c.l.b16 %v48
    %v76 = vunpack.c.l.b16 %v49
    %v77 = vunpack.c.l.b16 %v50
    %v78 = vunpack.c.l.b16 %v51
    %v79 = vunpack.c.l.b16 %v52
    %v80 = vunpack.c.l.b16 %v53
    %v81 = vunpack.c.l.b16 %v54
    %v82 = vpack.c.b16 %v75, %v74
    %v83 = vpack.c.b16 %v77, %v76
    %v84 = vpack.c.b16 %v79, %v78
    %v85 = vpack.c.b16 %v81, %v80
    %v91 = vsel %vm24, %v65, 0
    %93 = vmatpush.bf16.msra.mxu0 0
    %94 = vmatpush.bf16.msra.mxu0 0
    %95 = vmatpush.bf16.msra.mxu0 0
    %96 = vmatpush.bf16.msra.mxu0 0
    %97 = vmatpush.bf16.msra.mxu0 %v85
    %98 = vmatpush.bf16.msra.mxu0 %v84
    %99 = vmatpush.bf16.msra.mxu0 %v83
    %100 = vmatpush.bf16.msra.mxu0 %v82
    %101 = vmatmul.bf16.gmra.mxu0 %v91
    %v102 = vpop.f32.mrf.mxu0
    %v103 = vadd.f32 %v57, %v102
    %v104 = vpop.f32.mrf.mxu0
    %105 = vdwg.mxu0
    %106 = vst [vmem:[#allocation2] sm:$0x3] %v103
    // Predicated region
    $region14: #{_lambda_.15} parent=1 // pred_check
      _
    $region15: #{_lambda_.15} parent=1 // pred_check_branch
      %108 = sbr.rel (0) target = $region17
    $region16: #{_lambda_.15} parent=1 // pred_region
      %110 = vsyncadd [#allocation3], 0
      %s112 = sshll.u32 [#allocation2], 4
      %s113 = int_to_ptr.vmem [resolvable:$true] %s112
      %s114 = sshll.u32 %s3, 4
      %s115 = int_to_ptr.hbm [resolvable:$true] %s114
      %117 = dma.vmem_to_hbm [thread:$0]  %s113, 32, %s115, [#allocation3]
    $region17: #{_lambda_.15} parent=1 // pred_fallthru
      _
    // Predicated region
    $region18: #{_lambda_.15} parent=1 // pred_check
      _
    $region19: #{_lambda_.15} parent=1 // pred_check_branch
      %119 = sbr.rel (0) target = $region21
    $region20: #{_lambda_.15} parent=1 // pred_region
      %121 = dma.done [#allocation3], 32
    $region21: #{_lambda_.15} parent=1 // pred_fallthru
      _
    %122 = vsyncpa [#allocation3], 1

// kernel: _lambda_.14
$region0: #{_lambda_.14}
  #allocation0 [shape = 'u32[]', space=smem, size = 0x4, offset = 0x4, fixed_abs, tag = 'smem constant byte address 0x4 - core index']
  #allocation1 [shape = 'u32[72,128]{1,0:T(1,128)}', space=vmem, size = 0x9000, scoped, tag = 'internal scratch']
  %s0 = inlined_call_operand.vmem [shape: bf16[2,48,64], index: 0, kind: input, shape index: {}]
  %s1 = inlined_call_operand.vmem [shape: bf16[576,64], index: 1, kind: input, shape index: {}]
  %s2 = inlined_call_operand.vmem [shape: f32[1,64], index: 2, kind: input, shape index: {}]
  %s3 = inlined_call_operand.vmem [shape: bf16[48,64], index: 3, kind: input, shape index: {}]
  %s4 = inlined_call_operand.vmem [shape: bf16[48,64], index: 4, kind: output, shape index: {}]
  %s5 = sld [smem:[#allocation0]]
  $region49: #{_lambda_.14} parent=0
    _
  %s7 = ssub.s32 1, %s5
  %s8 = scalar_select 0, %s7, %s5
  loop: start=0, step=1, limit=4
  $region2: #{_lambda_.14} parent=0 // loop_pre_header
    _
  $region3: #{_lambda_.14} parent=0 // loop_header
    %s10 = sphi 0, %s14
    %p11 = scmp.ge.s32.totalorder %s10, 4
    %s20 = sphi 0, %s22
    %s23 = sphi 0, %s20
    %s24 = sphi 0, %s23
    %s40 = sphi 0, %s24
    %s44 = sphi 0, %s44
    %s46 = sphi 0, %s44
    %s47 = sphi 0, %s46
    %s61 = sphi 0, %s47
    %s65 = sphi 0, %s65
    %s67 = sphi 0, %s65
    %s68 = sphi 0, %s67
    %s82 = sphi 0, %s68
    %s88 = sphi 0, %s90
    %s91 = sphi 0, %s88
    %s92 = sphi 0, %s91
    %s108 = sphi 0, %s92
    %s114 = sphi 0, %s116
    %s117 = sphi 0, %s114
    %s118 = sphi 0, %s117
    %s134 = sphi 0, %s118
  $region4: #{_lambda_.14} parent=0 // loop_header_branch
    %13 = sbr.rel (%p11) target = $region8
  $region5: #{_lambda_.14} parent=0 // loop_body
    %s15 = ssub.s32 %s10, 1
    %s16 = ssub.s32 %s10, 2
    %s17 = sadd.s32 %s10, 1
    %s18 = ssub.s32 %s10, %s17
    %p19 = scmp.eq.s32.totalorder %s18, 0
    %s21 = sadd.s32 %s20, 1
    %s22 = scalar_select %p19, %s20, %s21
    %p25 = pneg %p19
    %p26 = scmp.eq.s32.totalorder %s10, 1
    %p27 = por %p25, %p26
    %p28 = scmp.ne.s32.totalorder %s20, %s23
    %p29 = scmp.eq.s32.totalorder %s10, 0
    %p30 = por %p28, %p29
    %p31 = scmp.ne.s32.totalorder %s20, %s23
    %p32 = scmp.eq.s32.totalorder %s15, 1
    %p33 = por %p31, %p32
    %p34 = scmp.ne.s32.totalorder %s23, %s24
    %p35 = scmp.eq.s32.totalorder %s15, 0
    %p36 = por %p34, %p35
    %p37 = scmp.ne.s32.totalorder %s23, %s24
    %p38 = scmp.eq.s32.totalorder %s16, 1
    %p39 = por %p37, %p38
    %p41 = scmp.ne.s32.totalorder %s24, %s40
    %p42 = scmp.eq.s32.totalorder %s16, 0
    %p43 = por %p41, %p42
    %s45 = sadd.s32 %s44, 1
    %p48 = scmp.eq.s32.totalorder %s10, 1
    %p49 = scmp.ne.s32.totalorder %s44, %s46
    %p50 = scmp.eq.s32.totalorder %s10, 0
    %p51 = por %p49, %p50
    %p52 = scmp.ne.s32.totalorder %s44, %s46
    %p53 = scmp.eq.s32.totalorder %s15, 1
    %p54 = por %p52, %p53
    %p55 = scmp.ne.s32.totalorder %s46, %s47
    %p56 = scmp.eq.s32.totalorder %s15, 0
    %p57 = por %p55, %p56
    %p58 = scmp.ne.s32.totalorder %s46, %s47
    %p59 = scmp.eq.s32.totalorder %s16, 1
    %p60 = por %p58, %p59
    %p62 = scmp.ne.s32.totalorder %s47, %s61
    %p63 = scmp.eq.s32.totalorder %s16, 0
    %p64 = por %p62, %p63
    %s66 = sadd.s32 %s65, 1
    %p69 = scmp.eq.s32.totalorder %s10, 1
    %p70 = scmp.ne.s32.totalorder %s65, %s67
    %p71 = scmp.eq.s32.totalorder %s10, 0
    %p72 = por %p70, %p71
    %p73 = scmp.ne.s32.totalorder %s65, %s67
    %p74 = scmp.eq.s32.totalorder %s15, 1
    %p75 = por %p73, %p74
    %p76 = scmp.ne.s32.totalorder %s67, %s68
    %p77 = scmp.eq.s32.totalorder %s15, 0
    %p78 = por %p76, %p77
    %p79 = scmp.ne.s32.totalorder %s67, %s68
    %p80 = scmp.eq.s32.totalorder %s16, 1
    %p81 = por %p79, %p80
    %p83 = scmp.ne.s32.totalorder %s68, %s82
    %p84 = scmp.eq.s32.totalorder %s16, 0
    %p85 = por %p83, %p84
    %s86 = ssub.s32 %s10, %s17
    %p87 = scmp.eq.s32.totalorder %s86, 0
    %s89 = sadd.s32 %s88, 1
    %s90 = scalar_select %p87, %s88, %s89
    %p93 = pneg %p87
    %p94 = scmp.eq.s32.totalorder %s10, 1
    %p95 = por %p93, %p94
    %p96 = scmp.ne.s32.totalorder %s88, %s91
    %p97 = scmp.eq.s32.totalorder %s10, 0
    %p98 = por %p96, %p97
    %p99 = scmp.ne.s32.totalorder %s88, %s91
    %p100 = scmp.eq.s32.totalorder %s15, 1
    %p101 = por %p99, %p100
    %p102 = scmp.ne.s32.totalorder %s91, %s92
    %p103 = scmp.eq.s32.totalorder %s15, 0
    %p104 = por %p102, %p103
    %p105 = scmp.ne.s32.totalorder %s91, %s92
    %p106 = scmp.eq.s32.totalorder %s16, 1
    %p107 = por %p105, %p106
    %p109 = scmp.ne.s32.totalorder %s92, %s108
    %p110 = scmp.eq.s32.totalorder %s16, 0
    %p111 = por %p109, %p110
    %s112 = ssub.s32 %s10, %s17
    %p113 = scmp.eq.s32.totalorder %s112, 0
    %s115 = sadd.s32 %s114, 1
    %s116 = scalar_select %p113, %s114, %s115
    %p119 = pneg %p113
    %p120 = scmp.eq.s32.totalorder %s10, 1
    %p121 = por %p119, %p120
    %p122 = scmp.ne.s32.totalorder %s114, %s117
    %p123 = scmp.eq.s32.totalorder %s10, 0
    %p124 = por %p122, %p123
    %p125 = scmp.ne.s32.totalorder %s114, %s117
    %p126 = scmp.eq.s32.totalorder %s15, 1
    %p127 = por %p125, %p126
    %p128 = scmp.ne.s32.totalorder %s117, %s118
    %p129 = scmp.eq.s32.totalorder %s15, 0
    %p130 = por %p128, %p129
    %p131 = scmp.ne.s32.totalorder %s117, %s118
    %p132 = scmp.eq.s32.totalorder %s16, 1
    %p133 = por %p131, %p132
    %p135 = scmp.ne.s32.totalorder %s118, %s134
    %p136 = scmp.eq.s32.totalorder %s16, 0
    %p137 = por %p135, %p136
    %p138 = scmp.le.s32.totalorder 1, %s10
    %p139 = scmp.lt.s32.totalorder %s10, 3
    %p140 = pnand %p138, %p139
    %p141 = pneg %p140
    // Predicated region
    $region9: #{_lambda_.14} parent=5 // pred_check
      _
    $region10: #{_lambda_.14} parent=5 // pred_check_branch
      %143 = sbr.rel (%p140) target = $region12
    $region11: #{_lambda_.14} parent=5 // pred_region
      %s144 = ssub.s32 %s10, 1
      // Predicated region
      $region13: #{_lambda_.14} parent=11 // pred_check
        %p145 = pneg %p57
      $region14: #{_lambda_.14} parent=11 // pred_check_branch
        %147 = sbr.rel (%p145) target = $region16
      $region15: #{_lambda_.14} parent=11 // pred_region
        _
      $region16: #{_lambda_.14} parent=11 // pred_fallthru
        _
      // Predicated region
      $region17: #{_lambda_.14} parent=11 // pred_check
        %p148 = pneg %p78
      $region18: #{_lambda_.14} parent=11 // pred_check_branch
        %150 = sbr.rel (%p148) target = $region20
      $region19: #{_lambda_.14} parent=11 // pred_region
        _
      $region20: #{_lambda_.14} parent=11 // pred_fallthru
        _
    $region12: #{_lambda_.14} parent=5 // pred_fallthru
      _
    %p151 = scmp.lt.s32.totalorder %s10, 2
    // Predicated region
    $region21: #{_lambda_.14} parent=5 // pred_check
      %p152 = pneg %p151
    $region22: #{_lambda_.14} parent=5 // pred_check_branch
      %154 = sbr.rel (%p152) target = $region24
    $region23: #{_lambda_.14} parent=5 // pred_region
      // Predicated region
      $region25: #{_lambda_.14} parent=23 // pred_check
        %p155 = pneg %p30
      $region26: #{_lambda_.14} parent=23 // pred_check_branch
        %157 = sbr.rel (%p155) target = $region28
      $region27: #{_lambda_.14} parent=23 // pred_region
        %p158 = scmp.lt.s32.totalorder %s10, 1
        %s159 = scalar_select %p158, %s10, 1
        %s160 = smul.addr %s159, 6
        %s161 = smul.addr %s160, 4
        %s162 = scalar_lea.vmem %s0, %s161
      $region28: #{_lambda_.14} parent=23 // pred_fallthru
        _
      // Predicated region
      $region29: #{_lambda_.14} parent=23 // pred_check
        %p163 = pneg %p98
      $region30: #{_lambda_.14} parent=23 // pred_check_branch
        %165 = sbr.rel (%p163) target = $region32
      $region31: #{_lambda_.14} parent=23 // pred_region
        %s166 = smul.u32 3, %s10
        %p167 = scmp.lt.s32.totalorder %s166, 5
        %s168 = scalar_select %p167, %s166, 5
        %s169 = smul.addr %s168, 4
        %s170 = scalar_lea.vmem %s3, %s169
        %s171 = smul.u32 3, %s10
      $region32: #{_lambda_.14} parent=23 // pred_fallthru
        _
    $region24: #{_lambda_.14} parent=5 // pred_fallthru
      _
    %p172 = scmp.le.s32.totalorder 1, %s10
    %p173 = scmp.lt.s32.totalorder %s10, 3
    %p174 = pnand %p172, %p173
    %p175 = pneg %p174
    // Predicated region
    $region33: #{_lambda_.14} parent=5 // pred_check
      _
    $region34: #{_lambda_.14} parent=5 // pred_check_branch
      %177 = sbr.rel (%p174) target = $region36
    $region35: #{_lambda_.14} parent=5 // pred_region
      %s178 = ssub.s32 %s10, 1
      %p179 = scmp.lt.s32.totalorder %s15, 1
      %s180 = scalar_select %p179, %s15, 1
      %s181 = smul.addr %s180, 6
      %s182 = smul.addr %s181, 4
      %s183 = scalar_lea.vmem %s0, %s182
      %p184 = pneg %p36
      %p185 = pneg %p33
      %p186 = pneg %p57
      %p187 = pneg %p54
      %p188 = pneg %p78
      %p189 = pneg %p75
      %s190 = smul.u32 3, %s15
      %p191 = scmp.lt.s32.totalorder %s190, 5
      %s192 = scalar_select %p191, %s190, 5
      %s193 = smul.addr %s192, 4
      %s194 = scalar_lea.vmem %s3, %s193
      %p195 = pneg %p104
      %p196 = pneg %p101
      %p197 = pneg %p130
      %p198 = pneg %p127
      %s199 = smul.u32 3, %s15
      %p200 = scmp.lt.s32.totalorder %s199, 5
      %s201 = scalar_select %p200, %s199, 5
      %s202 = smul.addr %s201, 4
      %s203 = scalar_lea.vmem %s4, %s202
      %p204 = scmp.lt.s32.totalorder %s15, 1
      %s205 = scalar_select %p204, %s15, 1
      %s206 = smul.addr %s205, 6
      %s207 = smul.addr %s206, 4
      %s208 = scalar_lea.vmem %s0, %s207
      %s209 = smul.u32 3, %s15
      %p210 = scmp.lt.s32.totalorder %s209, 5
      %s211 = scalar_select %p210, %s209, 5
      %s212 = smul.addr %s211, 4
      %s213 = scalar_lea.vmem %s3, %s212
      %s214 = smul.u32 3, %s15
      %s215 = smul.u32 3, %s15
      %p216 = scmp.lt.s32.totalorder %s215, 5
      %s217 = scalar_select %p216, %s215, 5
      %s218 = smul.addr %s217, 4
      %s219 = scalar_lea.vmem %s4, %s218
      %s220 = smul.u32 3, %s15
      %v222 = vld [vmem:[%s208] sm:$0xf]
      %v223 = vld [vmem:[%s208 + $0x4] sm:$0xf]
      %v224 = vld [vmem:[%s208 + $0x8] sm:$0xf]
      %v225 = vld [vmem:[%s1] sm:$0xf]
      %v226 = vld [vmem:[%s1 + $0x4] sm:$0xf]
      %v227 = vld [vmem:[%s1 + $0x8] sm:$0xf]
      %v228 = vld [vmem:[%s1 + $0xc] sm:$0xf]
      %v229 = vld [vmem:[%s1 + $0x10] sm:$0xf]
      %v230 = vld [vmem:[%s1 + $0x14] sm:$0xf]
      %v231 = vld [vmem:[%s1 + $0x18] sm:$0xf]
      %v232 = vld [vmem:[%s1 + $0x1c] sm:$0xf]
      %v233 = vld [vmem:[%s208 + $0xc] sm:$0x1]
      %v234 = vld [vmem:[%s1 + $0x20] sm:$0xf]
      %v235 = vld [vmem:[%s1 + $0x24] sm:$0xf]
      %v236 = vld [vmem:[%s1 + $0x28] sm:$0xf]
      %v237 = vld [vmem:[%s1 + $0x2c] sm:$0xf]
      %v238 = vld [vmem:[%s1 + $0x30] sm:$0xf]
      %v239 = vld [vmem:[%s1 + $0x34] sm:$0xf]
      %v240 = vld [vmem:[%s1 + $0x38] sm:$0xf]
      %v241 = vld [vmem:[%s1 + $0x3c] sm:$0xf]
      %v246 = vunpack.c.l.b16 %v222
      %v247 = vunpack.c.l.b16 %v223
      %v248 = vunpack.c.l.b16 %v224
      %v249 = vunpack.c.l.b16 %v233
      %v250 = vpack.c.b16 %v247, %v246
      %v251 = vpack.c.b16 %v249, %v248
      %vm252 = vsmask.f32 7424
      %v254 = vshrl.u32 %v250, 16
      %v256 = vshll.u32 %v250, 16
      %v258 = vrot.slane %v256, 1
      %v259 = vor.u32 %v254, %v258
      %v261 = vshll.u32 %v251, 16
      %v263 = vrot.slane %v261, 1
      %v264 = vsel %vm252, %v259, %v263
      %v265 = vshrl.u32 %v251, 16
      %v267 = vor.u32 %v265, %v263
      %v276 = vunpack.c.l.b16 %v234
      %v277 = vunpack.c.l.b16 %v235
      %v278 = vunpack.c.l.b16 %v236
      %v279 = vunpack.c.l.b16 %v237
      %v280 = vunpack.c.l.b16 %v238
      %v281 = vunpack.c.l.b16 %v239
      %v282 = vunpack.c.l.b16 %v240
      %v283 = vunpack.c.l.b16 %v241
      %v284 = vpack.c.b16 %v277, %v276
      %v285 = vpack.c.b16 %v279, %v278
      %v286 = vpack.c.b16 %v281, %v280
      %v287 = vpack.c.b16 %v283, %v282
      %vm292 = vcmask 523264
      %v294 = vsel %vm292, %v264, 0
      %v297 = vsel %vm292, %v267, 0
      %299 = vmatpush.bf16.msra.mxu0 0
      %300 = vmatpush.bf16.msra.mxu0 0
      %301 = vmatpush.bf16.msra.mxu0 0
      %302 = vmatpush.bf16.msra.mxu0 0
      %303 = vmatpush.bf16.msra.mxu0 %v287
      %304 = vmatpush.bf16.msra.mxu0 %v286
      %305 = vmatpush.bf16.msra.mxu0 %v285
      %306 = vmatpush.bf16.msra.mxu0 %v284
      %307 = vmatmul.bf16.gmra.mxu0 %v294
      %v308 = vpop.f32.mrf.mxu0
      %v309 = vadd.f32 0.0, %v308
      %v310 = vpop.f32.mrf.mxu0
      %v311 = vadd.f32 0.0, %v310
      %312 = vmatmul.bf16.gmra.mxu0 %v297
      %v313 = vpop.f32.mrf.mxu0
      %v314 = vadd.f32 0.0, %v313
      %v315 = vpop.f32.mrf.mxu0
      %316 = vdwg.mxu0
      %v317 = vpack.c.b16 %v248, %v248
      %v326 = vunpack.c.l.b16 %v225
      %v327 = vunpack.c.l.b16 %v226
      %v328 = vunpack.c.l.b16 %v227
      %v329 = vunpack.c.l.b16 %v228
      %v330 = vunpack.c.l.b16 %v229
      %v331 = vunpack.c.l.b16 %v230
      %v332 = vunpack.c.l.b16 %v231
      %v333 = vunpack.c.l.b16 %v232
      %v334 = vpack.c.b16 %v327, %v326
      %v335 = vpack.c.b16 %v329, %v328
      %v336 = vpack.c.b16 %v331, %v330
      %v337 = vpack.c.b16 %v333, %v332
      %v342 = vsel %vm292, %v250, 0
      %v345 = vsel %vm292, %v317, 0
      %347 = vmatpush.bf16.msra.mxu0 0
      %348 = vmatpush.bf16.msra.mxu0 0
      %349 = vmatpush.bf16.msra.mxu0 0
      %350 = vmatpush.bf16.msra.mxu0 0
      %351 = vmatpush.bf16.msra.mxu0 %v337
      %352 = vmatpush.bf16.msra.mxu0 %v336
      %353 = vmatpush.bf16.msra.mxu0 %v335
      %354 = vmatpush.bf16.msra.mxu0 %v334
      %355 = vmatmul.bf16.gmra.mxu0 %v342
      %v356 = vpop.f32.mrf.mxu0
      %v357 = vadd.f32 %v309, %v356
      %v358 = vpop.f32.mrf.mxu0
      %v359 = vadd.f32 %v311, %v358
      %360 = vmatmul.bf16.gmra.mxu0 %v345
      %v361 = vpop.f32.mrf.mxu0
      %v362 = vadd.f32 %v314, %v361
      %v363 = vpop.f32.mrf.mxu0
      %364 = vdwg.mxu0
      %v365 = vld [vmem:[%s208] sm:$0xe]
      %v366 = vld [vmem:[%s1 + $0x40] sm:$0xf]
      %v367 = vld [vmem:[%s1 + $0x44] sm:$0xf]
      %v368 = vld [vmem:[%s1 + $0x48] sm:$0xf]
      %v369 = vld [vmem:[%s1 + $0x4c] sm:$0xf]
      %v370 = vld [vmem:[%s1 + $0x50] sm:$0xf]
      %v371 = vld [vmem:[%s1 + $0x54] sm:$0xf]
      %v372 = vld [vmem:[%s1 + $0x58] sm:$0xf]
      %v373 = vld [vmem:[%s1 + $0x5c] sm:$0xf]
      %v375 = vunpack.c.l.b16 %v365
      %v376 = vpack.c.b16 %v247, %v375
      %vm377 = vcmask 1046528
      %v378 = vrot.slane %v376, 1
      %v379 = vrot.slane %v251, 1
      %v380 = vsel %vm377, %v378, %v379
      %v389 = vunpack.c.l.b16 %v366
      %v390 = vunpack.c.l.b16 %v367
      %v391 = vunpack.c.l.b16 %v368
      %v392 = vunpack.c.l.b16 %v369
      %v393 = vunpack.c.l.b16 %v370
      %v394 = vunpack.c.l.b16 %v371
      %v395 = vunpack.c.l.b16 %v372
      %v396 = vunpack.c.l.b16 %v373
      %v397 = vpack.c.b16 %v390, %v389
      %v398 = vpack.c.b16 %v392, %v391
      %v399 = vpack.c.b16 %v394, %v393
      %v400 = vpack.c.b16 %v396, %v395
      %v406 = vsel %vm292, %v380, 0
      %v409 = vsel %vm292, %v379, 0
      %411 = vmatpush.bf16.msra.mxu0 0
      %412 = vmatpush.bf16.msra.mxu0 0
      %413 = vmatpush.bf16.msra.mxu0 0
      %414 = vmatpush.bf16.msra.mxu0 0
      %415 = vmatpush.bf16.msra.mxu0 %v400
      %416 = vmatpush.bf16.msra.mxu0 %v399
      %417 = vmatpush.bf16.msra.mxu0 %v398
      %418 = vmatpush.bf16.msra.mxu0 %v397
      %419 = vmatmul.bf16.gmra.mxu0 %v406
      %v420 = vpop.f32.mrf.mxu0
      %v421 = vadd.f32 0.0, %v420
      %v422 = vpop.f32.mrf.mxu0
      %v423 = vadd.f32 0.0, %v422
      %424 = vmatmul.bf16.gmra.mxu0 %v409
      %v425 = vpop.f32.mrf.mxu0
      %v426 = vadd.f32 0.0, %v425
      %v427 = vpop.f32.mrf.mxu0
      %428 = vdwg.mxu0
      %v429 = vadd.f32 %v357, %v421
      %v430 = vadd.f32 %v359, %v423
      %v431 = vadd.f32 %v362, %v426
      %v432 = vld [vmem:[%s208] sm:$0x8]
      %v433 = vld [vmem:[%s208 + $0xc] sm:$0x7]
      %v434 = vld [vmem:[%s1 + $0x60] sm:$0xf]
      %v435 = vld [vmem:[%s1 + $0x64] sm:$0xf]
      %v436 = vld [vmem:[%s1 + $0x68] sm:$0xf]
      %v437 = vld [vmem:[%s1 + $0x6c] sm:$0xf]
      %v438 = vld [vmem:[%s1 + $0x70] sm:$0xf]
      %v439 = vld [vmem:[%s1 + $0x74] sm:$0xf]
      %v440 = vld [vmem:[%s1 + $0x78] sm:$0xf]
      %v441 = vld [vmem:[%s1 + $0x7c] sm:$0xf]
      %v444 = vunpack.c.l.b16 %v432
      %v445 = vunpack.c.l.b16 %v433
      %v446 = vpack.c.b16 %v247, %v444
      %v447 = vpack.c.b16 %v445, %v248
      %vm448 = vcmask 1044480
      %v449 = vrot.slane %v446, 3
      %v450 = vrot.slane %v447, 3
      %v451 = vsel %vm448, %v449, %v450
      %v460 = vunpack.c.l.b16 %v434
      %v461 = vunpack.c.l.b16 %v435
      %v462 = vunpack.c.l.b16 %v436
      %v463 = vunpack.c.l.b16 %v437
      %v464 = vunpack.c.l.b16 %v438
      %v465 = vunpack.c.l.b16 %v439
      %v466 = vunpack.c.l.b16 %v440
      %v467 = vunpack.c.l.b16 %v441
      %v468 = vpack.c.b16 %v461, %v460
      %v469 = vpack.c.b16 %v463, %v462
      %v470 = vpack.c.b16 %v465, %v464
      %v471 = vpack.c.b16 %v467, %v466
      %v477 = vsel %vm292, %v451, 0
      %v480 = vsel %vm292, %v450, 0
      %482 = vmatpush.bf16.msra.mxu0 0
      %483 = vmatpush.bf16.msra.mxu0 0
      %484 = vmatpush.bf16.msra.mxu0 0
      %485 = vmatpush.bf16.msra.mxu0 0
      %486 = vmatpush.bf16.msra.mxu0 %v471
      %487 = vmatpush.bf16.msra.mxu0 %v470
      %488 = vmatpush.bf16.msra.mxu0 %v469
      %489 = vmatpush.bf16.msra.mxu0 %v468
      %490 = vmatmul.bf16.gmra.mxu0 %v477
      %v491 = vpop.f32.mrf.mxu0
      %v492 = vadd.f32 0.0, %v491
      %v493 = vpop.f32.mrf.mxu0
      %v494 = vadd.f32 0.0, %v493
      %495 = vmatmul.bf16.gmra.mxu0 %v480
      %v496 = vpop.f32.mrf.mxu0
      %v497 = vadd.f32 0.0, %v496
      %v498 = vpop.f32.mrf.mxu0
      %499 = vdwg.mxu0
      %v500 = vadd.f32 %v429, %v492
      %v501 = vadd.f32 %v430, %v494
      %v502 = vadd.f32 %v431, %v497
      %v503 = vld [vmem:[%s208 + $0xc] sm:$0xf]
      %v504 = vld [vmem:[%s1 + $0x80] sm:$0xf]
      %v505 = vld [vmem:[%s1 + $0x84] sm:$0xf]
      %v506 = vld [vmem:[%s1 + $0x88] sm:$0xf]
      %v507 = vld [vmem:[%s1 + $0x8c] sm:$0xf]
      %v508 = vld [vmem:[%s1 + $0x90] sm:$0xf]
      %v509 = vld [vmem:[%s1 + $0x94] sm:$0xf]
      %v510 = vld [vmem:[%s1 + $0x98] sm:$0xf]
      %v511 = vld [vmem:[%s1 + $0x9c] sm:$0xf]
      %v513 = vunpack.c.l.b16 %v503
      %v514 = vpack.c.b16 %v513, %v248
      %vm515 = vsmask.f32 4352
      %v517 = vshrl.u32 %v446, 16
      %v519 = vrot.slane %v517, 3
      %v520 = vshll.u32 %v446, 16
      %v522 = vrot.slane %v520, 4
      %v523 = vor.u32 %v519, %v522
      %v525 = vshrl.u32 %v514, 16
      %v527 = vrot.slane %v525, 3
      %v528 = vshll.u32 %v514, 16
      %v530 = vrot.slane %v528, 4
      %v531 = vor.u32 %v527, %v530
      %v532 = vsel %vm515, %v523, %v531
      %v541 = vunpack.c.l.b16 %v504
      %v542 = vunpack.c.l.b16 %v505
      %v543 = vunpack.c.l.b16 %v506
      %v544 = vunpack.c.l.b16 %v507
      %v545 = vunpack.c.l.b16 %v508
      %v546 = vunpack.c.l.b16 %v509
      %v547 = vunpack.c.l.b16 %v510
      %v548 = vunpack.c.l.b16 %v511
      %v549 = vpack.c.b16 %v542, %v541
      %v550 = vpack.c.b16 %v544, %v543
      %v551 = vpack.c.b16 %v546, %v545
      %v552 = vpack.c.b16 %v548, %v547
      %v558 = vsel %vm292, %v532, 0
      %v561 = vsel %vm292, %v531, 0
      %563 = vmatpush.bf16.msra.mxu0 0
      %564 = vmatpush.bf16.msra.mxu0 0
      %565 = vmatpush.bf16.msra.mxu0 0
      %566 = vmatpush.bf16.msra.mxu0 0
      %567 = vmatpush.bf16.msra.mxu0 %v552
      %568 = vmatpush.bf16.msra.mxu0 %v551
      %569 = vmatpush.bf16.msra.mxu0 %v550
      %570 = vmatpush.bf16.msra.mxu0 %v549
      %571 = vmatmul.bf16.gmra.mxu0 %v558
      %v572 = vpop.f32.mrf.mxu0
      %v573 = vadd.f32 0.0, %v572
      %v574 = vpop.f32.mrf.mxu0
      %v575 = vadd.f32 0.0, %v574
      %576 = vmatmul.bf16.gmra.mxu0 %v561
      %v577 = vpop.f32.mrf.mxu0
      %v578 = vadd.f32 0.0, %v577
      %v579 = vpop.f32.mrf.mxu0
      %580 = vdwg.mxu0
      %v581 = vadd.f32 %v500, %v573
      %v582 = vadd.f32 %v501, %v575
      %v583 = vadd.f32 %v502, %v578
      %v584 = vld [vmem:[%s1 + $0xa0] sm:$0xf]
      %v585 = vld [vmem:[%s1 + $0xa4] sm:$0xf]
      %v586 = vld [vmem:[%s1 + $0xa8] sm:$0xf]
      %v587 = vld [vmem:[%s1 + $0xac] sm:$0xf]
      %v588 = vld [vmem:[%s1 + $0xb0] sm:$0xf]
      %v589 = vld [vmem:[%s1 + $0xb4] sm:$0xf]
      %v590 = vld [vmem:[%s1 + $0xb8] sm:$0xf]
      %v591 = vld [vmem:[%s1 + $0xbc] sm:$0xf]
      %v592 = vpack.c.b16 %v248, %v247
      %v593 = vpack.c.b16 %v513, %v513
      %v602 = vunpack.c.l.b16 %v584
      %v603 = vunpack.c.l.b16 %v585
      %v604 = vunpack.c.l.b16 %v586
      %v605 = vunpack.c.l.b16 %v587
      %v606 = vunpack.c.l.b16 %v588
      %v607 = vunpack.c.l.b16 %v589
      %v608 = vunpack.c.l.b16 %v590
      %v609 = vunpack.c.l.b16 %v591
      %v610 = vpack.c.b16 %v603, %v602
      %v611 = vpack.c.b16 %v605, %v604
      %v612 = vpack.c.b16 %v607, %v606
      %v613 = vpack.c.b16 %v609, %v608
      %v619 = vsel %vm292, %v592, 0
      %v622 = vsel %vm292, %v593, 0
      %624 = vmatpush.bf16.msra.mxu0 0
      %625 = vmatpush.bf16.msra.mxu0 0
      %626 = vmatpush.bf16.msra.mxu0 0
      %627 = vmatpush.bf16.msra.mxu0 0
      %628 = vmatpush.bf16.msra.mxu0 %v613
      %629 = vmatpush.bf16.msra.mxu0 %v612
      %630 = vmatpush.bf16.msra.mxu0 %v611
      %631 = vmatpush.bf16.msra.mxu0 %v610
      %632 = vmatmul.bf16.gmra.mxu0 %v619
      %v633 = vpop.f32.mrf.mxu0
      %v634 = vadd.f32 0.0, %v633
      %v635 = vpop.f32.mrf.mxu0
      %v636 = vadd.f32 0.0, %v635
      %637 = vmatmul.bf16.gmra.mxu0 %v622
      %v638 = vpop.f32.mrf.mxu0
      %v639 = vadd.f32 0.0, %v638
      %v640 = vpop.f32.mrf.mxu0
      %641 = vdwg.mxu0
      %v642 = vadd.f32 %v581, %v634
      %v643 = vadd.f32 %v582, %v636
      %v644 = vadd.f32 %v583, %v639
      %v645 = vld [vmem:[%s208 + $0x4] sm:$0xc]
      %v646 = vld [vmem:[%s208 + $0x8] sm:$0xf]
      %v647 = vld [vmem:[%s208 + $0xc] sm:$0xf]
      %v648 = vld [vmem:[%s208 + $0x10] sm:$0x3]
      %v649 = vld [vmem:[%s1 + $0xc0] sm:$0xf]
      %v650 = vld [vmem:[%s1 + $0xc4] sm:$0xf]
      %v651 = vld [vmem:[%s1 + $0xc8] sm:$0xf]
      %v652 = vld [vmem:[%s1 + $0xcc] sm:$0xf]
      %v653 = vld [vmem:[%s1 + $0xd0] sm:$0xf]
      %v654 = vld [vmem:[%s1 + $0xd4] sm:$0xf]
      %v655 = vld [vmem:[%s1 + $0xd8] sm:$0xf]
      %v656 = vld [vmem:[%s1 + $0xdc] sm:$0xf]
      %v661 = vunpack.c.l.b16 %v645
      %v662 = vunpack.c.l.b16 %v646
      %v663 = vunpack.c.l.b16 %v647
      %v664 = vunpack.c.l.b16 %v648
      %v665 = vpack.c.b16 %v662, %v661
      %v666 = vpack.c.b16 %v664, %v663
      %vm667 = vcmask 1045504
      %v668 = vrot.slane %v665, 2
      %v669 = vrot.slane %v666, 2
      %v670 = vsel %vm667, %v668, %v669
      %v679 = vunpack.c.l.b16 %v649
      %v680 = vunpack.c.l.b16 %v650
      %v681 = vunpack.c.l.b16 %v651
      %v682 = vunpack.c.l.b16 %v652
      %v683 = vunpack.c.l.b16 %v653
      %v684 = vunpack.c.l.b16 %v654
      %v685 = vunpack.c.l.b16 %v655
      %v686 = vunpack.c.l.b16 %v656
      %v687 = vpack.c.b16 %v680, %v679
      %v688 = vpack.c.b16 %v682, %v681
      %v689 = vpack.c.b16 %v684, %v683
      %v690 = vpack.c.b16 %v686, %v685
      %v696 = vsel %vm292, %v670, 0
      %v699 = vsel %vm292, %v669, 0
      %701 = vmatpush.bf16.msra.mxu0 0
      %702 = vmatpush.bf16.msra.mxu0 0
      %703 = vmatpush.bf16.msra.mxu0 0
      %704 = vmatpush.bf16.msra.mxu0 0
      %705 = vmatpush.bf16.msra.mxu0 %v690
      %706 = vmatpush.bf16.msra.mxu0 %v689
      %707 = vmatpush.bf16.msra.mxu0 %v688
      %708 = vmatpush.bf16.msra.mxu0 %v687
      %709 = vmatmul.bf16.gmra.mxu0 %v696
      %v710 = vpop.f32.mrf.mxu0
      %v711 = vadd.f32 0.0, %v710
      %v712 = vpop.f32.mrf.mxu0
      %v713 = vadd.f32 0.0, %v712
      %714 = vmatmul.bf16.gmra.mxu0 %v699
      %v715 = vpop.f32.mrf.mxu0
      %v716 = vadd.f32 0.0, %v715
      %v717 = vpop.f32.mrf.mxu0
      %718 = vdwg.mxu0
      %v719 = vadd.f32 %v642, %v711
      %v720 = vadd.f32 %v643, %v713
      %v721 = vadd.f32 %v644, %v716
      %v722 = vld [vmem:[%s208 + $0x10] sm:$0x7]
      %v723 = vld [vmem:[%s1 + $0xe0] sm:$0xf]
      %v724 = vld [vmem:[%s1 + $0xe4] sm:$0xf]
      %v725 = vld [vmem:[%s1 + $0xe8] sm:$0xf]
      %v726 = vld [vmem:[%s1 + $0xec] sm:$0xf]
      %v727 = vld [vmem:[%s1 + $0xf0] sm:$0xf]
      %v728 = vld [vmem:[%s1 + $0xf4] sm:$0xf]
      %v729 = vld [vmem:[%s1 + $0xf8] sm:$0xf]
      %v730 = vld [vmem:[%s1 + $0xfc] sm:$0xf]
      %v732 = vunpack.c.l.b16 %v722
      %v733 = vpack.c.b16 %v732, %v663
      %vm734 = vsmask.f32 5376
      %v736 = vshrl.u32 %v665, 16
      %v738 = vrot.slane %v736, 2
      %v739 = vshll.u32 %v665, 16
      %v741 = vrot.slane %v739, 3
      %v742 = vor.u32 %v738, %v741
      %v744 = vshrl.u32 %v733, 16
      %v746 = vrot.slane %v744, 2
      %v747 = vshll.u32 %v733, 16
      %v749 = vrot.slane %v747, 3
      %v750 = vor.u32 %v746, %v749
      %v751 = vsel %vm734, %v742, %v750
      %v760 = vunpack.c.l.b16 %v723
      %v761 = vunpack.c.l.b16 %v724
      %v762 = vunpack.c.l.b16 %v725
      %v763 = vunpack.c.l.b16 %v726
      %v764 = vunpack.c.l.b16 %v727
      %v765 = vunpack.c.l.b16 %v728
      %v766 = vunpack.c.l.b16 %v729
      %v767 = vunpack.c.l.b16 %v730
      %v768 = vpack.c.b16 %v761, %v760
      %v769 = vpack.c.b16 %v763, %v762
      %v770 = vpack.c.b16 %v765, %v764
      %v771 = vpack.c.b16 %v767, %v766
      %v777 = vsel %vm292, %v751, 0
      %v780 = vsel %vm292, %v750, 0
      %782 = vmatpush.bf16.msra.mxu0 0
      %783 = vmatpush.bf16.msra.mxu0 0
      %784 = vmatpush.bf16.msra.mxu0 0
      %785 = vmatpush.bf16.msra.mxu0 0
      %786 = vmatpush.bf16.msra.mxu0 %v771
      %787 = vmatpush.bf16.msra.mxu0 %v770
      %788 = vmatpush.bf16.msra.mxu0 %v769
      %789 = vmatpush.bf16.msra.mxu0 %v768
      %790 = vmatmul.bf16.gmra.mxu0 %v777
      %v791 = vpop.f32.mrf.mxu0
      %v792 = vadd.f32 0.0, %v791
      %v793 = vpop.f32.mrf.mxu0
      %v794 = vadd.f32 0.0, %v793
      %795 = vmatmul.bf16.gmra.mxu0 %v780
      %v796 = vpop.f32.mrf.mxu0
      %v797 = vadd.f32 0.0, %v796
      %v798 = vpop.f32.mrf.mxu0
      %799 = vdwg.mxu0
      %v800 = vadd.f32 %v719, %v792
      %v801 = vadd.f32 %v720, %v794
      %v802 = vadd.f32 %v721, %v797
      %v803 = vld [vmem:[%s208 + $0x4] sm:$0x8]
      %v804 = vld [vmem:[%s1 + $0x100] sm:$0xf]
      %v805 = vld [vmem:[%s1 + $0x104] sm:$0xf]
      %v806 = vld [vmem:[%s1 + $0x108] sm:$0xf]
      %v807 = vld [vmem:[%s1 + $0x10c] sm:$0xf]
      %v808 = vld [vmem:[%s1 + $0x110] sm:$0xf]
      %v809 = vld [vmem:[%s1 + $0x114] sm:$0xf]
      %v810 = vld [vmem:[%s1 + $0x118] sm:$0xf]
      %v811 = vld [vmem:[%s1 + $0x11c] sm:$0xf]
      %v813 = vunpack.c.l.b16 %v803
      %v814 = vpack.c.b16 %v662, %v813
      %v815 = vrot.slane %v814, 3
      %v816 = vrot.slane %v733, 3
      %v817 = vsel %vm448, %v815, %v816
      %v826 = vunpack.c.l.b16 %v804
      %v827 = vunpack.c.l.b16 %v805
      %v828 = vunpack.c.l.b16 %v806
      %v829 = vunpack.c.l.b16 %v807
      %v830 = vunpack.c.l.b16 %v808
      %v831 = vunpack.c.l.b16 %v809
      %v832 = vunpack.c.l.b16 %v810
      %v833 = vunpack.c.l.b16 %v811
      %v834 = vpack.c.b16 %v827, %v826
      %v835 = vpack.c.b16 %v829, %v828
      %v836 = vpack.c.b16 %v831, %v830
      %v837 = vpack.c.b16 %v833, %v832
      %v843 = vsel %vm292, %v817, 0
      %v846 = vsel %vm292, %v816, 0
      %848 = vmatpush.bf16.msra.mxu0 0
      %849 = vmatpush.bf16.msra.mxu0 0
      %850 = vmatpush.bf16.msra.mxu0 0
      %851 = vmatpush.bf16.msra.mxu0 0
      %852 = vmatpush.bf16.msra.mxu0 %v837
      %853 = vmatpush.bf16.msra.mxu0 %v836
      %854 = vmatpush.bf16.msra.mxu0 %v835
      %855 = vmatpush.bf16.msra.mxu0 %v834
      %856 = vmatmul.bf16.gmra.mxu0 %v843
      %v857 = vpop.f32.mrf.mxu0
      %v858 = vadd.f32 0.0, %v857
      %v859 = vpop.f32.mrf.mxu0
      %v860 = vadd.f32 0.0, %v859
      %861 = vmatmul.bf16.gmra.mxu0 %v846
      %v862 = vpop.f32.mrf.mxu0
      %v863 = vadd.f32 0.0, %v862
      %v864 = vpop.f32.mrf.mxu0
      %865 = vdwg.mxu0
      %v866 = vadd.f32 %v800, %v858
      %v867 = vadd.f32 %v801, %v860
      %v868 = vadd.f32 %v802, %v863
      %v869 = vld [vmem:[%s2] sm:$0x1]
      %v871 = vperm.slane %v869, 0
      %v873 = vadd.f32 %v866, %v871
      %v874 = vadd.f32 %v867, %v871
      %v875 = vadd.f32 %v868, %v871
      %v876 = vld [vmem:[%s213] sm:$0xf]
      %v877 = vld [vmem:[%s213 + $0x4] sm:$0xf]
      %v878 = vld [vmem:[%s213 + $0x8] sm:$0xf]
      %v879 = vunpack.c.l.bf16 %v876
      %v880 = vunpack.c.l.bf16 %v877
      %v881 = vunpack.c.l.bf16 %v878
      %v882 = vadd.f32 %v873, %v879
      %v883 = vadd.f32 %v874, %v880
      %v884 = vadd.f32 %v875, %v881
      %v885 = vmax.f32 %v882, 0.0
      %v886 = vmax.f32 %v883, 0.0
      %v887 = vmax.f32 %v884, 0.0
      %v888 = vpack.c.bf16 %v885, %v885
      %v889 = vpack.c.bf16 %v886, %v886
      %v890 = vpack.c.bf16 %v887, %v887
      %vm891 = vcmask 519168
      %892 = vst.msk [vmem:[%s219] sm:$0xf] %vm891, %v888
      %893 = vst.msk [vmem:[%s219 + $0x4] sm:$0xf] %vm891, %v889
      %894 = vst.msk [vmem:[%s219 + $0x8] sm:$0xf] %vm891, %v890
      %s895 = smul.u32 3, %s15
      %p896 = scmp.lt.s32.totalorder %s895, 5
      %s897 = scalar_select %p896, %s895, 5
      %s898 = smul.addr %s897, 4
      %s899 = scalar_lea.vmem %s4, %s898
      // Predicated region
      $region37: #{_lambda_.14} parent=35 // pred_check
        %p900 = pneg %p127
      $region38: #{_lambda_.14} parent=35 // pred_check_branch
        %902 = sbr.rel (%p900) target = $region40
      $region39: #{_lambda_.14} parent=35 // pred_region
        %s903 = smul.u32 3, %s15
      $region40: #{_lambda_.14} parent=35 // pred_fallthru
        _
    $region36: #{_lambda_.14} parent=5 // pred_fallthru
      _
    %p904 = scmp.le.s32.totalorder 2, %s10
    // Predicated region
    $region41: #{_lambda_.14} parent=5 // pred_check
      %p905 = pneg %p904
    $region42: #{_lambda_.14} parent=5 // pred_check_branch
      %907 = sbr.rel (%p905) target = $region44
    $region43: #{_lambda_.14} parent=5 // pred_region
      %s908 = ssub.s32 %s10, 2
      // Predicated region
      $region45: #{_lambda_.14} parent=43 // pred_check
        %p909 = pneg %p133
      $region46: #{_lambda_.14} parent=43 // pred_check_branch
        %911 = sbr.rel (%p909) target = $region48
      $region47: #{_lambda_.14} parent=43 // pred_region
        %s912 = smul.u32 3, %s16
        %p913 = scmp.lt.s32.totalorder %s912, 5
        %s914 = scalar_select %p913, %s912, 5
        %s915 = smul.addr %s914, 4
        %s916 = scalar_lea.vmem %s4, %s915
      $region48: #{_lambda_.14} parent=43 // pred_fallthru
        _
    $region44: #{_lambda_.14} parent=5 // pred_fallthru
      _
  $region6: #{_lambda_.14} parent=0 // loop_footer
    %s14 = sadd.s32 1, %s10
  $region7: #{_lambda_.14} parent=0 // loop_footer_branch
    %9 = sbr.rel target = $region3
  $region8: #{_lambda_.14} parent=0 // loop_exit
    _

// kernel: _lambda_.13
$region0: #{_lambda_.13}
  #allocation0 [shape = 'u32[]', space=smem, size = 0x4, offset = 0x4, fixed_abs, tag = 'smem constant byte address 0x4 - core index']
  #allocation1 [shape = 'u32[72,128]{1,0:T(1,128)}', space=vmem, size = 0x9000, scoped, tag = 'internal scratch']
  %s0 = inlined_call_operand.vmem [shape: bf16[2,120,32], index: 0, kind: input, shape index: {}]
  %s1 = inlined_call_operand.vmem [shape: bf16[288,64], index: 1, kind: input, shape index: {}]
  %s2 = inlined_call_operand.vmem [shape: f32[1,64], index: 2, kind: input, shape index: {}]
  %s3 = inlined_call_operand.vmem [shape: bf16[48,64], index: 3, kind: output, shape index: {}]
  %s4 = sld [smem:[#allocation0]]
  $region45: #{_lambda_.13} parent=0
    _
  %s6 = ssub.s32 1, %s4
  %s7 = scalar_select 0, %s6, %s4
  loop: start=0, step=1, limit=4
  $region2: #{_lambda_.13} parent=0 // loop_pre_header
    _
  $region3: #{_lambda_.13} parent=0 // loop_header
    %s9 = sphi 0, %s13
    %p10 = scmp.ge.s32.totalorder %s9, 4
    %s19 = sphi 0, %s21
    %s22 = sphi 0, %s19
    %s23 = sphi 0, %s22
    %s39 = sphi 0, %s23
    %s43 = sphi 0, %s43
    %s45 = sphi 0, %s43
    %s46 = sphi 0, %s45
    %s60 = sphi 0, %s46
    %s64 = sphi 0, %s64
    %s66 = sphi 0, %s64
    %s67 = sphi 0, %s66
    %s81 = sphi 0, %s67
    %s87 = sphi 0, %s89
    %s90 = sphi 0, %s87
    %s91 = sphi 0, %s90
    %s107 = sphi 0, %s91
  $region4: #{_lambda_.13} parent=0 // loop_header_branch
    %12 = sbr.rel (%p10) target = $region8
  $region5: #{_lambda_.13} parent=0 // loop_body
    %s14 = ssub.s32 %s9, 1
    %s15 = ssub.s32 %s9, 2
    %s16 = sadd.s32 %s9, 1
    %s17 = ssub.s32 %s9, %s16
    %p18 = scmp.eq.s32.totalorder %s17, 0
    %s20 = sadd.s32 %s19, 1
    %s21 = scalar_select %p18, %s19, %s20
    %p24 = pneg %p18
    %p25 = scmp.eq.s32.totalorder %s9, 1
    %p26 = por %p24, %p25
    %p27 = scmp.ne.s32.totalorder %s19, %s22
    %p28 = scmp.eq.s32.totalorder %s9, 0
    %p29 = por %p27, %p28
    %p30 = scmp.ne.s32.totalorder %s19, %s22
    %p31 = scmp.eq.s32.totalorder %s14, 1
    %p32 = por %p30, %p31
    %p33 = scmp.ne.s32.totalorder %s22, %s23
    %p34 = scmp.eq.s32.totalorder %s14, 0
    %p35 = por %p33, %p34
    %p36 = scmp.ne.s32.totalorder %s22, %s23
    %p37 = scmp.eq.s32.totalorder %s15, 1
    %p38 = por %p36, %p37
    %p40 = scmp.ne.s32.totalorder %s23, %s39
    %p41 = scmp.eq.s32.totalorder %s15, 0
    %p42 = por %p40, %p41
    %s44 = sadd.s32 %s43, 1
    %p47 = scmp.eq.s32.totalorder %s9, 1
    %p48 = scmp.ne.s32.totalorder %s43, %s45
    %p49 = scmp.eq.s32.totalorder %s9, 0
    %p50 = por %p48, %p49
    %p51 = scmp.ne.s32.totalorder %s43, %s45
    %p52 = scmp.eq.s32.totalorder %s14, 1
    %p53 = por %p51, %p52
    %p54 = scmp.ne.s32.totalorder %s45, %s46
    %p55 = scmp.eq.s32.totalorder %s14, 0
    %p56 = por %p54, %p55
    %p57 = scmp.ne.s32.totalorder %s45, %s46
    %p58 = scmp.eq.s32.totalorder %s15, 1
    %p59 = por %p57, %p58
    %p61 = scmp.ne.s32.totalorder %s46, %s60
    %p62 = scmp.eq.s32.totalorder %s15, 0
    %p63 = por %p61, %p62
    %s65 = sadd.s32 %s64, 1
    %p68 = scmp.eq.s32.totalorder %s9, 1
    %p69 = scmp.ne.s32.totalorder %s64, %s66
    %p70 = scmp.eq.s32.totalorder %s9, 0
    %p71 = por %p69, %p70
    %p72 = scmp.ne.s32.totalorder %s64, %s66
    %p73 = scmp.eq.s32.totalorder %s14, 1
    %p74 = por %p72, %p73
    %p75 = scmp.ne.s32.totalorder %s66, %s67
    %p76 = scmp.eq.s32.totalorder %s14, 0
    %p77 = por %p75, %p76
    %p78 = scmp.ne.s32.totalorder %s66, %s67
    %p79 = scmp.eq.s32.totalorder %s15, 1
    %p80 = por %p78, %p79
    %p82 = scmp.ne.s32.totalorder %s67, %s81
    %p83 = scmp.eq.s32.totalorder %s15, 0
    %p84 = por %p82, %p83
    %s85 = ssub.s32 %s9, %s16
    %p86 = scmp.eq.s32.totalorder %s85, 0
    %s88 = sadd.s32 %s87, 1
    %s89 = scalar_select %p86, %s87, %s88
    %p92 = pneg %p86
    %p93 = scmp.eq.s32.totalorder %s9, 1
    %p94 = por %p92, %p93
    %p95 = scmp.ne.s32.totalorder %s87, %s90
    %p96 = scmp.eq.s32.totalorder %s9, 0
    %p97 = por %p95, %p96
    %p98 = scmp.ne.s32.totalorder %s87, %s90
    %p99 = scmp.eq.s32.totalorder %s14, 1
    %p100 = por %p98, %p99
    %p101 = scmp.ne.s32.totalorder %s90, %s91
    %p102 = scmp.eq.s32.totalorder %s14, 0
    %p103 = por %p101, %p102
    %p104 = scmp.ne.s32.totalorder %s90, %s91
    %p105 = scmp.eq.s32.totalorder %s15, 1
    %p106 = por %p104, %p105
    %p108 = scmp.ne.s32.totalorder %s91, %s107
    %p109 = scmp.eq.s32.totalorder %s15, 0
    %p110 = por %p108, %p109
    %p111 = scmp.le.s32.totalorder 1, %s9
    %p112 = scmp.lt.s32.totalorder %s9, 3
    %p113 = pnand %p111, %p112
    %p114 = pneg %p113
    // Predicated region
    $region9: #{_lambda_.13} parent=5 // pred_check
      _
    $region10: #{_lambda_.13} parent=5 // pred_check_branch
      %116 = sbr.rel (%p113) target = $region12
    $region11: #{_lambda_.13} parent=5 // pred_region
      %s117 = ssub.s32 %s9, 1
      // Predicated region
      $region13: #{_lambda_.13} parent=11 // pred_check
        %p118 = pneg %p56
      $region14: #{_lambda_.13} parent=11 // pred_check_branch
        %120 = sbr.rel (%p118) target = $region16
      $region15: #{_lambda_.13} parent=11 // pred_region
        _
      $region16: #{_lambda_.13} parent=11 // pred_fallthru
        _
      // Predicated region
      $region17: #{_lambda_.13} parent=11 // pred_check
        %p121 = pneg %p77
      $region18: #{_lambda_.13} parent=11 // pred_check_branch
        %123 = sbr.rel (%p121) target = $region20
      $region19: #{_lambda_.13} parent=11 // pred_region
        _
      $region20: #{_lambda_.13} parent=11 // pred_fallthru
        _
    $region12: #{_lambda_.13} parent=5 // pred_fallthru
      _
    %p124 = scmp.lt.s32.totalorder %s9, 2
    // Predicated region
    $region21: #{_lambda_.13} parent=5 // pred_check
      %p125 = pneg %p124
    $region22: #{_lambda_.13} parent=5 // pred_check_branch
      %127 = sbr.rel (%p125) target = $region24
    $region23: #{_lambda_.13} parent=5 // pred_region
      // Predicated region
      $region25: #{_lambda_.13} parent=23 // pred_check
        %p128 = pneg %p29
      $region26: #{_lambda_.13} parent=23 // pred_check_branch
        %130 = sbr.rel (%p128) target = $region28
      $region27: #{_lambda_.13} parent=23 // pred_region
        %p131 = scmp.lt.s32.totalorder %s9, 1
        %s132 = scalar_select %p131, %s9, 1
        %s133 = smul.addr %s132, 15
        %s134 = smul.addr %s133, 4
        %s135 = scalar_lea.vmem %s0, %s134
      $region28: #{_lambda_.13} parent=23 // pred_fallthru
        _
    $region24: #{_lambda_.13} parent=5 // pred_fallthru
      _
    %p136 = scmp.le.s32.totalorder 1, %s9
    %p137 = scmp.lt.s32.totalorder %s9, 3
    %p138 = pnand %p136, %p137
    %p139 = pneg %p138
    // Predicated region
    $region29: #{_lambda_.13} parent=5 // pred_check
      _
    $region30: #{_lambda_.13} parent=5 // pred_check_branch
      %141 = sbr.rel (%p138) target = $region32
    $region31: #{_lambda_.13} parent=5 // pred_region
      %s142 = ssub.s32 %s9, 1
      %p143 = scmp.lt.s32.totalorder %s14, 1
      %s144 = scalar_select %p143, %s14, 1
      %s145 = smul.addr %s144, 15
      %s146 = smul.addr %s145, 4
      %s147 = scalar_lea.vmem %s0, %s146
      %p148 = pneg %p35
      %p149 = pneg %p32
      %p150 = pneg %p56
      %p151 = pneg %p53
      %p152 = pneg %p77
      %p153 = pneg %p74
      %p154 = pneg %p103
      %p155 = pneg %p100
      %s156 = smul.u32 3, %s14
      %p157 = scmp.lt.s32.totalorder %s156, 5
      %s158 = scalar_select %p157, %s156, 5
      %s159 = smul.addr %s158, 4
      %s160 = scalar_lea.vmem %s3, %s159
      %p161 = scmp.lt.s32.totalorder %s14, 1
      %s162 = scalar_select %p161, %s14, 1
      %s163 = smul.addr %s162, 15
      %s164 = smul.addr %s163, 4
      %s165 = scalar_lea.vmem %s0, %s164
      %s166 = smul.u32 3, %s14
      %p167 = scmp.lt.s32.totalorder %s166, 5
      %s168 = scalar_select %p167, %s166, 5
      %s169 = smul.addr %s168, 4
      %s170 = scalar_lea.vmem %s3, %s169
      %s171 = smul.u32 3, %s14
      %v173 = vld [vmem:[%s165] sm:$0xf]
      %v174 = vld [vmem:[%s165 + $0x4] sm:$0xf]
      %v175 = vld [vmem:[%s165 + $0x8] sm:$0xf]
      %v176 = vld [vmem:[%s1] sm:$0xf]
      %v177 = vld [vmem:[%s1 + $0x4] sm:$0xf]
      %v178 = vld [vmem:[%s1 + $0x8] sm:$0xf]
      %v179 = vld [vmem:[%s1 + $0xc] sm:$0xf]
      %v180 = vld [vmem:[%s165 + $0xc] sm:$0x8]
      %v181 = vld [vmem:[%s165 + $0x10] sm:$0xf]
      %v182 = vld [vmem:[%s165 + $0x14] sm:$0xf]
      %v183 = vld [vmem:[%s165 + $0x18] sm:$0x7]
      %v184 = vld [vmem:[%s1 + $0x10] sm:$0xf]
      %v185 = vld [vmem:[%s1 + $0x14] sm:$0xf]
      %v186 = vld [vmem:[%s1 + $0x18] sm:$0xf]
      %v187 = vld [vmem:[%s1 + $0x1c] sm:$0xf]
      %v192 = vunpack.c.l.b16 %v180
      %v193 = vunpack.c.l.b16 %v181
      %v194 = vunpack.c.l.b16 %v182
      %v195 = vunpack.c.l.b16 %v183
      %v196 = vpack.c.b16 %v193, %v192
      %v197 = vpack.c.b16 %v195, %v194
      %vm198 = vcmask 1044480
      %v199 = vrot.slane %v196, 3
      %v200 = vrot.slane %v197, 3
      %v201 = vsel %vm198, %v199, %v200
      %v206 = vunpack.c.l.b16 %v184
      %v207 = vunpack.c.l.b16 %v185
      %v208 = vunpack.c.l.b16 %v186
      %v209 = vunpack.c.l.b16 %v187
      %v210 = vpack.c.b16 %v207, %v206
      %v211 = vpack.c.b16 %v209, %v208
      %vm214 = vcmask 261120
      %v216 = vsel %vm214, %v201, 0
      %v219 = vsel %vm214, %v200, 0
      %221 = vmatpush.bf16.msra.mxu0 0
      %222 = vmatpush.bf16.msra.mxu0 0
      %223 = vmatpush.bf16.msra.mxu0 0
      %224 = vmatpush.bf16.msra.mxu0 0
      %225 = vmatpush.bf16.msra.mxu0 0
      %226 = vmatpush.bf16.msra.mxu0 0
      %227 = vmatpush.bf16.msra.mxu0 %v211
      %228 = vmatpush.bf16.msra.mxu0 %v210
      %229 = vmatmul.bf16.gmra.mxu0 %v216
      %v230 = vpop.f32.mrf.mxu0
      %v231 = vadd.f32 0.0, %v230
      %v232 = vpop.f32.mrf.mxu0
      %v233 = vadd.f32 0.0, %v232
      %234 = vmatmul.bf16.gmra.mxu0 %v219
      %v235 = vpop.f32.mrf.mxu0
      %v236 = vadd.f32 0.0, %v235
      %v237 = vpop.f32.mrf.mxu0
      %238 = vdwg.mxu0
      %v242 = vunpack.c.l.b16 %v173
      %v243 = vunpack.c.l.b16 %v174
      %v244 = vunpack.c.l.b16 %v175
      %v245 = vpack.c.b16 %v243, %v242
      %v246 = vpack.c.b16 %v244, %v244
      %v251 = vunpack.c.l.b16 %v176
      %v252 = vunpack.c.l.b16 %v177
      %v253 = vunpack.c.l.b16 %v178
      %v254 = vunpack.c.l.b16 %v179
      %v255 = vpack.c.b16 %v252, %v251
      %v256 = vpack.c.b16 %v254, %v253
      %v260 = vsel %vm214, %v245, 0
      %v263 = vsel %vm214, %v246, 0
      %265 = vmatpush.bf16.msra.mxu0 0
      %266 = vmatpush.bf16.msra.mxu0 0
      %267 = vmatpush.bf16.msra.mxu0 0
      %268 = vmatpush.bf16.msra.mxu0 0
      %269 = vmatpush.bf16.msra.mxu0 0
      %270 = vmatpush.bf16.msra.mxu0 0
      %271 = vmatpush.bf16.msra.mxu0 %v256
      %272 = vmatpush.bf16.msra.mxu0 %v255
      %273 = vmatmul.bf16.gmra.mxu0 %v260
      %v274 = vpop.f32.mrf.mxu0
      %v275 = vadd.f32 %v231, %v274
      %v276 = vpop.f32.mrf.mxu0
      %v277 = vadd.f32 %v233, %v276
      %278 = vmatmul.bf16.gmra.mxu0 %v263
      %v279 = vpop.f32.mrf.mxu0
      %v280 = vadd.f32 %v236, %v279
      %v281 = vpop.f32.mrf.mxu0
      %282 = vdwg.mxu0
      %v283 = vld [vmem:[%s165] sm:$0xf]
      %v284 = vld [vmem:[%s165 + $0x4] sm:$0xf]
      %v285 = vld [vmem:[%s165 + $0x8] sm:$0xf]
      %v286 = vld [vmem:[%s165 + $0xc] sm:$0x1]
      %v287 = vld [vmem:[%s1 + $0x20] sm:$0xf]
      %v288 = vld [vmem:[%s1 + $0x24] sm:$0xf]
      %v289 = vld [vmem:[%s1 + $0x28] sm:$0xf]
      %v290 = vld [vmem:[%s1 + $0x2c] sm:$0xf]
      %v295 = vunpack.c.l.b16 %v283
      %v296 = vunpack.c.l.b16 %v284
      %v297 = vunpack.c.l.b16 %v285
      %v298 = vunpack.c.l.b16 %v286
      %v299 = vpack.c.b16 %v296, %v295
      %v300 = vpack.c.b16 %v298, %v297
      %vm301 = vsmask.f32 7424
      %v303 = vshrl.u32 %v299, 16
      %v305 = vshll.u32 %v299, 16
      %v307 = vrot.slane %v305, 1
      %v308 = vor.u32 %v303, %v307
      %v310 = vshll.u32 %v300, 16
      %v312 = vrot.slane %v310, 1
      %v313 = vsel %vm301, %v308, %v312
      %v314 = vshrl.u32 %v300, 16
      %v316 = vor.u32 %v314, %v312
      %v321 = vunpack.c.l.b16 %v287
      %v322 = vunpack.c.l.b16 %v288
      %v323 = vunpack.c.l.b16 %v289
      %v324 = vunpack.c.l.b16 %v290
      %v325 = vpack.c.b16 %v322, %v321
      %v326 = vpack.c.b16 %v324, %v323
      %v330 = vsel %vm214, %v313, 0
      %v333 = vsel %vm214, %v316, 0
      %335 = vmatpush.bf16.msra.mxu0 0
      %336 = vmatpush.bf16.msra.mxu0 0
      %337 = vmatpush.bf16.msra.mxu0 0
      %338 = vmatpush.bf16.msra.mxu0 0
      %339 = vmatpush.bf16.msra.mxu0 0
      %340 = vmatpush.bf16.msra.mxu0 0
      %341 = vmatpush.bf16.msra.mxu0 %v326
      %342 = vmatpush.bf16.msra.mxu0 %v325
      %343 = vmatmul.bf16.gmra.mxu0 %v330
      %v344 = vpop.f32.mrf.mxu0
      %v345 = vadd.f32 0.0, %v344
      %v346 = vpop.f32.mrf.mxu0
      %v347 = vadd.f32 0.0, %v346
      %348 = vmatmul.bf16.gmra.mxu0 %v333
      %v349 = vpop.f32.mrf.mxu0
      %v350 = vadd.f32 0.0, %v349
      %v351 = vpop.f32.mrf.mxu0
      %352 = vdwg.mxu0
      %v353 = vadd.f32 %v275, %v345
      %v354 = vadd.f32 %v277, %v347
      %v355 = vadd.f32 %v280, %v350
      %v356 = vld [vmem:[%s165 + $0x1c] sm:$0xc]
      %v357 = vld [vmem:[%s165 + $0x20] sm:$0xf]
      %v358 = vld [vmem:[%s165 + $0x24] sm:$0xf]
      %v359 = vld [vmem:[%s165 + $0x28] sm:$0x3]
      %v360 = vld [vmem:[%s1 + $0x30] sm:$0xf]
      %v361 = vld [vmem:[%s1 + $0x34] sm:$0xf]
      %v362 = vld [vmem:[%s1 + $0x38] sm:$0xf]
      %v363 = vld [vmem:[%s1 + $0x3c] sm:$0xf]
      %v368 = vunpack.c.l.b16 %v356
      %v369 = vunpack.c.l.b16 %v357
      %v370 = vunpack.c.l.b16 %v358
      %v371 = vunpack.c.l.b16 %v359
      %v372 = vpack.c.b16 %v369, %v368
      %v373 = vpack.c.b16 %v371, %v370
      %vm374 = vcmask 1045504
      %v375 = vrot.slane %v372, 2
      %v376 = vrot.slane %v373, 2
      %v377 = vsel %vm374, %v375, %v376
      %v382 = vunpack.c.l.b16 %v360
      %v383 = vunpack.c.l.b16 %v361
      %v384 = vunpack.c.l.b16 %v362
      %v385 = vunpack.c.l.b16 %v363
      %v386 = vpack.c.b16 %v383, %v382
      %v387 = vpack.c.b16 %v385, %v384
      %v391 = vsel %vm214, %v377, 0
      %v394 = vsel %vm214, %v376, 0
      %396 = vmatpush.bf16.msra.mxu0 0
      %397 = vmatpush.bf16.msra.mxu0 0
      %398 = vmatpush.bf16.msra.mxu0 0
      %399 = vmatpush.bf16.msra.mxu0 0
      %400 = vmatpush.bf16.msra.mxu0 0
      %401 = vmatpush.bf16.msra.mxu0 0
      %402 = vmatpush.bf16.msra.mxu0 %v387
      %403 = vmatpush.bf16.msra.mxu0 %v386
      %404 = vmatmul.bf16.gmra.mxu0 %v391
      %v405 = vpop.f32.mrf.mxu0
      %v406 = vadd.f32 0.0, %v405
      %v407 = vpop.f32.mrf.mxu0
      %v408 = vadd.f32 0.0, %v407
      %409 = vmatmul.bf16.gmra.mxu0 %v394
      %v410 = vpop.f32.mrf.mxu0
      %v411 = vadd.f32 0.0, %v410
      %v412 = vpop.f32.mrf.mxu0
      %413 = vdwg.mxu0
      %v414 = vadd.f32 %v353, %v406
      %v415 = vadd.f32 %v354, %v408
      %v416 = vadd.f32 %v355, %v411
      %v417 = vld [vmem:[%s165 + $0x2c] sm:$0xe]
      %v418 = vld [vmem:[%s165 + $0x30] sm:$0xf]
      %v419 = vld [vmem:[%s165 + $0x34] sm:$0xf]
      %v420 = vld [vmem:[%s165 + $0x38] sm:$0x1]
      %v421 = vld [vmem:[%s1 + $0x40] sm:$0xf]
      %v422 = vld [vmem:[%s1 + $0x44] sm:$0xf]
      %v423 = vld [vmem:[%s1 + $0x48] sm:$0xf]
      %v424 = vld [vmem:[%s1 + $0x4c] sm:$0xf]
      %v429 = vunpack.c.l.b16 %v417
      %v430 = vunpack.c.l.b16 %v418
      %v431 = vunpack.c.l.b16 %v419
      %v432 = vunpack.c.l.b16 %v420
      %v433 = vpack.c.b16 %v430, %v429
      %v434 = vpack.c.b16 %v432, %v431
      %vm435 = vcmask 1046528
      %v436 = vrot.slane %v433, 1
      %v437 = vrot.slane %v434, 1
      %v438 = vsel %vm435, %v436, %v437
      %v443 = vunpack.c.l.b16 %v421
      %v444 = vunpack.c.l.b16 %v422
      %v445 = vunpack.c.l.b16 %v423
      %v446 = vunpack.c.l.b16 %v424
      %v447 = vpack.c.b16 %v444, %v443
      %v448 = vpack.c.b16 %v446, %v445
      %v452 = vsel %vm214, %v438, 0
      %v455 = vsel %vm214, %v437, 0
      %457 = vmatpush.bf16.msra.mxu0 0
      %458 = vmatpush.bf16.msra.mxu0 0
      %459 = vmatpush.bf16.msra.mxu0 0
      %460 = vmatpush.bf16.msra.mxu0 0
      %461 = vmatpush.bf16.msra.mxu0 0
      %462 = vmatpush.bf16.msra.mxu0 0
      %463 = vmatpush.bf16.msra.mxu0 %v448
      %464 = vmatpush.bf16.msra.mxu0 %v447
      %465 = vmatmul.bf16.gmra.mxu0 %v452
      %v466 = vpop.f32.mrf.mxu0
      %v467 = vadd.f32 0.0, %v466
      %v468 = vpop.f32.mrf.mxu0
      %v469 = vadd.f32 0.0, %v468
      %470 = vmatmul.bf16.gmra.mxu0 %v455
      %v471 = vpop.f32.mrf.mxu0
      %v472 = vadd.f32 0.0, %v471
      %v473 = vpop.f32.mrf.mxu0
      %474 = vdwg.mxu0
      %v475 = vadd.f32 %v414, %v467
      %v476 = vadd.f32 %v415, %v469
      %v477 = vadd.f32 %v416, %v472
      %v478 = vld [vmem:[%s165 + $0x28] sm:$0x7]
      %v479 = vld [vmem:[%s1 + $0x50] sm:$0xf]
      %v480 = vld [vmem:[%s1 + $0x54] sm:$0xf]
      %v481 = vld [vmem:[%s1 + $0x58] sm:$0xf]
      %v482 = vld [vmem:[%s1 + $0x5c] sm:$0xf]
      %v484 = vunpack.c.l.b16 %v478
      %v485 = vpack.c.b16 %v484, %v370
      %vm486 = vsmask.f32 5376
      %v488 = vshrl.u32 %v372, 16
      %v490 = vrot.slane %v488, 2
      %v491 = vshll.u32 %v372, 16
      %v493 = vrot.slane %v491, 3
      %v494 = vor.u32 %v490, %v493
      %v496 = vshrl.u32 %v485, 16
      %v498 = vrot.slane %v496, 2
      %v499 = vshll.u32 %v485, 16
      %v501 = vrot.slane %v499, 3
      %v502 = vor.u32 %v498, %v501
      %v503 = vsel %vm486, %v494, %v502
      %v508 = vunpack.c.l.b16 %v479
      %v509 = vunpack.c.l.b16 %v480
      %v510 = vunpack.c.l.b16 %v481
      %v511 = vunpack.c.l.b16 %v482
      %v512 = vpack.c.b16 %v509, %v508
      %v513 = vpack.c.b16 %v511, %v510
      %v517 = vsel %vm214, %v503, 0
      %v520 = vsel %vm214, %v502, 0
      %522 = vmatpush.bf16.msra.mxu0 0
      %523 = vmatpush.bf16.msra.mxu0 0
      %524 = vmatpush.bf16.msra.mxu0 0
      %525 = vmatpush.bf16.msra.mxu0 0
      %526 = vmatpush.bf16.msra.mxu0 0
      %527 = vmatpush.bf16.msra.mxu0 0
      %528 = vmatpush.bf16.msra.mxu0 %v513
      %529 = vmatpush.bf16.msra.mxu0 %v512
      %530 = vmatmul.bf16.gmra.mxu0 %v517
      %v531 = vpop.f32.mrf.mxu0
      %v532 = vadd.f32 0.0, %v531
      %v533 = vpop.f32.mrf.mxu0
      %v534 = vadd.f32 0.0, %v533
      %535 = vmatmul.bf16.gmra.mxu0 %v520
      %v536 = vpop.f32.mrf.mxu0
      %v537 = vadd.f32 0.0, %v536
      %v538 = vpop.f32.mrf.mxu0
      %539 = vdwg.mxu0
      %v540 = vadd.f32 %v475, %v532
      %v541 = vadd.f32 %v476, %v534
      %v542 = vadd.f32 %v477, %v537
      %v543 = vld [vmem:[%s165] sm:$0xc]
      %v544 = vld [vmem:[%s165 + $0xc] sm:$0x7]
      %v545 = vld [vmem:[%s1 + $0x60] sm:$0xf]
      %v546 = vld [vmem:[%s1 + $0x64] sm:$0xf]
      %v547 = vld [vmem:[%s1 + $0x68] sm:$0xf]
      %v548 = vld [vmem:[%s1 + $0x6c] sm:$0xf]
      %v551 = vunpack.c.l.b16 %v543
      %v552 = vunpack.c.l.b16 %v544
      %v553 = vpack.c.b16 %v296, %v551
      %v554 = vpack.c.b16 %v552, %v297
      %v556 = vshrl.u32 %v553, 16
      %v558 = vrot.slane %v556, 2
      %v559 = vshll.u32 %v553, 16
      %v561 = vrot.slane %v559, 3
      %v562 = vor.u32 %v558, %v561
      %v564 = vshrl.u32 %v554, 16
      %v566 = vrot.slane %v564, 2
      %v567 = vshll.u32 %v554, 16
      %v569 = vrot.slane %v567, 3
      %v570 = vor.u32 %v566, %v569
      %v571 = vsel %vm486, %v562, %v570
      %v576 = vunpack.c.l.b16 %v545
      %v577 = vunpack.c.l.b16 %v546
      %v578 = vunpack.c.l.b16 %v547
      %v579 = vunpack.c.l.b16 %v548
      %v580 = vpack.c.b16 %v577, %v576
      %v581 = vpack.c.b16 %v579, %v578
      %v585 = vsel %vm214, %v571, 0
      %v588 = vsel %vm214, %v570, 0
      %590 = vmatpush.bf16.msra.mxu0 0
      %591 = vmatpush.bf16.msra.mxu0 0
      %592 = vmatpush.bf16.msra.mxu0 0
      %593 = vmatpush.bf16.msra.mxu0 0
      %594 = vmatpush.bf16.msra.mxu0 0
      %595 = vmatpush.bf16.msra.mxu0 0
      %596 = vmatpush.bf16.msra.mxu0 %v581
      %597 = vmatpush.bf16.msra.mxu0 %v580
      %598 = vmatmul.bf16.gmra.mxu0 %v585
      %v599 = vpop.f32.mrf.mxu0
      %v600 = vadd.f32 0.0, %v599
      %v601 = vpop.f32.mrf.mxu0
      %v602 = vadd.f32 0.0, %v601
      %603 = vmatmul.bf16.gmra.mxu0 %v588
      %v604 = vpop.f32.mrf.mxu0
      %v605 = vadd.f32 0.0, %v604
      %v606 = vpop.f32.mrf.mxu0
      %607 = vdwg.mxu0
      %v608 = vadd.f32 %v540, %v600
      %v609 = vadd.f32 %v541, %v602
      %v610 = vadd.f32 %v542, %v605
      %v611 = vld [vmem:[%s165 + $0x10] sm:$0xe]
      %v612 = vld [vmem:[%s165 + $0x14] sm:$0xf]
      %v613 = vld [vmem:[%s165 + $0x18] sm:$0xf]
      %v614 = vld [vmem:[%s165 + $0x1c] sm:$0x3]
      %v615 = vld [vmem:[%s1 + $0x70] sm:$0xf]
      %v616 = vld [vmem:[%s1 + $0x74] sm:$0xf]
      %v617 = vld [vmem:[%s1 + $0x78] sm:$0xf]
      %v618 = vld [vmem:[%s1 + $0x7c] sm:$0xf]
      %v623 = vunpack.c.l.b16 %v611
      %v624 = vunpack.c.l.b16 %v612
      %v625 = vunpack.c.l.b16 %v613
      %v626 = vunpack.c.l.b16 %v614
      %v627 = vpack.c.b16 %v624, %v623
      %v628 = vpack.c.b16 %v626, %v625
      %vm629 = vsmask.f32 6400
      %v631 = vshrl.u32 %v627, 16
      %v633 = vrot.slane %v631, 1
      %v634 = vshll.u32 %v627, 16
      %v636 = vrot.slane %v634, 2
      %v637 = vor.u32 %v633, %v636
      %v639 = vshrl.u32 %v628, 16
      %v641 = vrot.slane %v639, 1
      %v642 = vshll.u32 %v628, 16
      %v644 = vrot.slane %v642, 2
      %v645 = vor.u32 %v641, %v644
      %v646 = vsel %vm629, %v637, %v645
      %v651 = vunpack.c.l.b16 %v615
      %v652 = vunpack.c.l.b16 %v616
      %v653 = vunpack.c.l.b16 %v617
      %v654 = vunpack.c.l.b16 %v618
      %v655 = vpack.c.b16 %v652, %v651
      %v656 = vpack.c.b16 %v654, %v653
      %v660 = vsel %vm214, %v646, 0
      %v663 = vsel %vm214, %v645, 0
      %665 = vmatpush.bf16.msra.mxu0 0
      %666 = vmatpush.bf16.msra.mxu0 0
      %667 = vmatpush.bf16.msra.mxu0 0
      %668 = vmatpush.bf16.msra.mxu0 0
      %669 = vmatpush.bf16.msra.mxu0 0
      %670 = vmatpush.bf16.msra.mxu0 0
      %671 = vmatpush.bf16.msra.mxu0 %v656
      %672 = vmatpush.bf16.msra.mxu0 %v655
      %673 = vmatmul.bf16.gmra.mxu0 %v660
      %v674 = vpop.f32.mrf.mxu0
      %v675 = vadd.f32 0.0, %v674
      %v676 = vpop.f32.mrf.mxu0
      %v677 = vadd.f32 0.0, %v676
      %678 = vmatmul.bf16.gmra.mxu0 %v663
      %v679 = vpop.f32.mrf.mxu0
      %v680 = vadd.f32 0.0, %v679
      %v681 = vpop.f32.mrf.mxu0
      %682 = vdwg.mxu0
      %v683 = vadd.f32 %v608, %v675
      %v684 = vadd.f32 %v609, %v677
      %v685 = vadd.f32 %v610, %v680
      %v686 = vld [vmem:[%s165] sm:$0x8]
      %v687 = vld [vmem:[%s1 + $0x80] sm:$0xf]
      %v688 = vld [vmem:[%s1 + $0x84] sm:$0xf]
      %v689 = vld [vmem:[%s1 + $0x88] sm:$0xf]
      %v690 = vld [vmem:[%s1 + $0x8c] sm:$0xf]
      %v692 = vunpack.c.l.b16 %v686
      %v693 = vpack.c.b16 %v296, %v692
      %v694 = vrot.slane %v693, 3
      %v695 = vrot.slane %v554, 3
      %v696 = vsel %vm198, %v694, %v695
      %v701 = vunpack.c.l.b16 %v687
      %v702 = vunpack.c.l.b16 %v688
      %v703 = vunpack.c.l.b16 %v689
      %v704 = vunpack.c.l.b16 %v690
      %v705 = vpack.c.b16 %v702, %v701
      %v706 = vpack.c.b16 %v704, %v703
      %v710 = vsel %vm214, %v696, 0
      %v713 = vsel %vm214, %v695, 0
      %715 = vmatpush.bf16.msra.mxu0 0
      %716 = vmatpush.bf16.msra.mxu0 0
      %717 = vmatpush.bf16.msra.mxu0 0
      %718 = vmatpush.bf16.msra.mxu0 0
      %719 = vmatpush.bf16.msra.mxu0 0
      %720 = vmatpush.bf16.msra.mxu0 0
      %721 = vmatpush.bf16.msra.mxu0 %v706
      %722 = vmatpush.bf16.msra.mxu0 %v705
      %723 = vmatmul.bf16.gmra.mxu0 %v710
      %v724 = vpop.f32.mrf.mxu0
      %v725 = vadd.f32 0.0, %v724
      %v726 = vpop.f32.mrf.mxu0
      %v727 = vadd.f32 0.0, %v726
      %728 = vmatmul.bf16.gmra.mxu0 %v713
      %v729 = vpop.f32.mrf.mxu0
      %v730 = vadd.f32 0.0, %v729
      %v731 = vpop.f32.mrf.mxu0
      %732 = vdwg.mxu0
      %v733 = vadd.f32 %v683, %v725
      %v734 = vadd.f32 %v684, %v727
      %v735 = vadd.f32 %v685, %v730
      %v736 = vld [vmem:[%s2] sm:$0x1]
      %v738 = vperm.slane %v736, 0
      %v740 = vadd.f32 %v733, %v738
      %v741 = vadd.f32 %v734, %v738
      %v742 = vadd.f32 %v735, %v738
      %v743 = vmax.f32 %v740, 0.0
      %v744 = vmax.f32 %v741, 0.0
      %v745 = vmax.f32 %v742, 0.0
      %v746 = vpack.c.bf16 %v743, %v743
      %v747 = vpack.c.bf16 %v744, %v744
      %v748 = vpack.c.bf16 %v745, %v745
      %vm749 = vcmask 519168
      %750 = vst.msk [vmem:[%s170] sm:$0xf] %vm749, %v746
      %751 = vst.msk [vmem:[%s170 + $0x4] sm:$0xf] %vm749, %v747
      %752 = vst.msk [vmem:[%s170 + $0x8] sm:$0xf] %vm749, %v748
      %s753 = smul.u32 3, %s14
      %p754 = scmp.lt.s32.totalorder %s753, 5
      %s755 = scalar_select %p754, %s753, 5
      %s756 = smul.addr %s755, 4
      %s757 = scalar_lea.vmem %s3, %s756
      // Predicated region
      $region33: #{_lambda_.13} parent=31 // pred_check
        %p758 = pneg %p100
      $region34: #{_lambda_.13} parent=31 // pred_check_branch
        %760 = sbr.rel (%p758) target = $region36
      $region35: #{_lambda_.13} parent=31 // pred_region
        %s761 = smul.u32 3, %s14
      $region36: #{_lambda_.13} parent=31 // pred_fallthru
        _
    $region32: #{_lambda_.13} parent=5 // pred_fallthru
      _
    %p762 = scmp.le.s32.totalorder 2, %s9
    // Predicated region
    $region37: #{_lambda_.13} parent=5 // pred_check
      %p763 = pneg %p762
    $region38: #{_lambda_.13} parent=5 // pred_check_branch
      %765 = sbr.rel (%p763) target = $region40
    $region39: #{_lambda_.13} parent=5 // pred_region
      %s766 = ssub.s32 %s9, 2
      // Predicated region
      $region41: #{_lambda_.13} parent=39 // pred_check
        %p767 = pneg %p106
      $region42: #{_lambda_.13} parent=39 // pred_check_branch
        %769 = sbr.rel (%p767) target = $region44
      $region43: #{_lambda_.13} parent=39 // pred_region
        %s770 = smul.u32 3, %s15
        %p771 = scmp.lt.s32.totalorder %s770, 5
        %s772 = scalar_select %p771, %s770, 5
        %s773 = smul.addr %s772, 4
        %s774 = scalar_lea.vmem %s3, %s773
      $region44: #{_lambda_.13} parent=39 // pred_fallthru
        _
    $region40: #{_lambda_.13} parent=5 // pred_fallthru
      _
  $region6: #{_lambda_.13} parent=0 // loop_footer
    %s13 = sadd.s32 1, %s9
  $region7: #{_lambda_.13} parent=0 // loop_footer_branch
    %8 = sbr.rel target = $region3
  $region8: #{_lambda_.13} parent=0 // loop_exit
    _

</llo_original>
